<compile_context>
chip_gen: v5e
topology: v5e:2x2
jax: 0.10.0
libtpu: 0.0.40
codegen_flags: <defaults>
</compile_context>

<pallas_src>
import functools

import jax
import jax.numpy as jnp
import numpy as np
from jax import lax
from jax.experimental import pallas as pl
from jax.experimental.pallas import tpu as pltpu

_VMEM_LIMIT = 32 * 1024 * 1024   # far above what we use; safe on v5e/v6e/v7x
_COL0 = 8                        # interior column start in the padded scratch
                                 # (f32 sublane-aligned -> all stores aligned)


def _round_up(v, m):
    return (v + m - 1) // m * m


# ----------------------------------------------------------------------------
# Fused Pallas kernel: one grid step == one batch element, fully in VMEM
# ----------------------------------------------------------------------------
def _block35_kernel(H, W, x_ref, w_in_ref, b_in_ref, w3_ref, b3_ref,
                    wf_ref, bf_ref, o_ref, pad_ref):
    # x_ref : (1, H*W, 256) f32      input tile (also the residual)
    # w_in  : (3, 256, 32) bf16      branch0 / branch1[0] / branch2[0] 1x1 (BN folded)
    # b_in  : (3, 1, 32)   f32
    # w3    : (3, 9, 32, 32) bf16    b1_1 / b2_1 / b2_2 3x3 taps (BN folded)
    # b3    : (3, 1, 32)   f32
    # wf    : (3, 32, 256) bf16      final 1x1 split per branch (block scale folded)
    # bf    : (1, 256)     f32       final bias (block scale folded)
    # o_ref : (1, H*W, 256) f32      output tile (used as the accumulator)
    # pad   : (H+2, Wbuf, 32) f32    zero-gutter scratch for the 3x3 convs
    HW = H * W
    c0 = _COL0

    def conv1x1(stage):
        xb = x_ref[0].astype(jnp.bfloat16)
        y = jnp.dot(xb, w_in_ref[stage], preferred_element_type=jnp.float32)
        return jnp.maximum(y + b_in_ref[stage], 0.0)            # (HW, 32) f32

    def write_interior(y_flat):
        # store (HW,32) into the zero-gutter scratch; column start is aligned.
        pad_ref[1:H + 1, c0:c0 + W, :] = y_flat.reshape(H, W, 32)

    def conv3x3(stage):
        # 3x3 conv, padding=1: 9 shifted (HW,32)x(32,32) dots, f32 accumulation.
        acc = jnp.zeros((HW, 32), jnp.float32)
        for dh in range(3):
            for dw in range(3):
                cs = c0 - 1 + dw
                patch = pad_ref[dh:dh + H, cs:cs + W, :]         # (H, W, 32)
                acc = acc + jnp.dot(
                    patch.reshape(HW, 32).astype(jnp.bfloat16),
                    w3_ref[stage, dh * 3 + dw],
                    preferred_element_type=jnp.float32)
        return jnp.maximum(acc + b3_ref[stage], 0.0)             # (HW, 32) f32

    # residual + (scale-folded) final bias, accumulated in the output block
    o_ref[0] = x_ref[0] + bf_ref[...]

    # zero the gutters once; the interior is fully overwritten before every conv
    pad_ref[...] = jnp.zeros_like(pad_ref)

    # branch0: 1x1
    y0 = conv1x1(0)
    o_ref[0] = o_ref[0] + jnp.dot(y0.astype(jnp.bfloat16), wf_ref[0],
                                  preferred_element_type=jnp.float32)

    # branch1: 1x1 -> 3x3(p=1)
    write_interior(conv1x1(1))
    y1 = conv3x3(0)
    o_ref[0] = o_ref[0] + jnp.dot(y1.astype(jnp.bfloat16), wf_ref[1],
                                  preferred_element_type=jnp.float32)

    # branch2: 1x1 -> 3x3(p=1) -> 3x3(p=1)
    write_interior(conv1x1(2))
    write_interior(conv3x3(1))
    y2 = conv3x3(2)
    o_ref[0] = o_ref[0] + jnp.dot(y2.astype(jnp.bfloat16), wf_ref[2],
                                  preferred_element_type=jnp.float32)

    # final ReLU
    o_ref[0] = jnp.maximum(o_ref[0], 0.0)


def _block35_pallas(xf, p, H, W):
    """xf: (N, H*W, 256) f32 -> (N, H*W, 256) f32."""
    N, HW, C = xf.shape
    assert C == 256 and HW == H * W
    assert W % 8 == 0, "W must be sublane-aligned for the in-kernel reshape"
    wbuf = _round_up(_COL0 + W + 1, 8)                # zero gutter on both sides
    kern = functools.partial(_block35_kernel, H, W)
    return pl.pallas_call(
        kern,
        out_shape=jax.ShapeDtypeStruct((N, HW, 256), jnp.float32),
        grid=(N,),
        in_specs=[
            pl.BlockSpec((1, HW, 256), lambda n: (n, 0, 0)),
            pl.BlockSpec((3, 256, 32), lambda n: (0, 0, 0)),
            pl.BlockSpec((3, 1, 32), lambda n: (0, 0, 0)),
            pl.BlockSpec((3, 9, 32, 32), lambda n: (0, 0, 0, 0)),
            pl.BlockSpec((3, 1, 32), lambda n: (0, 0, 0)),
            pl.BlockSpec((3, 32, 256), lambda n: (0, 0, 0)),
            pl.BlockSpec((1, 256), lambda n: (0, 0)),
        ],
        out_specs=pl.BlockSpec((1, HW, 256), lambda n: (n, 0, 0)),
        scratch_shapes=[pltpu.VMEM((H + 2, wbuf, 32), jnp.float32)],
        compiler_params=pltpu.CompilerParams(
            dimension_semantics=("parallel",),
            vmem_limit_bytes=_VMEM_LIMIT),
    )(xf, p["w_in"], p["b_in"], p["w3"], p["b3"], p["wf"], p["bf"])


# ----------------------------------------------------------------------------
# Parameter init (raw, PyTorch-equivalent) and kernel-side folding
# ----------------------------------------------------------------------------
def init_convplus(key, cin, cout, k, eps=1e-3):
    k1, k2, k3, k4, k5 = jax.random.split(key, 5)
    w = jax.random.normal(k1, (k, k, cin, cout), jnp.float32) * 0.05   # HWIO
    gamma = jax.random.uniform(k2, (cout,), jnp.float32, 0.5, 1.5)
    beta = jax.random.normal(k3, (cout,), jnp.float32) * 0.1
    r_mean = jax.random.normal(k4, (cout,), jnp.float32) * 0.1
    r_var = jax.random.uniform(k5, (cout,), jnp.float32, 0.5, 1.5)
    scale = gamma / jnp.sqrt(r_var + eps)      # eval-mode BN as affine
    bias = beta - r_mean * scale
    return {"w": w, "scale": scale, "bias": bias}


def init_block35_raw(key):
    ks = jax.random.split(key, 8)
    return {
        "b0":   init_convplus(ks[0], 256, 32, 1),
        "b1_0": init_convplus(ks[1], 256, 32, 1),
        "b1_1": init_convplus(ks[2], 32, 32, 3),
        "b2_0": init_convplus(ks[3], 256, 32, 1),
        "b2_1": init_convplus(ks[4], 32, 32, 3),
        "b2_2": init_convplus(ks[5], 32, 32, 3),
        "conv2d_w": jax.random.normal(ks[6], (1, 1, 96, 256), jnp.float32) * 0.05,
        "conv2d_b": jax.random.normal(ks[7], (256,), jnp.float32) * 0.05,
    }


def _fold_1x1(p):
    w = p["w"].reshape(p["w"].shape[2], p["w"].shape[3])       # (Cin, Cout)
    return w * p["scale"][None, :], p["bias"]


def _fold_3x3(p):
    w = p["w"] * p["scale"][None, None, None, :]               # (3,3,Cin,Cout)
    return w.reshape(9, w.shape[2], w.shape[3]), p["bias"]


def build_kernel_params(raw, block_scale):
    """Fold BN into conv weights, stack per-branch weights, fold the block
    residual scale into the final conv, cast matmul weights to bf16."""
    w0, b0 = _fold_1x1(raw["b0"])
    w10, b10 = _fold_1x1(raw["b1_0"])
    w20, b20 = _fold_1x1(raw["b2_0"])
    w_in = jnp.stack([w0, w10, w20], 0).astype(jnp.bfloat16)            # (3,256,32)
    b_in = jnp.stack([b0, b10, b20], 0).reshape(3, 1, 32).astype(jnp.float32)

    w11, b11 = _fold_3x3(raw["b1_1"])
    w21, b21 = _fold_3x3(raw["b2_1"])
    w22, b22 = _fold_3x3(raw["b2_2"])
    w3 = jnp.stack([w11, w21, w22], 0).astype(jnp.bfloat16)             # (3,9,32,32)
    b3 = jnp.stack([b11, b21, b22], 0).reshape(3, 1, 32).astype(jnp.float32)

    wf = raw["conv2d_w"].reshape(96, 256) * block_scale
    bf = raw["conv2d_b"] * block_scale
    wf3 = jnp.stack([wf[0:32], wf[32:64], wf[64:96]], 0).astype(jnp.bfloat16)
    return {"w_in": w_in, "b_in": b_in, "w3": w3, "b3": b3,
            "wf": wf3, "bf": bf.reshape(1, 256).astype(jnp.float32)}


# ----------------------------------------------------------------------------
# Forward pass
# ----------------------------------------------------------------------------
@jax.jit
def block35_forward(x_nchw, p):
    N, C, H, W = x_nchw.shape
    x = jnp.transpose(x_nchw, (0, 2, 3, 1)).astype(jnp.float32)     # NHWC
    xf = x.reshape(N, H * W, C)
    out = _block35_pallas(xf, p, H, W)                              # (N,H*W,256)
    return jnp.transpose(out.reshape(N, H, W, 256), (0, 3, 1, 2))   # NCHW


# ----------------------------------------------------------------------------
# Pure-JAX reference (correctness check only)
# ----------------------------------------------------------------------------
def _ref_convplus(x, p, pad=0):
    y = lax.conv_general_dilated(
        x, p["w"], (1, 1), [(pad, pad), (pad, pad)],
        dimension_numbers=("NHWC", "HWIO", "NHWC"),
        precision=lax.Precision.HIGHEST)
    return jnp.maximum(y * p["scale"] + p["bias"], 0.0)


@jax.jit
def block35_reference(x_nchw, raw, block_scale):
    x = jnp.transpose(x_nchw, (0, 2, 3, 1)).astype(jnp.float32)
    x0 = _ref_convplus(x, raw["b0"])
    x1 = _ref_convplus(_ref_convplus(x, raw["b1_0"]), raw["b1_1"], pad=1)
    y = _ref_convplus(x, raw["b2_0"])
    y = _ref_convplus(y, raw["b2_1"], pad=1)
    x2 = _ref_convplus(y, raw["b2_2"], pad=1)
    cat = jnp.concatenate([x0, x1, x2], axis=-1)
    out = lax.conv_general_dilated(
        cat, raw["conv2d_w"], (1, 1), [(0, 0), (0, 0)],
        dimension_numbers=("NHWC", "HWIO", "NHWC"),
        precision=lax.Precision.HIGHEST) + raw["conv2d_b"]
    out = jnp.maximum(out * block_scale + x, 0.0)
    return jnp.transpose(out, (0, 3, 1, 2))


# ----------------------------------------------------------------------------
if __name__ == "__main__":
    key = jax.random.PRNGKey(0)
    k_params, k_x = jax.random.split(key)

    block_scale = 0.17                          # Block35 residual scale
    raw_params = init_block35_raw(k_params)
    kparams = build_kernel_params(raw_params, block_scale)

    # Channels are fixed at 256 by the module; 16x16 spatial keeps it small.
    x = jax.random.normal(k_x, (2, 256, 16, 16), jnp.float32)   # NCHW

    out = jax.block_until_ready(block35_forward(x, kparams))
    assert out.shape == (2, 256, 16, 16), out.shape

    ref = jax.block_until_ready(block35_reference(x, raw_params, block_scale))
    np.testing.assert_allclose(np.asarray(out), np.asarray(ref),
                               rtol=2e-2, atol=2e-2)

    print("KERNEL_OK")
</pallas_src>

<mosaic_0001>
module attributes {stable_mosaic.version = 11 : i64} {
  func.func @_block35_kernel(%arg0: i32, %arg1: memref<1x256x256xf32, #tpu.memory_space<vmem>>, %arg2: memref<3x256x32xbf16, #tpu.memory_space<vmem>>, %arg3: memref<3x1x32xf32, #tpu.memory_space<vmem>>, %arg4: memref<3x9x32x32xbf16, #tpu.memory_space<vmem>>, %arg5: memref<3x1x32xf32, #tpu.memory_space<vmem>>, %arg6: memref<3x32x256xbf16, #tpu.memory_space<vmem>>, %arg7: memref<1x256xf32, #tpu.memory_space<vmem>>, %arg8: memref<1x256x256xf32, #tpu.memory_space<vmem>>, %arg9: memref<18x32x32xf32, #tpu.memory_space<vmem>>) attributes {dimension_semantics = [#tpu.dimension_semantics<parallel>], iteration_bounds = array<i64: 2>, scalar_prefetch = 0 : i64, scratch_operands = 1 : i64, tpu.core_type = #tpu.core_type<tc>, window_params = [{transform_indices = @transform_0, window_bounds = array<i64: 1, 256, 256>}, {pipeline_mode = #tpu.pipeline_mode<synchronous>, transform_indices = @transform_1, window_bounds = array<i64: 3, 256, 32>}, {pipeline_mode = #tpu.pipeline_mode<synchronous>, transform_indices = @transform_2, window_bounds = array<i64: 3, 1, 32>}, {pipeline_mode = #tpu.pipeline_mode<synchronous>, transform_indices = @transform_3, window_bounds = array<i64: 3, 9, 32, 32>}, {pipeline_mode = #tpu.pipeline_mode<synchronous>, transform_indices = @transform_4, window_bounds = array<i64: 3, 1, 32>}, {pipeline_mode = #tpu.pipeline_mode<synchronous>, transform_indices = @transform_5, window_bounds = array<i64: 3, 32, 256>}, {pipeline_mode = #tpu.pipeline_mode<synchronous>, transform_indices = @transform_6, window_bounds = array<i64: 1, 256>}, {transform_indices = @transform_7, window_bounds = array<i64: 1, 256, 256>}]} {
    %c0 = arith.constant 0 : index
    %c0_0 = arith.constant 0 : index
    %c0_1 = arith.constant 0 : index
    %0 = vector.load %arg1[%c0, %c0_0, %c0_1] : memref<1x256x256xf32, #tpu.memory_space<vmem>>, vector<1x256x256xf32>
    %1 = vector.shape_cast %0 : vector<1x256x256xf32> to vector<256x256xf32>
    %c0_2 = arith.constant 0 : index
    %c0_3 = arith.constant 0 : index
    %2 = vector.load %arg7[%c0_2, %c0_3] : memref<1x256xf32, #tpu.memory_space<vmem>>, vector<1x256xf32>
    %3 = vector.broadcast %2 : vector<1x256xf32> to vector<256x256xf32>
    %4 = arith.addf %1, %3 : vector<256x256xf32>
    %c0_4 = arith.constant 0 : index
    %c0_5 = arith.constant 0 : index
    %c0_6 = arith.constant 0 : index
    %5 = vector.load %arg8[%c0_4, %c0_5, %c0_6] : memref<1x256x256xf32, #tpu.memory_space<vmem>>, vector<1x256x256xf32>
    %6 = vector.shape_cast %5 : vector<1x256x256xf32> to vector<256x256xf32>
    %7 = vector.shape_cast %4 : vector<256x256xf32> to vector<1x256x256xf32>
    tpu.vector_store %arg8[%c0_4, %c0_5, %c0_6], %7 {strides = array<i32>} : memref<1x256x256xf32, #tpu.memory_space<vmem>>, vector<1x256x256xf32>,
    %cst = arith.constant 0.000000e+00 : f32
    %8 = vector.broadcast %cst : f32 to vector<18x32x32xf32>
    %c0_7 = arith.constant 0 : index
    %c0_8 = arith.constant 0 : index
    %c0_9 = arith.constant 0 : index
    %9 = vector.load %arg9[%c0_7, %c0_8, %c0_9] : memref<18x32x32xf32, #tpu.memory_space<vmem>>, vector<18x32x32xf32>
    tpu.vector_store %arg9[%c0_7, %c0_8, %c0_9], %8 {strides = array<i32>} : memref<18x32x32xf32, #tpu.memory_space<vmem>>, vector<18x32x32xf32>,
    %c0_10 = arith.constant 0 : index
    %c0_11 = arith.constant 0 : index
    %c0_12 = arith.constant 0 : index
    %10 = vector.load %arg1[%c0_10, %c0_11, %c0_12] : memref<1x256x256xf32, #tpu.memory_space<vmem>>, vector<1x256x256xf32>
    %11 = vector.shape_cast %10 : vector<1x256x256xf32> to vector<256x256xf32>
    %12 = arith.truncf %11 : vector<256x256xf32> to vector<256x256xbf16>
    %c0_13 = arith.constant 0 : index
    %c0_14 = arith.constant 0 : index
    %c0_15 = arith.constant 0 : index
    %13 = vector.load %arg2[%c0_13, %c0_14, %c0_15] : memref<3x256x32xbf16, #tpu.memory_space<vmem>>, vector<1x256x32xbf16>
    %14 = vector.shape_cast %13 : vector<1x256x32xbf16> to vector<256x32xbf16>
    %cst_16 = arith.constant dense<0.000000e+00> : vector<256x32xf32>
    %15 = tpu.matmul %12, %14, %cst_16 {dimension_numbers = #tpu.dot_dimension_numbers<[1], [0], [0], [1], [0, 0, 1, 1], [], []>} : vector<256x256xbf16>, vector<256x32xbf16>, vector<256x32xf32> -> vector<256x32xf32>
    %c0_17 = arith.constant 0 : index
    %c0_18 = arith.constant 0 : index
    %c0_19 = arith.constant 0 : index
    %16 = vector.load %arg3[%c0_17, %c0_18, %c0_19] : memref<3x1x32xf32, #tpu.memory_space<vmem>>, vector<1x1x32xf32>
    %17 = vector.shape_cast %16 : vector<1x1x32xf32> to vector<1x32xf32>
    %18 = vector.broadcast %17 : vector<1x32xf32> to vector<256x32xf32>
    %19 = arith.addf %15, %18 : vector<256x32xf32>
    %cst_20 = arith.constant 0.000000e+00 : f32
    %20 = vector.broadcast %cst_20 : f32 to vector<256x32xf32>
    %21 = arith.maximumf %19, %20 : vector<256x32xf32>
    %c0_21 = arith.constant 0 : index
    %c0_22 = arith.constant 0 : index
    %c0_23 = arith.constant 0 : index
    %22 = vector.load %arg8[%c0_21, %c0_22, %c0_23] : memref<1x256x256xf32, #tpu.memory_space<vmem>>, vector<1x256x256xf32>
    %23 = vector.shape_cast %22 : vector<1x256x256xf32> to vector<256x256xf32>
    %24 = arith.truncf %21 : vector<256x32xf32> to vector<256x32xbf16>
    %c0_24 = arith.constant 0 : index
    %c0_25 = arith.constant 0 : index
    %c0_26 = arith.constant 0 : index
    %25 = vector.load %arg6[%c0_24, %c0_25, %c0_26] : memref<3x32x256xbf16, #tpu.memory_space<vmem>>, vector<1x32x256xbf16>
    %26 = vector.shape_cast %25 : vector<1x32x256xbf16> to vector<32x256xbf16>
    %cst_27 = arith.constant dense<0.000000e+00> : vector<256x256xf32>
    %27 = tpu.matmul %24, %26, %cst_27 {dimension_numbers = #tpu.dot_dimension_numbers<[1], [0], [0], [1], [0, 0, 1, 1], [], []>} : vector<256x32xbf16>, vector<32x256xbf16>, vector<256x256xf32> -> vector<256x256xf32>
    %28 = arith.addf %23, %27 : vector<256x256xf32>
    %c0_28 = arith.constant 0 : index
    %c0_29 = arith.constant 0 : index
    %c0_30 = arith.constant 0 : index
    %29 = vector.load %arg8[%c0_28, %c0_29, %c0_30] : memref<1x256x256xf32, #tpu.memory_space<vmem>>, vector<1x256x256xf32>
    %30 = vector.shape_cast %29 : vector<1x256x256xf32> to vector<256x256xf32>
    %31 = vector.shape_cast %28 : vector<256x256xf32> to vector<1x256x256xf32>
    tpu.vector_store %arg8[%c0_28, %c0_29, %c0_30], %31 {strides = array<i32>} : memref<1x256x256xf32, #tpu.memory_space<vmem>>, vector<1x256x256xf32>,
    %c0_31 = arith.constant 0 : index
    %c0_32 = arith.constant 0 : index
    %c0_33 = arith.constant 0 : index
    %32 = vector.load %arg1[%c0_31, %c0_32, %c0_33] : memref<1x256x256xf32, #tpu.memory_space<vmem>>, vector<1x256x256xf32>
    %33 = vector.shape_cast %32 : vector<1x256x256xf32> to vector<256x256xf32>
    %34 = arith.truncf %33 : vector<256x256xf32> to vector<256x256xbf16>
    %c1 = arith.constant 1 : index
    %c0_34 = arith.constant 0 : index
    %c0_35 = arith.constant 0 : index
    %35 = vector.load %arg2[%c1, %c0_34, %c0_35] : memref<3x256x32xbf16, #tpu.memory_space<vmem>>, vector<1x256x32xbf16>
    %36 = vector.shape_cast %35 : vector<1x256x32xbf16> to vector<256x32xbf16>
    %cst_36 = arith.constant dense<0.000000e+00> : vector<256x32xf32>
    %37 = tpu.matmul %34, %36, %cst_36 {dimension_numbers = #tpu.dot_dimension_numbers<[1], [0], [0], [1], [0, 0, 1, 1], [], []>} : vector<256x256xbf16>, vector<256x32xbf16>, vector<256x32xf32> -> vector<256x32xf32>
    %c1_37 = arith.constant 1 : index
    %c0_38 = arith.constant 0 : index
    %c0_39 = arith.constant 0 : index
    %38 = vector.load %arg3[%c1_37, %c0_38, %c0_39] : memref<3x1x32xf32, #tpu.memory_space<vmem>>, vector<1x1x32xf32>
    %39 = vector.shape_cast %38 : vector<1x1x32xf32> to vector<1x32xf32>
    %40 = vector.broadcast %39 : vector<1x32xf32> to vector<256x32xf32>
    %41 = arith.addf %37, %40 : vector<256x32xf32>
    %cst_40 = arith.constant 0.000000e+00 : f32
    %42 = vector.broadcast %cst_40 : f32 to vector<256x32xf32>
    %43 = arith.maximumf %41, %42 : vector<256x32xf32>
    %44 = vector.shape_cast %43 : vector<256x32xf32> to vector<16x16x32xf32>
    %c1_41 = arith.constant 1 : index
    %c8 = arith.constant 8 : index
    %c0_42 = arith.constant 0 : index
    %45 = vector.load %arg9[%c1_41, %c8, %c0_42] : memref<18x32x32xf32, #tpu.memory_space<vmem>>, vector<16x16x32xf32>
    tpu.vector_store %arg9[%c1_41, %c8, %c0_42], %44 {strides = array<i32>} : memref<18x32x32xf32, #tpu.memory_space<vmem>>, vector<16x16x32xf32>,
    %cst_43 = arith.constant 0.000000e+00 : f32
    %46 = vector.broadcast %cst_43 : f32 to vector<256x32xf32>
    %c0_44 = arith.constant 0 : index
    %c7 = arith.constant 7 : index
    %c0_45 = arith.constant 0 : index
    %47 = vector.load %arg9[%c0_44, %c7, %c0_45] : memref<18x32x32xf32, #tpu.memory_space<vmem>>, vector<16x16x32xf32>
    %48 = vector.shape_cast %47 : vector<16x16x32xf32> to vector<256x32xf32>
    %49 = arith.truncf %48 : vector<256x32xf32> to vector<256x32xbf16>
    %c0_46 = arith.constant 0 : index
    %c0_47 = arith.constant 0 : index
    %c0_48 = arith.constant 0 : index
    %c0_49 = arith.constant 0 : index
    %50 = vector.load %arg4[%c0_46, %c0_47, %c0_48, %c0_49] : memref<3x9x32x32xbf16, #tpu.memory_space<vmem>>, vector<1x1x32x32xbf16>
    %51 = vector.shape_cast %50 : vector<1x1x32x32xbf16> to vector<32x32xbf16>
    %cst_50 = arith.constant dense<0.000000e+00> : vector<256x32xf32>
    %52 = tpu.matmul %49, %51, %cst_50 {dimension_numbers = #tpu.dot_dimension_numbers<[1], [0], [0], [1], [0, 0, 1, 1], [], []>} : vector<256x32xbf16>, vector<32x32xbf16>, vector<256x32xf32> -> vector<256x32xf32>
    %53 = arith.addf %46, %52 : vector<256x32xf32>
    %c0_51 = arith.constant 0 : index
    %c8_52 = arith.constant 8 : index
    %c0_53 = arith.constant 0 : index
    %54 = vector.load %arg9[%c0_51, %c8_52, %c0_53] : memref<18x32x32xf32, #tpu.memory_space<vmem>>, vector<16x16x32xf32>
    %55 = vector.shape_cast %54 : vector<16x16x32xf32> to vector<256x32xf32>
    %56 = arith.truncf %55 : vector<256x32xf32> to vector<256x32xbf16>
    %c0_54 = arith.constant 0 : index
    %c1_55 = arith.constant 1 : index
    %c0_56 = arith.constant 0 : index
    %c0_57 = arith.constant 0 : index
    %57 = vector.load %arg4[%c0_54, %c1_55, %c0_56, %c0_57] : memref<3x9x32x32xbf16, #tpu.memory_space<vmem>>, vector<1x1x32x32xbf16>
    %58 = vector.shape_cast %57 : vector<1x1x32x32xbf16> to vector<32x32xbf16>
    %cst_58 = arith.constant dense<0.000000e+00> : vector<256x32xf32>
    %59 = tpu.matmul %56, %58, %cst_58 {dimension_numbers = #tpu.dot_dimension_numbers<[1], [0], [0], [1], [0, 0, 1, 1], [], []>} : vector<256x32xbf16>, vector<32x32xbf16>, vector<256x32xf32> -> vector<256x32xf32>
    %60 = arith.addf %53, %59 : vector<256x32xf32>
    %c0_59 = arith.constant 0 : index
    %c9 = arith.constant 9 : index
    %c0_60 = arith.constant 0 : index
    %61 = vector.load %arg9[%c0_59, %c9, %c0_60] : memref<18x32x32xf32, #tpu.memory_space<vmem>>, vector<16x16x32xf32>
    %62 = vector.shape_cast %61 : vector<16x16x32xf32> to vector<256x32xf32>
    %63 = arith.truncf %62 : vector<256x32xf32> to vector<256x32xbf16>
    %c0_61 = arith.constant 0 : index
    %c2 = arith.constant 2 : index
    %c0_62 = arith.constant 0 : index
    %c0_63 = arith.constant 0 : index
    %64 = vector.load %arg4[%c0_61, %c2, %c0_62, %c0_63] : memref<3x9x32x32xbf16, #tpu.memory_space<vmem>>, vector<1x1x32x32xbf16>
    %65 = vector.shape_cast %64 : vector<1x1x32x32xbf16> to vector<32x32xbf16>
    %cst_64 = arith.constant dense<0.000000e+00> : vector<256x32xf32>
    %66 = tpu.matmul %63, %65, %cst_64 {dimension_numbers = #tpu.dot_dimension_numbers<[1], [0], [0], [1], [0, 0, 1, 1], [], []>} : vector<256x32xbf16>, vector<32x32xbf16>, vector<256x32xf32> -> vector<256x32xf32>
    %67 = arith.addf %60, %66 : vector<256x32xf32>
    %c1_65 = arith.constant 1 : index
    %c7_66 = arith.constant 7 : index
    %c0_67 = arith.constant 0 : index
    %68 = vector.load %arg9[%c1_65, %c7_66, %c0_67] : memref<18x32x32xf32, #tpu.memory_space<vmem>>, vector<16x16x32xf32>
    %69 = vector.shape_cast %68 : vector<16x16x32xf32> to vector<256x32xf32>
    %70 = arith.truncf %69 : vector<256x32xf32> to vector<256x32xbf16>
    %c0_68 = arith.constant 0 : index
    %c3 = arith.constant 3 : index
    %c0_69 = arith.constant 0 : index
    %c0_70 = arith.constant 0 : index
    %71 = vector.load %arg4[%c0_68, %c3, %c0_69, %c0_70] : memref<3x9x32x32xbf16, #tpu.memory_space<vmem>>, vector<1x1x32x32xbf16>
    %72 = vector.shape_cast %71 : vector<1x1x32x32xbf16> to vector<32x32xbf16>
    %cst_71 = arith.constant dense<0.000000e+00> : vector<256x32xf32>
    %73 = tpu.matmul %70, %72, %cst_71 {dimension_numbers = #tpu.dot_dimension_numbers<[1], [0], [0], [1], [0, 0, 1, 1], [], []>} : vector<256x32xbf16>, vector<32x32xbf16>, vector<256x32xf32> -> vector<256x32xf32>
    %74 = arith.addf %67, %73 : vector<256x32xf32>
    %c1_72 = arith.constant 1 : index
    %c8_73 = arith.constant 8 : index
    %c0_74 = arith.constant 0 : index
    %75 = vector.load %arg9[%c1_72, %c8_73, %c0_74] : memref<18x32x32xf32, #tpu.memory_space<vmem>>, vector<16x16x32xf32>
    %76 = vector.shape_cast %75 : vector<16x16x32xf32> to vector<256x32xf32>
    %77 = arith.truncf %76 : vector<256x32xf32> to vector<256x32xbf16>
    %c0_75 = arith.constant 0 : index
    %c4 = arith.constant 4 : index
    %c0_76 = arith.constant 0 : index
    %c0_77 = arith.constant 0 : index
    %78 = vector.load %arg4[%c0_75, %c4, %c0_76, %c0_77] : memref<3x9x32x32xbf16, #tpu.memory_space<vmem>>, vector<1x1x32x32xbf16>
    %79 = vector.shape_cast %78 : vector<1x1x32x32xbf16> to vector<32x32xbf16>
    %cst_78 = arith.constant dense<0.000000e+00> : vector<256x32xf32>
    %80 = tpu.matmul %77, %79, %cst_78 {dimension_numbers = #tpu.dot_dimension_numbers<[1], [0], [0], [1], [0, 0, 1, 1], [], []>} : vector<256x32xbf16>, vector<32x32xbf16>, vector<256x32xf32> -> vector<256x32xf32>
    %81 = arith.addf %74, %80 : vector<256x32xf32>
    %c1_79 = arith.constant 1 : index
    %c9_80 = arith.constant 9 : index
    %c0_81 = arith.constant 0 : index
    %82 = vector.load %arg9[%c1_79, %c9_80, %c0_81] : memref<18x32x32xf32, #tpu.memory_space<vmem>>, vector<16x16x32xf32>
    %83 = vector.shape_cast %82 : vector<16x16x32xf32> to vector<256x32xf32>
    %84 = arith.truncf %83 : vector<256x32xf32> to vector<256x32xbf16>
    %c0_82 = arith.constant 0 : index
    %c5 = arith.constant 5 : index
    %c0_83 = arith.constant 0 : index
    %c0_84 = arith.constant 0 : index
    %85 = vector.load %arg4[%c0_82, %c5, %c0_83, %c0_84] : memref<3x9x32x32xbf16, #tpu.memory_space<vmem>>, vector<1x1x32x32xbf16>
    %86 = vector.shape_cast %85 : vector<1x1x32x32xbf16> to vector<32x32xbf16>
    %cst_85 = arith.constant dense<0.000000e+00> : vector<256x32xf32>
    %87 = tpu.matmul %84, %86, %cst_85 {dimension_numbers = #tpu.dot_dimension_numbers<[1], [0], [0], [1], [0, 0, 1, 1], [], []>} : vector<256x32xbf16>, vector<32x32xbf16>, vector<256x32xf32> -> vector<256x32xf32>
    %88 = arith.addf %81, %87 : vector<256x32xf32>
    %c2_86 = arith.constant 2 : index
    %c7_87 = arith.constant 7 : index
    %c0_88 = arith.constant 0 : index
    %89 = vector.load %arg9[%c2_86, %c7_87, %c0_88] : memref<18x32x32xf32, #tpu.memory_space<vmem>>, vector<16x16x32xf32>
    %90 = vector.shape_cast %89 : vector<16x16x32xf32> to vector<256x32xf32>
    %91 = arith.truncf %90 : vector<256x32xf32> to vector<256x32xbf16>
    %c0_89 = arith.constant 0 : index
    %c6 = arith.constant 6 : index
    %c0_90 = arith.constant 0 : index
    %c0_91 = arith.constant 0 : index
    %92 = vector.load %arg4[%c0_89, %c6, %c0_90, %c0_91] : memref<3x9x32x32xbf16, #tpu.memory_space<vmem>>, vector<1x1x32x32xbf16>
    %93 = vector.shape_cast %92 : vector<1x1x32x32xbf16> to vector<32x32xbf16>
    %cst_92 = arith.constant dense<0.000000e+00> : vector<256x32xf32>
    %94 = tpu.matmul %91, %93, %cst_92 {dimension_numbers = #tpu.dot_dimension_numbers<[1], [0], [0], [1], [0, 0, 1, 1], [], []>} : vector<256x32xbf16>, vector<32x32xbf16>, vector<256x32xf32> -> vector<256x32xf32>
    %95 = arith.addf %88, %94 : vector<256x32xf32>
    %c2_93 = arith.constant 2 : index
    %c8_94 = arith.constant 8 : index
    %c0_95 = arith.constant 0 : index
    %96 = vector.load %arg9[%c2_93, %c8_94, %c0_95] : memref<18x32x32xf32, #tpu.memory_space<vmem>>, vector<16x16x32xf32>
    %97 = vector.shape_cast %96 : vector<16x16x32xf32> to vector<256x32xf32>
    %98 = arith.truncf %97 : vector<256x32xf32> to vector<256x32xbf16>
    %c0_96 = arith.constant 0 : index
    %c7_97 = arith.constant 7 : index
    %c0_98 = arith.constant 0 : index
    %c0_99 = arith.constant 0 : index
    %99 = vector.load %arg4[%c0_96, %c7_97, %c0_98, %c0_99] : memref<3x9x32x32xbf16, #tpu.memory_space<vmem>>, vector<1x1x32x32xbf16>
    %100 = vector.shape_cast %99 : vector<1x1x32x32xbf16> to vector<32x32xbf16>
    %cst_100 = arith.constant dense<0.000000e+00> : vector<256x32xf32>
    %101 = tpu.matmul %98, %100, %cst_100 {dimension_numbers = #tpu.dot_dimension_numbers<[1], [0], [0], [1], [0, 0, 1, 1], [], []>} : vector<256x32xbf16>, vector<32x32xbf16>, vector<256x32xf32> -> vector<256x32xf32>
    %102 = arith.addf %95, %101 : vector<256x32xf32>
    %c2_101 = arith.constant 2 : index
    %c9_102 = arith.constant 9 : index
    %c0_103 = arith.constant 0 : index
    %103 = vector.load %arg9[%c2_101, %c9_102, %c0_103] : memref<18x32x32xf32, #tpu.memory_space<vmem>>, vector<16x16x32xf32>
    %104 = vector.shape_cast %103 : vector<16x16x32xf32> to vector<256x32xf32>
    %105 = arith.truncf %104 : vector<256x32xf32> to vector<256x32xbf16>
    %c0_104 = arith.constant 0 : index
    %c8_105 = arith.constant 8 : index
    %c0_106 = arith.constant 0 : index
    %c0_107 = arith.constant 0 : index
    %106 = vector.load %arg4[%c0_104, %c8_105, %c0_106, %c0_107] : memref<3x9x32x32xbf16, #tpu.memory_space<vmem>>, vector<1x1x32x32xbf16>
    %107 = vector.shape_cast %106 : vector<1x1x32x32xbf16> to vector<32x32xbf16>
    %cst_108 = arith.constant dense<0.000000e+00> : vector<256x32xf32>
    %108 = tpu.matmul %105, %107, %cst_108 {dimension_numbers = #tpu.dot_dimension_numbers<[1], [0], [0], [1], [0, 0, 1, 1], [], []>} : vector<256x32xbf16>, vector<32x32xbf16>, vector<256x32xf32> -> vector<256x32xf32>
    %109 = arith.addf %102, %108 : vector<256x32xf32>
    %c0_109 = arith.constant 0 : index
    %c0_110 = arith.constant 0 : index
    %c0_111 = arith.constant 0 : index
    %110 = vector.load %arg5[%c0_109, %c0_110, %c0_111] : memref<3x1x32xf32, #tpu.memory_space<vmem>>, vector<1x1x32xf32>
    %111 = vector.shape_cast %110 : vector<1x1x32xf32> to vector<1x32xf32>
    %112 = vector.broadcast %111 : vector<1x32xf32> to vector<256x32xf32>
    %113 = arith.addf %109, %112 : vector<256x32xf32>
    %cst_112 = arith.constant 0.000000e+00 : f32
    %114 = vector.broadcast %cst_112 : f32 to vector<256x32xf32>
    %115 = arith.maximumf %113, %114 : vector<256x32xf32>
    %c0_113 = arith.constant 0 : index
    %c0_114 = arith.constant 0 : index
    %c0_115 = arith.constant 0 : index
    %116 = vector.load %arg8[%c0_113, %c0_114, %c0_115] : memref<1x256x256xf32, #tpu.memory_space<vmem>>, vector<1x256x256xf32>
    %117 = vector.shape_cast %116 : vector<1x256x256xf32> to vector<256x256xf32>
    %118 = arith.truncf %115 : vector<256x32xf32> to vector<256x32xbf16>
    %c1_116 = arith.constant 1 : index
    %c0_117 = arith.constant 0 : index
    %c0_118 = arith.constant 0 : index
    %119 = vector.load %arg6[%c1_116, %c0_117, %c0_118] : memref<3x32x256xbf16, #tpu.memory_space<vmem>>, vector<1x32x256xbf16>
    %120 = vector.shape_cast %119 : vector<1x32x256xbf16> to vector<32x256xbf16>
    %cst_119 = arith.constant dense<0.000000e+00> : vector<256x256xf32>
    %121 = tpu.matmul %118, %120, %cst_119 {dimension_numbers = #tpu.dot_dimension_numbers<[1], [0], [0], [1], [0, 0, 1, 1], [], []>} : vector<256x32xbf16>, vector<32x256xbf16>, vector<256x256xf32> -> vector<256x256xf32>
    %122 = arith.addf %117, %121 : vector<256x256xf32>
    %c0_120 = arith.constant 0 : index
    %c0_121 = arith.constant 0 : index
    %c0_122 = arith.constant 0 : index
    %123 = vector.load %arg8[%c0_120, %c0_121, %c0_122] : memref<1x256x256xf32, #tpu.memory_space<vmem>>, vector<1x256x256xf32>
    %124 = vector.shape_cast %123 : vector<1x256x256xf32> to vector<256x256xf32>
    %125 = vector.shape_cast %122 : vector<256x256xf32> to vector<1x256x256xf32>
    tpu.vector_store %arg8[%c0_120, %c0_121, %c0_122], %125 {strides = array<i32>} : memref<1x256x256xf32, #tpu.memory_space<vmem>>, vector<1x256x256xf32>,
    %c0_123 = arith.constant 0 : index
    %c0_124 = arith.constant 0 : index
    %c0_125 = arith.constant 0 : index
    %126 = vector.load %arg1[%c0_123, %c0_124, %c0_125] : memref<1x256x256xf32, #tpu.memory_space<vmem>>, vector<1x256x256xf32>
    %127 = vector.shape_cast %126 : vector<1x256x256xf32> to vector<256x256xf32>
    %128 = arith.truncf %127 : vector<256x256xf32> to vector<256x256xbf16>
    %c2_126 = arith.constant 2 : index
    %c0_127 = arith.constant 0 : index
    %c0_128 = arith.constant 0 : index
    %129 = vector.load %arg2[%c2_126, %c0_127, %c0_128] : memref<3x256x32xbf16, #tpu.memory_space<vmem>>, vector<1x256x32xbf16>
    %130 = vector.shape_cast %129 : vector<1x256x32xbf16> to vector<256x32xbf16>
    %cst_129 = arith.constant dense<0.000000e+00> : vector<256x32xf32>
    %131 = tpu.matmul %128, %130, %cst_129 {dimension_numbers = #tpu.dot_dimension_numbers<[1], [0], [0], [1], [0, 0, 1, 1], [], []>} : vector<256x256xbf16>, vector<256x32xbf16>, vector<256x32xf32> -> vector<256x32xf32>
    %c2_130 = arith.constant 2 : index
    %c0_131 = arith.constant 0 : index
    %c0_132 = arith.constant 0 : index
    %132 = vector.load %arg3[%c2_130, %c0_131, %c0_132] : memref<3x1x32xf32, #tpu.memory_space<vmem>>, vector<1x1x32xf32>
    %133 = vector.shape_cast %132 : vector<1x1x32xf32> to vector<1x32xf32>
    %134 = vector.broadcast %133 : vector<1x32xf32> to vector<256x32xf32>
    %135 = arith.addf %131, %134 : vector<256x32xf32>
    %cst_133 = arith.constant 0.000000e+00 : f32
    %136 = vector.broadcast %cst_133 : f32 to vector<256x32xf32>
    %137 = arith.maximumf %135, %136 : vector<256x32xf32>
    %138 = vector.shape_cast %137 : vector<256x32xf32> to vector<16x16x32xf32>
    %c1_134 = arith.constant 1 : index
    %c8_135 = arith.constant 8 : index
    %c0_136 = arith.constant 0 : index
    %139 = vector.load %arg9[%c1_134, %c8_135, %c0_136] : memref<18x32x32xf32, #tpu.memory_space<vmem>>, vector<16x16x32xf32>
    tpu.vector_store %arg9[%c1_134, %c8_135, %c0_136], %138 {strides = array<i32>} : memref<18x32x32xf32, #tpu.memory_space<vmem>>, vector<16x16x32xf32>,
    %cst_137 = arith.constant 0.000000e+00 : f32
    %140 = vector.broadcast %cst_137 : f32 to vector<256x32xf32>
    %c0_138 = arith.constant 0 : index
    %c7_139 = arith.constant 7 : index
    %c0_140 = arith.constant 0 : index
    %141 = vector.load %arg9[%c0_138, %c7_139, %c0_140] : memref<18x32x32xf32, #tpu.memory_space<vmem>>, vector<16x16x32xf32>
    %142 = vector.shape_cast %141 : vector<16x16x32xf32> to vector<256x32xf32>
    %143 = arith.truncf %142 : vector<256x32xf32> to vector<256x32xbf16>
    %c1_141 = arith.constant 1 : index
    %c0_142 = arith.constant 0 : index
    %c0_143 = arith.constant 0 : index
    %c0_144 = arith.constant 0 : index
    %144 = vector.load %arg4[%c1_141, %c0_142, %c0_143, %c0_144] : memref<3x9x32x32xbf16, #tpu.memory_space<vmem>>, vector<1x1x32x32xbf16>
    %145 = vector.shape_cast %144 : vector<1x1x32x32xbf16> to vector<32x32xbf16>
    %cst_145 = arith.constant dense<0.000000e+00> : vector<256x32xf32>
    %146 = tpu.matmul %143, %145, %cst_145 {dimension_numbers = #tpu.dot_dimension_numbers<[1], [0], [0], [1], [0, 0, 1, 1], [], []>} : vector<256x32xbf16>, vector<32x32xbf16>, vector<256x32xf32> -> vector<256x32xf32>
    %147 = arith.addf %140, %146 : vector<256x32xf32>
    %c0_146 = arith.constant 0 : index
    %c8_147 = arith.constant 8 : index
    %c0_148 = arith.constant 0 : index
    %148 = vector.load %arg9[%c0_146, %c8_147, %c0_148] : memref<18x32x32xf32, #tpu.memory_space<vmem>>, vector<16x16x32xf32>
    %149 = vector.shape_cast %148 : vector<16x16x32xf32> to vector<256x32xf32>
    %150 = arith.truncf %149 : vector<256x32xf32> to vector<256x32xbf16>
    %c1_149 = arith.constant 1 : index
    %c1_150 = arith.constant 1 : index
    %c0_151 = arith.constant 0 : index
    %c0_152 = arith.constant 0 : index
    %151 = vector.load %arg4[%c1_149, %c1_150, %c0_151, %c0_152] : memref<3x9x32x32xbf16, #tpu.memory_space<vmem>>, vector<1x1x32x32xbf16>
    %152 = vector.shape_cast %151 : vector<1x1x32x32xbf16> to vector<32x32xbf16>
    %cst_153 = arith.constant dense<0.000000e+00> : vector<256x32xf32>
    %153 = tpu.matmul %150, %152, %cst_153 {dimension_numbers = #tpu.dot_dimension_numbers<[1], [0], [0], [1], [0, 0, 1, 1], [], []>} : vector<256x32xbf16>, vector<32x32xbf16>, vector<256x32xf32> -> vector<256x32xf32>
    %154 = arith.addf %147, %153 : vector<256x32xf32>
    %c0_154 = arith.constant 0 : index
    %c9_155 = arith.constant 9 : index
    %c0_156 = arith.constant 0 : index
    %155 = vector.load %arg9[%c0_154, %c9_155, %c0_156] : memref<18x32x32xf32, #tpu.memory_space<vmem>>, vector<16x16x32xf32>
    %156 = vector.shape_cast %155 : vector<16x16x32xf32> to vector<256x32xf32>
    %157 = arith.truncf %156 : vector<256x32xf32> to vector<256x32xbf16>
    %c1_157 = arith.constant 1 : index
    %c2_158 = arith.constant 2 : index
    %c0_159 = arith.constant 0 : index
    %c0_160 = arith.constant 0 : index
    %158 = vector.load %arg4[%c1_157, %c2_158, %c0_159, %c0_160] : memref<3x9x32x32xbf16, #tpu.memory_space<vmem>>, vector<1x1x32x32xbf16>
    %159 = vector.shape_cast %158 : vector<1x1x32x32xbf16> to vector<32x32xbf16>
    %cst_161 = arith.constant dense<0.000000e+00> : vector<256x32xf32>
    %160 = tpu.matmul %157, %159, %cst_161 {dimension_numbers = #tpu.dot_dimension_numbers<[1], [0], [0], [1], [0, 0, 1, 1], [], []>} : vector<256x32xbf16>, vector<32x32xbf16>, vector<256x32xf32> -> vector<256x32xf32>
    %161 = arith.addf %154, %160 : vector<256x32xf32>
    %c1_162 = arith.constant 1 : index
    %c7_163 = arith.constant 7 : index
    %c0_164 = arith.constant 0 : index
    %162 = vector.load %arg9[%c1_162, %c7_163, %c0_164] : memref<18x32x32xf32, #tpu.memory_space<vmem>>, vector<16x16x32xf32>
    %163 = vector.shape_cast %162 : vector<16x16x32xf32> to vector<256x32xf32>
    %164 = arith.truncf %163 : vector<256x32xf32> to vector<256x32xbf16>
    %c1_165 = arith.constant 1 : index
    %c3_166 = arith.constant 3 : index
    %c0_167 = arith.constant 0 : index
    %c0_168 = arith.constant 0 : index
    %165 = vector.load %arg4[%c1_165, %c3_166, %c0_167, %c0_168] : memref<3x9x32x32xbf16, #tpu.memory_space<vmem>>, vector<1x1x32x32xbf16>
    %166 = vector.shape_cast %165 : vector<1x1x32x32xbf16> to vector<32x32xbf16>
    %cst_169 = arith.constant dense<0.000000e+00> : vector<256x32xf32>
    %167 = tpu.matmul %164, %166, %cst_169 {dimension_numbers = #tpu.dot_dimension_numbers<[1], [0], [0], [1], [0, 0, 1, 1], [], []>} : vector<256x32xbf16>, vector<32x32xbf16>, vector<256x32xf32> -> vector<256x32xf32>
    %168 = arith.addf %161, %167 : vector<256x32xf32>
    %c1_170 = arith.constant 1 : index
    %c8_171 = arith.constant 8 : index
    %c0_172 = arith.constant 0 : index
    %169 = vector.load %arg9[%c1_170, %c8_171, %c0_172] : memref<18x32x32xf32, #tpu.memory_space<vmem>>, vector<16x16x32xf32>
    %170 = vector.shape_cast %169 : vector<16x16x32xf32> to vector<256x32xf32>
    %171 = arith.truncf %170 : vector<256x32xf32> to vector<256x32xbf16>
    %c1_173 = arith.constant 1 : index
    %c4_174 = arith.constant 4 : index
    %c0_175 = arith.constant 0 : index
    %c0_176 = arith.constant 0 : index
    %172 = vector.load %arg4[%c1_173, %c4_174, %c0_175, %c0_176] : memref<3x9x32x32xbf16, #tpu.memory_space<vmem>>, vector<1x1x32x32xbf16>
    %173 = vector.shape_cast %172 : vector<1x1x32x32xbf16> to vector<32x32xbf16>
    %cst_177 = arith.constant dense<0.000000e+00> : vector<256x32xf32>
    %174 = tpu.matmul %171, %173, %cst_177 {dimension_numbers = #tpu.dot_dimension_numbers<[1], [0], [0], [1], [0, 0, 1, 1], [], []>} : vector<256x32xbf16>, vector<32x32xbf16>, vector<256x32xf32> -> vector<256x32xf32>
    %175 = arith.addf %168, %174 : vector<256x32xf32>
    %c1_178 = arith.constant 1 : index
    %c9_179 = arith.constant 9 : index
    %c0_180 = arith.constant 0 : index
    %176 = vector.load %arg9[%c1_178, %c9_179, %c0_180] : memref<18x32x32xf32, #tpu.memory_space<vmem>>, vector<16x16x32xf32>
    %177 = vector.shape_cast %176 : vector<16x16x32xf32> to vector<256x32xf32>
    %178 = arith.truncf %177 : vector<256x32xf32> to vector<256x32xbf16>
    %c1_181 = arith.constant 1 : index
    %c5_182 = arith.constant 5 : index
    %c0_183 = arith.constant 0 : index
    %c0_184 = arith.constant 0 : index
    %179 = vector.load %arg4[%c1_181, %c5_182, %c0_183, %c0_184] : memref<3x9x32x32xbf16, #tpu.memory_space<vmem>>, vector<1x1x32x32xbf16>
    %180 = vector.shape_cast %179 : vector<1x1x32x32xbf16> to vector<32x32xbf16>
    %cst_185 = arith.constant dense<0.000000e+00> : vector<256x32xf32>
    %181 = tpu.matmul %178, %180, %cst_185 {dimension_numbers = #tpu.dot_dimension_numbers<[1], [0], [0], [1], [0, 0, 1, 1], [], []>} : vector<256x32xbf16>, vector<32x32xbf16>, vector<256x32xf32> -> vector<256x32xf32>
    %182 = arith.addf %175, %181 : vector<256x32xf32>
    %c2_186 = arith.constant 2 : index
    %c7_187 = arith.constant 7 : index
    %c0_188 = arith.constant 0 : index
    %183 = vector.load %arg9[%c2_186, %c7_187, %c0_188] : memref<18x32x32xf32, #tpu.memory_space<vmem>>, vector<16x16x32xf32>
    %184 = vector.shape_cast %183 : vector<16x16x32xf32> to vector<256x32xf32>
    %185 = arith.truncf %184 : vector<256x32xf32> to vector<256x32xbf16>
    %c1_189 = arith.constant 1 : index
    %c6_190 = arith.constant 6 : index
    %c0_191 = arith.constant 0 : index
    %c0_192 = arith.constant 0 : index
    %186 = vector.load %arg4[%c1_189, %c6_190, %c0_191, %c0_192] : memref<3x9x32x32xbf16, #tpu.memory_space<vmem>>, vector<1x1x32x32xbf16>
    %187 = vector.shape_cast %186 : vector<1x1x32x32xbf16> to vector<32x32xbf16>
    %cst_193 = arith.constant dense<0.000000e+00> : vector<256x32xf32>
    %188 = tpu.matmul %185, %187, %cst_193 {dimension_numbers = #tpu.dot_dimension_numbers<[1], [0], [0], [1], [0, 0, 1, 1], [], []>} : vector<256x32xbf16>, vector<32x32xbf16>, vector<256x32xf32> -> vector<256x32xf32>
    %189 = arith.addf %182, %188 : vector<256x32xf32>
    %c2_194 = arith.constant 2 : index
    %c8_195 = arith.constant 8 : index
    %c0_196 = arith.constant 0 : index
    %190 = vector.load %arg9[%c2_194, %c8_195, %c0_196] : memref<18x32x32xf32, #tpu.memory_space<vmem>>, vector<16x16x32xf32>
    %191 = vector.shape_cast %190 : vector<16x16x32xf32> to vector<256x32xf32>
    %192 = arith.truncf %191 : vector<256x32xf32> to vector<256x32xbf16>
    %c1_197 = arith.constant 1 : index
    %c7_198 = arith.constant 7 : index
    %c0_199 = arith.constant 0 : index
    %c0_200 = arith.constant 0 : index
    %193 = vector.load %arg4[%c1_197, %c7_198, %c0_199, %c0_200] : memref<3x9x32x32xbf16, #tpu.memory_space<vmem>>, vector<1x1x32x32xbf16>
    %194 = vector.shape_cast %193 : vector<1x1x32x32xbf16> to vector<32x32xbf16>
    %cst_201 = arith.constant dense<0.000000e+00> : vector<256x32xf32>
    %195 = tpu.matmul %192, %194, %cst_201 {dimension_numbers = #tpu.dot_dimension_numbers<[1], [0], [0], [1], [0, 0, 1, 1], [], []>} : vector<256x32xbf16>, vector<32x32xbf16>, vector<256x32xf32> -> vector<256x32xf32>
    %196 = arith.addf %189, %195 : vector<256x32xf32>
    %c2_202 = arith.constant 2 : index
    %c9_203 = arith.constant 9 : index
    %c0_204 = arith.constant 0 : index
    %197 = vector.load %arg9[%c2_202, %c9_203, %c0_204] : memref<18x32x32xf32, #tpu.memory_space<vmem>>, vector<16x16x32xf32>
    %198 = vector.shape_cast %197 : vector<16x16x32xf32> to vector<256x32xf32>
    %199 = arith.truncf %198 : vector<256x32xf32> to vector<256x32xbf16>
    %c1_205 = arith.constant 1 : index
    %c8_206 = arith.constant 8 : index
    %c0_207 = arith.constant 0 : index
    %c0_208 = arith.constant 0 : index
    %200 = vector.load %arg4[%c1_205, %c8_206, %c0_207, %c0_208] : memref<3x9x32x32xbf16, #tpu.memory_space<vmem>>, vector<1x1x32x32xbf16>
    %201 = vector.shape_cast %200 : vector<1x1x32x32xbf16> to vector<32x32xbf16>
    %cst_209 = arith.constant dense<0.000000e+00> : vector<256x32xf32>
    %202 = tpu.matmul %199, %201, %cst_209 {dimension_numbers = #tpu.dot_dimension_numbers<[1], [0], [0], [1], [0, 0, 1, 1], [], []>} : vector<256x32xbf16>, vector<32x32xbf16>, vector<256x32xf32> -> vector<256x32xf32>
    %203 = arith.addf %196, %202 : vector<256x32xf32>
    %c1_210 = arith.constant 1 : index
    %c0_211 = arith.constant 0 : index
    %c0_212 = arith.constant 0 : index
    %204 = vector.load %arg5[%c1_210, %c0_211, %c0_212] : memref<3x1x32xf32, #tpu.memory_space<vmem>>, vector<1x1x32xf32>
    %205 = vector.shape_cast %204 : vector<1x1x32xf32> to vector<1x32xf32>
    %206 = vector.broadcast %205 : vector<1x32xf32> to vector<256x32xf32>
    %207 = arith.addf %203, %206 : vector<256x32xf32>
    %cst_213 = arith.constant 0.000000e+00 : f32
    %208 = vector.broadcast %cst_213 : f32 to vector<256x32xf32>
    %209 = arith.maximumf %207, %208 : vector<256x32xf32>
    %210 = vector.shape_cast %209 : vector<256x32xf32> to vector<16x16x32xf32>
    %c1_214 = arith.constant 1 : index
    %c8_215 = arith.constant 8 : index
    %c0_216 = arith.constant 0 : index
    %211 = vector.load %arg9[%c1_214, %c8_215, %c0_216] : memref<18x32x32xf32, #tpu.memory_space<vmem>>, vector<16x16x32xf32>
    tpu.vector_store %arg9[%c1_214, %c8_215, %c0_216], %210 {strides = array<i32>} : memref<18x32x32xf32, #tpu.memory_space<vmem>>, vector<16x16x32xf32>,
    %cst_217 = arith.constant 0.000000e+00 : f32
    %212 = vector.broadcast %cst_217 : f32 to vector<256x32xf32>
    %c0_218 = arith.constant 0 : index
    %c7_219 = arith.constant 7 : index
    %c0_220 = arith.constant 0 : index
    %213 = vector.load %arg9[%c0_218, %c7_219, %c0_220] : memref<18x32x32xf32, #tpu.memory_space<vmem>>, vector<16x16x32xf32>
    %214 = vector.shape_cast %213 : vector<16x16x32xf32> to vector<256x32xf32>
    %215 = arith.truncf %214 : vector<256x32xf32> to vector<256x32xbf16>
    %c2_221 = arith.constant 2 : index
    %c0_222 = arith.constant 0 : index
    %c0_223 = arith.constant 0 : index
    %c0_224 = arith.constant 0 : index
    %216 = vector.load %arg4[%c2_221, %c0_222, %c0_223, %c0_224] : memref<3x9x32x32xbf16, #tpu.memory_space<vmem>>, vector<1x1x32x32xbf16>
    %217 = vector.shape_cast %216 : vector<1x1x32x32xbf16> to vector<32x32xbf16>
    %cst_225 = arith.constant dense<0.000000e+00> : vector<256x32xf32>
    %218 = tpu.matmul %215, %217, %cst_225 {dimension_numbers = #tpu.dot_dimension_numbers<[1], [0], [0], [1], [0, 0, 1, 1], [], []>} : vector<256x32xbf16>, vector<32x32xbf16>, vector<256x32xf32> -> vector<256x32xf32>
    %219 = arith.addf %212, %218 : vector<256x32xf32>
    %c0_226 = arith.constant 0 : index
    %c8_227 = arith.constant 8 : index
    %c0_228 = arith.constant 0 : index
    %220 = vector.load %arg9[%c0_226, %c8_227, %c0_228] : memref<18x32x32xf32, #tpu.memory_space<vmem>>, vector<16x16x32xf32>
    %221 = vector.shape_cast %220 : vector<16x16x32xf32> to vector<256x32xf32>
    %222 = arith.truncf %221 : vector<256x32xf32> to vector<256x32xbf16>
    %c2_229 = arith.constant 2 : index
    %c1_230 = arith.constant 1 : index
    %c0_231 = arith.constant 0 : index
    %c0_232 = arith.constant 0 : index
    %223 = vector.load %arg4[%c2_229, %c1_230, %c0_231, %c0_232] : memref<3x9x32x32xbf16, #tpu.memory_space<vmem>>, vector<1x1x32x32xbf16>
    %224 = vector.shape_cast %223 : vector<1x1x32x32xbf16> to vector<32x32xbf16>
    %cst_233 = arith.constant dense<0.000000e+00> : vector<256x32xf32>
    %225 = tpu.matmul %222, %224, %cst_233 {dimension_numbers = #tpu.dot_dimension_numbers<[1], [0], [0], [1], [0, 0, 1, 1], [], []>} : vector<256x32xbf16>, vector<32x32xbf16>, vector<256x32xf32> -> vector<256x32xf32>
    %226 = arith.addf %219, %225 : vector<256x32xf32>
    %c0_234 = arith.constant 0 : index
    %c9_235 = arith.constant 9 : index
    %c0_236 = arith.constant 0 : index
    %227 = vector.load %arg9[%c0_234, %c9_235, %c0_236] : memref<18x32x32xf32, #tpu.memory_space<vmem>>, vector<16x16x32xf32>
    %228 = vector.shape_cast %227 : vector<16x16x32xf32> to vector<256x32xf32>
    %229 = arith.truncf %228 : vector<256x32xf32> to vector<256x32xbf16>
    %c2_237 = arith.constant 2 : index
    %c2_238 = arith.constant 2 : index
    %c0_239 = arith.constant 0 : index
    %c0_240 = arith.constant 0 : index
    %230 = vector.load %arg4[%c2_237, %c2_238, %c0_239, %c0_240] : memref<3x9x32x32xbf16, #tpu.memory_space<vmem>>, vector<1x1x32x32xbf16>
    %231 = vector.shape_cast %230 : vector<1x1x32x32xbf16> to vector<32x32xbf16>
    %cst_241 = arith.constant dense<0.000000e+00> : vector<256x32xf32>
    %232 = tpu.matmul %229, %231, %cst_241 {dimension_numbers = #tpu.dot_dimension_numbers<[1], [0], [0], [1], [0, 0, 1, 1], [], []>} : vector<256x32xbf16>, vector<32x32xbf16>, vector<256x32xf32> -> vector<256x32xf32>
    %233 = arith.addf %226, %232 : vector<256x32xf32>
    %c1_242 = arith.constant 1 : index
    %c7_243 = arith.constant 7 : index
    %c0_244 = arith.constant 0 : index
    %234 = vector.load %arg9[%c1_242, %c7_243, %c0_244] : memref<18x32x32xf32, #tpu.memory_space<vmem>>, vector<16x16x32xf32>
    %235 = vector.shape_cast %234 : vector<16x16x32xf32> to vector<256x32xf32>
    %236 = arith.truncf %235 : vector<256x32xf32> to vector<256x32xbf16>
    %c2_245 = arith.constant 2 : index
    %c3_246 = arith.constant 3 : index
    %c0_247 = arith.constant 0 : index
    %c0_248 = arith.constant 0 : index
    %237 = vector.load %arg4[%c2_245, %c3_246, %c0_247, %c0_248] : memref<3x9x32x32xbf16, #tpu.memory_space<vmem>>, vector<1x1x32x32xbf16>
    %238 = vector.shape_cast %237 : vector<1x1x32x32xbf16> to vector<32x32xbf16>
    %cst_249 = arith.constant dense<0.000000e+00> : vector<256x32xf32>
    %239 = tpu.matmul %236, %238, %cst_249 {dimension_numbers = #tpu.dot_dimension_numbers<[1], [0], [0], [1], [0, 0, 1, 1], [], []>} : vector<256x32xbf16>, vector<32x32xbf16>, vector<256x32xf32> -> vector<256x32xf32>
    %240 = arith.addf %233, %239 : vector<256x32xf32>
    %c1_250 = arith.constant 1 : index
    %c8_251 = arith.constant 8 : index
    %c0_252 = arith.constant 0 : index
    %241 = vector.load %arg9[%c1_250, %c8_251, %c0_252] : memref<18x32x32xf32, #tpu.memory_space<vmem>>, vector<16x16x32xf32>
    %242 = vector.shape_cast %241 : vector<16x16x32xf32> to vector<256x32xf32>
    %243 = arith.truncf %242 : vector<256x32xf32> to vector<256x32xbf16>
    %c2_253 = arith.constant 2 : index
    %c4_254 = arith.constant 4 : index
    %c0_255 = arith.constant 0 : index
    %c0_256 = arith.constant 0 : index
    %244 = vector.load %arg4[%c2_253, %c4_254, %c0_255, %c0_256] : memref<3x9x32x32xbf16, #tpu.memory_space<vmem>>, vector<1x1x32x32xbf16>
    %245 = vector.shape_cast %244 : vector<1x1x32x32xbf16> to vector<32x32xbf16>
    %cst_257 = arith.constant dense<0.000000e+00> : vector<256x32xf32>
    %246 = tpu.matmul %243, %245, %cst_257 {dimension_numbers = #tpu.dot_dimension_numbers<[1], [0], [0], [1], [0, 0, 1, 1], [], []>} : vector<256x32xbf16>, vector<32x32xbf16>, vector<256x32xf32> -> vector<256x32xf32>
    %247 = arith.addf %240, %246 : vector<256x32xf32>
    %c1_258 = arith.constant 1 : index
    %c9_259 = arith.constant 9 : index
    %c0_260 = arith.constant 0 : index
    %248 = vector.load %arg9[%c1_258, %c9_259, %c0_260] : memref<18x32x32xf32, #tpu.memory_space<vmem>>, vector<16x16x32xf32>
    %249 = vector.shape_cast %248 : vector<16x16x32xf32> to vector<256x32xf32>
    %250 = arith.truncf %249 : vector<256x32xf32> to vector<256x32xbf16>
    %c2_261 = arith.constant 2 : index
    %c5_262 = arith.constant 5 : index
    %c0_263 = arith.constant 0 : index
    %c0_264 = arith.constant 0 : index
    %251 = vector.load %arg4[%c2_261, %c5_262, %c0_263, %c0_264] : memref<3x9x32x32xbf16, #tpu.memory_space<vmem>>, vector<1x1x32x32xbf16>
    %252 = vector.shape_cast %251 : vector<1x1x32x32xbf16> to vector<32x32xbf16>
    %cst_265 = arith.constant dense<0.000000e+00> : vector<256x32xf32>
    %253 = tpu.matmul %250, %252, %cst_265 {dimension_numbers = #tpu.dot_dimension_numbers<[1], [0], [0], [1], [0, 0, 1, 1], [], []>} : vector<256x32xbf16>, vector<32x32xbf16>, vector<256x32xf32> -> vector<256x32xf32>
    %254 = arith.addf %247, %253 : vector<256x32xf32>
    %c2_266 = arith.constant 2 : index
    %c7_267 = arith.constant 7 : index
    %c0_268 = arith.constant 0 : index
    %255 = vector.load %arg9[%c2_266, %c7_267, %c0_268] : memref<18x32x32xf32, #tpu.memory_space<vmem>>, vector<16x16x32xf32>
    %256 = vector.shape_cast %255 : vector<16x16x32xf32> to vector<256x32xf32>
    %257 = arith.truncf %256 : vector<256x32xf32> to vector<256x32xbf16>
    %c2_269 = arith.constant 2 : index
    %c6_270 = arith.constant 6 : index
    %c0_271 = arith.constant 0 : index
    %c0_272 = arith.constant 0 : index
    %258 = vector.load %arg4[%c2_269, %c6_270, %c0_271, %c0_272] : memref<3x9x32x32xbf16, #tpu.memory_space<vmem>>, vector<1x1x32x32xbf16>
    %259 = vector.shape_cast %258 : vector<1x1x32x32xbf16> to vector<32x32xbf16>
    %cst_273 = arith.constant dense<0.000000e+00> : vector<256x32xf32>
    %260 = tpu.matmul %257, %259, %cst_273 {dimension_numbers = #tpu.dot_dimension_numbers<[1], [0], [0], [1], [0, 0, 1, 1], [], []>} : vector<256x32xbf16>, vector<32x32xbf16>, vector<256x32xf32> -> vector<256x32xf32>
    %261 = arith.addf %254, %260 : vector<256x32xf32>
    %c2_274 = arith.constant 2 : index
    %c8_275 = arith.constant 8 : index
    %c0_276 = arith.constant 0 : index
    %262 = vector.load %arg9[%c2_274, %c8_275, %c0_276] : memref<18x32x32xf32, #tpu.memory_space<vmem>>, vector<16x16x32xf32>
    %263 = vector.shape_cast %262 : vector<16x16x32xf32> to vector<256x32xf32>
    %264 = arith.truncf %263 : vector<256x32xf32> to vector<256x32xbf16>
    %c2_277 = arith.constant 2 : index
    %c7_278 = arith.constant 7 : index
    %c0_279 = arith.constant 0 : index
    %c0_280 = arith.constant 0 : index
    %265 = vector.load %arg4[%c2_277, %c7_278, %c0_279, %c0_280] : memref<3x9x32x32xbf16, #tpu.memory_space<vmem>>, vector<1x1x32x32xbf16>
    %266 = vector.shape_cast %265 : vector<1x1x32x32xbf16> to vector<32x32xbf16>
    %cst_281 = arith.constant dense<0.000000e+00> : vector<256x32xf32>
    %267 = tpu.matmul %264, %266, %cst_281 {dimension_numbers = #tpu.dot_dimension_numbers<[1], [0], [0], [1], [0, 0, 1, 1], [], []>} : vector<256x32xbf16>, vector<32x32xbf16>, vector<256x32xf32> -> vector<256x32xf32>
    %268 = arith.addf %261, %267 : vector<256x32xf32>
    %c2_282 = arith.constant 2 : index
    %c9_283 = arith.constant 9 : index
    %c0_284 = arith.constant 0 : index
    %269 = vector.load %arg9[%c2_282, %c9_283, %c0_284] : memref<18x32x32xf32, #tpu.memory_space<vmem>>, vector<16x16x32xf32>
    %270 = vector.shape_cast %269 : vector<16x16x32xf32> to vector<256x32xf32>
    %271 = arith.truncf %270 : vector<256x32xf32> to vector<256x32xbf16>
    %c2_285 = arith.constant 2 : index
    %c8_286 = arith.constant 8 : index
    %c0_287 = arith.constant 0 : index
    %c0_288 = arith.constant 0 : index
    %272 = vector.load %arg4[%c2_285, %c8_286, %c0_287, %c0_288] : memref<3x9x32x32xbf16, #tpu.memory_space<vmem>>, vector<1x1x32x32xbf16>
    %273 = vector.shape_cast %272 : vector<1x1x32x32xbf16> to vector<32x32xbf16>
    %cst_289 = arith.constant dense<0.000000e+00> : vector<256x32xf32>
    %274 = tpu.matmul %271, %273, %cst_289 {dimension_numbers = #tpu.dot_dimension_numbers<[1], [0], [0], [1], [0, 0, 1, 1], [], []>} : vector<256x32xbf16>, vector<32x32xbf16>, vector<256x32xf32> -> vector<256x32xf32>
    %275 = arith.addf %268, %274 : vector<256x32xf32>
    %c2_290 = arith.constant 2 : index
    %c0_291 = arith.constant 0 : index
    %c0_292 = arith.constant 0 : index
    %276 = vector.load %arg5[%c2_290, %c0_291, %c0_292] : memref<3x1x32xf32, #tpu.memory_space<vmem>>, vector<1x1x32xf32>
    %277 = vector.shape_cast %276 : vector<1x1x32xf32> to vector<1x32xf32>
    %278 = vector.broadcast %277 : vector<1x32xf32> to vector<256x32xf32>
    %279 = arith.addf %275, %278 : vector<256x32xf32>
    %cst_293 = arith.constant 0.000000e+00 : f32
    %280 = vector.broadcast %cst_293 : f32 to vector<256x32xf32>
    %281 = arith.maximumf %279, %280 : vector<256x32xf32>
    %c0_294 = arith.constant 0 : index
    %c0_295 = arith.constant 0 : index
    %c0_296 = arith.constant 0 : index
    %282 = vector.load %arg8[%c0_294, %c0_295, %c0_296] : memref<1x256x256xf32, #tpu.memory_space<vmem>>, vector<1x256x256xf32>
    %283 = vector.shape_cast %282 : vector<1x256x256xf32> to vector<256x256xf32>
    %284 = arith.truncf %281 : vector<256x32xf32> to vector<256x32xbf16>
    %c2_297 = arith.constant 2 : index
    %c0_298 = arith.constant 0 : index
    %c0_299 = arith.constant 0 : index
    %285 = vector.load %arg6[%c2_297, %c0_298, %c0_299] : memref<3x32x256xbf16, #tpu.memory_space<vmem>>, vector<1x32x256xbf16>
    %286 = vector.shape_cast %285 : vector<1x32x256xbf16> to vector<32x256xbf16>
    %cst_300 = arith.constant dense<0.000000e+00> : vector<256x256xf32>
    %287 = tpu.matmul %284, %286, %cst_300 {dimension_numbers = #tpu.dot_dimension_numbers<[1], [0], [0], [1], [0, 0, 1, 1], [], []>} : vector<256x32xbf16>, vector<32x256xbf16>, vector<256x256xf32> -> vector<256x256xf32>
    %288 = arith.addf %283, %287 : vector<256x256xf32>
    %c0_301 = arith.constant 0 : index
    %c0_302 = arith.constant 0 : index
    %c0_303 = arith.constant 0 : index
    %289 = vector.load %arg8[%c0_301, %c0_302, %c0_303] : memref<1x256x256xf32, #tpu.memory_space<vmem>>, vector<1x256x256xf32>
    %290 = vector.shape_cast %289 : vector<1x256x256xf32> to vector<256x256xf32>
    %291 = vector.shape_cast %288 : vector<256x256xf32> to vector<1x256x256xf32>
    tpu.vector_store %arg8[%c0_301, %c0_302, %c0_303], %291 {strides = array<i32>} : memref<1x256x256xf32, #tpu.memory_space<vmem>>, vector<1x256x256xf32>,
    %c0_304 = arith.constant 0 : index
    %c0_305 = arith.constant 0 : index
    %c0_306 = arith.constant 0 : index
    %292 = vector.load %arg8[%c0_304, %c0_305, %c0_306] : memref<1x256x256xf32, #tpu.memory_space<vmem>>, vector<1x256x256xf32>
    %293 = vector.shape_cast %292 : vector<1x256x256xf32> to vector<256x256xf32>
    %cst_307 = arith.constant 0.000000e+00 : f32
    %294 = vector.broadcast %cst_307 : f32 to vector<256x256xf32>
    %295 = arith.maximumf %293, %294 : vector<256x256xf32>
    %c0_308 = arith.constant 0 : index
    %c0_309 = arith.constant 0 : index
    %c0_310 = arith.constant 0 : index
    %296 = vector.load %arg8[%c0_308, %c0_309, %c0_310] : memref<1x256x256xf32, #tpu.memory_space<vmem>>, vector<1x256x256xf32>
    %297 = vector.shape_cast %296 : vector<1x256x256xf32> to vector<256x256xf32>
    %298 = vector.shape_cast %295 : vector<256x256xf32> to vector<1x256x256xf32>
    tpu.vector_store %arg8[%c0_308, %c0_309, %c0_310], %298 {strides = array<i32>} : memref<1x256x256xf32, #tpu.memory_space<vmem>>, vector<1x256x256xf32>,
    return
  }
  func.func @transform_0(%arg0: i32) -> (i32, i32, i32) {
    %c0_i32 = arith.constant 0 : i32
    %c0_i32_0 = arith.constant 0 : i32
    %c0_i32_1 = arith.constant 0 : i32
    return %arg0, %c0_i32, %c0_i32_0 : i32, i32, i32
  }
  func.func @transform_1(%arg0: i32) -> (i32, i32, i32) {
    %c0_i32 = arith.constant 0 : i32
    %c0_i32_0 = arith.constant 0 : i32
    %c0_i32_1 = arith.constant 0 : i32
    %c0_i32_2 = arith.constant 0 : i32
    return %c0_i32, %c0_i32_0, %c0_i32_1 : i32, i32, i32
  }
  func.func @transform_2(%arg0: i32) -> (i32, i32, i32) {
    %c0_i32 = arith.constant 0 : i32
    %c0_i32_0 = arith.constant 0 : i32
    %c0_i32_1 = arith.constant 0 : i32
    %c0_i32_2 = arith.constant 0 : i32
    return %c0_i32, %c0_i32_0, %c0_i32_1 : i32, i32, i32
  }
  func.func @transform_3(%arg0: i32) -> (i32, i32, i32, i32) {
    %c0_i32 = arith.constant 0 : i32
    %c0_i32_0 = arith.constant 0 : i32
    %c0_i32_1 = arith.constant 0 : i32
    %c0_i32_2 = arith.constant 0 : i32
    %c0_i32_3 = arith.constant 0 : i32
    return %c0_i32, %c0_i32_0, %c0_i32_1, %c0_i32_2 : i32, i32, i32, i32
  }
  func.func @transform_4(%arg0: i32) -> (i32, i32, i32) {
    %c0_i32 = arith.constant 0 : i32
    %c0_i32_0 = arith.constant 0 : i32
    %c0_i32_1 = arith.constant 0 : i32
    %c0_i32_2 = arith.constant 0 : i32
    return %c0_i32, %c0_i32_0, %c0_i32_1 : i32, i32, i32
  }
  func.func @transform_5(%arg0: i32) -> (i32, i32, i32) {
    %c0_i32 = arith.constant 0 : i32
    %c0_i32_0 = arith.constant 0 : i32
    %c0_i32_1 = arith.constant 0 : i32
    %c0_i32_2 = arith.constant 0 : i32
    return %c0_i32, %c0_i32_0, %c0_i32_1 : i32, i32, i32
  }
  func.func @transform_6(%arg0: i32) -> (i32, i32) {
    %c0_i32 = arith.constant 0 : i32
    %c0_i32_0 = arith.constant 0 : i32
    %c0_i32_1 = arith.constant 0 : i32
    return %c0_i32, %c0_i32_0 : i32, i32
  }
  func.func @transform_7(%arg0: i32) -> (i32, i32, i32) {
    %c0_i32 = arith.constant 0 : i32
    %c0_i32_0 = arith.constant 0 : i32
    %c0_i32_1 = arith.constant 0 : i32
    return %arg0, %c0_i32, %c0_i32_0 : i32, i32, i32
  }
}

</mosaic_0001>

<llo_original>
// kernel: block35_forward.1
$region0: #{block35_forward.1}
  #allocation0 [shape = 'u32[]', space=smem, size = 0x4, offset = 0x4, fixed_abs, tag = 'smem constant byte address 0x4 - core index']
  #allocation1 [shape = 'u32[72,128]{1,0:T(1,128)}', space=vmem, size = 0x9000, scoped, tag = 'internal scratch']
  #allocation2 [shape = 'f32[18,32,32]{2,1,0:T(8,128)}', space=vmem, size = 0x48000, scoped, tag = 'scratch operand']
  %s0 = inlined_call_operand.hbm [shape: f32[2,256,256], index: 0, kind: input, shape index: {}]
  %s1 = inlined_call_operand.vmem [shape: bf16[3,256,32], index: 1, kind: input, shape index: {}]
  %s2 = inlined_call_operand.vmem [shape: f32[3,1,32], index: 2, kind: input, shape index: {}]
  %s3 = inlined_call_operand.vmem [shape: bf16[3,9,32,32], index: 3, kind: input, shape index: {}]
  %s4 = inlined_call_operand.vmem [shape: f32[3,1,32], index: 4, kind: input, shape index: {}]
  %s5 = inlined_call_operand.hbm [shape: bf16[3,32,256], index: 5, kind: input, shape index: {}]
  %s6 = inlined_call_operand.vmem [shape: f32[1,256], index: 6, kind: input, shape index: {}]
  %s7 = inlined_call_operand.hbm [shape: f32[2,256,256], index: 7, kind: output, shape index: {}]
  %s8 = sld [smem:[#allocation0]]
  $region69: #{block35_forward.1} parent=0
    _
  %s10 = ssub.s32 1, %s8
  %s11 = scalar_select 0, %s10, %s8
  $region1: #{block35_forward.1} parent=0
    #allocation3 [shape = 'u8[524288]{0}', space=vmem, size = 0x80000, scoped, tag = 'input window, operand 0']
    #allocation4 [shape = 's32[2]{0}', space=sflag, size = 0x8, scoped, tag = 'scoped memory for block35_forward.1']
    #allocation5 [shape = 's32[2]{0}', space=sflag, size = 0x8, scoped, tag = 'scoped memory for block35_forward.1']
    #allocation6 [shape = 'u8[49152]{0}', space=vmem, size = 0xc000, scoped, tag = 'input window, operand 5, single buffered']
    #allocation7 [shape = 's32[1]{0}', space=sflag, size = 0x4, scoped, tag = 'scoped memory for block35_forward.1']
    #allocation8 [shape = 'u8[524288]{0}', space=vmem, size = 0x80000, scoped, tag = 'output window, operand 0']
    %12 = vsyncpa [#allocation4], 0
    %s13 = scalar_lea.sflag [#allocation4], 1
    %14 = vsyncpa %s13, 0
    %15 = vsyncpa [#allocation7], 0
    %16 = vsyncpa [#allocation5], 0
    %s17 = scalar_lea.sflag [#allocation5], 1
    %18 = vsyncpa %s17, 0
    loop: start=0, step=1, limit=4
    $region2: #{block35_forward.1} parent=1 // loop_pre_header
      _
    $region3: #{block35_forward.1} parent=1 // loop_header
      %s20 = sphi 0, %s24
      %p21 = scmp.ge.s32.totalorder %s20, 4
      %s30 = sphi 0, %s32
      %s33 = sphi 0, %s30
      %s34 = sphi 0, %s33
      %s50 = sphi 0, %s34
      %s54 = sphi 0, %s54
      %s56 = sphi 0, %s54
      %s57 = sphi 0, %s56
      %s71 = sphi 0, %s57
      %s75 = sphi 0, %s75
      %s77 = sphi 0, %s75
      %s78 = sphi 0, %s77
      %s92 = sphi 0, %s78
      %s96 = sphi 0, %s96
      %s98 = sphi 0, %s96
      %s99 = sphi 0, %s98
      %s113 = sphi 0, %s99
      %s117 = sphi 0, %s117
      %s119 = sphi 0, %s117
      %s120 = sphi 0, %s119
      %s134 = sphi 0, %s120
      %s138 = sphi 0, %s138
      %s140 = sphi 0, %s138
      %s141 = sphi 0, %s140
      %s155 = sphi 0, %s141
      %s159 = sphi 0, %s159
      %s161 = sphi 0, %s159
      %s162 = sphi 0, %s161
      %s176 = sphi 0, %s162
      %s182 = sphi 0, %s184
      %s185 = sphi 0, %s182
      %s186 = sphi 0, %s185
      %s202 = sphi 0, %s186
    $region4: #{block35_forward.1} parent=1 // loop_header_branch
      %23 = sbr.rel (%p21) target = $region8
    $region5: #{block35_forward.1} parent=1 // loop_body
      %s25 = ssub.s32 %s20, 1
      %s26 = ssub.s32 %s20, 2
      %s27 = sadd.s32 %s20, 1
      %s28 = ssub.s32 %s20, %s27
      %p29 = scmp.eq.s32.totalorder %s28, 0
      %s31 = sadd.s32 %s30, 1
      %s32 = scalar_select %p29, %s30, %s31
      %p35 = pneg %p29
      %p36 = scmp.eq.s32.totalorder %s20, 1
      %p37 = por %p35, %p36
      %p38 = scmp.ne.s32.totalorder %s30, %s33
      %p39 = scmp.eq.s32.totalorder %s20, 0
      %p40 = por %p38, %p39
      %p41 = scmp.ne.s32.totalorder %s30, %s33
      %p42 = scmp.eq.s32.totalorder %s25, 1
      %p43 = por %p41, %p42
      %p44 = scmp.ne.s32.totalorder %s33, %s34
      %p45 = scmp.eq.s32.totalorder %s25, 0
      %p46 = por %p44, %p45
      %p47 = scmp.ne.s32.totalorder %s33, %s34
      %p48 = scmp.eq.s32.totalorder %s26, 1
      %p49 = por %p47, %p48
      %p51 = scmp.ne.s32.totalorder %s34, %s50
      %p52 = scmp.eq.s32.totalorder %s26, 0
      %p53 = por %p51, %p52
      %s55 = sadd.s32 %s54, 1
      %p58 = scmp.eq.s32.totalorder %s20, 1
      %p59 = scmp.ne.s32.totalorder %s54, %s56
      %p60 = scmp.eq.s32.totalorder %s20, 0
      %p61 = por %p59, %p60
      %p62 = scmp.ne.s32.totalorder %s54, %s56
      %p63 = scmp.eq.s32.totalorder %s25, 1
      %p64 = por %p62, %p63
      %p65 = scmp.ne.s32.totalorder %s56, %s57
      %p66 = scmp.eq.s32.totalorder %s25, 0
      %p67 = por %p65, %p66
      %p68 = scmp.ne.s32.totalorder %s56, %s57
      %p69 = scmp.eq.s32.totalorder %s26, 1
      %p70 = por %p68, %p69
      %p72 = scmp.ne.s32.totalorder %s57, %s71
      %p73 = scmp.eq.s32.totalorder %s26, 0
      %p74 = por %p72, %p73
      %s76 = sadd.s32 %s75, 1
      %p79 = scmp.eq.s32.totalorder %s20, 1
      %p80 = scmp.ne.s32.totalorder %s75, %s77
      %p81 = scmp.eq.s32.totalorder %s20, 0
      %p82 = por %p80, %p81
      %p83 = scmp.ne.s32.totalorder %s75, %s77
      %p84 = scmp.eq.s32.totalorder %s25, 1
      %p85 = por %p83, %p84
      %p86 = scmp.ne.s32.totalorder %s77, %s78
      %p87 = scmp.eq.s32.totalorder %s25, 0
      %p88 = por %p86, %p87
      %p89 = scmp.ne.s32.totalorder %s77, %s78
      %p90 = scmp.eq.s32.totalorder %s26, 1
      %p91 = por %p89, %p90
      %p93 = scmp.ne.s32.totalorder %s78, %s92
      %p94 = scmp.eq.s32.totalorder %s26, 0
      %p95 = por %p93, %p94
      %s97 = sadd.s32 %s96, 1
      %p100 = scmp.eq.s32.totalorder %s20, 1
      %p101 = scmp.ne.s32.totalorder %s96, %s98
      %p102 = scmp.eq.s32.totalorder %s20, 0
      %p103 = por %p101, %p102
      %p104 = scmp.ne.s32.totalorder %s96, %s98
      %p105 = scmp.eq.s32.totalorder %s25, 1
      %p106 = por %p104, %p105
      %p107 = scmp.ne.s32.totalorder %s98, %s99
      %p108 = scmp.eq.s32.totalorder %s25, 0
      %p109 = por %p107, %p108
      %p110 = scmp.ne.s32.totalorder %s98, %s99
      %p111 = scmp.eq.s32.totalorder %s26, 1
      %p112 = por %p110, %p111
      %p114 = scmp.ne.s32.totalorder %s99, %s113
      %p115 = scmp.eq.s32.totalorder %s26, 0
      %p116 = por %p114, %p115
      %s118 = sadd.s32 %s117, 1
      %p121 = scmp.eq.s32.totalorder %s20, 1
      %p122 = scmp.ne.s32.totalorder %s117, %s119
      %p123 = scmp.eq.s32.totalorder %s20, 0
      %p124 = por %p122, %p123
      %p125 = scmp.ne.s32.totalorder %s117, %s119
      %p126 = scmp.eq.s32.totalorder %s25, 1
      %p127 = por %p125, %p126
      %p128 = scmp.ne.s32.totalorder %s119, %s120
      %p129 = scmp.eq.s32.totalorder %s25, 0
      %p130 = por %p128, %p129
      %p131 = scmp.ne.s32.totalorder %s119, %s120
      %p132 = scmp.eq.s32.totalorder %s26, 1
      %p133 = por %p131, %p132
      %p135 = scmp.ne.s32.totalorder %s120, %s134
      %p136 = scmp.eq.s32.totalorder %s26, 0
      %p137 = por %p135, %p136
      %s139 = sadd.s32 %s138, 1
      %p142 = scmp.eq.s32.totalorder %s20, 1
      %p143 = scmp.ne.s32.totalorder %s138, %s140
      %p144 = scmp.eq.s32.totalorder %s20, 0
      %p145 = por %p143, %p144
      %p146 = scmp.ne.s32.totalorder %s138, %s140
      %p147 = scmp.eq.s32.totalorder %s25, 1
      %p148 = por %p146, %p147
      %p149 = scmp.ne.s32.totalorder %s140, %s141
      %p150 = scmp.eq.s32.totalorder %s25, 0
      %p151 = por %p149, %p150
      %p152 = scmp.ne.s32.totalorder %s140, %s141
      %p153 = scmp.eq.s32.totalorder %s26, 1
      %p154 = por %p152, %p153
      %p156 = scmp.ne.s32.totalorder %s141, %s155
      %p157 = scmp.eq.s32.totalorder %s26, 0
      %p158 = por %p156, %p157
      %s160 = sadd.s32 %s159, 1
      %p163 = scmp.eq.s32.totalorder %s20, 1
      %p164 = scmp.ne.s32.totalorder %s159, %s161
      %p165 = scmp.eq.s32.totalorder %s20, 0
      %p166 = por %p164, %p165
      %p167 = scmp.ne.s32.totalorder %s159, %s161
      %p168 = scmp.eq.s32.totalorder %s25, 1
      %p169 = por %p167, %p168
      %p170 = scmp.ne.s32.totalorder %s161, %s162
      %p171 = scmp.eq.s32.totalorder %s25, 0
      %p172 = por %p170, %p171
      %p173 = scmp.ne.s32.totalorder %s161, %s162
      %p174 = scmp.eq.s32.totalorder %s26, 1
      %p175 = por %p173, %p174
      %p177 = scmp.ne.s32.totalorder %s162, %s176
      %p178 = scmp.eq.s32.totalorder %s26, 0
      %p179 = por %p177, %p178
      %s180 = ssub.s32 %s20, %s27
      %p181 = scmp.eq.s32.totalorder %s180, 0
      %s183 = sadd.s32 %s182, 1
      %s184 = scalar_select %p181, %s182, %s183
      %p187 = pneg %p181
      %p188 = scmp.eq.s32.totalorder %s20, 1
      %p189 = por %p187, %p188
      %p190 = scmp.ne.s32.totalorder %s182, %s185
      %p191 = scmp.eq.s32.totalorder %s20, 0
      %p192 = por %p190, %p191
      %p193 = scmp.ne.s32.totalorder %s182, %s185
      %p194 = scmp.eq.s32.totalorder %s25, 1
      %p195 = por %p193, %p194
      %p196 = scmp.ne.s32.totalorder %s185, %s186
      %p197 = scmp.eq.s32.totalorder %s25, 0
      %p198 = por %p196, %p197
      %p199 = scmp.ne.s32.totalorder %s185, %s186
      %p200 = scmp.eq.s32.totalorder %s26, 1
      %p201 = por %p199, %p200
      %p203 = scmp.ne.s32.totalorder %s186, %s202
      %p204 = scmp.eq.s32.totalorder %s26, 0
      %p205 = por %p203, %p204
      %p206 = scmp.le.s32.totalorder 1, %s20
      %p207 = scmp.lt.s32.totalorder %s20, 3
      %p208 = pnand %p206, %p207
      %p209 = pneg %p208
      // Predicated region
      $region9: #{block35_forward.1} parent=5 // pred_check
        _
      $region10: #{block35_forward.1} parent=5 // pred_check_branch
        %211 = sbr.rel (%p208) target = $region12
      $region11: #{block35_forward.1} parent=5 // pred_region
        %s212 = ssub.s32 %s20, 1
        // Predicated region
        $region13: #{block35_forward.1} parent=11 // pred_check
          %p213 = pneg %p67
        $region14: #{block35_forward.1} parent=11 // pred_check_branch
          %215 = sbr.rel (%p213) target = $region16
        $region15: #{block35_forward.1} parent=11 // pred_region
          _
        $region16: #{block35_forward.1} parent=11 // pred_fallthru
          _
        // Predicated region
        $region17: #{block35_forward.1} parent=11 // pred_check
          %p216 = pneg %p88
        $region18: #{block35_forward.1} parent=11 // pred_check_branch
          %218 = sbr.rel (%p216) target = $region20
        $region19: #{block35_forward.1} parent=11 // pred_region
          _
        $region20: #{block35_forward.1} parent=11 // pred_fallthru
          _
        // Predicated region
        $region21: #{block35_forward.1} parent=11 // pred_check
          %p219 = pneg %p109
        $region22: #{block35_forward.1} parent=11 // pred_check_branch
          %221 = sbr.rel (%p219) target = $region24
        $region23: #{block35_forward.1} parent=11 // pred_region
          _
        $region24: #{block35_forward.1} parent=11 // pred_fallthru
          _
        // Predicated region
        $region25: #{block35_forward.1} parent=11 // pred_check
          %p222 = pneg %p130
        $region26: #{block35_forward.1} parent=11 // pred_check_branch
          %224 = sbr.rel (%p222) target = $region28
        $region27: #{block35_forward.1} parent=11 // pred_region
          _
        $region28: #{block35_forward.1} parent=11 // pred_fallthru
          _
        // Predicated region
        $region29: #{block35_forward.1} parent=11 // pred_check
          %p225 = pneg %p151
        $region30: #{block35_forward.1} parent=11 // pred_check_branch
          %227 = sbr.rel (%p225) target = $region32
        $region31: #{block35_forward.1} parent=11 // pred_region
          %229 = vsyncadd [#allocation7], 0
          %s230 = sshll.u32 %s5, 4
          %s231 = int_to_ptr.hbm [resolvable:$true] %s230
          %s232 = sshll.u32 [#allocation6], 4
          %s233 = int_to_ptr.vmem [resolvable:$true] %s232
          %238 = dma.hbm_to_vmem [thread:$0]  %s231, 1536, %s233, [#allocation7], 128, 128, 8
        $region32: #{block35_forward.1} parent=11 // pred_fallthru
          _
        // Predicated region
        $region33: #{block35_forward.1} parent=11 // pred_check
          %p239 = pneg %p172
        $region34: #{block35_forward.1} parent=11 // pred_check_branch
          %241 = sbr.rel (%p239) target = $region36
        $region35: #{block35_forward.1} parent=11 // pred_region
          _
        $region36: #{block35_forward.1} parent=11 // pred_fallthru
          _
      $region12: #{block35_forward.1} parent=5 // pred_fallthru
        _
      %p242 = scmp.lt.s32.totalorder %s20, 2
      // Predicated region
      $region37: #{block35_forward.1} parent=5 // pred_check
        %p243 = pneg %p242
      $region38: #{block35_forward.1} parent=5 // pred_check_branch
        %245 = sbr.rel (%p243) target = $region40
      $region39: #{block35_forward.1} parent=5 // pred_region
        // Predicated region
        $region41: #{block35_forward.1} parent=39 // pred_check
          %p246 = pneg %p40
        $region42: #{block35_forward.1} parent=39 // pred_check_branch
          %248 = sbr.rel (%p246) target = $region44
        $region43: #{block35_forward.1} parent=39 // pred_region
          %s249 = sand.u32 %s30, 1
          %s250 = scalar_lea.sflag [#allocation4], %s249
          %s251 = sand.u32 %s30, 1
          %s252 = smul.addr %s251, 512
          %s253 = scalar_lea.vmem [#allocation3], %s252
          %255 = vsyncadd %s250, 0
          %s256 = smul.addr %s20, 64
          %s257 = smul.addr %s256, 8
          %s258 = scalar_lea.hbm %s0, %s257
          %s259 = sshll.u32 %s258, 4
          %s260 = int_to_ptr.hbm [resolvable:$true] %s259
          %s261 = sshll.u32 %s253, 4
          %s262 = int_to_ptr.vmem [resolvable:$true] %s261
          %267 = dma.hbm_to_vmem [thread:$0]  %s260, 8192, %s262, %s250, 256, 256, 16
        $region44: #{block35_forward.1} parent=39 // pred_fallthru
          _
      $region40: #{block35_forward.1} parent=5 // pred_fallthru
        _
      %p268 = scmp.le.s32.totalorder 1, %s20
      %p269 = scmp.lt.s32.totalorder %s20, 3
      %p270 = pnand %p268, %p269
      %p271 = pneg %p270
      // Predicated region
      $region45: #{block35_forward.1} parent=5 // pred_check
        _
      $region46: #{block35_forward.1} parent=5 // pred_check_branch
        %273 = sbr.rel (%p270) target = $region48
      $region47: #{block35_forward.1} parent=5 // pred_region
        %s274 = ssub.s32 %s20, 1
        %s275 = sand.u32 %s33, 1
        %s276 = scalar_lea.sflag [#allocation4], %s275
        %s277 = sand.u32 %s33, 1
        %s278 = smul.addr %s277, 512
        %s279 = scalar_lea.vmem [#allocation3], %s278
        // Predicated region
        $region49: #{block35_forward.1} parent=47 // pred_check
          %p280 = pneg %p46
        $region50: #{block35_forward.1} parent=47 // pred_check_branch
          %282 = sbr.rel (%p280) target = $region52
        $region51: #{block35_forward.1} parent=47 // pred_region
          %284 = dma.done %s276, 8192
        $region52: #{block35_forward.1} parent=47 // pred_fallthru
          _
        // Predicated region
        $region53: #{block35_forward.1} parent=47 // pred_check
          %p285 = pneg %p151
        $region54: #{block35_forward.1} parent=47 // pred_check_branch
          %287 = sbr.rel (%p285) target = $region56
        $region55: #{block35_forward.1} parent=47 // pred_region
          %289 = dma.done [#allocation7], 1536
        $region56: #{block35_forward.1} parent=47 // pred_fallthru
          _
        %s290 = sand.u32 %s33, 1
        %s291 = scalar_lea.sflag [#allocation4], %s290
        %s292 = sand.u32 %s33, 1
        %s293 = smul.addr %s292, 512
        %s294 = scalar_lea.vmem [#allocation3], %s293
        %p295 = pneg %p46
        %p296 = pneg %p43
        %p297 = pneg %p67
        %p298 = pneg %p64
        %p299 = pneg %p88
        %p300 = pneg %p85
        %p301 = pneg %p109
        %p302 = pneg %p106
        %p303 = pneg %p130
        %p304 = pneg %p127
        %p305 = pneg %p151
        %p306 = pneg %p148
        %p307 = pneg %p172
        %p308 = pneg %p169
        %p309 = pneg %p198
        %p310 = pneg %p195
        %s311 = sand.u32 %s185, 1
        %s312 = scalar_lea.sflag [#allocation5], %s311
        %s313 = sand.u32 %s185, 1
        %s314 = smul.addr %s313, 512
        %s315 = scalar_lea.vmem [#allocation8], %s314
        %v317 = vld [vmem:[%s279] sm:$0xff]
        %v318 = vld [vmem:[%s279 + $0x8] sm:$0xff]
        %v319 = vld [vmem:[%s279 + $0x10] sm:$0xff]
        %v320 = vld [vmem:[%s279 + $0x18] sm:$0xff]
        %v321 = vld [vmem:[%s279 + $0x20] sm:$0xff]
        %v322 = vld [vmem:[%s279 + $0x28] sm:$0xff]
        %v323 = vld [vmem:[%s279 + $0x30] sm:$0xff]
        %v324 = vld [vmem:[%s279 + $0x38] sm:$0xff]
        %v325 = vld [vmem:[%s279 + $0x40] sm:$0xff]
        %v326 = vld [vmem:[%s279 + $0x48] sm:$0xff]
        %v327 = vld [vmem:[%s279 + $0x50] sm:$0xff]
        %v328 = vld [vmem:[%s279 + $0x58] sm:$0xff]
        %v329 = vld [vmem:[%s279 + $0x60] sm:$0xff]
        %v330 = vld [vmem:[%s279 + $0x68] sm:$0xff]
        %v331 = vld [vmem:[%s279 + $0x70] sm:$0xff]
        %v332 = vld [vmem:[%s279 + $0x78] sm:$0xff]
        %v333 = vld [vmem:[%s279 + $0x80] sm:$0xff]
        %v334 = vld [vmem:[%s279 + $0x88] sm:$0xff]
        %v335 = vld [vmem:[%s279 + $0x90] sm:$0xff]
        %v336 = vld [vmem:[%s279 + $0x98] sm:$0xff]
        %v337 = vld [vmem:[%s279 + $0xa0] sm:$0xff]
        %v338 = vld [vmem:[%s279 + $0xa8] sm:$0xff]
        %v339 = vld [vmem:[%s279 + $0xb0] sm:$0xff]
        %v340 = vld [vmem:[%s279 + $0xb8] sm:$0xff]
        %v341 = vld [vmem:[%s279 + $0xc0] sm:$0xff]
        %v342 = vld [vmem:[%s279 + $0xc8] sm:$0xff]
        %v343 = vld [vmem:[%s279 + $0xd0] sm:$0xff]
        %v344 = vld [vmem:[%s279 + $0xd8] sm:$0xff]
        %v345 = vld [vmem:[%s279 + $0xe0] sm:$0xff]
        %v346 = vld [vmem:[%s279 + $0xe8] sm:$0xff]
        %v347 = vld [vmem:[%s279 + $0xf0] sm:$0xff]
        %v348 = vld [vmem:[%s279 + $0xf8] sm:$0xff]
        %v349 = vld [vmem:[%s279 + $0x100] sm:$0xff]
        %v350 = vld [vmem:[%s279 + $0x108] sm:$0xff]
        %v351 = vld [vmem:[%s279 + $0x110] sm:$0xff]
        %v352 = vld [vmem:[%s279 + $0x118] sm:$0xff]
        %v353 = vld [vmem:[%s279 + $0x120] sm:$0xff]
        %v354 = vld [vmem:[%s279 + $0x128] sm:$0xff]
        %v355 = vld [vmem:[%s279 + $0x130] sm:$0xff]
        %v356 = vld [vmem:[%s279 + $0x138] sm:$0xff]
        %v357 = vld [vmem:[%s279 + $0x140] sm:$0xff]
        %v358 = vld [vmem:[%s279 + $0x148] sm:$0xff]
        %v359 = vld [vmem:[%s279 + $0x150] sm:$0xff]
        %v360 = vld [vmem:[%s279 + $0x158] sm:$0xff]
        %v361 = vld [vmem:[%s279 + $0x160] sm:$0xff]
        %v362 = vld [vmem:[%s279 + $0x168] sm:$0xff]
        %v363 = vld [vmem:[%s279 + $0x170] sm:$0xff]
        %v364 = vld [vmem:[%s279 + $0x178] sm:$0xff]
        %v365 = vld [vmem:[%s279 + $0x180] sm:$0xff]
        %v366 = vld [vmem:[%s279 + $0x188] sm:$0xff]
        %v367 = vld [vmem:[%s279 + $0x190] sm:$0xff]
        %v368 = vld [vmem:[%s279 + $0x198] sm:$0xff]
        %v369 = vld [vmem:[%s279 + $0x1a0] sm:$0xff]
        %v370 = vld [vmem:[%s279 + $0x1a8] sm:$0xff]
        %v371 = vld [vmem:[%s279 + $0x1b0] sm:$0xff]
        %v372 = vld [vmem:[%s279 + $0x1b8] sm:$0xff]
        %v373 = vld [vmem:[%s279 + $0x1c0] sm:$0xff]
        %v374 = vld [vmem:[%s279 + $0x1c8] sm:$0xff]
        %v375 = vld [vmem:[%s279 + $0x1d0] sm:$0xff]
        %v376 = vld [vmem:[%s279 + $0x1d8] sm:$0xff]
        %v377 = vld [vmem:[%s279 + $0x1e0] sm:$0xff]
        %v378 = vld [vmem:[%s279 + $0x1e8] sm:$0xff]
        %v379 = vld [vmem:[%s279 + $0x1f0] sm:$0xff]
        %v380 = vld [vmem:[%s279 + $0x1f8] sm:$0xff]
        %v381 = vld [vmem:[%s6] sm:$0x3]
        %v383 = vperm.slane %v381, 0
        %v384 = vperm.slane %v381, 1
        %v387 = vadd.f32 %v317, %v383
        %v388 = vadd.f32 %v318, %v384
        %v389 = vadd.f32 %v319, %v383
        %v390 = vadd.f32 %v320, %v384
        %v391 = vadd.f32 %v321, %v383
        %v392 = vadd.f32 %v322, %v384
        %v393 = vadd.f32 %v323, %v383
        %v394 = vadd.f32 %v324, %v384
        %v395 = vadd.f32 %v325, %v383
        %v396 = vadd.f32 %v326, %v384
        %v397 = vadd.f32 %v327, %v383
        %v398 = vadd.f32 %v328, %v384
        %v399 = vadd.f32 %v329, %v383
        %v400 = vadd.f32 %v330, %v384
        %v401 = vadd.f32 %v331, %v383
        %v402 = vadd.f32 %v332, %v384
        %v403 = vadd.f32 %v333, %v383
        %v404 = vadd.f32 %v334, %v384
        %v405 = vadd.f32 %v335, %v383
        %v406 = vadd.f32 %v336, %v384
        %v407 = vadd.f32 %v337, %v383
        %v408 = vadd.f32 %v338, %v384
        %v409 = vadd.f32 %v339, %v383
        %v410 = vadd.f32 %v340, %v384
        %v411 = vadd.f32 %v341, %v383
        %v412 = vadd.f32 %v342, %v384
        %v413 = vadd.f32 %v343, %v383
        %v414 = vadd.f32 %v344, %v384
        %v415 = vadd.f32 %v345, %v383
        %v416 = vadd.f32 %v346, %v384
        %v417 = vadd.f32 %v347, %v383
        %v418 = vadd.f32 %v348, %v384
        %v419 = vadd.f32 %v349, %v383
        %v420 = vadd.f32 %v350, %v384
        %v421 = vadd.f32 %v351, %v383
        %v422 = vadd.f32 %v352, %v384
        %v423 = vadd.f32 %v353, %v383
        %v424 = vadd.f32 %v354, %v384
        %v425 = vadd.f32 %v355, %v383
        %v426 = vadd.f32 %v356, %v384
        %v427 = vadd.f32 %v357, %v383
        %v428 = vadd.f32 %v358, %v384
        %v429 = vadd.f32 %v359, %v383
        %v430 = vadd.f32 %v360, %v384
        %v431 = vadd.f32 %v361, %v383
        %v432 = vadd.f32 %v362, %v384
        %v433 = vadd.f32 %v363, %v383
        %v434 = vadd.f32 %v364, %v384
        %v435 = vadd.f32 %v365, %v383
        %v436 = vadd.f32 %v366, %v384
        %v437 = vadd.f32 %v367, %v383
        %v438 = vadd.f32 %v368, %v384
        %v439 = vadd.f32 %v369, %v383
        %v440 = vadd.f32 %v370, %v384
        %v441 = vadd.f32 %v371, %v383
        %v442 = vadd.f32 %v372, %v384
        %v443 = vadd.f32 %v373, %v383
        %v444 = vadd.f32 %v374, %v384
        %v445 = vadd.f32 %v375, %v383
        %v446 = vadd.f32 %v376, %v384
        %v447 = vadd.f32 %v377, %v383
        %v448 = vadd.f32 %v378, %v384
        %v449 = vadd.f32 %v379, %v383
        %v450 = vadd.f32 %v380, %v384
        %451 = vst [vmem:[%s315] sm:$0xff] %v387
        %452 = vst [vmem:[%s315 + $0x8] sm:$0xff] %v388
        %453 = vst [vmem:[%s315 + $0x10] sm:$0xff] %v389
        %454 = vst [vmem:[%s315 + $0x18] sm:$0xff] %v390
        %455 = vst [vmem:[%s315 + $0x20] sm:$0xff] %v391
        %456 = vst [vmem:[%s315 + $0x28] sm:$0xff] %v392
        %457 = vst [vmem:[%s315 + $0x30] sm:$0xff] %v393
        %458 = vst [vmem:[%s315 + $0x38] sm:$0xff] %v394
        %459 = vst [vmem:[%s315 + $0x40] sm:$0xff] %v395
        %460 = vst [vmem:[%s315 + $0x48] sm:$0xff] %v396
        %461 = vst [vmem:[%s315 + $0x50] sm:$0xff] %v397
        %462 = vst [vmem:[%s315 + $0x58] sm:$0xff] %v398
        %463 = vst [vmem:[%s315 + $0x60] sm:$0xff] %v399
        %464 = vst [vmem:[%s315 + $0x68] sm:$0xff] %v400
        %465 = vst [vmem:[%s315 + $0x70] sm:$0xff] %v401
        %466 = vst [vmem:[%s315 + $0x78] sm:$0xff] %v402
        %467 = vst [vmem:[%s315 + $0x80] sm:$0xff] %v403
        %468 = vst [vmem:[%s315 + $0x88] sm:$0xff] %v404
        %469 = vst [vmem:[%s315 + $0x90] sm:$0xff] %v405
        %470 = vst [vmem:[%s315 + $0x98] sm:$0xff] %v406
        %471 = vst [vmem:[%s315 + $0xa0] sm:$0xff] %v407
        %472 = vst [vmem:[%s315 + $0xa8] sm:$0xff] %v408
        %473 = vst [vmem:[%s315 + $0xb0] sm:$0xff] %v409
        %474 = vst [vmem:[%s315 + $0xb8] sm:$0xff] %v410
        %475 = vst [vmem:[%s315 + $0xc0] sm:$0xff] %v411
        %476 = vst [vmem:[%s315 + $0xc8] sm:$0xff] %v412
        %477 = vst [vmem:[%s315 + $0xd0] sm:$0xff] %v413
        %478 = vst [vmem:[%s315 + $0xd8] sm:$0xff] %v414
        %479 = vst [vmem:[%s315 + $0xe0] sm:$0xff] %v415
        %480 = vst [vmem:[%s315 + $0xe8] sm:$0xff] %v416
        %481 = vst [vmem:[%s315 + $0xf0] sm:$0xff] %v417
        %482 = vst [vmem:[%s315 + $0xf8] sm:$0xff] %v418
        %483 = vst [vmem:[%s315 + $0x100] sm:$0xff] %v419
        %484 = vst [vmem:[%s315 + $0x108] sm:$0xff] %v420
        %485 = vst [vmem:[%s315 + $0x110] sm:$0xff] %v421
        %486 = vst [vmem:[%s315 + $0x118] sm:$0xff] %v422
        %487 = vst [vmem:[%s315 + $0x120] sm:$0xff] %v423
        %488 = vst [vmem:[%s315 + $0x128] sm:$0xff] %v424
        %489 = vst [vmem:[%s315 + $0x130] sm:$0xff] %v425
        %490 = vst [vmem:[%s315 + $0x138] sm:$0xff] %v426
        %491 = vst [vmem:[%s315 + $0x140] sm:$0xff] %v427
        %492 = vst [vmem:[%s315 + $0x148] sm:$0xff] %v428
        %493 = vst [vmem:[%s315 + $0x150] sm:$0xff] %v429
        %494 = vst [vmem:[%s315 + $0x158] sm:$0xff] %v430
        %495 = vst [vmem:[%s315 + $0x160] sm:$0xff] %v431
        %496 = vst [vmem:[%s315 + $0x168] sm:$0xff] %v432
        %497 = vst [vmem:[%s315 + $0x170] sm:$0xff] %v433
        %498 = vst [vmem:[%s315 + $0x178] sm:$0xff] %v434
        %499 = vst [vmem:[%s315 + $0x180] sm:$0xff] %v435
        %500 = vst [vmem:[%s315 + $0x188] sm:$0xff] %v436
        %501 = vst [vmem:[%s315 + $0x190] sm:$0xff] %v437
        %502 = vst [vmem:[%s315 + $0x198] sm:$0xff] %v438
        %503 = vst [vmem:[%s315 + $0x1a0] sm:$0xff] %v439
        %504 = vst [vmem:[%s315 + $0x1a8] sm:$0xff] %v440
        %505 = vst [vmem:[%s315 + $0x1b0] sm:$0xff] %v441
        %506 = vst [vmem:[%s315 + $0x1b8] sm:$0xff] %v442
        %507 = vst [vmem:[%s315 + $0x1c0] sm:$0xff] %v443
        %508 = vst [vmem:[%s315 + $0x1c8] sm:$0xff] %v444
        %509 = vst [vmem:[%s315 + $0x1d0] sm:$0xff] %v445
        %510 = vst [vmem:[%s315 + $0x1d8] sm:$0xff] %v446
        %511 = vst [vmem:[%s315 + $0x1e0] sm:$0xff] %v447
        %512 = vst [vmem:[%s315 + $0x1e8] sm:$0xff] %v448
        %513 = vst [vmem:[%s315 + $0x1f0] sm:$0xff] %v449
        %514 = vst [vmem:[%s315 + $0x1f8] sm:$0xff] %v450
        %vm515 = vcmask 261120
        %516 = vst.msk [vmem:[#allocation2] sm:$0xff] %vm515, 0.0
        %517 = vst.msk [vmem:[#allocation2 + $0x8] sm:$0xff] %vm515, 0.0
        %518 = vst.msk [vmem:[#allocation2 + $0x10] sm:$0xff] %vm515, 0.0
        %519 = vst.msk [vmem:[#allocation2 + $0x18] sm:$0xff] %vm515, 0.0
        %520 = vst.msk [vmem:[#allocation2 + $0x20] sm:$0xff] %vm515, 0.0
        %521 = vst.msk [vmem:[#allocation2 + $0x28] sm:$0xff] %vm515, 0.0
        %522 = vst.msk [vmem:[#allocation2 + $0x30] sm:$0xff] %vm515, 0.0
        %523 = vst.msk [vmem:[#allocation2 + $0x38] sm:$0xff] %vm515, 0.0
        %524 = vst.msk [vmem:[#allocation2 + $0x40] sm:$0xff] %vm515, 0.0
        %525 = vst.msk [vmem:[#allocation2 + $0x48] sm:$0xff] %vm515, 0.0
        %526 = vst.msk [vmem:[#allocation2 + $0x50] sm:$0xff] %vm515, 0.0
        %527 = vst.msk [vmem:[#allocation2 + $0x58] sm:$0xff] %vm515, 0.0
        %528 = vst.msk [vmem:[#allocation2 + $0x60] sm:$0xff] %vm515, 0.0
        %529 = vst.msk [vmem:[#allocation2 + $0x68] sm:$0xff] %vm515, 0.0
        %530 = vst.msk [vmem:[#allocation2 + $0x70] sm:$0xff] %vm515, 0.0
        %531 = vst.msk [vmem:[#allocation2 + $0x78] sm:$0xff] %vm515, 0.0
        %532 = vst.msk [vmem:[#allocation2 + $0x80] sm:$0xff] %vm515, 0.0
        %533 = vst.msk [vmem:[#allocation2 + $0x88] sm:$0xff] %vm515, 0.0
        %534 = vst.msk [vmem:[#allocation2 + $0x90] sm:$0xff] %vm515, 0.0
        %535 = vst.msk [vmem:[#allocation2 + $0x98] sm:$0xff] %vm515, 0.0
        %536 = vst.msk [vmem:[#allocation2 + $0xa0] sm:$0xff] %vm515, 0.0
        %537 = vst.msk [vmem:[#allocation2 + $0xa8] sm:$0xff] %vm515, 0.0
        %538 = vst.msk [vmem:[#allocation2 + $0xb0] sm:$0xff] %vm515, 0.0
        %539 = vst.msk [vmem:[#allocation2 + $0xb8] sm:$0xff] %vm515, 0.0
        %540 = vst.msk [vmem:[#allocation2 + $0xc0] sm:$0xff] %vm515, 0.0
        %541 = vst.msk [vmem:[#allocation2 + $0xc8] sm:$0xff] %vm515, 0.0
        %542 = vst.msk [vmem:[#allocation2 + $0xd0] sm:$0xff] %vm515, 0.0
        %543 = vst.msk [vmem:[#allocation2 + $0xd8] sm:$0xff] %vm515, 0.0
        %544 = vst.msk [vmem:[#allocation2 + $0xe0] sm:$0xff] %vm515, 0.0
        %545 = vst.msk [vmem:[#allocation2 + $0xe8] sm:$0xff] %vm515, 0.0
        %546 = vst.msk [vmem:[#allocation2 + $0xf0] sm:$0xff] %vm515, 0.0
        %547 = vst.msk [vmem:[#allocation2 + $0xf8] sm:$0xff] %vm515, 0.0
        %548 = vst.msk [vmem:[#allocation2 + $0x100] sm:$0xff] %vm515, 0.0
        %549 = vst.msk [vmem:[#allocation2 + $0x108] sm:$0xff] %vm515, 0.0
        %550 = vst.msk [vmem:[#allocation2 + $0x110] sm:$0xff] %vm515, 0.0
        %551 = vst.msk [vmem:[#allocation2 + $0x118] sm:$0xff] %vm515, 0.0
        %552 = vst.msk [vmem:[#allocation2 + $0x120] sm:$0xff] %vm515, 0.0
        %553 = vst.msk [vmem:[#allocation2 + $0x128] sm:$0xff] %vm515, 0.0
        %554 = vst.msk [vmem:[#allocation2 + $0x130] sm:$0xff] %vm515, 0.0
        %555 = vst.msk [vmem:[#allocation2 + $0x138] sm:$0xff] %vm515, 0.0
        %556 = vst.msk [vmem:[#allocation2 + $0x140] sm:$0xff] %vm515, 0.0
        %557 = vst.msk [vmem:[#allocation2 + $0x148] sm:$0xff] %vm515, 0.0
        %558 = vst.msk [vmem:[#allocation2 + $0x150] sm:$0xff] %vm515, 0.0
        %559 = vst.msk [vmem:[#allocation2 + $0x158] sm:$0xff] %vm515, 0.0
        %560 = vst.msk [vmem:[#allocation2 + $0x160] sm:$0xff] %vm515, 0.0
        %561 = vst.msk [vmem:[#allocation2 + $0x168] sm:$0xff] %vm515, 0.0
        %562 = vst.msk [vmem:[#allocation2 + $0x170] sm:$0xff] %vm515, 0.0
        %563 = vst.msk [vmem:[#allocation2 + $0x178] sm:$0xff] %vm515, 0.0
        %564 = vst.msk [vmem:[#allocation2 + $0x180] sm:$0xff] %vm515, 0.0
        %565 = vst.msk [vmem:[#allocation2 + $0x188] sm:$0xff] %vm515, 0.0
        %566 = vst.msk [vmem:[#allocation2 + $0x190] sm:$0xff] %vm515, 0.0
        %567 = vst.msk [vmem:[#allocation2 + $0x198] sm:$0xff] %vm515, 0.0
        %568 = vst.msk [vmem:[#allocation2 + $0x1a0] sm:$0xff] %vm515, 0.0
        %569 = vst.msk [vmem:[#allocation2 + $0x1a8] sm:$0xff] %vm515, 0.0
        %570 = vst.msk [vmem:[#allocation2 + $0x1b0] sm:$0xff] %vm515, 0.0
        %571 = vst.msk [vmem:[#allocation2 + $0x1b8] sm:$0xff] %vm515, 0.0
        %572 = vst.msk [vmem:[#allocation2 + $0x1c0] sm:$0xff] %vm515, 0.0
        %573 = vst.msk [vmem:[#allocation2 + $0x1c8] sm:$0xff] %vm515, 0.0
        %574 = vst.msk [vmem:[#allocation2 + $0x1d0] sm:$0xff] %vm515, 0.0
        %575 = vst.msk [vmem:[#allocation2 + $0x1d8] sm:$0xff] %vm515, 0.0
        %576 = vst.msk [vmem:[#allocation2 + $0x1e0] sm:$0xff] %vm515, 0.0
        %577 = vst.msk [vmem:[#allocation2 + $0x1e8] sm:$0xff] %vm515, 0.0
        %578 = vst.msk [vmem:[#allocation2 + $0x1f0] sm:$0xff] %vm515, 0.0
        %579 = vst.msk [vmem:[#allocation2 + $0x1f8] sm:$0xff] %vm515, 0.0
        %580 = vst.msk [vmem:[#allocation2 + $0x200] sm:$0xff] %vm515, 0.0
        %581 = vst.msk [vmem:[#allocation2 + $0x208] sm:$0xff] %vm515, 0.0
        %582 = vst.msk [vmem:[#allocation2 + $0x210] sm:$0xff] %vm515, 0.0
        %583 = vst.msk [vmem:[#allocation2 + $0x218] sm:$0xff] %vm515, 0.0
        %584 = vst.msk [vmem:[#allocation2 + $0x220] sm:$0xff] %vm515, 0.0
        %585 = vst.msk [vmem:[#allocation2 + $0x228] sm:$0xff] %vm515, 0.0
        %586 = vst.msk [vmem:[#allocation2 + $0x230] sm:$0xff] %vm515, 0.0
        %587 = vst.msk [vmem:[#allocation2 + $0x238] sm:$0xff] %vm515, 0.0
        %v588 = vld [vmem:[%s279] sm:$0xff]
        %v589 = vld [vmem:[%s279 + $0x8] sm:$0xff]
        %v590 = vld [vmem:[%s279 + $0x10] sm:$0xff]
        %v591 = vld [vmem:[%s279 + $0x18] sm:$0xff]
        %v592 = vld [vmem:[%s279 + $0x20] sm:$0xff]
        %v593 = vld [vmem:[%s279 + $0x28] sm:$0xff]
        %v594 = vld [vmem:[%s279 + $0x30] sm:$0xff]
        %v595 = vld [vmem:[%s279 + $0x38] sm:$0xff]
        %v596 = vld [vmem:[%s279 + $0x40] sm:$0xff]
        %v597 = vld [vmem:[%s279 + $0x48] sm:$0xff]
        %v598 = vld [vmem:[%s279 + $0x50] sm:$0xff]
        %v599 = vld [vmem:[%s279 + $0x58] sm:$0xff]
        %v600 = vld [vmem:[%s279 + $0x60] sm:$0xff]
        %v601 = vld [vmem:[%s279 + $0x68] sm:$0xff]
        %v602 = vld [vmem:[%s279 + $0x70] sm:$0xff]
        %v603 = vld [vmem:[%s279 + $0x78] sm:$0xff]
        %v604 = vld [vmem:[%s279 + $0x80] sm:$0xff]
        %v605 = vld [vmem:[%s279 + $0x88] sm:$0xff]
        %v606 = vld [vmem:[%s279 + $0x90] sm:$0xff]
        %v607 = vld [vmem:[%s279 + $0x98] sm:$0xff]
        %v608 = vld [vmem:[%s279 + $0xa0] sm:$0xff]
        %v609 = vld [vmem:[%s279 + $0xa8] sm:$0xff]
        %v610 = vld [vmem:[%s279 + $0xb0] sm:$0xff]
        %v611 = vld [vmem:[%s279 + $0xb8] sm:$0xff]
        %v612 = vld [vmem:[%s279 + $0xc0] sm:$0xff]
        %v613 = vld [vmem:[%s279 + $0xc8] sm:$0xff]
        %v614 = vld [vmem:[%s279 + $0xd0] sm:$0xff]
        %v615 = vld [vmem:[%s279 + $0xd8] sm:$0xff]
        %v616 = vld [vmem:[%s279 + $0xe0] sm:$0xff]
        %v617 = vld [vmem:[%s279 + $0xe8] sm:$0xff]
        %v618 = vld [vmem:[%s279 + $0xf0] sm:$0xff]
        %v619 = vld [vmem:[%s279 + $0xf8] sm:$0xff]
        %v620 = vld [vmem:[%s279 + $0x100] sm:$0xff]
        %v621 = vld [vmem:[%s279 + $0x108] sm:$0xff]
        %v622 = vld [vmem:[%s279 + $0x110] sm:$0xff]
        %v623 = vld [vmem:[%s279 + $0x118] sm:$0xff]
        %v624 = vld [vmem:[%s279 + $0x120] sm:$0xff]
        %v625 = vld [vmem:[%s279 + $0x128] sm:$0xff]
        %v626 = vld [vmem:[%s279 + $0x130] sm:$0xff]
        %v627 = vld [vmem:[%s279 + $0x138] sm:$0xff]
        %v628 = vld [vmem:[%s279 + $0x140] sm:$0xff]
        %v629 = vld [vmem:[%s279 + $0x148] sm:$0xff]
        %v630 = vld [vmem:[%s279 + $0x150] sm:$0xff]
        %v631 = vld [vmem:[%s279 + $0x158] sm:$0xff]
        %v632 = vld [vmem:[%s279 + $0x160] sm:$0xff]
        %v633 = vld [vmem:[%s279 + $0x168] sm:$0xff]
        %v634 = vld [vmem:[%s279 + $0x170] sm:$0xff]
        %v635 = vld [vmem:[%s279 + $0x178] sm:$0xff]
        %v636 = vld [vmem:[%s279 + $0x180] sm:$0xff]
        %v637 = vld [vmem:[%s279 + $0x188] sm:$0xff]
        %v638 = vld [vmem:[%s279 + $0x190] sm:$0xff]
        %v639 = vld [vmem:[%s279 + $0x198] sm:$0xff]
        %v640 = vld [vmem:[%s279 + $0x1a0] sm:$0xff]
        %v641 = vld [vmem:[%s279 + $0x1a8] sm:$0xff]
        %v642 = vld [vmem:[%s279 + $0x1b0] sm:$0xff]
        %v643 = vld [vmem:[%s279 + $0x1b8] sm:$0xff]
        %v644 = vld [vmem:[%s279 + $0x1c0] sm:$0xff]
        %v645 = vld [vmem:[%s279 + $0x1c8] sm:$0xff]
        %v646 = vld [vmem:[%s279 + $0x1d0] sm:$0xff]
        %v647 = vld [vmem:[%s279 + $0x1d8] sm:$0xff]
        %v648 = vld [vmem:[%s279 + $0x1e0] sm:$0xff]
        %v649 = vld [vmem:[%s279 + $0x1e8] sm:$0xff]
        %v650 = vld [vmem:[%s279 + $0x1f0] sm:$0xff]
        %v651 = vld [vmem:[%s279 + $0x1f8] sm:$0xff]
        %v652 = vpack.c.bf16 %v590, %v588
        %v653 = vpack.c.bf16 %v591, %v589
        %v654 = vpack.c.bf16 %v594, %v592
        %v655 = vpack.c.bf16 %v595, %v593
        %v656 = vpack.c.bf16 %v598, %v596
        %v657 = vpack.c.bf16 %v599, %v597
        %v658 = vpack.c.bf16 %v602, %v600
        %v659 = vpack.c.bf16 %v603, %v601
        %v660 = vpack.c.bf16 %v606, %v604
        %v661 = vpack.c.bf16 %v607, %v605
        %v662 = vpack.c.bf16 %v610, %v608
        %v663 = vpack.c.bf16 %v611, %v609
        %v664 = vpack.c.bf16 %v614, %v612
        %v665 = vpack.c.bf16 %v615, %v613
        %v666 = vpack.c.bf16 %v618, %v616
        %v667 = vpack.c.bf16 %v619, %v617
        %v668 = vpack.c.bf16 %v622, %v620
        %v669 = vpack.c.bf16 %v623, %v621
        %v670 = vpack.c.bf16 %v626, %v624
        %v671 = vpack.c.bf16 %v627, %v625
        %v672 = vpack.c.bf16 %v630, %v628
        %v673 = vpack.c.bf16 %v631, %v629
        %v674 = vpack.c.bf16 %v634, %v632
        %v675 = vpack.c.bf16 %v635, %v633
        %v676 = vpack.c.bf16 %v638, %v636
        %v677 = vpack.c.bf16 %v639, %v637
        %v678 = vpack.c.bf16 %v642, %v640
        %v679 = vpack.c.bf16 %v643, %v641
        %v680 = vpack.c.bf16 %v646, %v644
        %v681 = vpack.c.bf16 %v647, %v645
        %v682 = vpack.c.bf16 %v650, %v648
        %v683 = vpack.c.bf16 %v651, %v649
        %v684 = vld [vmem:[%s1] sm:$0xf]
        %v685 = vld [vmem:[%s1 + $0x4] sm:$0xf]
        %v686 = vld [vmem:[%s1 + $0x8] sm:$0xf]
        %v687 = vld [vmem:[%s1 + $0xc] sm:$0xf]
        %v688 = vld [vmem:[%s1 + $0x10] sm:$0xf]
        %v689 = vld [vmem:[%s1 + $0x14] sm:$0xf]
        %v690 = vld [vmem:[%s1 + $0x18] sm:$0xf]
        %v691 = vld [vmem:[%s1 + $0x1c] sm:$0xf]
        %v692 = vld [vmem:[%s1 + $0x20] sm:$0xf]
        %v693 = vld [vmem:[%s1 + $0x24] sm:$0xf]
        %v694 = vld [vmem:[%s1 + $0x28] sm:$0xf]
        %v695 = vld [vmem:[%s1 + $0x2c] sm:$0xf]
        %v696 = vld [vmem:[%s1 + $0x30] sm:$0xf]
        %v697 = vld [vmem:[%s1 + $0x34] sm:$0xf]
        %v698 = vld [vmem:[%s1 + $0x38] sm:$0xf]
        %v699 = vld [vmem:[%s1 + $0x3c] sm:$0xf]
        %v700 = vld [vmem:[%s1 + $0x40] sm:$0xf]
        %v701 = vld [vmem:[%s1 + $0x44] sm:$0xf]
        %v702 = vld [vmem:[%s1 + $0x48] sm:$0xf]
        %v703 = vld [vmem:[%s1 + $0x4c] sm:$0xf]
        %v704 = vld [vmem:[%s1 + $0x50] sm:$0xf]
        %v705 = vld [vmem:[%s1 + $0x54] sm:$0xf]
        %v706 = vld [vmem:[%s1 + $0x58] sm:$0xf]
        %v707 = vld [vmem:[%s1 + $0x5c] sm:$0xf]
        %v708 = vld [vmem:[%s1 + $0x60] sm:$0xf]
        %v709 = vld [vmem:[%s1 + $0x64] sm:$0xf]
        %v710 = vld [vmem:[%s1 + $0x68] sm:$0xf]
        %v711 = vld [vmem:[%s1 + $0x6c] sm:$0xf]
        %v712 = vld [vmem:[%s1 + $0x70] sm:$0xf]
        %v713 = vld [vmem:[%s1 + $0x74] sm:$0xf]
        %v714 = vld [vmem:[%s1 + $0x78] sm:$0xf]
        %v715 = vld [vmem:[%s1 + $0x7c] sm:$0xf]
        %v716 = vld [vmem:[%s2] sm:$0x1]
        %v718 = vperm.slane %v716, 0
        %v752 = vunpack.c.l.b16 %v684
        %v753 = vunpack.c.l.b16 %v685
        %v754 = vunpack.c.l.b16 %v686
        %v755 = vunpack.c.l.b16 %v687
        %v756 = vunpack.c.l.b16 %v688
        %v757 = vunpack.c.l.b16 %v689
        %v758 = vunpack.c.l.b16 %v690
        %v759 = vunpack.c.l.b16 %v691
        %v760 = vunpack.c.l.b16 %v692
        %v761 = vunpack.c.l.b16 %v693
        %v762 = vunpack.c.l.b16 %v694
        %v763 = vunpack.c.l.b16 %v695
        %v764 = vunpack.c.l.b16 %v696
        %v765 = vunpack.c.l.b16 %v697
        %v766 = vunpack.c.l.b16 %v698
        %v767 = vunpack.c.l.b16 %v699
        %v768 = vunpack.c.l.b16 %v700
        %v769 = vunpack.c.l.b16 %v701
        %v770 = vunpack.c.l.b16 %v702
        %v771 = vunpack.c.l.b16 %v703
        %v772 = vunpack.c.l.b16 %v704
        %v773 = vunpack.c.l.b16 %v705
        %v774 = vunpack.c.l.b16 %v706
        %v775 = vunpack.c.l.b16 %v707
        %v776 = vunpack.c.l.b16 %v708
        %v777 = vunpack.c.l.b16 %v709
        %v778 = vunpack.c.l.b16 %v710
        %v779 = vunpack.c.l.b16 %v711
        %v780 = vunpack.c.l.b16 %v712
        %v781 = vunpack.c.l.b16 %v713
        %v782 = vunpack.c.l.b16 %v714
        %v783 = vunpack.c.l.b16 %v715
        %v784 = vpack.c.b16 %v753, %v752
        %v785 = vpack.c.b16 %v755, %v754
        %v786 = vpack.c.b16 %v757, %v756
        %v787 = vpack.c.b16 %v759, %v758
        %v788 = vpack.c.b16 %v761, %v760
        %v789 = vpack.c.b16 %v763, %v762
        %v790 = vpack.c.b16 %v765, %v764
        %v791 = vpack.c.b16 %v767, %v766
        %v792 = vpack.c.b16 %v769, %v768
        %v793 = vpack.c.b16 %v771, %v770
        %v794 = vpack.c.b16 %v773, %v772
        %v795 = vpack.c.b16 %v775, %v774
        %v796 = vpack.c.b16 %v777, %v776
        %v797 = vpack.c.b16 %v779, %v778
        %v798 = vpack.c.b16 %v781, %v780
        %v799 = vpack.c.b16 %v783, %v782
        %816 = vmatpush.bf16.msra.mxu0 %v791
        %817 = vmatpush.bf16.msra.mxu0 %v790
        %818 = vmatpush.bf16.msra.mxu0 %v789
        %819 = vmatpush.bf16.msra.mxu0 %v788
        %820 = vmatpush.bf16.msra.mxu0 %v787
        %821 = vmatpush.bf16.msra.mxu0 %v786
        %822 = vmatpush.bf16.msra.mxu0 %v785
        %823 = vmatpush.bf16.msra.mxu0 %v784
        %824 = vmatmul.bf16.gmra.mxu0 %v652
        %v825 = vpop.f32.mrf.mxu0
        %v826 = vadd.f32 %v718, %v825
        %v827 = vpop.f32.mrf.mxu0
        %v828 = vadd.f32 %v718, %v827
        %829 = vmatmul.bf16.gmra.mxu0 %v654
        %v830 = vpop.f32.mrf.mxu0
        %v831 = vadd.f32 %v718, %v830
        %v832 = vpop.f32.mrf.mxu0
        %v833 = vadd.f32 %v718, %v832
        %834 = vmatmul.bf16.gmra.mxu0 %v656
        %v835 = vpop.f32.mrf.mxu0
        %v836 = vadd.f32 %v718, %v835
        %v837 = vpop.f32.mrf.mxu0
        %v838 = vadd.f32 %v718, %v837
        %839 = vmatmul.bf16.gmra.mxu0 %v658
        %v840 = vpop.f32.mrf.mxu0
        %v841 = vadd.f32 %v718, %v840
        %v842 = vpop.f32.mrf.mxu0
        %v843 = vadd.f32 %v718, %v842
        %844 = vmatmul.bf16.gmra.mxu0 %v660
        %v845 = vpop.f32.mrf.mxu0
        %v846 = vadd.f32 %v718, %v845
        %v847 = vpop.f32.mrf.mxu0
        %v848 = vadd.f32 %v718, %v847
        %849 = vmatmul.bf16.gmra.mxu0 %v662
        %v850 = vpop.f32.mrf.mxu0
        %v851 = vadd.f32 %v718, %v850
        %v852 = vpop.f32.mrf.mxu0
        %v853 = vadd.f32 %v718, %v852
        %854 = vmatmul.bf16.gmra.mxu0 %v664
        %v855 = vpop.f32.mrf.mxu0
        %v856 = vadd.f32 %v718, %v855
        %v857 = vpop.f32.mrf.mxu0
        %v858 = vadd.f32 %v718, %v857
        %859 = vmatmul.bf16.gmra.mxu0 %v666
        %v860 = vpop.f32.mrf.mxu0
        %v861 = vadd.f32 %v718, %v860
        %v862 = vpop.f32.mrf.mxu0
        %v863 = vadd.f32 %v718, %v862
        %864 = vmatmul.bf16.gmra.mxu0 %v668
        %v865 = vpop.f32.mrf.mxu0
        %v866 = vadd.f32 %v718, %v865
        %v867 = vpop.f32.mrf.mxu0
        %v868 = vadd.f32 %v718, %v867
        %869 = vmatmul.bf16.gmra.mxu0 %v670
        %v870 = vpop.f32.mrf.mxu0
        %v871 = vadd.f32 %v718, %v870
        %v872 = vpop.f32.mrf.mxu0
        %v873 = vadd.f32 %v718, %v872
        %874 = vmatmul.bf16.gmra.mxu0 %v672
        %v875 = vpop.f32.mrf.mxu0
        %v876 = vadd.f32 %v718, %v875
        %v877 = vpop.f32.mrf.mxu0
        %v878 = vadd.f32 %v718, %v877
        %879 = vmatmul.bf16.gmra.mxu0 %v674
        %v880 = vpop.f32.mrf.mxu0
        %v881 = vadd.f32 %v718, %v880
        %v882 = vpop.f32.mrf.mxu0
        %v883 = vadd.f32 %v718, %v882
        %884 = vmatmul.bf16.gmra.mxu0 %v676
        %v885 = vpop.f32.mrf.mxu0
        %v886 = vadd.f32 %v718, %v885
        %v887 = vpop.f32.mrf.mxu0
        %v888 = vadd.f32 %v718, %v887
        %889 = vmatmul.bf16.gmra.mxu0 %v678
        %v890 = vpop.f32.mrf.mxu0
        %v891 = vadd.f32 %v718, %v890
        %v892 = vpop.f32.mrf.mxu0
        %v893 = vadd.f32 %v718, %v892
        %894 = vmatmul.bf16.gmra.mxu0 %v680
        %v895 = vpop.f32.mrf.mxu0
        %v896 = vadd.f32 %v718, %v895
        %v897 = vpop.f32.mrf.mxu0
        %v898 = vadd.f32 %v718, %v897
        %899 = vmatmul.bf16.gmra.mxu0 %v682
        %v900 = vpop.f32.mrf.mxu0
        %v901 = vadd.f32 %v718, %v900
        %v902 = vpop.f32.mrf.mxu0
        %v903 = vadd.f32 %v718, %v902
        %904 = vdwg.mxu0
        %905 = vmatpush.bf16.msra.mxu0 %v799
        %906 = vmatpush.bf16.msra.mxu0 %v798
        %907 = vmatpush.bf16.msra.mxu0 %v797
        %908 = vmatpush.bf16.msra.mxu0 %v796
        %909 = vmatpush.bf16.msra.mxu0 %v795
        %910 = vmatpush.bf16.msra.mxu0 %v794
        %911 = vmatpush.bf16.msra.mxu0 %v793
        %912 = vmatpush.bf16.msra.mxu0 %v792
        %913 = vmatmul.bf16.gmra.mxu0 %v653
        %v914 = vpop.f32.mrf.mxu0
        %v915 = vadd.f32 %v826, %v914
        %v916 = vpop.f32.mrf.mxu0
        %v917 = vadd.f32 %v828, %v916
        %918 = vmatmul.bf16.gmra.mxu0 %v655
        %v919 = vpop.f32.mrf.mxu0
        %v920 = vadd.f32 %v831, %v919
        %v921 = vpop.f32.mrf.mxu0
        %v922 = vadd.f32 %v833, %v921
        %923 = vmatmul.bf16.gmra.mxu0 %v657
        %v924 = vpop.f32.mrf.mxu0
        %v925 = vadd.f32 %v836, %v924
        %v926 = vpop.f32.mrf.mxu0
        %v927 = vadd.f32 %v838, %v926
        %928 = vmatmul.bf16.gmra.mxu0 %v659
        %v929 = vpop.f32.mrf.mxu0
        %v930 = vadd.f32 %v841, %v929
        %v931 = vpop.f32.mrf.mxu0
        %v932 = vadd.f32 %v843, %v931
        %933 = vmatmul.bf16.gmra.mxu0 %v661
        %v934 = vpop.f32.mrf.mxu0
        %v935 = vadd.f32 %v846, %v934
        %v936 = vpop.f32.mrf.mxu0
        %v937 = vadd.f32 %v848, %v936
        %938 = vmatmul.bf16.gmra.mxu0 %v663
        %v939 = vpop.f32.mrf.mxu0
        %v940 = vadd.f32 %v851, %v939
        %v941 = vpop.f32.mrf.mxu0
        %v942 = vadd.f32 %v853, %v941
        %943 = vmatmul.bf16.gmra.mxu0 %v665
        %v944 = vpop.f32.mrf.mxu0
        %v945 = vadd.f32 %v856, %v944
        %v946 = vpop.f32.mrf.mxu0
        %v947 = vadd.f32 %v858, %v946
        %948 = vmatmul.bf16.gmra.mxu0 %v667
        %v949 = vpop.f32.mrf.mxu0
        %v950 = vadd.f32 %v861, %v949
        %v951 = vpop.f32.mrf.mxu0
        %v952 = vadd.f32 %v863, %v951
        %953 = vmatmul.bf16.gmra.mxu0 %v669
        %v954 = vpop.f32.mrf.mxu0
        %v955 = vadd.f32 %v866, %v954
        %v956 = vpop.f32.mrf.mxu0
        %v957 = vadd.f32 %v868, %v956
        %958 = vmatmul.bf16.gmra.mxu0 %v671
        %v959 = vpop.f32.mrf.mxu0
        %v960 = vadd.f32 %v871, %v959
        %v961 = vpop.f32.mrf.mxu0
        %v962 = vadd.f32 %v873, %v961
        %963 = vmatmul.bf16.gmra.mxu0 %v673
        %v964 = vpop.f32.mrf.mxu0
        %v965 = vadd.f32 %v876, %v964
        %v966 = vpop.f32.mrf.mxu0
        %v967 = vadd.f32 %v878, %v966
        %968 = vmatmul.bf16.gmra.mxu0 %v675
        %v969 = vpop.f32.mrf.mxu0
        %v970 = vadd.f32 %v881, %v969
        %v971 = vpop.f32.mrf.mxu0
        %v972 = vadd.f32 %v883, %v971
        %973 = vmatmul.bf16.gmra.mxu0 %v677
        %v974 = vpop.f32.mrf.mxu0
        %v975 = vadd.f32 %v886, %v974
        %v976 = vpop.f32.mrf.mxu0
        %v977 = vadd.f32 %v888, %v976
        %978 = vmatmul.bf16.gmra.mxu0 %v679
        %v979 = vpop.f32.mrf.mxu0
        %v980 = vadd.f32 %v891, %v979
        %v981 = vpop.f32.mrf.mxu0
        %v982 = vadd.f32 %v893, %v981
        %983 = vmatmul.bf16.gmra.mxu0 %v681
        %v984 = vpop.f32.mrf.mxu0
        %v985 = vadd.f32 %v896, %v984
        %v986 = vpop.f32.mrf.mxu0
        %v987 = vadd.f32 %v898, %v986
        %988 = vmatmul.bf16.gmra.mxu0 %v683
        %v989 = vpop.f32.mrf.mxu0
        %v990 = vadd.f32 %v901, %v989
        %v991 = vpop.f32.mrf.mxu0
        %v992 = vadd.f32 %v903, %v991
        %993 = vdwg.mxu0
        %v994 = vmax.f32 %v915, 0.0
        %v995 = vmax.f32 %v917, 0.0
        %v996 = vmax.f32 %v920, 0.0
        %v997 = vmax.f32 %v922, 0.0
        %v998 = vmax.f32 %v925, 0.0
        %v999 = vmax.f32 %v927, 0.0
        %v1000 = vmax.f32 %v930, 0.0
        %v1001 = vmax.f32 %v932, 0.0
        %v1002 = vmax.f32 %v935, 0.0
        %v1003 = vmax.f32 %v937, 0.0
        %v1004 = vmax.f32 %v940, 0.0
        %v1005 = vmax.f32 %v942, 0.0
        %v1006 = vmax.f32 %v945, 0.0
        %v1007 = vmax.f32 %v947, 0.0
        %v1008 = vmax.f32 %v950, 0.0
        %v1009 = vmax.f32 %v952, 0.0
        %v1010 = vmax.f32 %v955, 0.0
        %v1011 = vmax.f32 %v957, 0.0
        %v1012 = vmax.f32 %v960, 0.0
        %v1013 = vmax.f32 %v962, 0.0
        %v1014 = vmax.f32 %v965, 0.0
        %v1015 = vmax.f32 %v967, 0.0
        %v1016 = vmax.f32 %v970, 0.0
        %v1017 = vmax.f32 %v972, 0.0
        %v1018 = vmax.f32 %v975, 0.0
        %v1019 = vmax.f32 %v977, 0.0
        %v1020 = vmax.f32 %v980, 0.0
        %v1021 = vmax.f32 %v982, 0.0
        %v1022 = vmax.f32 %v985, 0.0
        %v1023 = vmax.f32 %v987, 0.0
        %v1024 = vmax.f32 %v990, 0.0
        %v1025 = vmax.f32 %v992, 0.0
        %v1026 = vld [vmem:[%s315] sm:$0xff]
        %v1027 = vld [vmem:[%s315 + $0x8] sm:$0xff]
        %v1028 = vld [vmem:[%s315 + $0x10] sm:$0xff]
        %v1029 = vld [vmem:[%s315 + $0x18] sm:$0xff]
        %v1030 = vld [vmem:[%s315 + $0x20] sm:$0xff]
        %v1031 = vld [vmem:[%s315 + $0x28] sm:$0xff]
        %v1032 = vld [vmem:[%s315 + $0x30] sm:$0xff]
        %v1033 = vld [vmem:[%s315 + $0x38] sm:$0xff]
        %v1034 = vld [vmem:[%s315 + $0x40] sm:$0xff]
        %v1035 = vld [vmem:[%s315 + $0x48] sm:$0xff]
        %v1036 = vld [vmem:[%s315 + $0x50] sm:$0xff]
        %v1037 = vld [vmem:[%s315 + $0x58] sm:$0xff]
        %v1038 = vld [vmem:[%s315 + $0x60] sm:$0xff]
        %v1039 = vld [vmem:[%s315 + $0x68] sm:$0xff]
        %v1040 = vld [vmem:[%s315 + $0x70] sm:$0xff]
        %v1041 = vld [vmem:[%s315 + $0x78] sm:$0xff]
        %v1042 = vld [vmem:[%s315 + $0x80] sm:$0xff]
        %v1043 = vld [vmem:[%s315 + $0x88] sm:$0xff]
        %v1044 = vld [vmem:[%s315 + $0x90] sm:$0xff]
        %v1045 = vld [vmem:[%s315 + $0x98] sm:$0xff]
        %v1046 = vld [vmem:[%s315 + $0xa0] sm:$0xff]
        %v1047 = vld [vmem:[%s315 + $0xa8] sm:$0xff]
        %v1048 = vld [vmem:[%s315 + $0xb0] sm:$0xff]
        %v1049 = vld [vmem:[%s315 + $0xb8] sm:$0xff]
        %v1050 = vld [vmem:[%s315 + $0xc0] sm:$0xff]
        %v1051 = vld [vmem:[%s315 + $0xc8] sm:$0xff]
        %v1052 = vld [vmem:[%s315 + $0xd0] sm:$0xff]
        %v1053 = vld [vmem:[%s315 + $0xd8] sm:$0xff]
        %v1054 = vld [vmem:[%s315 + $0xe0] sm:$0xff]
        %v1055 = vld [vmem:[%s315 + $0xe8] sm:$0xff]
        %v1056 = vld [vmem:[%s315 + $0xf0] sm:$0xff]
        %v1057 = vld [vmem:[%s315 + $0xf8] sm:$0xff]
        %v1058 = vld [vmem:[%s315 + $0x100] sm:$0xff]
        %v1059 = vld [vmem:[%s315 + $0x108] sm:$0xff]
        %v1060 = vld [vmem:[%s315 + $0x110] sm:$0xff]
        %v1061 = vld [vmem:[%s315 + $0x118] sm:$0xff]
        %v1062 = vld [vmem:[%s315 + $0x120] sm:$0xff]
        %v1063 = vld [vmem:[%s315 + $0x128] sm:$0xff]
        %v1064 = vld [vmem:[%s315 + $0x130] sm:$0xff]
        %v1065 = vld [vmem:[%s315 + $0x138] sm:$0xff]
        %v1066 = vld [vmem:[%s315 + $0x140] sm:$0xff]
        %v1067 = vld [vmem:[%s315 + $0x148] sm:$0xff]
        %v1068 = vld [vmem:[%s315 + $0x150] sm:$0xff]
        %v1069 = vld [vmem:[%s315 + $0x158] sm:$0xff]
        %v1070 = vld [vmem:[%s315 + $0x160] sm:$0xff]
        %v1071 = vld [vmem:[%s315 + $0x168] sm:$0xff]
        %v1072 = vld [vmem:[%s315 + $0x170] sm:$0xff]
        %v1073 = vld [vmem:[%s315 + $0x178] sm:$0xff]
        %v1074 = vld [vmem:[%s315 + $0x180] sm:$0xff]
        %v1075 = vld [vmem:[%s315 + $0x188] sm:$0xff]
        %v1076 = vld [vmem:[%s315 + $0x190] sm:$0xff]
        %v1077 = vld [vmem:[%s315 + $0x198] sm:$0xff]
        %v1078 = vld [vmem:[%s315 + $0x1a0] sm:$0xff]
        %v1079 = vld [vmem:[%s315 + $0x1a8] sm:$0xff]
        %v1080 = vld [vmem:[%s315 + $0x1b0] sm:$0xff]
        %v1081 = vld [vmem:[%s315 + $0x1b8] sm:$0xff]
        %v1082 = vld [vmem:[%s315 + $0x1c0] sm:$0xff]
        %v1083 = vld [vmem:[%s315 + $0x1c8] sm:$0xff]
        %v1084 = vld [vmem:[%s315 + $0x1d0] sm:$0xff]
        %v1085 = vld [vmem:[%s315 + $0x1d8] sm:$0xff]
        %v1086 = vld [vmem:[%s315 + $0x1e0] sm:$0xff]
        %v1087 = vld [vmem:[%s315 + $0x1e8] sm:$0xff]
        %v1088 = vld [vmem:[%s315 + $0x1f0] sm:$0xff]
        %v1089 = vld [vmem:[%s315 + $0x1f8] sm:$0xff]
        %v1090 = vpack.c.bf16 %v995, %v994
        %v1091 = vpack.c.bf16 %v997, %v996
        %v1092 = vpack.c.bf16 %v999, %v998
        %v1093 = vpack.c.bf16 %v1001, %v1000
        %v1094 = vpack.c.bf16 %v1003, %v1002
        %v1095 = vpack.c.bf16 %v1005, %v1004
        %v1096 = vpack.c.bf16 %v1007, %v1006
        %v1097 = vpack.c.bf16 %v1009, %v1008
        %v1098 = vpack.c.bf16 %v1011, %v1010
        %v1099 = vpack.c.bf16 %v1013, %v1012
        %v1100 = vpack.c.bf16 %v1015, %v1014
        %v1101 = vpack.c.bf16 %v1017, %v1016
        %v1102 = vpack.c.bf16 %v1019, %v1018
        %v1103 = vpack.c.bf16 %v1021, %v1020
        %v1104 = vpack.c.bf16 %v1023, %v1022
        %v1105 = vpack.c.bf16 %v1025, %v1024
        %v1106 = vld [vmem:[#allocation6] sm:$0xff]
        %v1107 = vld [vmem:[#allocation6 + $0x8] sm:$0xff]
        %v1108 = vld [vmem:[#allocation6 + $0x10] sm:$0xff]
        %v1109 = vld [vmem:[#allocation6 + $0x18] sm:$0xff]
        %v1114 = vunpack.c.l.b16 %v1106
        %v1115 = vunpack.c.h.b16 %v1106
        %v1116 = vunpack.c.l.b16 %v1107
        %v1117 = vunpack.c.h.b16 %v1107
        %v1118 = vunpack.c.l.b16 %v1108
        %v1119 = vunpack.c.h.b16 %v1108
        %v1120 = vunpack.c.l.b16 %v1109
        %v1121 = vunpack.c.h.b16 %v1109
        %v1122 = vpack.c.b16 %v1116, %v1114
        %v1123 = vpack.c.b16 %v1117, %v1115
        %v1124 = vpack.c.b16 %v1120, %v1118
        %v1125 = vpack.c.b16 %v1121, %v1119
        %v1131 = vsel %vm515, %v1090, 0
        %v1134 = vsel %vm515, %v1091, 0
        %v1137 = vsel %vm515, %v1092, 0
        %v1140 = vsel %vm515, %v1093, 0
        %v1143 = vsel %vm515, %v1094, 0
        %v1146 = vsel %vm515, %v1095, 0
        %v1149 = vsel %vm515, %v1096, 0
        %v1152 = vsel %vm515, %v1097, 0
        %v1155 = vsel %vm515, %v1098, 0
        %v1158 = vsel %vm515, %v1099, 0
        %v1161 = vsel %vm515, %v1100, 0
        %v1164 = vsel %vm515, %v1101, 0
        %v1167 = vsel %vm515, %v1102, 0
        %v1170 = vsel %vm515, %v1103, 0
        %v1173 = vsel %vm515, %v1104, 0
        %v1176 = vsel %vm515, %v1105, 0
        %1178 = vmatpush.bf16.msra.mxu0 0
        %1179 = vmatpush.bf16.msra.mxu0 0
        %1180 = vmatpush.bf16.msra.mxu0 0
        %1181 = vmatpush.bf16.msra.mxu0 0
        %1182 = vmatpush.bf16.msra.mxu0 0
        %1183 = vmatpush.bf16.msra.mxu0 0
        %1184 = vmatpush.bf16.msra.mxu0 %v1124
        %1185 = vmatpush.bf16.msra.mxu0 %v1122
        %1186 = vmatmul.bf16.gmra.mxu0 %v1131
        %v1187 = vpop.f32.mrf.mxu0
        %v1188 = vadd.f32 0.0, %v1187
        %v1189 = vpop.f32.mrf.mxu0
        %v1190 = vadd.f32 0.0, %v1189
        %1191 = vmatmul.bf16.gmra.mxu0 %v1134
        %v1192 = vpop.f32.mrf.mxu0
        %v1193 = vadd.f32 0.0, %v1192
        %v1194 = vpop.f32.mrf.mxu0
        %v1195 = vadd.f32 0.0, %v1194
        %1196 = vmatmul.bf16.gmra.mxu0 %v1137
        %v1197 = vpop.f32.mrf.mxu0
        %v1198 = vadd.f32 0.0, %v1197
        %v1199 = vpop.f32.mrf.mxu0
        %v1200 = vadd.f32 0.0, %v1199
        %1201 = vmatmul.bf16.gmra.mxu0 %v1140
        %v1202 = vpop.f32.mrf.mxu0
        %v1203 = vadd.f32 0.0, %v1202
        %v1204 = vpop.f32.mrf.mxu0
        %v1205 = vadd.f32 0.0, %v1204
        %1206 = vmatmul.bf16.gmra.mxu0 %v1143
        %v1207 = vpop.f32.mrf.mxu0
        %v1208 = vadd.f32 0.0, %v1207
        %v1209 = vpop.f32.mrf.mxu0
        %v1210 = vadd.f32 0.0, %v1209
        %1211 = vmatmul.bf16.gmra.mxu0 %v1146
        %v1212 = vpop.f32.mrf.mxu0
        %v1213 = vadd.f32 0.0, %v1212
        %v1214 = vpop.f32.mrf.mxu0
        %v1215 = vadd.f32 0.0, %v1214
        %1216 = vmatmul.bf16.gmra.mxu0 %v1149
        %v1217 = vpop.f32.mrf.mxu0
        %v1218 = vadd.f32 0.0, %v1217
        %v1219 = vpop.f32.mrf.mxu0
        %v1220 = vadd.f32 0.0, %v1219
        %1221 = vmatmul.bf16.gmra.mxu0 %v1152
        %v1222 = vpop.f32.mrf.mxu0
        %v1223 = vadd.f32 0.0, %v1222
        %v1224 = vpop.f32.mrf.mxu0
        %v1225 = vadd.f32 0.0, %v1224
        %1226 = vmatmul.bf16.gmra.mxu0 %v1155
        %v1227 = vpop.f32.mrf.mxu0
        %v1228 = vadd.f32 0.0, %v1227
        %v1229 = vpop.f32.mrf.mxu0
        %v1230 = vadd.f32 0.0, %v1229
        %1231 = vmatmul.bf16.gmra.mxu0 %v1158
        %v1232 = vpop.f32.mrf.mxu0
        %v1233 = vadd.f32 0.0, %v1232
        %v1234 = vpop.f32.mrf.mxu0
        %v1235 = vadd.f32 0.0, %v1234
        %1236 = vmatmul.bf16.gmra.mxu0 %v1161
        %v1237 = vpop.f32.mrf.mxu0
        %v1238 = vadd.f32 0.0, %v1237
        %v1239 = vpop.f32.mrf.mxu0
        %v1240 = vadd.f32 0.0, %v1239
        %1241 = vmatmul.bf16.gmra.mxu0 %v1164
        %v1242 = vpop.f32.mrf.mxu0
        %v1243 = vadd.f32 0.0, %v1242
        %v1244 = vpop.f32.mrf.mxu0
        %v1245 = vadd.f32 0.0, %v1244
        %1246 = vmatmul.bf16.gmra.mxu0 %v1167
        %v1247 = vpop.f32.mrf.mxu0
        %v1248 = vadd.f32 0.0, %v1247
        %v1249 = vpop.f32.mrf.mxu0
        %v1250 = vadd.f32 0.0, %v1249
        %1251 = vmatmul.bf16.gmra.mxu0 %v1170
        %v1252 = vpop.f32.mrf.mxu0
        %v1253 = vadd.f32 0.0, %v1252
        %v1254 = vpop.f32.mrf.mxu0
        %v1255 = vadd.f32 0.0, %v1254
        %1256 = vmatmul.bf16.gmra.mxu0 %v1173
        %v1257 = vpop.f32.mrf.mxu0
        %v1258 = vadd.f32 0.0, %v1257
        %v1259 = vpop.f32.mrf.mxu0
        %v1260 = vadd.f32 0.0, %v1259
        %1261 = vmatmul.bf16.gmra.mxu0 %v1176
        %v1262 = vpop.f32.mrf.mxu0
        %v1263 = vadd.f32 0.0, %v1262
        %v1264 = vpop.f32.mrf.mxu0
        %v1265 = vadd.f32 0.0, %v1264
        %1266 = vdwg.mxu0
        %1267 = vmatpush.bf16.msra.mxu0 0
        %1268 = vmatpush.bf16.msra.mxu0 0
        %1269 = vmatpush.bf16.msra.mxu0 0
        %1270 = vmatpush.bf16.msra.mxu0 0
        %1271 = vmatpush.bf16.msra.mxu0 0
        %1272 = vmatpush.bf16.msra.mxu0 0
        %1273 = vmatpush.bf16.msra.mxu0 %v1125
        %1274 = vmatpush.bf16.msra.mxu0 %v1123
        %1275 = vmatmul.bf16.gmra.mxu0 %v1131
        %v1276 = vpop.f32.mrf.mxu0
        %v1277 = vadd.f32 0.0, %v1276
        %v1278 = vpop.f32.mrf.mxu0
        %v1279 = vadd.f32 0.0, %v1278
        %1280 = vmatmul.bf16.gmra.mxu0 %v1134
        %v1281 = vpop.f32.mrf.mxu0
        %v1282 = vadd.f32 0.0, %v1281
        %v1283 = vpop.f32.mrf.mxu0
        %v1284 = vadd.f32 0.0, %v1283
        %1285 = vmatmul.bf16.gmra.mxu0 %v1137
        %v1286 = vpop.f32.mrf.mxu0
        %v1287 = vadd.f32 0.0, %v1286
        %v1288 = vpop.f32.mrf.mxu0
        %v1289 = vadd.f32 0.0, %v1288
        %1290 = vmatmul.bf16.gmra.mxu0 %v1140
        %v1291 = vpop.f32.mrf.mxu0
        %v1292 = vadd.f32 0.0, %v1291
        %v1293 = vpop.f32.mrf.mxu0
        %v1294 = vadd.f32 0.0, %v1293
        %1295 = vmatmul.bf16.gmra.mxu0 %v1143
        %v1296 = vpop.f32.mrf.mxu0
        %v1297 = vadd.f32 0.0, %v1296
        %v1298 = vpop.f32.mrf.mxu0
        %v1299 = vadd.f32 0.0, %v1298
        %1300 = vmatmul.bf16.gmra.mxu0 %v1146
        %v1301 = vpop.f32.mrf.mxu0
        %v1302 = vadd.f32 0.0, %v1301
        %v1303 = vpop.f32.mrf.mxu0
        %v1304 = vadd.f32 0.0, %v1303
        %1305 = vmatmul.bf16.gmra.mxu0 %v1149
        %v1306 = vpop.f32.mrf.mxu0
        %v1307 = vadd.f32 0.0, %v1306
        %v1308 = vpop.f32.mrf.mxu0
        %v1309 = vadd.f32 0.0, %v1308
        %1310 = vmatmul.bf16.gmra.mxu0 %v1152
        %v1311 = vpop.f32.mrf.mxu0
        %v1312 = vadd.f32 0.0, %v1311
        %v1313 = vpop.f32.mrf.mxu0
        %v1314 = vadd.f32 0.0, %v1313
        %1315 = vmatmul.bf16.gmra.mxu0 %v1155
        %v1316 = vpop.f32.mrf.mxu0
        %v1317 = vadd.f32 0.0, %v1316
        %v1318 = vpop.f32.mrf.mxu0
        %v1319 = vadd.f32 0.0, %v1318
        %1320 = vmatmul.bf16.gmra.mxu0 %v1158
        %v1321 = vpop.f32.mrf.mxu0
        %v1322 = vadd.f32 0.0, %v1321
        %v1323 = vpop.f32.mrf.mxu0
        %v1324 = vadd.f32 0.0, %v1323
        %1325 = vmatmul.bf16.gmra.mxu0 %v1161
        %v1326 = vpop.f32.mrf.mxu0
        %v1327 = vadd.f32 0.0, %v1326
        %v1328 = vpop.f32.mrf.mxu0
        %v1329 = vadd.f32 0.0, %v1328
        %1330 = vmatmul.bf16.gmra.mxu0 %v1164
        %v1331 = vpop.f32.mrf.mxu0
        %v1332 = vadd.f32 0.0, %v1331
        %v1333 = vpop.f32.mrf.mxu0
        %v1334 = vadd.f32 0.0, %v1333
        %1335 = vmatmul.bf16.gmra.mxu0 %v1167
        %v1336 = vpop.f32.mrf.mxu0
        %v1337 = vadd.f32 0.0, %v1336
        %v1338 = vpop.f32.mrf.mxu0
        %v1339 = vadd.f32 0.0, %v1338
        %1340 = vmatmul.bf16.gmra.mxu0 %v1170
        %v1341 = vpop.f32.mrf.mxu0
        %v1342 = vadd.f32 0.0, %v1341
        %v1343 = vpop.f32.mrf.mxu0
        %v1344 = vadd.f32 0.0, %v1343
        %1345 = vmatmul.bf16.gmra.mxu0 %v1173
        %v1346 = vpop.f32.mrf.mxu0
        %v1347 = vadd.f32 0.0, %v1346
        %v1348 = vpop.f32.mrf.mxu0
        %v1349 = vadd.f32 0.0, %v1348
        %1350 = vmatmul.bf16.gmra.mxu0 %v1176
        %v1351 = vpop.f32.mrf.mxu0
        %v1352 = vadd.f32 0.0, %v1351
        %v1353 = vpop.f32.mrf.mxu0
        %v1354 = vadd.f32 0.0, %v1353
        %1355 = vdwg.mxu0
        %v1356 = vadd.f32 %v1026, %v1188
        %v1357 = vadd.f32 %v1027, %v1277
        %v1358 = vadd.f32 %v1028, %v1190
        %v1359 = vadd.f32 %v1029, %v1279
        %v1360 = vadd.f32 %v1030, %v1193
        %v1361 = vadd.f32 %v1031, %v1282
        %v1362 = vadd.f32 %v1032, %v1195
        %v1363 = vadd.f32 %v1033, %v1284
        %v1364 = vadd.f32 %v1034, %v1198
        %v1365 = vadd.f32 %v1035, %v1287
        %v1366 = vadd.f32 %v1036, %v1200
        %v1367 = vadd.f32 %v1037, %v1289
        %v1368 = vadd.f32 %v1038, %v1203
        %v1369 = vadd.f32 %v1039, %v1292
        %v1370 = vadd.f32 %v1040, %v1205
        %v1371 = vadd.f32 %v1041, %v1294
        %v1372 = vadd.f32 %v1042, %v1208
        %v1373 = vadd.f32 %v1043, %v1297
        %v1374 = vadd.f32 %v1044, %v1210
        %v1375 = vadd.f32 %v1045, %v1299
        %v1376 = vadd.f32 %v1046, %v1213
        %v1377 = vadd.f32 %v1047, %v1302
        %v1378 = vadd.f32 %v1048, %v1215
        %v1379 = vadd.f32 %v1049, %v1304
        %v1380 = vadd.f32 %v1050, %v1218
        %v1381 = vadd.f32 %v1051, %v1307
        %v1382 = vadd.f32 %v1052, %v1220
        %v1383 = vadd.f32 %v1053, %v1309
        %v1384 = vadd.f32 %v1054, %v1223
        %v1385 = vadd.f32 %v1055, %v1312
        %v1386 = vadd.f32 %v1056, %v1225
        %v1387 = vadd.f32 %v1057, %v1314
        %v1388 = vadd.f32 %v1058, %v1228
        %v1389 = vadd.f32 %v1059, %v1317
        %v1390 = vadd.f32 %v1060, %v1230
        %v1391 = vadd.f32 %v1061, %v1319
        %v1392 = vadd.f32 %v1062, %v1233
        %v1393 = vadd.f32 %v1063, %v1322
        %v1394 = vadd.f32 %v1064, %v1235
        %v1395 = vadd.f32 %v1065, %v1324
        %v1396 = vadd.f32 %v1066, %v1238
        %v1397 = vadd.f32 %v1067, %v1327
        %v1398 = vadd.f32 %v1068, %v1240
        %v1399 = vadd.f32 %v1069, %v1329
        %v1400 = vadd.f32 %v1070, %v1243
        %v1401 = vadd.f32 %v1071, %v1332
        %v1402 = vadd.f32 %v1072, %v1245
        %v1403 = vadd.f32 %v1073, %v1334
        %v1404 = vadd.f32 %v1074, %v1248
        %v1405 = vadd.f32 %v1075, %v1337
        %v1406 = vadd.f32 %v1076, %v1250
        %v1407 = vadd.f32 %v1077, %v1339
        %v1408 = vadd.f32 %v1078, %v1253
        %v1409 = vadd.f32 %v1079, %v1342
        %v1410 = vadd.f32 %v1080, %v1255
        %v1411 = vadd.f32 %v1081, %v1344
        %v1412 = vadd.f32 %v1082, %v1258
        %v1413 = vadd.f32 %v1083, %v1347
        %v1414 = vadd.f32 %v1084, %v1260
        %v1415 = vadd.f32 %v1085, %v1349
        %v1416 = vadd.f32 %v1086, %v1263
        %v1417 = vadd.f32 %v1087, %v1352
        %v1418 = vadd.f32 %v1088, %v1265
        %v1419 = vadd.f32 %v1089, %v1354
        %1420 = vst [vmem:[%s315] sm:$0xff] %v1356
        %1421 = vst [vmem:[%s315 + $0x8] sm:$0xff] %v1357
        %1422 = vst [vmem:[%s315 + $0x10] sm:$0xff] %v1358
        %1423 = vst [vmem:[%s315 + $0x18] sm:$0xff] %v1359
        %1424 = vst [vmem:[%s315 + $0x20] sm:$0xff] %v1360
        %1425 = vst [vmem:[%s315 + $0x28] sm:$0xff] %v1361
        %1426 = vst [vmem:[%s315 + $0x30] sm:$0xff] %v1362
        %1427 = vst [vmem:[%s315 + $0x38] sm:$0xff] %v1363
        %1428 = vst [vmem:[%s315 + $0x40] sm:$0xff] %v1364
        %1429 = vst [vmem:[%s315 + $0x48] sm:$0xff] %v1365
        %1430 = vst [vmem:[%s315 + $0x50] sm:$0xff] %v1366
        %1431 = vst [vmem:[%s315 + $0x58] sm:$0xff] %v1367
        %1432 = vst [vmem:[%s315 + $0x60] sm:$0xff] %v1368
        %1433 = vst [vmem:[%s315 + $0x68] sm:$0xff] %v1369
        %1434 = vst [vmem:[%s315 + $0x70] sm:$0xff] %v1370
        %1435 = vst [vmem:[%s315 + $0x78] sm:$0xff] %v1371
        %1436 = vst [vmem:[%s315 + $0x80] sm:$0xff] %v1372
        %1437 = vst [vmem:[%s315 + $0x88] sm:$0xff] %v1373
        %1438 = vst [vmem:[%s315 + $0x90] sm:$0xff] %v1374
        %1439 = vst [vmem:[%s315 + $0x98] sm:$0xff] %v1375
        %1440 = vst [vmem:[%s315 + $0xa0] sm:$0xff] %v1376
        %1441 = vst [vmem:[%s315 + $0xa8] sm:$0xff] %v1377
        %1442 = vst [vmem:[%s315 + $0xb0] sm:$0xff] %v1378
        %1443 = vst [vmem:[%s315 + $0xb8] sm:$0xff] %v1379
        %1444 = vst [vmem:[%s315 + $0xc0] sm:$0xff] %v1380
        %1445 = vst [vmem:[%s315 + $0xc8] sm:$0xff] %v1381
        %1446 = vst [vmem:[%s315 + $0xd0] sm:$0xff] %v1382
        %1447 = vst [vmem:[%s315 + $0xd8] sm:$0xff] %v1383
        %1448 = vst [vmem:[%s315 + $0xe0] sm:$0xff] %v1384
        %1449 = vst [vmem:[%s315 + $0xe8] sm:$0xff] %v1385
        %1450 = vst [vmem:[%s315 + $0xf0] sm:$0xff] %v1386
        %1451 = vst [vmem:[%s315 + $0xf8] sm:$0xff] %v1387
        %1452 = vst [vmem:[%s315 + $0x100] sm:$0xff] %v1388
        %1453 = vst [vmem:[%s315 + $0x108] sm:$0xff] %v1389
        %1454 = vst [vmem:[%s315 + $0x110] sm:$0xff] %v1390
        %1455 = vst [vmem:[%s315 + $0x118] sm:$0xff] %v1391
        %1456 = vst [vmem:[%s315 + $0x120] sm:$0xff] %v1392
        %1457 = vst [vmem:[%s315 + $0x128] sm:$0xff] %v1393
        %1458 = vst [vmem:[%s315 + $0x130] sm:$0xff] %v1394
        %1459 = vst [vmem:[%s315 + $0x138] sm:$0xff] %v1395
        %1460 = vst [vmem:[%s315 + $0x140] sm:$0xff] %v1396
        %1461 = vst [vmem:[%s315 + $0x148] sm:$0xff] %v1397
        %1462 = vst [vmem:[%s315 + $0x150] sm:$0xff] %v1398
        %1463 = vst [vmem:[%s315 + $0x158] sm:$0xff] %v1399
        %1464 = vst [vmem:[%s315 + $0x160] sm:$0xff] %v1400
        %1465 = vst [vmem:[%s315 + $0x168] sm:$0xff] %v1401
        %1466 = vst [vmem:[%s315 + $0x170] sm:$0xff] %v1402
        %1467 = vst [vmem:[%s315 + $0x178] sm:$0xff] %v1403
        %1468 = vst [vmem:[%s315 + $0x180] sm:$0xff] %v1404
        %1469 = vst [vmem:[%s315 + $0x188] sm:$0xff] %v1405
        %1470 = vst [vmem:[%s315 + $0x190] sm:$0xff] %v1406
        %1471 = vst [vmem:[%s315 + $0x198] sm:$0xff] %v1407
        %1472 = vst [vmem:[%s315 + $0x1a0] sm:$0xff] %v1408
        %1473 = vst [vmem:[%s315 + $0x1a8] sm:$0xff] %v1409
        %1474 = vst [vmem:[%s315 + $0x1b0] sm:$0xff] %v1410
        %1475 = vst [vmem:[%s315 + $0x1b8] sm:$0xff] %v1411
        %1476 = vst [vmem:[%s315 + $0x1c0] sm:$0xff] %v1412
        %1477 = vst [vmem:[%s315 + $0x1c8] sm:$0xff] %v1413
        %1478 = vst [vmem:[%s315 + $0x1d0] sm:$0xff] %v1414
        %1479 = vst [vmem:[%s315 + $0x1d8] sm:$0xff] %v1415
        %1480 = vst [vmem:[%s315 + $0x1e0] sm:$0xff] %v1416
        %1481 = vst [vmem:[%s315 + $0x1e8] sm:$0xff] %v1417
        %1482 = vst [vmem:[%s315 + $0x1f0] sm:$0xff] %v1418
        %1483 = vst [vmem:[%s315 + $0x1f8] sm:$0xff] %v1419
        %v1484 = vld [vmem:[%s279] sm:$0xff]
        %v1485 = vld [vmem:[%s279 + $0x8] sm:$0xff]
        %v1486 = vld [vmem:[%s279 + $0x10] sm:$0xff]
        %v1487 = vld [vmem:[%s279 + $0x18] sm:$0xff]
        %v1488 = vld [vmem:[%s279 + $0x20] sm:$0xff]
        %v1489 = vld [vmem:[%s279 + $0x28] sm:$0xff]
        %v1490 = vld [vmem:[%s279 + $0x30] sm:$0xff]
        %v1491 = vld [vmem:[%s279 + $0x38] sm:$0xff]
        %v1492 = vld [vmem:[%s279 + $0x40] sm:$0xff]
        %v1493 = vld [vmem:[%s279 + $0x48] sm:$0xff]
        %v1494 = vld [vmem:[%s279 + $0x50] sm:$0xff]
        %v1495 = vld [vmem:[%s279 + $0x58] sm:$0xff]
        %v1496 = vld [vmem:[%s279 + $0x60] sm:$0xff]
        %v1497 = vld [vmem:[%s279 + $0x68] sm:$0xff]
        %v1498 = vld [vmem:[%s279 + $0x70] sm:$0xff]
        %v1499 = vld [vmem:[%s279 + $0x78] sm:$0xff]
        %v1500 = vld [vmem:[%s279 + $0x80] sm:$0xff]
        %v1501 = vld [vmem:[%s279 + $0x88] sm:$0xff]
        %v1502 = vld [vmem:[%s279 + $0x90] sm:$0xff]
        %v1503 = vld [vmem:[%s279 + $0x98] sm:$0xff]
        %v1504 = vld [vmem:[%s279 + $0xa0] sm:$0xff]
        %v1505 = vld [vmem:[%s279 + $0xa8] sm:$0xff]
        %v1506 = vld [vmem:[%s279 + $0xb0] sm:$0xff]
        %v1507 = vld [vmem:[%s279 + $0xb8] sm:$0xff]
        %v1508 = vld [vmem:[%s279 + $0xc0] sm:$0xff]
        %v1509 = vld [vmem:[%s279 + $0xc8] sm:$0xff]
        %v1510 = vld [vmem:[%s279 + $0xd0] sm:$0xff]
        %v1511 = vld [vmem:[%s279 + $0xd8] sm:$0xff]
        %v1512 = vld [vmem:[%s279 + $0xe0] sm:$0xff]
        %v1513 = vld [vmem:[%s279 + $0xe8] sm:$0xff]
        %v1514 = vld [vmem:[%s279 + $0xf0] sm:$0xff]
        %v1515 = vld [vmem:[%s279 + $0xf8] sm:$0xff]
        %v1516 = vld [vmem:[%s279 + $0x100] sm:$0xff]
        %v1517 = vld [vmem:[%s279 + $0x108] sm:$0xff]
        %v1518 = vld [vmem:[%s279 + $0x110] sm:$0xff]
        %v1519 = vld [vmem:[%s279 + $0x118] sm:$0xff]
        %v1520 = vld [vmem:[%s279 + $0x120] sm:$0xff]
        %v1521 = vld [vmem:[%s279 + $0x128] sm:$0xff]
        %v1522 = vld [vmem:[%s279 + $0x130] sm:$0xff]
        %v1523 = vld [vmem:[%s279 + $0x138] sm:$0xff]
        %v1524 = vld [vmem:[%s279 + $0x140] sm:$0xff]
        %v1525 = vld [vmem:[%s279 + $0x148] sm:$0xff]
        %v1526 = vld [vmem:[%s279 + $0x150] sm:$0xff]
        %v1527 = vld [vmem:[%s279 + $0x158] sm:$0xff]
        %v1528 = vld [vmem:[%s279 + $0x160] sm:$0xff]
        %v1529 = vld [vmem:[%s279 + $0x168] sm:$0xff]
        %v1530 = vld [vmem:[%s279 + $0x170] sm:$0xff]
        %v1531 = vld [vmem:[%s279 + $0x178] sm:$0xff]
        %v1532 = vld [vmem:[%s279 + $0x180] sm:$0xff]
        %v1533 = vld [vmem:[%s279 + $0x188] sm:$0xff]
        %v1534 = vld [vmem:[%s279 + $0x190] sm:$0xff]
        %v1535 = vld [vmem:[%s279 + $0x198] sm:$0xff]
        %v1536 = vld [vmem:[%s279 + $0x1a0] sm:$0xff]
        %v1537 = vld [vmem:[%s279 + $0x1a8] sm:$0xff]
        %v1538 = vld [vmem:[%s279 + $0x1b0] sm:$0xff]
        %v1539 = vld [vmem:[%s279 + $0x1b8] sm:$0xff]
        %v1540 = vld [vmem:[%s279 + $0x1c0] sm:$0xff]
        %v1541 = vld [vmem:[%s279 + $0x1c8] sm:$0xff]
        %v1542 = vld [vmem:[%s279 + $0x1d0] sm:$0xff]
        %v1543 = vld [vmem:[%s279 + $0x1d8] sm:$0xff]
        %v1544 = vld [vmem:[%s279 + $0x1e0] sm:$0xff]
        %v1545 = vld [vmem:[%s279 + $0x1e8] sm:$0xff]
        %v1546 = vld [vmem:[%s279 + $0x1f0] sm:$0xff]
        %v1547 = vld [vmem:[%s279 + $0x1f8] sm:$0xff]
        %v1548 = vpack.c.bf16 %v1486, %v1484
        %v1549 = vpack.c.bf16 %v1487, %v1485
        %v1550 = vpack.c.bf16 %v1490, %v1488
        %v1551 = vpack.c.bf16 %v1491, %v1489
        %v1552 = vpack.c.bf16 %v1494, %v1492
        %v1553 = vpack.c.bf16 %v1495, %v1493
        %v1554 = vpack.c.bf16 %v1498, %v1496
        %v1555 = vpack.c.bf16 %v1499, %v1497
        %v1556 = vpack.c.bf16 %v1502, %v1500
        %v1557 = vpack.c.bf16 %v1503, %v1501
        %v1558 = vpack.c.bf16 %v1506, %v1504
        %v1559 = vpack.c.bf16 %v1507, %v1505
        %v1560 = vpack.c.bf16 %v1510, %v1508
        %v1561 = vpack.c.bf16 %v1511, %v1509
        %v1562 = vpack.c.bf16 %v1514, %v1512
        %v1563 = vpack.c.bf16 %v1515, %v1513
        %v1564 = vpack.c.bf16 %v1518, %v1516
        %v1565 = vpack.c.bf16 %v1519, %v1517
        %v1566 = vpack.c.bf16 %v1522, %v1520
        %v1567 = vpack.c.bf16 %v1523, %v1521
        %v1568 = vpack.c.bf16 %v1526, %v1524
        %v1569 = vpack.c.bf16 %v1527, %v1525
        %v1570 = vpack.c.bf16 %v1530, %v1528
        %v1571 = vpack.c.bf16 %v1531, %v1529
        %v1572 = vpack.c.bf16 %v1534, %v1532
        %v1573 = vpack.c.bf16 %v1535, %v1533
        %v1574 = vpack.c.bf16 %v1538, %v1536
        %v1575 = vpack.c.bf16 %v1539, %v1537
        %v1576 = vpack.c.bf16 %v1542, %v1540
        %v1577 = vpack.c.bf16 %v1543, %v1541
        %v1578 = vpack.c.bf16 %v1546, %v1544
        %v1579 = vpack.c.bf16 %v1547, %v1545
        %s1580 = scalar_lea.vmem %s1, 128
        %v1581 = vld [vmem:[%s1580] sm:$0xf]
        %v1582 = vld [vmem:[%s1580 + $0x4] sm:$0xf]
        %v1583 = vld [vmem:[%s1580 + $0x8] sm:$0xf]
        %v1584 = vld [vmem:[%s1580 + $0xc] sm:$0xf]
        %v1585 = vld [vmem:[%s1580 + $0x10] sm:$0xf]
        %v1586 = vld [vmem:[%s1580 + $0x14] sm:$0xf]
        %v1587 = vld [vmem:[%s1580 + $0x18] sm:$0xf]
        %v1588 = vld [vmem:[%s1580 + $0x1c] sm:$0xf]
        %v1589 = vld [vmem:[%s1580 + $0x20] sm:$0xf]
        %v1590 = vld [vmem:[%s1580 + $0x24] sm:$0xf]
        %v1591 = vld [vmem:[%s1580 + $0x28] sm:$0xf]
        %v1592 = vld [vmem:[%s1580 + $0x2c] sm:$0xf]
        %v1593 = vld [vmem:[%s1580 + $0x30] sm:$0xf]
        %v1594 = vld [vmem:[%s1580 + $0x34] sm:$0xf]
        %v1595 = vld [vmem:[%s1580 + $0x38] sm:$0xf]
        %v1596 = vld [vmem:[%s1580 + $0x3c] sm:$0xf]
        %v1597 = vld [vmem:[%s1580 + $0x40] sm:$0xf]
        %v1598 = vld [vmem:[%s1580 + $0x44] sm:$0xf]
        %v1599 = vld [vmem:[%s1580 + $0x48] sm:$0xf]
        %v1600 = vld [vmem:[%s1580 + $0x4c] sm:$0xf]
        %v1601 = vld [vmem:[%s1580 + $0x50] sm:$0xf]
        %v1602 = vld [vmem:[%s1580 + $0x54] sm:$0xf]
        %v1603 = vld [vmem:[%s1580 + $0x58] sm:$0xf]
        %v1604 = vld [vmem:[%s1580 + $0x5c] sm:$0xf]
        %v1605 = vld [vmem:[%s1580 + $0x60] sm:$0xf]
        %v1606 = vld [vmem:[%s1580 + $0x64] sm:$0xf]
        %v1607 = vld [vmem:[%s1580 + $0x68] sm:$0xf]
        %v1608 = vld [vmem:[%s1580 + $0x6c] sm:$0xf]
        %v1609 = vld [vmem:[%s1580 + $0x70] sm:$0xf]
        %v1610 = vld [vmem:[%s1580 + $0x74] sm:$0xf]
        %v1611 = vld [vmem:[%s1580 + $0x78] sm:$0xf]
        %v1612 = vld [vmem:[%s1580 + $0x7c] sm:$0xf]
        %s1613 = scalar_lea.vmem %s2, 1
        %v1614 = vld [vmem:[%s1613] sm:$0x1]
        %v1616 = vperm.slane %v1614, 0
        %v1650 = vunpack.c.l.b16 %v1581
        %v1651 = vunpack.c.l.b16 %v1582
        %v1652 = vunpack.c.l.b16 %v1583
        %v1653 = vunpack.c.l.b16 %v1584
        %v1654 = vunpack.c.l.b16 %v1585
        %v1655 = vunpack.c.l.b16 %v1586
        %v1656 = vunpack.c.l.b16 %v1587
        %v1657 = vunpack.c.l.b16 %v1588
        %v1658 = vunpack.c.l.b16 %v1589
        %v1659 = vunpack.c.l.b16 %v1590
        %v1660 = vunpack.c.l.b16 %v1591
        %v1661 = vunpack.c.l.b16 %v1592
        %v1662 = vunpack.c.l.b16 %v1593
        %v1663 = vunpack.c.l.b16 %v1594
        %v1664 = vunpack.c.l.b16 %v1595
        %v1665 = vunpack.c.l.b16 %v1596
        %v1666 = vunpack.c.l.b16 %v1597
        %v1667 = vunpack.c.l.b16 %v1598
        %v1668 = vunpack.c.l.b16 %v1599
        %v1669 = vunpack.c.l.b16 %v1600
        %v1670 = vunpack.c.l.b16 %v1601
        %v1671 = vunpack.c.l.b16 %v1602
        %v1672 = vunpack.c.l.b16 %v1603
        %v1673 = vunpack.c.l.b16 %v1604
        %v1674 = vunpack.c.l.b16 %v1605
        %v1675 = vunpack.c.l.b16 %v1606
        %v1676 = vunpack.c.l.b16 %v1607
        %v1677 = vunpack.c.l.b16 %v1608
        %v1678 = vunpack.c.l.b16 %v1609
        %v1679 = vunpack.c.l.b16 %v1610
        %v1680 = vunpack.c.l.b16 %v1611
        %v1681 = vunpack.c.l.b16 %v1612
        %v1682 = vpack.c.b16 %v1651, %v1650
        %v1683 = vpack.c.b16 %v1653, %v1652
        %v1684 = vpack.c.b16 %v1655, %v1654
        %v1685 = vpack.c.b16 %v1657, %v1656
        %v1686 = vpack.c.b16 %v1659, %v1658
        %v1687 = vpack.c.b16 %v1661, %v1660
        %v1688 = vpack.c.b16 %v1663, %v1662
        %v1689 = vpack.c.b16 %v1665, %v1664
        %v1690 = vpack.c.b16 %v1667, %v1666
        %v1691 = vpack.c.b16 %v1669, %v1668
        %v1692 = vpack.c.b16 %v1671, %v1670
        %v1693 = vpack.c.b16 %v1673, %v1672
        %v1694 = vpack.c.b16 %v1675, %v1674
        %v1695 = vpack.c.b16 %v1677, %v1676
        %v1696 = vpack.c.b16 %v1679, %v1678
        %v1697 = vpack.c.b16 %v1681, %v1680
        %1714 = vmatpush.bf16.msra.mxu0 %v1689
        %1715 = vmatpush.bf16.msra.mxu0 %v1688
        %1716 = vmatpush.bf16.msra.mxu0 %v1687
        %1717 = vmatpush.bf16.msra.mxu0 %v1686
        %1718 = vmatpush.bf16.msra.mxu0 %v1685
        %1719 = vmatpush.bf16.msra.mxu0 %v1684
        %1720 = vmatpush.bf16.msra.mxu0 %v1683
        %1721 = vmatpush.bf16.msra.mxu0 %v1682
        %1722 = vmatmul.bf16.gmra.mxu0 %v1548
        %v1723 = vpop.f32.mrf.mxu0
        %v1724 = vadd.f32 %v1616, %v1723
        %v1725 = vpop.f32.mrf.mxu0
        %v1726 = vadd.f32 %v1616, %v1725
        %1727 = vmatmul.bf16.gmra.mxu0 %v1550
        %v1728 = vpop.f32.mrf.mxu0
        %v1729 = vadd.f32 %v1616, %v1728
        %v1730 = vpop.f32.mrf.mxu0
        %v1731 = vadd.f32 %v1616, %v1730
        %1732 = vmatmul.bf16.gmra.mxu0 %v1552
        %v1733 = vpop.f32.mrf.mxu0
        %v1734 = vadd.f32 %v1616, %v1733
        %v1735 = vpop.f32.mrf.mxu0
        %v1736 = vadd.f32 %v1616, %v1735
        %1737 = vmatmul.bf16.gmra.mxu0 %v1554
        %v1738 = vpop.f32.mrf.mxu0
        %v1739 = vadd.f32 %v1616, %v1738
        %v1740 = vpop.f32.mrf.mxu0
        %v1741 = vadd.f32 %v1616, %v1740
        %1742 = vmatmul.bf16.gmra.mxu0 %v1556
        %v1743 = vpop.f32.mrf.mxu0
        %v1744 = vadd.f32 %v1616, %v1743
        %v1745 = vpop.f32.mrf.mxu0
        %v1746 = vadd.f32 %v1616, %v1745
        %1747 = vmatmul.bf16.gmra.mxu0 %v1558
        %v1748 = vpop.f32.mrf.mxu0
        %v1749 = vadd.f32 %v1616, %v1748
        %v1750 = vpop.f32.mrf.mxu0
        %v1751 = vadd.f32 %v1616, %v1750
        %1752 = vmatmul.bf16.gmra.mxu0 %v1560
        %v1753 = vpop.f32.mrf.mxu0
        %v1754 = vadd.f32 %v1616, %v1753
        %v1755 = vpop.f32.mrf.mxu0
        %v1756 = vadd.f32 %v1616, %v1755
        %1757 = vmatmul.bf16.gmra.mxu0 %v1562
        %v1758 = vpop.f32.mrf.mxu0
        %v1759 = vadd.f32 %v1616, %v1758
        %v1760 = vpop.f32.mrf.mxu0
        %v1761 = vadd.f32 %v1616, %v1760
        %1762 = vmatmul.bf16.gmra.mxu0 %v1564
        %v1763 = vpop.f32.mrf.mxu0
        %v1764 = vadd.f32 %v1616, %v1763
        %v1765 = vpop.f32.mrf.mxu0
        %v1766 = vadd.f32 %v1616, %v1765
        %1767 = vmatmul.bf16.gmra.mxu0 %v1566
        %v1768 = vpop.f32.mrf.mxu0
        %v1769 = vadd.f32 %v1616, %v1768
        %v1770 = vpop.f32.mrf.mxu0
        %v1771 = vadd.f32 %v1616, %v1770
        %1772 = vmatmul.bf16.gmra.mxu0 %v1568
        %v1773 = vpop.f32.mrf.mxu0
        %v1774 = vadd.f32 %v1616, %v1773
        %v1775 = vpop.f32.mrf.mxu0
        %v1776 = vadd.f32 %v1616, %v1775
        %1777 = vmatmul.bf16.gmra.mxu0 %v1570
        %v1778 = vpop.f32.mrf.mxu0
        %v1779 = vadd.f32 %v1616, %v1778
        %v1780 = vpop.f32.mrf.mxu0
        %v1781 = vadd.f32 %v1616, %v1780
        %1782 = vmatmul.bf16.gmra.mxu0 %v1572
        %v1783 = vpop.f32.mrf.mxu0
        %v1784 = vadd.f32 %v1616, %v1783
        %v1785 = vpop.f32.mrf.mxu0
        %v1786 = vadd.f32 %v1616, %v1785
        %1787 = vmatmul.bf16.gmra.mxu0 %v1574
        %v1788 = vpop.f32.mrf.mxu0
        %v1789 = vadd.f32 %v1616, %v1788
        %v1790 = vpop.f32.mrf.mxu0
        %v1791 = vadd.f32 %v1616, %v1790
        %1792 = vmatmul.bf16.gmra.mxu0 %v1576
        %v1793 = vpop.f32.mrf.mxu0
        %v1794 = vadd.f32 %v1616, %v1793
        %v1795 = vpop.f32.mrf.mxu0
        %v1796 = vadd.f32 %v1616, %v1795
        %1797 = vmatmul.bf16.gmra.mxu0 %v1578
        %v1798 = vpop.f32.mrf.mxu0
        %v1799 = vadd.f32 %v1616, %v1798
        %v1800 = vpop.f32.mrf.mxu0
        %v1801 = vadd.f32 %v1616, %v1800
        %1802 = vdwg.mxu0
        %1803 = vmatpush.bf16.msra.mxu0 %v1697
        %1804 = vmatpush.bf16.msra.mxu0 %v1696
        %1805 = vmatpush.bf16.msra.mxu0 %v1695
        %1806 = vmatpush.bf16.msra.mxu0 %v1694
        %1807 = vmatpush.bf16.msra.mxu0 %v1693
        %1808 = vmatpush.bf16.msra.mxu0 %v1692
        %1809 = vmatpush.bf16.msra.mxu0 %v1691
        %1810 = vmatpush.bf16.msra.mxu0 %v1690
        %1811 = vmatmul.bf16.gmra.mxu0 %v1549
        %v1812 = vpop.f32.mrf.mxu0
        %v1813 = vadd.f32 %v1724, %v1812
        %v1814 = vpop.f32.mrf.mxu0
        %v1815 = vadd.f32 %v1726, %v1814
        %1816 = vmatmul.bf16.gmra.mxu0 %v1551
        %v1817 = vpop.f32.mrf.mxu0
        %v1818 = vadd.f32 %v1729, %v1817
        %v1819 = vpop.f32.mrf.mxu0
        %v1820 = vadd.f32 %v1731, %v1819
        %1821 = vmatmul.bf16.gmra.mxu0 %v1553
        %v1822 = vpop.f32.mrf.mxu0
        %v1823 = vadd.f32 %v1734, %v1822
        %v1824 = vpop.f32.mrf.mxu0
        %v1825 = vadd.f32 %v1736, %v1824
        %1826 = vmatmul.bf16.gmra.mxu0 %v1555
        %v1827 = vpop.f32.mrf.mxu0
        %v1828 = vadd.f32 %v1739, %v1827
        %v1829 = vpop.f32.mrf.mxu0
        %v1830 = vadd.f32 %v1741, %v1829
        %1831 = vmatmul.bf16.gmra.mxu0 %v1557
        %v1832 = vpop.f32.mrf.mxu0
        %v1833 = vadd.f32 %v1744, %v1832
        %v1834 = vpop.f32.mrf.mxu0
        %v1835 = vadd.f32 %v1746, %v1834
        %1836 = vmatmul.bf16.gmra.mxu0 %v1559
        %v1837 = vpop.f32.mrf.mxu0
        %v1838 = vadd.f32 %v1749, %v1837
        %v1839 = vpop.f32.mrf.mxu0
        %v1840 = vadd.f32 %v1751, %v1839
        %1841 = vmatmul.bf16.gmra.mxu0 %v1561
        %v1842 = vpop.f32.mrf.mxu0
        %v1843 = vadd.f32 %v1754, %v1842
        %v1844 = vpop.f32.mrf.mxu0
        %v1845 = vadd.f32 %v1756, %v1844
        %1846 = vmatmul.bf16.gmra.mxu0 %v1563
        %v1847 = vpop.f32.mrf.mxu0
        %v1848 = vadd.f32 %v1759, %v1847
        %v1849 = vpop.f32.mrf.mxu0
        %v1850 = vadd.f32 %v1761, %v1849
        %1851 = vmatmul.bf16.gmra.mxu0 %v1565
        %v1852 = vpop.f32.mrf.mxu0
        %v1853 = vadd.f32 %v1764, %v1852
        %v1854 = vpop.f32.mrf.mxu0
        %v1855 = vadd.f32 %v1766, %v1854
        %1856 = vmatmul.bf16.gmra.mxu0 %v1567
        %v1857 = vpop.f32.mrf.mxu0
        %v1858 = vadd.f32 %v1769, %v1857
        %v1859 = vpop.f32.mrf.mxu0
        %v1860 = vadd.f32 %v1771, %v1859
        %1861 = vmatmul.bf16.gmra.mxu0 %v1569
        %v1862 = vpop.f32.mrf.mxu0
        %v1863 = vadd.f32 %v1774, %v1862
        %v1864 = vpop.f32.mrf.mxu0
        %v1865 = vadd.f32 %v1776, %v1864
        %1866 = vmatmul.bf16.gmra.mxu0 %v1571
        %v1867 = vpop.f32.mrf.mxu0
        %v1868 = vadd.f32 %v1779, %v1867
        %v1869 = vpop.f32.mrf.mxu0
        %v1870 = vadd.f32 %v1781, %v1869
        %1871 = vmatmul.bf16.gmra.mxu0 %v1573
        %v1872 = vpop.f32.mrf.mxu0
        %v1873 = vadd.f32 %v1784, %v1872
        %v1874 = vpop.f32.mrf.mxu0
        %v1875 = vadd.f32 %v1786, %v1874
        %1876 = vmatmul.bf16.gmra.mxu0 %v1575
        %v1877 = vpop.f32.mrf.mxu0
        %v1878 = vadd.f32 %v1789, %v1877
        %v1879 = vpop.f32.mrf.mxu0
        %v1880 = vadd.f32 %v1791, %v1879
        %1881 = vmatmul.bf16.gmra.mxu0 %v1577
        %v1882 = vpop.f32.mrf.mxu0
        %v1883 = vadd.f32 %v1794, %v1882
        %v1884 = vpop.f32.mrf.mxu0
        %v1885 = vadd.f32 %v1796, %v1884
        %1886 = vmatmul.bf16.gmra.mxu0 %v1579
        %v1887 = vpop.f32.mrf.mxu0
        %v1888 = vadd.f32 %v1799, %v1887
        %v1889 = vpop.f32.mrf.mxu0
        %v1890 = vadd.f32 %v1801, %v1889
        %1891 = vdwg.mxu0
        %v1892 = vmax.f32 %v1813, 0.0
        %v1893 = vmax.f32 %v1815, 0.0
        %v1894 = vmax.f32 %v1818, 0.0
        %v1895 = vmax.f32 %v1820, 0.0
        %v1896 = vmax.f32 %v1823, 0.0
        %v1897 = vmax.f32 %v1825, 0.0
        %v1898 = vmax.f32 %v1828, 0.0
        %v1899 = vmax.f32 %v1830, 0.0
        %v1900 = vmax.f32 %v1833, 0.0
        %v1901 = vmax.f32 %v1835, 0.0
        %v1902 = vmax.f32 %v1838, 0.0
        %v1903 = vmax.f32 %v1840, 0.0
        %v1904 = vmax.f32 %v1843, 0.0
        %v1905 = vmax.f32 %v1845, 0.0
        %v1906 = vmax.f32 %v1848, 0.0
        %v1907 = vmax.f32 %v1850, 0.0
        %v1908 = vmax.f32 %v1853, 0.0
        %v1909 = vmax.f32 %v1855, 0.0
        %v1910 = vmax.f32 %v1858, 0.0
        %v1911 = vmax.f32 %v1860, 0.0
        %v1912 = vmax.f32 %v1863, 0.0
        %v1913 = vmax.f32 %v1865, 0.0
        %v1914 = vmax.f32 %v1868, 0.0
        %v1915 = vmax.f32 %v1870, 0.0
        %v1916 = vmax.f32 %v1873, 0.0
        %v1917 = vmax.f32 %v1875, 0.0
        %v1918 = vmax.f32 %v1878, 0.0
        %v1919 = vmax.f32 %v1880, 0.0
        %v1920 = vmax.f32 %v1883, 0.0
        %v1921 = vmax.f32 %v1885, 0.0
        %v1922 = vmax.f32 %v1888, 0.0
        %v1923 = vmax.f32 %v1890, 0.0
        %s1924 = scalar_lea.vmem [#allocation2], 32
        %1925 = vst.msk [vmem:[%s1924 + $0x8] sm:$0xff] %vm515, %v1892
        %1926 = vst.msk [vmem:[%s1924 + $0x10] sm:$0xff] %vm515, %v1893
        %1927 = vst.msk [vmem:[%s1924 + $0x28] sm:$0xff] %vm515, %v1894
        %1928 = vst.msk [vmem:[%s1924 + $0x30] sm:$0xff] %vm515, %v1895
        %1929 = vst.msk [vmem:[%s1924 + $0x48] sm:$0xff] %vm515, %v1896
        %1930 = vst.msk [vmem:[%s1924 + $0x50] sm:$0xff] %vm515, %v1897
        %1931 = vst.msk [vmem:[%s1924 + $0x68] sm:$0xff] %vm515, %v1898
        %1932 = vst.msk [vmem:[%s1924 + $0x70] sm:$0xff] %vm515, %v1899
        %1933 = vst.msk [vmem:[%s1924 + $0x88] sm:$0xff] %vm515, %v1900
        %1934 = vst.msk [vmem:[%s1924 + $0x90] sm:$0xff] %vm515, %v1901
        %1935 = vst.msk [vmem:[%s1924 + $0xa8] sm:$0xff] %vm515, %v1902
        %1936 = vst.msk [vmem:[%s1924 + $0xb0] sm:$0xff] %vm515, %v1903
        %1937 = vst.msk [vmem:[%s1924 + $0xc8] sm:$0xff] %vm515, %v1904
        %1938 = vst.msk [vmem:[%s1924 + $0xd0] sm:$0xff] %vm515, %v1905
        %1939 = vst.msk [vmem:[%s1924 + $0xe8] sm:$0xff] %vm515, %v1906
        %1940 = vst.msk [vmem:[%s1924 + $0xf0] sm:$0xff] %vm515, %v1907
        %1941 = vst.msk [vmem:[%s1924 + $0x108] sm:$0xff] %vm515, %v1908
        %1942 = vst.msk [vmem:[%s1924 + $0x110] sm:$0xff] %vm515, %v1909
        %1943 = vst.msk [vmem:[%s1924 + $0x128] sm:$0xff] %vm515, %v1910
        %1944 = vst.msk [vmem:[%s1924 + $0x130] sm:$0xff] %vm515, %v1911
        %1945 = vst.msk [vmem:[%s1924 + $0x148] sm:$0xff] %vm515, %v1912
        %1946 = vst.msk [vmem:[%s1924 + $0x150] sm:$0xff] %vm515, %v1913
        %1947 = vst.msk [vmem:[%s1924 + $0x168] sm:$0xff] %vm515, %v1914
        %1948 = vst.msk [vmem:[%s1924 + $0x170] sm:$0xff] %vm515, %v1915
        %1949 = vst.msk [vmem:[%s1924 + $0x188] sm:$0xff] %vm515, %v1916
        %1950 = vst.msk [vmem:[%s1924 + $0x190] sm:$0xff] %vm515, %v1917
        %1951 = vst.msk [vmem:[%s1924 + $0x1a8] sm:$0xff] %vm515, %v1918
        %1952 = vst.msk [vmem:[%s1924 + $0x1b0] sm:$0xff] %vm515, %v1919
        %1953 = vst.msk [vmem:[%s1924 + $0x1c8] sm:$0xff] %vm515, %v1920
        %1954 = vst.msk [vmem:[%s1924 + $0x1d0] sm:$0xff] %vm515, %v1921
        %1955 = vst.msk [vmem:[%s1924 + $0x1e8] sm:$0xff] %vm515, %v1922
        %1956 = vst.msk [vmem:[%s1924 + $0x1f0] sm:$0xff] %vm515, %v1923
        %v1957 = vld [vmem:[#allocation2 + $0x7] sm:$0xff]
        %v1958 = vld [vmem:[#allocation2 + $0xf] sm:$0xff]
        %v1959 = vld [vmem:[#allocation2 + $0x27] sm:$0xff]
        %v1960 = vld [vmem:[#allocation2 + $0x2f] sm:$0xff]
        %v1961 = vld [vmem:[#allocation2 + $0x47] sm:$0xff]
        %v1962 = vld [vmem:[#allocation2 + $0x4f] sm:$0xff]
        %v1963 = vld [vmem:[#allocation2 + $0x67] sm:$0xff]
        %v1964 = vld [vmem:[#allocation2 + $0x6f] sm:$0xff]
        %v1965 = vld [vmem:[#allocation2 + $0x87] sm:$0xff]
        %v1966 = vld [vmem:[#allocation2 + $0x8f] sm:$0xff]
        %v1967 = vld [vmem:[#allocation2 + $0xa7] sm:$0xff]
        %v1968 = vld [vmem:[#allocation2 + $0xaf] sm:$0xff]
        %v1969 = vld [vmem:[#allocation2 + $0xc7] sm:$0xff]
        %v1970 = vld [vmem:[#allocation2 + $0xcf] sm:$0xff]
        %v1971 = vld [vmem:[#allocation2 + $0xe7] sm:$0xff]
        %v1972 = vld [vmem:[#allocation2 + $0xef] sm:$0xff]
        %v1973 = vld [vmem:[#allocation2 + $0x107] sm:$0xff]
        %v1974 = vld [vmem:[#allocation2 + $0x10f] sm:$0xff]
        %v1975 = vld [vmem:[#allocation2 + $0x127] sm:$0xff]
        %v1976 = vld [vmem:[#allocation2 + $0x12f] sm:$0xff]
        %v1977 = vld [vmem:[#allocation2 + $0x147] sm:$0xff]
        %v1978 = vld [vmem:[#allocation2 + $0x14f] sm:$0xff]
        %v1979 = vld [vmem:[#allocation2 + $0x167] sm:$0xff]
        %v1980 = vld [vmem:[#allocation2 + $0x16f] sm:$0xff]
        %v1981 = vld [vmem:[#allocation2 + $0x187] sm:$0xff]
        %v1982 = vld [vmem:[#allocation2 + $0x18f] sm:$0xff]
        %v1983 = vld [vmem:[#allocation2 + $0x1a7] sm:$0xff]
        %v1984 = vld [vmem:[#allocation2 + $0x1af] sm:$0xff]
        %v1985 = vld [vmem:[#allocation2 + $0x1c7] sm:$0xff]
        %v1986 = vld [vmem:[#allocation2 + $0x1cf] sm:$0xff]
        %v1987 = vld [vmem:[#allocation2 + $0x1e7] sm:$0xff]
        %v1988 = vld [vmem:[#allocation2 + $0x1ef] sm:$0xff]
        %v1989 = vpack.c.bf16 %v1958, %v1957
        %v1990 = vpack.c.bf16 %v1960, %v1959
        %v1991 = vpack.c.bf16 %v1962, %v1961
        %v1992 = vpack.c.bf16 %v1964, %v1963
        %v1993 = vpack.c.bf16 %v1966, %v1965
        %v1994 = vpack.c.bf16 %v1968, %v1967
        %v1995 = vpack.c.bf16 %v1970, %v1969
        %v1996 = vpack.c.bf16 %v1972, %v1971
        %v1997 = vpack.c.bf16 %v1974, %v1973
        %v1998 = vpack.c.bf16 %v1976, %v1975
        %v1999 = vpack.c.bf16 %v1978, %v1977
        %v2000 = vpack.c.bf16 %v1980, %v1979
        %v2001 = vpack.c.bf16 %v1982, %v1981
        %v2002 = vpack.c.bf16 %v1984, %v1983
        %v2003 = vpack.c.bf16 %v1986, %v1985
        %v2004 = vpack.c.bf16 %v1988, %v1987
        %v2005 = vld [vmem:[%s3] sm:$0xf]
        %v2006 = vld [vmem:[%s3 + $0x4] sm:$0xf]
        %v2007 = vld [vmem:[%s3 + $0x8] sm:$0xf]
        %v2008 = vld [vmem:[%s3 + $0xc] sm:$0xf]
        %v2009 = vld [vmem:[#allocation2 + $0x8] sm:$0xff]
        %v2010 = vld [vmem:[#allocation2 + $0x10] sm:$0xff]
        %v2011 = vld [vmem:[#allocation2 + $0x28] sm:$0xff]
        %v2012 = vld [vmem:[#allocation2 + $0x30] sm:$0xff]
        %v2013 = vld [vmem:[#allocation2 + $0x48] sm:$0xff]
        %v2014 = vld [vmem:[#allocation2 + $0x50] sm:$0xff]
        %v2015 = vld [vmem:[#allocation2 + $0x68] sm:$0xff]
        %v2016 = vld [vmem:[#allocation2 + $0x70] sm:$0xff]
        %v2017 = vld [vmem:[#allocation2 + $0x88] sm:$0xff]
        %v2018 = vld [vmem:[#allocation2 + $0x90] sm:$0xff]
        %v2019 = vld [vmem:[#allocation2 + $0xa8] sm:$0xff]
        %v2020 = vld [vmem:[#allocation2 + $0xb0] sm:$0xff]
        %v2021 = vld [vmem:[#allocation2 + $0xc8] sm:$0xff]
        %v2022 = vld [vmem:[#allocation2 + $0xd0] sm:$0xff]
        %v2023 = vld [vmem:[#allocation2 + $0xe8] sm:$0xff]
        %v2024 = vld [vmem:[#allocation2 + $0xf0] sm:$0xff]
        %v2025 = vld [vmem:[#allocation2 + $0x108] sm:$0xff]
        %v2026 = vld [vmem:[#allocation2 + $0x110] sm:$0xff]
        %v2027 = vld [vmem:[#allocation2 + $0x128] sm:$0xff]
        %v2028 = vld [vmem:[#allocation2 + $0x130] sm:$0xff]
        %v2029 = vld [vmem:[#allocation2 + $0x148] sm:$0xff]
        %v2030 = vld [vmem:[#allocation2 + $0x150] sm:$0xff]
        %v2031 = vld [vmem:[#allocation2 + $0x168] sm:$0xff]
        %v2032 = vld [vmem:[#allocation2 + $0x170] sm:$0xff]
        %v2033 = vld [vmem:[#allocation2 + $0x188] sm:$0xff]
        %v2034 = vld [vmem:[#allocation2 + $0x190] sm:$0xff]
        %v2035 = vld [vmem:[#allocation2 + $0x1a8] sm:$0xff]
        %v2036 = vld [vmem:[#allocation2 + $0x1b0] sm:$0xff]
        %v2037 = vld [vmem:[#allocation2 + $0x1c8] sm:$0xff]
        %v2038 = vld [vmem:[#allocation2 + $0x1d0] sm:$0xff]
        %v2039 = vld [vmem:[#allocation2 + $0x1e8] sm:$0xff]
        %v2040 = vld [vmem:[#allocation2 + $0x1f0] sm:$0xff]
        %v2041 = vpack.c.bf16 %v2010, %v2009
        %v2042 = vpack.c.bf16 %v2012, %v2011
        %v2043 = vpack.c.bf16 %v2014, %v2013
        %v2044 = vpack.c.bf16 %v2016, %v2015
        %v2045 = vpack.c.bf16 %v2018, %v2017
        %v2046 = vpack.c.bf16 %v2020, %v2019
        %v2047 = vpack.c.bf16 %v2022, %v2021
        %v2048 = vpack.c.bf16 %v2024, %v2023
        %v2049 = vpack.c.bf16 %v2026, %v2025
        %v2050 = vpack.c.bf16 %v2028, %v2027
        %v2051 = vpack.c.bf16 %v2030, %v2029
        %v2052 = vpack.c.bf16 %v2032, %v2031
        %v2053 = vpack.c.bf16 %v2034, %v2033
        %v2054 = vpack.c.bf16 %v2036, %v2035
        %v2055 = vpack.c.bf16 %v2038, %v2037
        %v2056 = vpack.c.bf16 %v2040, %v2039
        %s2057 = scalar_lea.vmem %s3, 16
        %v2058 = vld [vmem:[%s2057] sm:$0xf]
        %v2059 = vld [vmem:[%s2057 + $0x4] sm:$0xf]
        %v2060 = vld [vmem:[%s2057 + $0x8] sm:$0xf]
        %v2061 = vld [vmem:[%s2057 + $0xc] sm:$0xf]
        %v2066 = vunpack.c.l.b16 %v2058
        %v2067 = vunpack.c.l.b16 %v2059
        %v2068 = vunpack.c.l.b16 %v2060
        %v2069 = vunpack.c.l.b16 %v2061
        %v2070 = vpack.c.b16 %v2067, %v2066
        %v2071 = vpack.c.b16 %v2069, %v2068
        %v2075 = vsel %vm515, %v2041, 0
        %v2078 = vsel %vm515, %v2042, 0
        %v2081 = vsel %vm515, %v2043, 0
        %v2084 = vsel %vm515, %v2044, 0
        %v2087 = vsel %vm515, %v2045, 0
        %v2090 = vsel %vm515, %v2046, 0
        %v2093 = vsel %vm515, %v2047, 0
        %v2096 = vsel %vm515, %v2048, 0
        %v2099 = vsel %vm515, %v2049, 0
        %v2102 = vsel %vm515, %v2050, 0
        %v2105 = vsel %vm515, %v2051, 0
        %v2108 = vsel %vm515, %v2052, 0
        %v2111 = vsel %vm515, %v2053, 0
        %v2114 = vsel %vm515, %v2054, 0
        %v2117 = vsel %vm515, %v2055, 0
        %v2120 = vsel %vm515, %v2056, 0
        %2122 = vmatpush.bf16.msra.mxu0 0
        %2123 = vmatpush.bf16.msra.mxu0 0
        %2124 = vmatpush.bf16.msra.mxu0 0
        %2125 = vmatpush.bf16.msra.mxu0 0
        %2126 = vmatpush.bf16.msra.mxu0 0
        %2127 = vmatpush.bf16.msra.mxu0 0
        %2128 = vmatpush.bf16.msra.mxu0 %v2071
        %2129 = vmatpush.bf16.msra.mxu0 %v2070
        %2130 = vmatmul.bf16.gmra.mxu0 %v2075
        %v2131 = vpop.f32.mrf.mxu0
        %v2132 = vadd.f32 0.0, %v2131
        %v2133 = vpop.f32.mrf.mxu0
        %v2134 = vadd.f32 0.0, %v2133
        %2135 = vmatmul.bf16.gmra.mxu0 %v2078
        %v2136 = vpop.f32.mrf.mxu0
        %v2137 = vadd.f32 0.0, %v2136
        %v2138 = vpop.f32.mrf.mxu0
        %v2139 = vadd.f32 0.0, %v2138
        %2140 = vmatmul.bf16.gmra.mxu0 %v2081
        %v2141 = vpop.f32.mrf.mxu0
        %v2142 = vadd.f32 0.0, %v2141
        %v2143 = vpop.f32.mrf.mxu0
        %v2144 = vadd.f32 0.0, %v2143
        %2145 = vmatmul.bf16.gmra.mxu0 %v2084
        %v2146 = vpop.f32.mrf.mxu0
        %v2147 = vadd.f32 0.0, %v2146
        %v2148 = vpop.f32.mrf.mxu0
        %v2149 = vadd.f32 0.0, %v2148
        %2150 = vmatmul.bf16.gmra.mxu0 %v2087
        %v2151 = vpop.f32.mrf.mxu0
        %v2152 = vadd.f32 0.0, %v2151
        %v2153 = vpop.f32.mrf.mxu0
        %v2154 = vadd.f32 0.0, %v2153
        %2155 = vmatmul.bf16.gmra.mxu0 %v2090
        %v2156 = vpop.f32.mrf.mxu0
        %v2157 = vadd.f32 0.0, %v2156
        %v2158 = vpop.f32.mrf.mxu0
        %v2159 = vadd.f32 0.0, %v2158
        %2160 = vmatmul.bf16.gmra.mxu0 %v2093
        %v2161 = vpop.f32.mrf.mxu0
        %v2162 = vadd.f32 0.0, %v2161
        %v2163 = vpop.f32.mrf.mxu0
        %v2164 = vadd.f32 0.0, %v2163
        %2165 = vmatmul.bf16.gmra.mxu0 %v2096
        %v2166 = vpop.f32.mrf.mxu0
        %v2167 = vadd.f32 0.0, %v2166
        %v2168 = vpop.f32.mrf.mxu0
        %v2169 = vadd.f32 0.0, %v2168
        %2170 = vmatmul.bf16.gmra.mxu0 %v2099
        %v2171 = vpop.f32.mrf.mxu0
        %v2172 = vadd.f32 0.0, %v2171
        %v2173 = vpop.f32.mrf.mxu0
        %v2174 = vadd.f32 0.0, %v2173
        %2175 = vmatmul.bf16.gmra.mxu0 %v2102
        %v2176 = vpop.f32.mrf.mxu0
        %v2177 = vadd.f32 0.0, %v2176
        %v2178 = vpop.f32.mrf.mxu0
        %v2179 = vadd.f32 0.0, %v2178
        %2180 = vmatmul.bf16.gmra.mxu0 %v2105
        %v2181 = vpop.f32.mrf.mxu0
        %v2182 = vadd.f32 0.0, %v2181
        %v2183 = vpop.f32.mrf.mxu0
        %v2184 = vadd.f32 0.0, %v2183
        %2185 = vmatmul.bf16.gmra.mxu0 %v2108
        %v2186 = vpop.f32.mrf.mxu0
        %v2187 = vadd.f32 0.0, %v2186
        %v2188 = vpop.f32.mrf.mxu0
        %v2189 = vadd.f32 0.0, %v2188
        %2190 = vmatmul.bf16.gmra.mxu0 %v2111
        %v2191 = vpop.f32.mrf.mxu0
        %v2192 = vadd.f32 0.0, %v2191
        %v2193 = vpop.f32.mrf.mxu0
        %v2194 = vadd.f32 0.0, %v2193
        %2195 = vmatmul.bf16.gmra.mxu0 %v2114
        %v2196 = vpop.f32.mrf.mxu0
        %v2197 = vadd.f32 0.0, %v2196
        %v2198 = vpop.f32.mrf.mxu0
        %v2199 = vadd.f32 0.0, %v2198
        %2200 = vmatmul.bf16.gmra.mxu0 %v2117
        %v2201 = vpop.f32.mrf.mxu0
        %v2202 = vadd.f32 0.0, %v2201
        %v2203 = vpop.f32.mrf.mxu0
        %v2204 = vadd.f32 0.0, %v2203
        %2205 = vmatmul.bf16.gmra.mxu0 %v2120
        %v2206 = vpop.f32.mrf.mxu0
        %v2207 = vadd.f32 0.0, %v2206
        %v2208 = vpop.f32.mrf.mxu0
        %v2209 = vadd.f32 0.0, %v2208
        %2210 = vdwg.mxu0
        %v2215 = vunpack.c.l.b16 %v2005
        %v2216 = vunpack.c.l.b16 %v2006
        %v2217 = vunpack.c.l.b16 %v2007
        %v2218 = vunpack.c.l.b16 %v2008
        %v2219 = vpack.c.b16 %v2216, %v2215
        %v2220 = vpack.c.b16 %v2218, %v2217
        %v2224 = vsel %vm515, %v1989, 0
        %v2227 = vsel %vm515, %v1990, 0
        %v2230 = vsel %vm515, %v1991, 0
        %v2233 = vsel %vm515, %v1992, 0
        %v2236 = vsel %vm515, %v1993, 0
        %v2239 = vsel %vm515, %v1994, 0
        %v2242 = vsel %vm515, %v1995, 0
        %v2245 = vsel %vm515, %v1996, 0
        %v2248 = vsel %vm515, %v1997, 0
        %v2251 = vsel %vm515, %v1998, 0
        %v2254 = vsel %vm515, %v1999, 0
        %v2257 = vsel %vm515, %v2000, 0
        %v2260 = vsel %vm515, %v2001, 0
        %v2263 = vsel %vm515, %v2002, 0
        %v2266 = vsel %vm515, %v2003, 0
        %v2269 = vsel %vm515, %v2004, 0
        %2271 = vmatpush.bf16.msra.mxu0 0
        %2272 = vmatpush.bf16.msra.mxu0 0
        %2273 = vmatpush.bf16.msra.mxu0 0
        %2274 = vmatpush.bf16.msra.mxu0 0
        %2275 = vmatpush.bf16.msra.mxu0 0
        %2276 = vmatpush.bf16.msra.mxu0 0
        %2277 = vmatpush.bf16.msra.mxu0 %v2220
        %2278 = vmatpush.bf16.msra.mxu0 %v2219
        %2279 = vmatmul.bf16.gmra.mxu0 %v2224
        %v2280 = vpop.f32.mrf.mxu0
        %v2281 = vadd.f32 %v2132, %v2280
        %v2282 = vpop.f32.mrf.mxu0
        %v2283 = vadd.f32 %v2134, %v2282
        %2284 = vmatmul.bf16.gmra.mxu0 %v2227
        %v2285 = vpop.f32.mrf.mxu0
        %v2286 = vadd.f32 %v2137, %v2285
        %v2287 = vpop.f32.mrf.mxu0
        %v2288 = vadd.f32 %v2139, %v2287
        %2289 = vmatmul.bf16.gmra.mxu0 %v2230
        %v2290 = vpop.f32.mrf.mxu0
        %v2291 = vadd.f32 %v2142, %v2290
        %v2292 = vpop.f32.mrf.mxu0
        %v2293 = vadd.f32 %v2144, %v2292
        %2294 = vmatmul.bf16.gmra.mxu0 %v2233
        %v2295 = vpop.f32.mrf.mxu0
        %v2296 = vadd.f32 %v2147, %v2295
        %v2297 = vpop.f32.mrf.mxu0
        %v2298 = vadd.f32 %v2149, %v2297
        %2299 = vmatmul.bf16.gmra.mxu0 %v2236
        %v2300 = vpop.f32.mrf.mxu0
        %v2301 = vadd.f32 %v2152, %v2300
        %v2302 = vpop.f32.mrf.mxu0
        %v2303 = vadd.f32 %v2154, %v2302
        %2304 = vmatmul.bf16.gmra.mxu0 %v2239
        %v2305 = vpop.f32.mrf.mxu0
        %v2306 = vadd.f32 %v2157, %v2305
        %v2307 = vpop.f32.mrf.mxu0
        %v2308 = vadd.f32 %v2159, %v2307
        %2309 = vmatmul.bf16.gmra.mxu0 %v2242
        %v2310 = vpop.f32.mrf.mxu0
        %v2311 = vadd.f32 %v2162, %v2310
        %v2312 = vpop.f32.mrf.mxu0
        %v2313 = vadd.f32 %v2164, %v2312
        %2314 = vmatmul.bf16.gmra.mxu0 %v2245
        %v2315 = vpop.f32.mrf.mxu0
        %v2316 = vadd.f32 %v2167, %v2315
        %v2317 = vpop.f32.mrf.mxu0
        %v2318 = vadd.f32 %v2169, %v2317
        %2319 = vmatmul.bf16.gmra.mxu0 %v2248
        %v2320 = vpop.f32.mrf.mxu0
        %v2321 = vadd.f32 %v2172, %v2320
        %v2322 = vpop.f32.mrf.mxu0
        %v2323 = vadd.f32 %v2174, %v2322
        %2324 = vmatmul.bf16.gmra.mxu0 %v2251
        %v2325 = vpop.f32.mrf.mxu0
        %v2326 = vadd.f32 %v2177, %v2325
        %v2327 = vpop.f32.mrf.mxu0
        %v2328 = vadd.f32 %v2179, %v2327
        %2329 = vmatmul.bf16.gmra.mxu0 %v2254
        %v2330 = vpop.f32.mrf.mxu0
        %v2331 = vadd.f32 %v2182, %v2330
        %v2332 = vpop.f32.mrf.mxu0
        %v2333 = vadd.f32 %v2184, %v2332
        %2334 = vmatmul.bf16.gmra.mxu0 %v2257
        %v2335 = vpop.f32.mrf.mxu0
        %v2336 = vadd.f32 %v2187, %v2335
        %v2337 = vpop.f32.mrf.mxu0
        %v2338 = vadd.f32 %v2189, %v2337
        %2339 = vmatmul.bf16.gmra.mxu0 %v2260
        %v2340 = vpop.f32.mrf.mxu0
        %v2341 = vadd.f32 %v2192, %v2340
        %v2342 = vpop.f32.mrf.mxu0
        %v2343 = vadd.f32 %v2194, %v2342
        %2344 = vmatmul.bf16.gmra.mxu0 %v2263
        %v2345 = vpop.f32.mrf.mxu0
        %v2346 = vadd.f32 %v2197, %v2345
        %v2347 = vpop.f32.mrf.mxu0
        %v2348 = vadd.f32 %v2199, %v2347
        %2349 = vmatmul.bf16.gmra.mxu0 %v2266
        %v2350 = vpop.f32.mrf.mxu0
        %v2351 = vadd.f32 %v2202, %v2350
        %v2352 = vpop.f32.mrf.mxu0
        %v2353 = vadd.f32 %v2204, %v2352
        %2354 = vmatmul.bf16.gmra.mxu0 %v2269
        %v2355 = vpop.f32.mrf.mxu0
        %v2356 = vadd.f32 %v2207, %v2355
        %v2357 = vpop.f32.mrf.mxu0
        %v2358 = vadd.f32 %v2209, %v2357
        %2359 = vdwg.mxu0
        %v2360 = vld [vmem:[#allocation2 + $0x9] sm:$0xff]
        %v2361 = vld [vmem:[#allocation2 + $0x11] sm:$0xff]
        %v2362 = vld [vmem:[#allocation2 + $0x29] sm:$0xff]
        %v2363 = vld [vmem:[#allocation2 + $0x31] sm:$0xff]
        %v2364 = vld [vmem:[#allocation2 + $0x49] sm:$0xff]
        %v2365 = vld [vmem:[#allocation2 + $0x51] sm:$0xff]
        %v2366 = vld [vmem:[#allocation2 + $0x69] sm:$0xff]
        %v2367 = vld [vmem:[#allocation2 + $0x71] sm:$0xff]
        %v2368 = vld [vmem:[#allocation2 + $0x89] sm:$0xff]
        %v2369 = vld [vmem:[#allocation2 + $0x91] sm:$0xff]
        %v2370 = vld [vmem:[#allocation2 + $0xa9] sm:$0xff]
        %v2371 = vld [vmem:[#allocation2 + $0xb1] sm:$0xff]
        %v2372 = vld [vmem:[#allocation2 + $0xc9] sm:$0xff]
        %v2373 = vld [vmem:[#allocation2 + $0xd1] sm:$0xff]
        %v2374 = vld [vmem:[#allocation2 + $0xe9] sm:$0xff]
        %v2375 = vld [vmem:[#allocation2 + $0xf1] sm:$0xff]
        %v2376 = vld [vmem:[#allocation2 + $0x109] sm:$0xff]
        %v2377 = vld [vmem:[#allocation2 + $0x111] sm:$0xff]
        %v2378 = vld [vmem:[#allocation2 + $0x129] sm:$0xff]
        %v2379 = vld [vmem:[#allocation2 + $0x131] sm:$0xff]
        %v2380 = vld [vmem:[#allocation2 + $0x149] sm:$0xff]
        %v2381 = vld [vmem:[#allocation2 + $0x151] sm:$0xff]
        %v2382 = vld [vmem:[#allocation2 + $0x169] sm:$0xff]
        %v2383 = vld [vmem:[#allocation2 + $0x171] sm:$0xff]
        %v2384 = vld [vmem:[#allocation2 + $0x189] sm:$0xff]
        %v2385 = vld [vmem:[#allocation2 + $0x191] sm:$0xff]
        %v2386 = vld [vmem:[#allocation2 + $0x1a9] sm:$0xff]
        %v2387 = vld [vmem:[#allocation2 + $0x1b1] sm:$0xff]
        %v2388 = vld [vmem:[#allocation2 + $0x1c9] sm:$0xff]
        %v2389 = vld [vmem:[#allocation2 + $0x1d1] sm:$0xff]
        %v2390 = vld [vmem:[#allocation2 + $0x1e9] sm:$0xff]
        %v2391 = vld [vmem:[#allocation2 + $0x1f1] sm:$0xff]
        %v2392 = vpack.c.bf16 %v2361, %v2360
        %v2393 = vpack.c.bf16 %v2363, %v2362
        %v2394 = vpack.c.bf16 %v2365, %v2364
        %v2395 = vpack.c.bf16 %v2367, %v2366
        %v2396 = vpack.c.bf16 %v2369, %v2368
        %v2397 = vpack.c.bf16 %v2371, %v2370
        %v2398 = vpack.c.bf16 %v2373, %v2372
        %v2399 = vpack.c.bf16 %v2375, %v2374
        %v2400 = vpack.c.bf16 %v2377, %v2376
        %v2401 = vpack.c.bf16 %v2379, %v2378
        %v2402 = vpack.c.bf16 %v2381, %v2380
        %v2403 = vpack.c.bf16 %v2383, %v2382
        %v2404 = vpack.c.bf16 %v2385, %v2384
        %v2405 = vpack.c.bf16 %v2387, %v2386
        %v2406 = vpack.c.bf16 %v2389, %v2388
        %v2407 = vpack.c.bf16 %v2391, %v2390
        %s2408 = scalar_lea.vmem %s3, 32
        %v2409 = vld [vmem:[%s2408] sm:$0xf]
        %v2410 = vld [vmem:[%s2408 + $0x4] sm:$0xf]
        %v2411 = vld [vmem:[%s2408 + $0x8] sm:$0xf]
        %v2412 = vld [vmem:[%s2408 + $0xc] sm:$0xf]
        %v2417 = vunpack.c.l.b16 %v2409
        %v2418 = vunpack.c.l.b16 %v2410
        %v2419 = vunpack.c.l.b16 %v2411
        %v2420 = vunpack.c.l.b16 %v2412
        %v2421 = vpack.c.b16 %v2418, %v2417
        %v2422 = vpack.c.b16 %v2420, %v2419
        %v2426 = vsel %vm515, %v2392, 0
        %v2429 = vsel %vm515, %v2393, 0
        %v2432 = vsel %vm515, %v2394, 0
        %v2435 = vsel %vm515, %v2395, 0
        %v2438 = vsel %vm515, %v2396, 0
        %v2441 = vsel %vm515, %v2397, 0
        %v2444 = vsel %vm515, %v2398, 0
        %v2447 = vsel %vm515, %v2399, 0
        %v2450 = vsel %vm515, %v2400, 0
        %v2453 = vsel %vm515, %v2401, 0
        %v2456 = vsel %vm515, %v2402, 0
        %v2459 = vsel %vm515, %v2403, 0
        %v2462 = vsel %vm515, %v2404, 0
        %v2465 = vsel %vm515, %v2405, 0
        %v2468 = vsel %vm515, %v2406, 0
        %v2471 = vsel %vm515, %v2407, 0
        %2473 = vmatpush.bf16.msra.mxu0 0
        %2474 = vmatpush.bf16.msra.mxu0 0
        %2475 = vmatpush.bf16.msra.mxu0 0
        %2476 = vmatpush.bf16.msra.mxu0 0
        %2477 = vmatpush.bf16.msra.mxu0 0
        %2478 = vmatpush.bf16.msra.mxu0 0
        %2479 = vmatpush.bf16.msra.mxu0 %v2422
        %2480 = vmatpush.bf16.msra.mxu0 %v2421
        %2481 = vmatmul.bf16.gmra.mxu0 %v2426
        %v2482 = vpop.f32.mrf.mxu0
        %v2483 = vadd.f32 0.0, %v2482
        %v2484 = vpop.f32.mrf.mxu0
        %v2485 = vadd.f32 0.0, %v2484
        %2486 = vmatmul.bf16.gmra.mxu0 %v2429
        %v2487 = vpop.f32.mrf.mxu0
        %v2488 = vadd.f32 0.0, %v2487
        %v2489 = vpop.f32.mrf.mxu0
        %v2490 = vadd.f32 0.0, %v2489
        %2491 = vmatmul.bf16.gmra.mxu0 %v2432
        %v2492 = vpop.f32.mrf.mxu0
        %v2493 = vadd.f32 0.0, %v2492
        %v2494 = vpop.f32.mrf.mxu0
        %v2495 = vadd.f32 0.0, %v2494
        %2496 = vmatmul.bf16.gmra.mxu0 %v2435
        %v2497 = vpop.f32.mrf.mxu0
        %v2498 = vadd.f32 0.0, %v2497
        %v2499 = vpop.f32.mrf.mxu0
        %v2500 = vadd.f32 0.0, %v2499
        %2501 = vmatmul.bf16.gmra.mxu0 %v2438
        %v2502 = vpop.f32.mrf.mxu0
        %v2503 = vadd.f32 0.0, %v2502
        %v2504 = vpop.f32.mrf.mxu0
        %v2505 = vadd.f32 0.0, %v2504
        %2506 = vmatmul.bf16.gmra.mxu0 %v2441
        %v2507 = vpop.f32.mrf.mxu0
        %v2508 = vadd.f32 0.0, %v2507
        %v2509 = vpop.f32.mrf.mxu0
        %v2510 = vadd.f32 0.0, %v2509
        %2511 = vmatmul.bf16.gmra.mxu0 %v2444
        %v2512 = vpop.f32.mrf.mxu0
        %v2513 = vadd.f32 0.0, %v2512
        %v2514 = vpop.f32.mrf.mxu0
        %v2515 = vadd.f32 0.0, %v2514
        %2516 = vmatmul.bf16.gmra.mxu0 %v2447
        %v2517 = vpop.f32.mrf.mxu0
        %v2518 = vadd.f32 0.0, %v2517
        %v2519 = vpop.f32.mrf.mxu0
        %v2520 = vadd.f32 0.0, %v2519
        %2521 = vmatmul.bf16.gmra.mxu0 %v2450
        %v2522 = vpop.f32.mrf.mxu0
        %v2523 = vadd.f32 0.0, %v2522
        %v2524 = vpop.f32.mrf.mxu0
        %v2525 = vadd.f32 0.0, %v2524
        %2526 = vmatmul.bf16.gmra.mxu0 %v2453
        %v2527 = vpop.f32.mrf.mxu0
        %v2528 = vadd.f32 0.0, %v2527
        %v2529 = vpop.f32.mrf.mxu0
        %v2530 = vadd.f32 0.0, %v2529
        %2531 = vmatmul.bf16.gmra.mxu0 %v2456
        %v2532 = vpop.f32.mrf.mxu0
        %v2533 = vadd.f32 0.0, %v2532
        %v2534 = vpop.f32.mrf.mxu0
        %v2535 = vadd.f32 0.0, %v2534
        %2536 = vmatmul.bf16.gmra.mxu0 %v2459
        %v2537 = vpop.f32.mrf.mxu0
        %v2538 = vadd.f32 0.0, %v2537
        %v2539 = vpop.f32.mrf.mxu0
        %v2540 = vadd.f32 0.0, %v2539
        %2541 = vmatmul.bf16.gmra.mxu0 %v2462
        %v2542 = vpop.f32.mrf.mxu0
        %v2543 = vadd.f32 0.0, %v2542
        %v2544 = vpop.f32.mrf.mxu0
        %v2545 = vadd.f32 0.0, %v2544
        %2546 = vmatmul.bf16.gmra.mxu0 %v2465
        %v2547 = vpop.f32.mrf.mxu0
        %v2548 = vadd.f32 0.0, %v2547
        %v2549 = vpop.f32.mrf.mxu0
        %v2550 = vadd.f32 0.0, %v2549
        %2551 = vmatmul.bf16.gmra.mxu0 %v2468
        %v2552 = vpop.f32.mrf.mxu0
        %v2553 = vadd.f32 0.0, %v2552
        %v2554 = vpop.f32.mrf.mxu0
        %v2555 = vadd.f32 0.0, %v2554
        %2556 = vmatmul.bf16.gmra.mxu0 %v2471
        %v2557 = vpop.f32.mrf.mxu0
        %v2558 = vadd.f32 0.0, %v2557
        %v2559 = vpop.f32.mrf.mxu0
        %v2560 = vadd.f32 0.0, %v2559
        %2561 = vdwg.mxu0
        %v2562 = vadd.f32 %v2281, %v2483
        %v2563 = vadd.f32 %v2283, %v2485
        %v2564 = vadd.f32 %v2286, %v2488
        %v2565 = vadd.f32 %v2288, %v2490
        %v2566 = vadd.f32 %v2291, %v2493
        %v2567 = vadd.f32 %v2293, %v2495
        %v2568 = vadd.f32 %v2296, %v2498
        %v2569 = vadd.f32 %v2298, %v2500
        %v2570 = vadd.f32 %v2301, %v2503
        %v2571 = vadd.f32 %v2303, %v2505
        %v2572 = vadd.f32 %v2306, %v2508
        %v2573 = vadd.f32 %v2308, %v2510
        %v2574 = vadd.f32 %v2311, %v2513
        %v2575 = vadd.f32 %v2313, %v2515
        %v2576 = vadd.f32 %v2316, %v2518
        %v2577 = vadd.f32 %v2318, %v2520
        %v2578 = vadd.f32 %v2321, %v2523
        %v2579 = vadd.f32 %v2323, %v2525
        %v2580 = vadd.f32 %v2326, %v2528
        %v2581 = vadd.f32 %v2328, %v2530
        %v2582 = vadd.f32 %v2331, %v2533
        %v2583 = vadd.f32 %v2333, %v2535
        %v2584 = vadd.f32 %v2336, %v2538
        %v2585 = vadd.f32 %v2338, %v2540
        %v2586 = vadd.f32 %v2341, %v2543
        %v2587 = vadd.f32 %v2343, %v2545
        %v2588 = vadd.f32 %v2346, %v2548
        %v2589 = vadd.f32 %v2348, %v2550
        %v2590 = vadd.f32 %v2351, %v2553
        %v2591 = vadd.f32 %v2353, %v2555
        %v2592 = vadd.f32 %v2356, %v2558
        %v2593 = vadd.f32 %v2358, %v2560
        %v2594 = vld [vmem:[%s1924 + $0x7] sm:$0xff]
        %v2595 = vld [vmem:[%s1924 + $0xf] sm:$0xff]
        %v2596 = vld [vmem:[%s1924 + $0x27] sm:$0xff]
        %v2597 = vld [vmem:[%s1924 + $0x2f] sm:$0xff]
        %v2598 = vld [vmem:[%s1924 + $0x47] sm:$0xff]
        %v2599 = vld [vmem:[%s1924 + $0x4f] sm:$0xff]
        %v2600 = vld [vmem:[%s1924 + $0x67] sm:$0xff]
        %v2601 = vld [vmem:[%s1924 + $0x6f] sm:$0xff]
        %v2602 = vld [vmem:[%s1924 + $0x87] sm:$0xff]
        %v2603 = vld [vmem:[%s1924 + $0x8f] sm:$0xff]
        %v2604 = vld [vmem:[%s1924 + $0xa7] sm:$0xff]
        %v2605 = vld [vmem:[%s1924 + $0xaf] sm:$0xff]
        %v2606 = vld [vmem:[%s1924 + $0xc7] sm:$0xff]
        %v2607 = vld [vmem:[%s1924 + $0xcf] sm:$0xff]
        %v2608 = vld [vmem:[%s1924 + $0xe7] sm:$0xff]
        %v2609 = vld [vmem:[%s1924 + $0xef] sm:$0xff]
        %v2610 = vld [vmem:[%s1924 + $0x107] sm:$0xff]
        %v2611 = vld [vmem:[%s1924 + $0x10f] sm:$0xff]
        %v2612 = vld [vmem:[%s1924 + $0x127] sm:$0xff]
        %v2613 = vld [vmem:[%s1924 + $0x12f] sm:$0xff]
        %v2614 = vld [vmem:[%s1924 + $0x147] sm:$0xff]
        %v2615 = vld [vmem:[%s1924 + $0x14f] sm:$0xff]
        %v2616 = vld [vmem:[%s1924 + $0x167] sm:$0xff]
        %v2617 = vld [vmem:[%s1924 + $0x16f] sm:$0xff]
        %v2618 = vld [vmem:[%s1924 + $0x187] sm:$0xff]
        %v2619 = vld [vmem:[%s1924 + $0x18f] sm:$0xff]
        %v2620 = vld [vmem:[%s1924 + $0x1a7] sm:$0xff]
        %v2621 = vld [vmem:[%s1924 + $0x1af] sm:$0xff]
        %v2622 = vld [vmem:[%s1924 + $0x1c7] sm:$0xff]
        %v2623 = vld [vmem:[%s1924 + $0x1cf] sm:$0xff]
        %v2624 = vld [vmem:[%s1924 + $0x1e7] sm:$0xff]
        %v2625 = vld [vmem:[%s1924 + $0x1ef] sm:$0xff]
        %v2626 = vpack.c.bf16 %v2595, %v2594
        %v2627 = vpack.c.bf16 %v2597, %v2596
        %v2628 = vpack.c.bf16 %v2599, %v2598
        %v2629 = vpack.c.bf16 %v2601, %v2600
        %v2630 = vpack.c.bf16 %v2603, %v2602
        %v2631 = vpack.c.bf16 %v2605, %v2604
        %v2632 = vpack.c.bf16 %v2607, %v2606
        %v2633 = vpack.c.bf16 %v2609, %v2608
        %v2634 = vpack.c.bf16 %v2611, %v2610
        %v2635 = vpack.c.bf16 %v2613, %v2612
        %v2636 = vpack.c.bf16 %v2615, %v2614
        %v2637 = vpack.c.bf16 %v2617, %v2616
        %v2638 = vpack.c.bf16 %v2619, %v2618
        %v2639 = vpack.c.bf16 %v2621, %v2620
        %v2640 = vpack.c.bf16 %v2623, %v2622
        %v2641 = vpack.c.bf16 %v2625, %v2624
        %s2642 = scalar_lea.vmem %s3, 48
        %v2643 = vld [vmem:[%s2642] sm:$0xf]
        %v2644 = vld [vmem:[%s2642 + $0x4] sm:$0xf]
        %v2645 = vld [vmem:[%s2642 + $0x8] sm:$0xf]
        %v2646 = vld [vmem:[%s2642 + $0xc] sm:$0xf]
        %v2651 = vunpack.c.l.b16 %v2643
        %v2652 = vunpack.c.l.b16 %v2644
        %v2653 = vunpack.c.l.b16 %v2645
        %v2654 = vunpack.c.l.b16 %v2646
        %v2655 = vpack.c.b16 %v2652, %v2651
        %v2656 = vpack.c.b16 %v2654, %v2653
        %v2660 = vsel %vm515, %v2626, 0
        %v2663 = vsel %vm515, %v2627, 0
        %v2666 = vsel %vm515, %v2628, 0
        %v2669 = vsel %vm515, %v2629, 0
        %v2672 = vsel %vm515, %v2630, 0
        %v2675 = vsel %vm515, %v2631, 0
        %v2678 = vsel %vm515, %v2632, 0
        %v2681 = vsel %vm515, %v2633, 0
        %v2684 = vsel %vm515, %v2634, 0
        %v2687 = vsel %vm515, %v2635, 0
        %v2690 = vsel %vm515, %v2636, 0
        %v2693 = vsel %vm515, %v2637, 0
        %v2696 = vsel %vm515, %v2638, 0
        %v2699 = vsel %vm515, %v2639, 0
        %v2702 = vsel %vm515, %v2640, 0
        %v2705 = vsel %vm515, %v2641, 0
        %2707 = vmatpush.bf16.msra.mxu0 0
        %2708 = vmatpush.bf16.msra.mxu0 0
        %2709 = vmatpush.bf16.msra.mxu0 0
        %2710 = vmatpush.bf16.msra.mxu0 0
        %2711 = vmatpush.bf16.msra.mxu0 0
        %2712 = vmatpush.bf16.msra.mxu0 0
        %2713 = vmatpush.bf16.msra.mxu0 %v2656
        %2714 = vmatpush.bf16.msra.mxu0 %v2655
        %2715 = vmatmul.bf16.gmra.mxu0 %v2660
        %v2716 = vpop.f32.mrf.mxu0
        %v2717 = vadd.f32 0.0, %v2716
        %v2718 = vpop.f32.mrf.mxu0
        %v2719 = vadd.f32 0.0, %v2718
        %2720 = vmatmul.bf16.gmra.mxu0 %v2663
        %v2721 = vpop.f32.mrf.mxu0
        %v2722 = vadd.f32 0.0, %v2721
        %v2723 = vpop.f32.mrf.mxu0
        %v2724 = vadd.f32 0.0, %v2723
        %2725 = vmatmul.bf16.gmra.mxu0 %v2666
        %v2726 = vpop.f32.mrf.mxu0
        %v2727 = vadd.f32 0.0, %v2726
        %v2728 = vpop.f32.mrf.mxu0
        %v2729 = vadd.f32 0.0, %v2728
        %2730 = vmatmul.bf16.gmra.mxu0 %v2669
        %v2731 = vpop.f32.mrf.mxu0
        %v2732 = vadd.f32 0.0, %v2731
        %v2733 = vpop.f32.mrf.mxu0
        %v2734 = vadd.f32 0.0, %v2733
        %2735 = vmatmul.bf16.gmra.mxu0 %v2672
        %v2736 = vpop.f32.mrf.mxu0
        %v2737 = vadd.f32 0.0, %v2736
        %v2738 = vpop.f32.mrf.mxu0
        %v2739 = vadd.f32 0.0, %v2738
        %2740 = vmatmul.bf16.gmra.mxu0 %v2675
        %v2741 = vpop.f32.mrf.mxu0
        %v2742 = vadd.f32 0.0, %v2741
        %v2743 = vpop.f32.mrf.mxu0
        %v2744 = vadd.f32 0.0, %v2743
        %2745 = vmatmul.bf16.gmra.mxu0 %v2678
        %v2746 = vpop.f32.mrf.mxu0
        %v2747 = vadd.f32 0.0, %v2746
        %v2748 = vpop.f32.mrf.mxu0
        %v2749 = vadd.f32 0.0, %v2748
        %2750 = vmatmul.bf16.gmra.mxu0 %v2681
        %v2751 = vpop.f32.mrf.mxu0
        %v2752 = vadd.f32 0.0, %v2751
        %v2753 = vpop.f32.mrf.mxu0
        %v2754 = vadd.f32 0.0, %v2753
        %2755 = vmatmul.bf16.gmra.mxu0 %v2684
        %v2756 = vpop.f32.mrf.mxu0
        %v2757 = vadd.f32 0.0, %v2756
        %v2758 = vpop.f32.mrf.mxu0
        %v2759 = vadd.f32 0.0, %v2758
        %2760 = vmatmul.bf16.gmra.mxu0 %v2687
        %v2761 = vpop.f32.mrf.mxu0
        %v2762 = vadd.f32 0.0, %v2761
        %v2763 = vpop.f32.mrf.mxu0
        %v2764 = vadd.f32 0.0, %v2763
        %2765 = vmatmul.bf16.gmra.mxu0 %v2690
        %v2766 = vpop.f32.mrf.mxu0
        %v2767 = vadd.f32 0.0, %v2766
        %v2768 = vpop.f32.mrf.mxu0
        %v2769 = vadd.f32 0.0, %v2768
        %2770 = vmatmul.bf16.gmra.mxu0 %v2693
        %v2771 = vpop.f32.mrf.mxu0
        %v2772 = vadd.f32 0.0, %v2771
        %v2773 = vpop.f32.mrf.mxu0
        %v2774 = vadd.f32 0.0, %v2773
        %2775 = vmatmul.bf16.gmra.mxu0 %v2696
        %v2776 = vpop.f32.mrf.mxu0
        %v2777 = vadd.f32 0.0, %v2776
        %v2778 = vpop.f32.mrf.mxu0
        %v2779 = vadd.f32 0.0, %v2778
        %2780 = vmatmul.bf16.gmra.mxu0 %v2699
        %v2781 = vpop.f32.mrf.mxu0
        %v2782 = vadd.f32 0.0, %v2781
        %v2783 = vpop.f32.mrf.mxu0
        %v2784 = vadd.f32 0.0, %v2783
        %2785 = vmatmul.bf16.gmra.mxu0 %v2702
        %v2786 = vpop.f32.mrf.mxu0
        %v2787 = vadd.f32 0.0, %v2786
        %v2788 = vpop.f32.mrf.mxu0
        %v2789 = vadd.f32 0.0, %v2788
        %2790 = vmatmul.bf16.gmra.mxu0 %v2705
        %v2791 = vpop.f32.mrf.mxu0
        %v2792 = vadd.f32 0.0, %v2791
        %v2793 = vpop.f32.mrf.mxu0
        %v2794 = vadd.f32 0.0, %v2793
        %2795 = vdwg.mxu0
        %v2796 = vadd.f32 %v2562, %v2717
        %v2797 = vadd.f32 %v2563, %v2719
        %v2798 = vadd.f32 %v2564, %v2722
        %v2799 = vadd.f32 %v2565, %v2724
        %v2800 = vadd.f32 %v2566, %v2727
        %v2801 = vadd.f32 %v2567, %v2729
        %v2802 = vadd.f32 %v2568, %v2732
        %v2803 = vadd.f32 %v2569, %v2734
        %v2804 = vadd.f32 %v2570, %v2737
        %v2805 = vadd.f32 %v2571, %v2739
        %v2806 = vadd.f32 %v2572, %v2742
        %v2807 = vadd.f32 %v2573, %v2744
        %v2808 = vadd.f32 %v2574, %v2747
        %v2809 = vadd.f32 %v2575, %v2749
        %v2810 = vadd.f32 %v2576, %v2752
        %v2811 = vadd.f32 %v2577, %v2754
        %v2812 = vadd.f32 %v2578, %v2757
        %v2813 = vadd.f32 %v2579, %v2759
        %v2814 = vadd.f32 %v2580, %v2762
        %v2815 = vadd.f32 %v2581, %v2764
        %v2816 = vadd.f32 %v2582, %v2767
        %v2817 = vadd.f32 %v2583, %v2769
        %v2818 = vadd.f32 %v2584, %v2772
        %v2819 = vadd.f32 %v2585, %v2774
        %v2820 = vadd.f32 %v2586, %v2777
        %v2821 = vadd.f32 %v2587, %v2779
        %v2822 = vadd.f32 %v2588, %v2782
        %v2823 = vadd.f32 %v2589, %v2784
        %v2824 = vadd.f32 %v2590, %v2787
        %v2825 = vadd.f32 %v2591, %v2789
        %v2826 = vadd.f32 %v2592, %v2792
        %v2827 = vadd.f32 %v2593, %v2794
        %v2828 = vld [vmem:[%s1924 + $0x8] sm:$0xff]
        %v2829 = vld [vmem:[%s1924 + $0x10] sm:$0xff]
        %v2830 = vld [vmem:[%s1924 + $0x28] sm:$0xff]
        %v2831 = vld [vmem:[%s1924 + $0x30] sm:$0xff]
        %v2832 = vld [vmem:[%s1924 + $0x48] sm:$0xff]
        %v2833 = vld [vmem:[%s1924 + $0x50] sm:$0xff]
        %v2834 = vld [vmem:[%s1924 + $0x68] sm:$0xff]
        %v2835 = vld [vmem:[%s1924 + $0x70] sm:$0xff]
        %v2836 = vld [vmem:[%s1924 + $0x88] sm:$0xff]
        %v2837 = vld [vmem:[%s1924 + $0x90] sm:$0xff]
        %v2838 = vld [vmem:[%s1924 + $0xa8] sm:$0xff]
        %v2839 = vld [vmem:[%s1924 + $0xb0] sm:$0xff]
        %v2840 = vld [vmem:[%s1924 + $0xc8] sm:$0xff]
        %v2841 = vld [vmem:[%s1924 + $0xd0] sm:$0xff]
        %v2842 = vld [vmem:[%s1924 + $0xe8] sm:$0xff]
        %v2843 = vld [vmem:[%s1924 + $0xf0] sm:$0xff]
        %v2844 = vld [vmem:[%s1924 + $0x108] sm:$0xff]
        %v2845 = vld [vmem:[%s1924 + $0x110] sm:$0xff]
        %v2846 = vld [vmem:[%s1924 + $0x128] sm:$0xff]
        %v2847 = vld [vmem:[%s1924 + $0x130] sm:$0xff]
        %v2848 = vld [vmem:[%s1924 + $0x148] sm:$0xff]
        %v2849 = vld [vmem:[%s1924 + $0x150] sm:$0xff]
        %v2850 = vld [vmem:[%s1924 + $0x168] sm:$0xff]
        %v2851 = vld [vmem:[%s1924 + $0x170] sm:$0xff]
        %v2852 = vld [vmem:[%s1924 + $0x188] sm:$0xff]
        %v2853 = vld [vmem:[%s1924 + $0x190] sm:$0xff]
        %v2854 = vld [vmem:[%s1924 + $0x1a8] sm:$0xff]
        %v2855 = vld [vmem:[%s1924 + $0x1b0] sm:$0xff]
        %v2856 = vld [vmem:[%s1924 + $0x1c8] sm:$0xff]
        %v2857 = vld [vmem:[%s1924 + $0x1d0] sm:$0xff]
        %v2858 = vld [vmem:[%s1924 + $0x1e8] sm:$0xff]
        %v2859 = vld [vmem:[%s1924 + $0x1f0] sm:$0xff]
        %v2860 = vpack.c.bf16 %v2829, %v2828
        %v2861 = vpack.c.bf16 %v2831, %v2830
        %v2862 = vpack.c.bf16 %v2833, %v2832
        %v2863 = vpack.c.bf16 %v2835, %v2834
        %v2864 = vpack.c.bf16 %v2837, %v2836
        %v2865 = vpack.c.bf16 %v2839, %v2838
        %v2866 = vpack.c.bf16 %v2841, %v2840
        %v2867 = vpack.c.bf16 %v2843, %v2842
        %v2868 = vpack.c.bf16 %v2845, %v2844
        %v2869 = vpack.c.bf16 %v2847, %v2846
        %v2870 = vpack.c.bf16 %v2849, %v2848
        %v2871 = vpack.c.bf16 %v2851, %v2850
        %v2872 = vpack.c.bf16 %v2853, %v2852
        %v2873 = vpack.c.bf16 %v2855, %v2854
        %v2874 = vpack.c.bf16 %v2857, %v2856
        %v2875 = vpack.c.bf16 %v2859, %v2858
        %s2876 = scalar_lea.vmem %s3, 64
        %v2877 = vld [vmem:[%s2876] sm:$0xf]
        %v2878 = vld [vmem:[%s2876 + $0x4] sm:$0xf]
        %v2879 = vld [vmem:[%s2876 + $0x8] sm:$0xf]
        %v2880 = vld [vmem:[%s2876 + $0xc] sm:$0xf]
        %v2885 = vunpack.c.l.b16 %v2877
        %v2886 = vunpack.c.l.b16 %v2878
        %v2887 = vunpack.c.l.b16 %v2879
        %v2888 = vunpack.c.l.b16 %v2880
        %v2889 = vpack.c.b16 %v2886, %v2885
        %v2890 = vpack.c.b16 %v2888, %v2887
        %v2894 = vsel %vm515, %v2860, 0
        %v2897 = vsel %vm515, %v2861, 0
        %v2900 = vsel %vm515, %v2862, 0
        %v2903 = vsel %vm515, %v2863, 0
        %v2906 = vsel %vm515, %v2864, 0
        %v2909 = vsel %vm515, %v2865, 0
        %v2912 = vsel %vm515, %v2866, 0
        %v2915 = vsel %vm515, %v2867, 0
        %v2918 = vsel %vm515, %v2868, 0
        %v2921 = vsel %vm515, %v2869, 0
        %v2924 = vsel %vm515, %v2870, 0
        %v2927 = vsel %vm515, %v2871, 0
        %v2930 = vsel %vm515, %v2872, 0
        %v2933 = vsel %vm515, %v2873, 0
        %v2936 = vsel %vm515, %v2874, 0
        %v2939 = vsel %vm515, %v2875, 0
        %2941 = vmatpush.bf16.msra.mxu0 0
        %2942 = vmatpush.bf16.msra.mxu0 0
        %2943 = vmatpush.bf16.msra.mxu0 0
        %2944 = vmatpush.bf16.msra.mxu0 0
        %2945 = vmatpush.bf16.msra.mxu0 0
        %2946 = vmatpush.bf16.msra.mxu0 0
        %2947 = vmatpush.bf16.msra.mxu0 %v2890
        %2948 = vmatpush.bf16.msra.mxu0 %v2889
        %2949 = vmatmul.bf16.gmra.mxu0 %v2894
        %v2950 = vpop.f32.mrf.mxu0
        %v2951 = vadd.f32 0.0, %v2950
        %v2952 = vpop.f32.mrf.mxu0
        %v2953 = vadd.f32 0.0, %v2952
        %2954 = vmatmul.bf16.gmra.mxu0 %v2897
        %v2955 = vpop.f32.mrf.mxu0
        %v2956 = vadd.f32 0.0, %v2955
        %v2957 = vpop.f32.mrf.mxu0
        %v2958 = vadd.f32 0.0, %v2957
        %2959 = vmatmul.bf16.gmra.mxu0 %v2900
        %v2960 = vpop.f32.mrf.mxu0
        %v2961 = vadd.f32 0.0, %v2960
        %v2962 = vpop.f32.mrf.mxu0
        %v2963 = vadd.f32 0.0, %v2962
        %2964 = vmatmul.bf16.gmra.mxu0 %v2903
        %v2965 = vpop.f32.mrf.mxu0
        %v2966 = vadd.f32 0.0, %v2965
        %v2967 = vpop.f32.mrf.mxu0
        %v2968 = vadd.f32 0.0, %v2967
        %2969 = vmatmul.bf16.gmra.mxu0 %v2906
        %v2970 = vpop.f32.mrf.mxu0
        %v2971 = vadd.f32 0.0, %v2970
        %v2972 = vpop.f32.mrf.mxu0
        %v2973 = vadd.f32 0.0, %v2972
        %2974 = vmatmul.bf16.gmra.mxu0 %v2909
        %v2975 = vpop.f32.mrf.mxu0
        %v2976 = vadd.f32 0.0, %v2975
        %v2977 = vpop.f32.mrf.mxu0
        %v2978 = vadd.f32 0.0, %v2977
        %2979 = vmatmul.bf16.gmra.mxu0 %v2912
        %v2980 = vpop.f32.mrf.mxu0
        %v2981 = vadd.f32 0.0, %v2980
        %v2982 = vpop.f32.mrf.mxu0
        %v2983 = vadd.f32 0.0, %v2982
        %2984 = vmatmul.bf16.gmra.mxu0 %v2915
        %v2985 = vpop.f32.mrf.mxu0
        %v2986 = vadd.f32 0.0, %v2985
        %v2987 = vpop.f32.mrf.mxu0
        %v2988 = vadd.f32 0.0, %v2987
        %2989 = vmatmul.bf16.gmra.mxu0 %v2918
        %v2990 = vpop.f32.mrf.mxu0
        %v2991 = vadd.f32 0.0, %v2990
        %v2992 = vpop.f32.mrf.mxu0
        %v2993 = vadd.f32 0.0, %v2992
        %2994 = vmatmul.bf16.gmra.mxu0 %v2921
        %v2995 = vpop.f32.mrf.mxu0
        %v2996 = vadd.f32 0.0, %v2995
        %v2997 = vpop.f32.mrf.mxu0
        %v2998 = vadd.f32 0.0, %v2997
        %2999 = vmatmul.bf16.gmra.mxu0 %v2924
        %v3000 = vpop.f32.mrf.mxu0
        %v3001 = vadd.f32 0.0, %v3000
        %v3002 = vpop.f32.mrf.mxu0
        %v3003 = vadd.f32 0.0, %v3002
        %3004 = vmatmul.bf16.gmra.mxu0 %v2927
        %v3005 = vpop.f32.mrf.mxu0
        %v3006 = vadd.f32 0.0, %v3005
        %v3007 = vpop.f32.mrf.mxu0
        %v3008 = vadd.f32 0.0, %v3007
        %3009 = vmatmul.bf16.gmra.mxu0 %v2930
        %v3010 = vpop.f32.mrf.mxu0
        %v3011 = vadd.f32 0.0, %v3010
        %v3012 = vpop.f32.mrf.mxu0
        %v3013 = vadd.f32 0.0, %v3012
        %3014 = vmatmul.bf16.gmra.mxu0 %v2933
        %v3015 = vpop.f32.mrf.mxu0
        %v3016 = vadd.f32 0.0, %v3015
        %v3017 = vpop.f32.mrf.mxu0
        %v3018 = vadd.f32 0.0, %v3017
        %3019 = vmatmul.bf16.gmra.mxu0 %v2936
        %v3020 = vpop.f32.mrf.mxu0
        %v3021 = vadd.f32 0.0, %v3020
        %v3022 = vpop.f32.mrf.mxu0
        %v3023 = vadd.f32 0.0, %v3022
        %3024 = vmatmul.bf16.gmra.mxu0 %v2939
        %v3025 = vpop.f32.mrf.mxu0
        %v3026 = vadd.f32 0.0, %v3025
        %v3027 = vpop.f32.mrf.mxu0
        %v3028 = vadd.f32 0.0, %v3027
        %3029 = vdwg.mxu0
        %v3030 = vadd.f32 %v2796, %v2951
        %v3031 = vadd.f32 %v2797, %v2953
        %v3032 = vadd.f32 %v2798, %v2956
        %v3033 = vadd.f32 %v2799, %v2958
        %v3034 = vadd.f32 %v2800, %v2961
        %v3035 = vadd.f32 %v2801, %v2963
        %v3036 = vadd.f32 %v2802, %v2966
        %v3037 = vadd.f32 %v2803, %v2968
        %v3038 = vadd.f32 %v2804, %v2971
        %v3039 = vadd.f32 %v2805, %v2973
        %v3040 = vadd.f32 %v2806, %v2976
        %v3041 = vadd.f32 %v2807, %v2978
        %v3042 = vadd.f32 %v2808, %v2981
        %v3043 = vadd.f32 %v2809, %v2983
        %v3044 = vadd.f32 %v2810, %v2986
        %v3045 = vadd.f32 %v2811, %v2988
        %v3046 = vadd.f32 %v2812, %v2991
        %v3047 = vadd.f32 %v2813, %v2993
        %v3048 = vadd.f32 %v2814, %v2996
        %v3049 = vadd.f32 %v2815, %v2998
        %v3050 = vadd.f32 %v2816, %v3001
        %v3051 = vadd.f32 %v2817, %v3003
        %v3052 = vadd.f32 %v2818, %v3006
        %v3053 = vadd.f32 %v2819, %v3008
        %v3054 = vadd.f32 %v2820, %v3011
        %v3055 = vadd.f32 %v2821, %v3013
        %v3056 = vadd.f32 %v2822, %v3016
        %v3057 = vadd.f32 %v2823, %v3018
        %v3058 = vadd.f32 %v2824, %v3021
        %v3059 = vadd.f32 %v2825, %v3023
        %v3060 = vadd.f32 %v2826, %v3026
        %v3061 = vadd.f32 %v2827, %v3028
        %v3062 = vld [vmem:[%s1924 + $0x9] sm:$0xff]
        %v3063 = vld [vmem:[%s1924 + $0x11] sm:$0xff]
        %v3064 = vld [vmem:[%s1924 + $0x29] sm:$0xff]
        %v3065 = vld [vmem:[%s1924 + $0x31] sm:$0xff]
        %v3066 = vld [vmem:[%s1924 + $0x49] sm:$0xff]
        %v3067 = vld [vmem:[%s1924 + $0x51] sm:$0xff]
        %v3068 = vld [vmem:[%s1924 + $0x69] sm:$0xff]
        %v3069 = vld [vmem:[%s1924 + $0x71] sm:$0xff]
        %v3070 = vld [vmem:[%s1924 + $0x89] sm:$0xff]
        %v3071 = vld [vmem:[%s1924 + $0x91] sm:$0xff]
        %v3072 = vld [vmem:[%s1924 + $0xa9] sm:$0xff]
        %v3073 = vld [vmem:[%s1924 + $0xb1] sm:$0xff]
        %v3074 = vld [vmem:[%s1924 + $0xc9] sm:$0xff]
        %v3075 = vld [vmem:[%s1924 + $0xd1] sm:$0xff]
        %v3076 = vld [vmem:[%s1924 + $0xe9] sm:$0xff]
        %v3077 = vld [vmem:[%s1924 + $0xf1] sm:$0xff]
        %v3078 = vld [vmem:[%s1924 + $0x109] sm:$0xff]
        %v3079 = vld [vmem:[%s1924 + $0x111] sm:$0xff]
        %v3080 = vld [vmem:[%s1924 + $0x129] sm:$0xff]
        %v3081 = vld [vmem:[%s1924 + $0x131] sm:$0xff]
        %v3082 = vld [vmem:[%s1924 + $0x149] sm:$0xff]
        %v3083 = vld [vmem:[%s1924 + $0x151] sm:$0xff]
        %v3084 = vld [vmem:[%s1924 + $0x169] sm:$0xff]
        %v3085 = vld [vmem:[%s1924 + $0x171] sm:$0xff]
        %v3086 = vld [vmem:[%s1924 + $0x189] sm:$0xff]
        %v3087 = vld [vmem:[%s1924 + $0x191] sm:$0xff]
        %v3088 = vld [vmem:[%s1924 + $0x1a9] sm:$0xff]
        %v3089 = vld [vmem:[%s1924 + $0x1b1] sm:$0xff]
        %v3090 = vld [vmem:[%s1924 + $0x1c9] sm:$0xff]
        %v3091 = vld [vmem:[%s1924 + $0x1d1] sm:$0xff]
        %v3092 = vld [vmem:[%s1924 + $0x1e9] sm:$0xff]
        %v3093 = vld [vmem:[%s1924 + $0x1f1] sm:$0xff]
        %v3094 = vpack.c.bf16 %v3063, %v3062
        %v3095 = vpack.c.bf16 %v3065, %v3064
        %v3096 = vpack.c.bf16 %v3067, %v3066
        %v3097 = vpack.c.bf16 %v3069, %v3068
        %v3098 = vpack.c.bf16 %v3071, %v3070
        %v3099 = vpack.c.bf16 %v3073, %v3072
        %v3100 = vpack.c.bf16 %v3075, %v3074
        %v3101 = vpack.c.bf16 %v3077, %v3076
        %v3102 = vpack.c.bf16 %v3079, %v3078
        %v3103 = vpack.c.bf16 %v3081, %v3080
        %v3104 = vpack.c.bf16 %v3083, %v3082
        %v3105 = vpack.c.bf16 %v3085, %v3084
        %v3106 = vpack.c.bf16 %v3087, %v3086
        %v3107 = vpack.c.bf16 %v3089, %v3088
        %v3108 = vpack.c.bf16 %v3091, %v3090
        %v3109 = vpack.c.bf16 %v3093, %v3092
        %s3110 = scalar_lea.vmem %s3, 80
        %v3111 = vld [vmem:[%s3110] sm:$0xf]
        %v3112 = vld [vmem:[%s3110 + $0x4] sm:$0xf]
        %v3113 = vld [vmem:[%s3110 + $0x8] sm:$0xf]
        %v3114 = vld [vmem:[%s3110 + $0xc] sm:$0xf]
        %v3119 = vunpack.c.l.b16 %v3111
        %v3120 = vunpack.c.l.b16 %v3112
        %v3121 = vunpack.c.l.b16 %v3113
        %v3122 = vunpack.c.l.b16 %v3114
        %v3123 = vpack.c.b16 %v3120, %v3119
        %v3124 = vpack.c.b16 %v3122, %v3121
        %v3128 = vsel %vm515, %v3094, 0
        %v3131 = vsel %vm515, %v3095, 0
        %v3134 = vsel %vm515, %v3096, 0
        %v3137 = vsel %vm515, %v3097, 0
        %v3140 = vsel %vm515, %v3098, 0
        %v3143 = vsel %vm515, %v3099, 0
        %v3146 = vsel %vm515, %v3100, 0
        %v3149 = vsel %vm515, %v3101, 0
        %v3152 = vsel %vm515, %v3102, 0
        %v3155 = vsel %vm515, %v3103, 0
        %v3158 = vsel %vm515, %v3104, 0
        %v3161 = vsel %vm515, %v3105, 0
        %v3164 = vsel %vm515, %v3106, 0
        %v3167 = vsel %vm515, %v3107, 0
        %v3170 = vsel %vm515, %v3108, 0
        %v3173 = vsel %vm515, %v3109, 0
        %3175 = vmatpush.bf16.msra.mxu0 0
        %3176 = vmatpush.bf16.msra.mxu0 0
        %3177 = vmatpush.bf16.msra.mxu0 0
        %3178 = vmatpush.bf16.msra.mxu0 0
        %3179 = vmatpush.bf16.msra.mxu0 0
        %3180 = vmatpush.bf16.msra.mxu0 0
        %3181 = vmatpush.bf16.msra.mxu0 %v3124
        %3182 = vmatpush.bf16.msra.mxu0 %v3123
        %3183 = vmatmul.bf16.gmra.mxu0 %v3128
        %v3184 = vpop.f32.mrf.mxu0
        %v3185 = vadd.f32 0.0, %v3184
        %v3186 = vpop.f32.mrf.mxu0
        %v3187 = vadd.f32 0.0, %v3186
        %3188 = vmatmul.bf16.gmra.mxu0 %v3131
        %v3189 = vpop.f32.mrf.mxu0
        %v3190 = vadd.f32 0.0, %v3189
        %v3191 = vpop.f32.mrf.mxu0
        %v3192 = vadd.f32 0.0, %v3191
        %3193 = vmatmul.bf16.gmra.mxu0 %v3134
        %v3194 = vpop.f32.mrf.mxu0
        %v3195 = vadd.f32 0.0, %v3194
        %v3196 = vpop.f32.mrf.mxu0
        %v3197 = vadd.f32 0.0, %v3196
        %3198 = vmatmul.bf16.gmra.mxu0 %v3137
        %v3199 = vpop.f32.mrf.mxu0
        %v3200 = vadd.f32 0.0, %v3199
        %v3201 = vpop.f32.mrf.mxu0
        %v3202 = vadd.f32 0.0, %v3201
        %3203 = vmatmul.bf16.gmra.mxu0 %v3140
        %v3204 = vpop.f32.mrf.mxu0
        %v3205 = vadd.f32 0.0, %v3204
        %v3206 = vpop.f32.mrf.mxu0
        %v3207 = vadd.f32 0.0, %v3206
        %3208 = vmatmul.bf16.gmra.mxu0 %v3143
        %v3209 = vpop.f32.mrf.mxu0
        %v3210 = vadd.f32 0.0, %v3209
        %v3211 = vpop.f32.mrf.mxu0
        %v3212 = vadd.f32 0.0, %v3211
        %3213 = vmatmul.bf16.gmra.mxu0 %v3146
        %v3214 = vpop.f32.mrf.mxu0
        %v3215 = vadd.f32 0.0, %v3214
        %v3216 = vpop.f32.mrf.mxu0
        %v3217 = vadd.f32 0.0, %v3216
        %3218 = vmatmul.bf16.gmra.mxu0 %v3149
        %v3219 = vpop.f32.mrf.mxu0
        %v3220 = vadd.f32 0.0, %v3219
        %v3221 = vpop.f32.mrf.mxu0
        %v3222 = vadd.f32 0.0, %v3221
        %3223 = vmatmul.bf16.gmra.mxu0 %v3152
        %v3224 = vpop.f32.mrf.mxu0
        %v3225 = vadd.f32 0.0, %v3224
        %v3226 = vpop.f32.mrf.mxu0
        %v3227 = vadd.f32 0.0, %v3226
        %3228 = vmatmul.bf16.gmra.mxu0 %v3155
        %v3229 = vpop.f32.mrf.mxu0
        %v3230 = vadd.f32 0.0, %v3229
        %v3231 = vpop.f32.mrf.mxu0
        %v3232 = vadd.f32 0.0, %v3231
        %3233 = vmatmul.bf16.gmra.mxu0 %v3158
        %v3234 = vpop.f32.mrf.mxu0
        %v3235 = vadd.f32 0.0, %v3234
        %v3236 = vpop.f32.mrf.mxu0
        %v3237 = vadd.f32 0.0, %v3236
        %3238 = vmatmul.bf16.gmra.mxu0 %v3161
        %v3239 = vpop.f32.mrf.mxu0
        %v3240 = vadd.f32 0.0, %v3239
        %v3241 = vpop.f32.mrf.mxu0
        %v3242 = vadd.f32 0.0, %v3241
        %3243 = vmatmul.bf16.gmra.mxu0 %v3164
        %v3244 = vpop.f32.mrf.mxu0
        %v3245 = vadd.f32 0.0, %v3244
        %v3246 = vpop.f32.mrf.mxu0
        %v3247 = vadd.f32 0.0, %v3246
        %3248 = vmatmul.bf16.gmra.mxu0 %v3167
        %v3249 = vpop.f32.mrf.mxu0
        %v3250 = vadd.f32 0.0, %v3249
        %v3251 = vpop.f32.mrf.mxu0
        %v3252 = vadd.f32 0.0, %v3251
        %3253 = vmatmul.bf16.gmra.mxu0 %v3170
        %v3254 = vpop.f32.mrf.mxu0
        %v3255 = vadd.f32 0.0, %v3254
        %v3256 = vpop.f32.mrf.mxu0
        %v3257 = vadd.f32 0.0, %v3256
        %3258 = vmatmul.bf16.gmra.mxu0 %v3173
        %v3259 = vpop.f32.mrf.mxu0
        %v3260 = vadd.f32 0.0, %v3259
        %v3261 = vpop.f32.mrf.mxu0
        %v3262 = vadd.f32 0.0, %v3261
        %3263 = vdwg.mxu0
        %v3264 = vadd.f32 %v3030, %v3185
        %v3265 = vadd.f32 %v3031, %v3187
        %v3266 = vadd.f32 %v3032, %v3190
        %v3267 = vadd.f32 %v3033, %v3192
        %v3268 = vadd.f32 %v3034, %v3195
        %v3269 = vadd.f32 %v3035, %v3197
        %v3270 = vadd.f32 %v3036, %v3200
        %v3271 = vadd.f32 %v3037, %v3202
        %v3272 = vadd.f32 %v3038, %v3205
        %v3273 = vadd.f32 %v3039, %v3207
        %v3274 = vadd.f32 %v3040, %v3210
        %v3275 = vadd.f32 %v3041, %v3212
        %v3276 = vadd.f32 %v3042, %v3215
        %v3277 = vadd.f32 %v3043, %v3217
        %v3278 = vadd.f32 %v3044, %v3220
        %v3279 = vadd.f32 %v3045, %v3222
        %v3280 = vadd.f32 %v3046, %v3225
        %v3281 = vadd.f32 %v3047, %v3227
        %v3282 = vadd.f32 %v3048, %v3230
        %v3283 = vadd.f32 %v3049, %v3232
        %v3284 = vadd.f32 %v3050, %v3235
        %v3285 = vadd.f32 %v3051, %v3237
        %v3286 = vadd.f32 %v3052, %v3240
        %v3287 = vadd.f32 %v3053, %v3242
        %v3288 = vadd.f32 %v3054, %v3245
        %v3289 = vadd.f32 %v3055, %v3247
        %v3290 = vadd.f32 %v3056, %v3250
        %v3291 = vadd.f32 %v3057, %v3252
        %v3292 = vadd.f32 %v3058, %v3255
        %v3293 = vadd.f32 %v3059, %v3257
        %v3294 = vadd.f32 %v3060, %v3260
        %v3295 = vadd.f32 %v3061, %v3262
        %s3296 = scalar_lea.vmem [#allocation2], 64
        %v3297 = vld [vmem:[%s3296 + $0x7] sm:$0xff]
        %v3298 = vld [vmem:[%s3296 + $0xf] sm:$0xff]
        %v3299 = vld [vmem:[%s3296 + $0x27] sm:$0xff]
        %v3300 = vld [vmem:[%s3296 + $0x2f] sm:$0xff]
        %v3301 = vld [vmem:[%s3296 + $0x47] sm:$0xff]
        %v3302 = vld [vmem:[%s3296 + $0x4f] sm:$0xff]
        %v3303 = vld [vmem:[%s3296 + $0x67] sm:$0xff]
        %v3304 = vld [vmem:[%s3296 + $0x6f] sm:$0xff]
        %v3305 = vld [vmem:[%s3296 + $0x87] sm:$0xff]
        %v3306 = vld [vmem:[%s3296 + $0x8f] sm:$0xff]
        %v3307 = vld [vmem:[%s3296 + $0xa7] sm:$0xff]
        %v3308 = vld [vmem:[%s3296 + $0xaf] sm:$0xff]
        %v3309 = vld [vmem:[%s3296 + $0xc7] sm:$0xff]
        %v3310 = vld [vmem:[%s3296 + $0xcf] sm:$0xff]
        %v3311 = vld [vmem:[%s3296 + $0xe7] sm:$0xff]
        %v3312 = vld [vmem:[%s3296 + $0xef] sm:$0xff]
        %v3313 = vld [vmem:[%s3296 + $0x107] sm:$0xff]
        %v3314 = vld [vmem:[%s3296 + $0x10f] sm:$0xff]
        %v3315 = vld [vmem:[%s3296 + $0x127] sm:$0xff]
        %v3316 = vld [vmem:[%s3296 + $0x12f] sm:$0xff]
        %v3317 = vld [vmem:[%s3296 + $0x147] sm:$0xff]
        %v3318 = vld [vmem:[%s3296 + $0x14f] sm:$0xff]
        %v3319 = vld [vmem:[%s3296 + $0x167] sm:$0xff]
        %v3320 = vld [vmem:[%s3296 + $0x16f] sm:$0xff]
        %v3321 = vld [vmem:[%s3296 + $0x187] sm:$0xff]
        %v3322 = vld [vmem:[%s3296 + $0x18f] sm:$0xff]
        %v3323 = vld [vmem:[%s3296 + $0x1a7] sm:$0xff]
        %v3324 = vld [vmem:[%s3296 + $0x1af] sm:$0xff]
        %v3325 = vld [vmem:[%s3296 + $0x1c7] sm:$0xff]
        %v3326 = vld [vmem:[%s3296 + $0x1cf] sm:$0xff]
        %v3327 = vld [vmem:[%s3296 + $0x1e7] sm:$0xff]
        %v3328 = vld [vmem:[%s3296 + $0x1ef] sm:$0xff]
        %v3329 = vpack.c.bf16 %v3298, %v3297
        %v3330 = vpack.c.bf16 %v3300, %v3299
        %v3331 = vpack.c.bf16 %v3302, %v3301
        %v3332 = vpack.c.bf16 %v3304, %v3303
        %v3333 = vpack.c.bf16 %v3306, %v3305
        %v3334 = vpack.c.bf16 %v3308, %v3307
        %v3335 = vpack.c.bf16 %v3310, %v3309
        %v3336 = vpack.c.bf16 %v3312, %v3311
        %v3337 = vpack.c.bf16 %v3314, %v3313
        %v3338 = vpack.c.bf16 %v3316, %v3315
        %v3339 = vpack.c.bf16 %v3318, %v3317
        %v3340 = vpack.c.bf16 %v3320, %v3319
        %v3341 = vpack.c.bf16 %v3322, %v3321
        %v3342 = vpack.c.bf16 %v3324, %v3323
        %v3343 = vpack.c.bf16 %v3326, %v3325
        %v3344 = vpack.c.bf16 %v3328, %v3327
        %s3345 = scalar_lea.vmem %s3, 96
        %v3346 = vld [vmem:[%s3345] sm:$0xf]
        %v3347 = vld [vmem:[%s3345 + $0x4] sm:$0xf]
        %v3348 = vld [vmem:[%s3345 + $0x8] sm:$0xf]
        %v3349 = vld [vmem:[%s3345 + $0xc] sm:$0xf]
        %v3354 = vunpack.c.l.b16 %v3346
        %v3355 = vunpack.c.l.b16 %v3347
        %v3356 = vunpack.c.l.b16 %v3348
        %v3357 = vunpack.c.l.b16 %v3349
        %v3358 = vpack.c.b16 %v3355, %v3354
        %v3359 = vpack.c.b16 %v3357, %v3356
        %v3363 = vsel %vm515, %v3329, 0
        %v3366 = vsel %vm515, %v3330, 0
        %v3369 = vsel %vm515, %v3331, 0
        %v3372 = vsel %vm515, %v3332, 0
        %v3375 = vsel %vm515, %v3333, 0
        %v3378 = vsel %vm515, %v3334, 0
        %v3381 = vsel %vm515, %v3335, 0
        %v3384 = vsel %vm515, %v3336, 0
        %v3387 = vsel %vm515, %v3337, 0
        %v3390 = vsel %vm515, %v3338, 0
        %v3393 = vsel %vm515, %v3339, 0
        %v3396 = vsel %vm515, %v3340, 0
        %v3399 = vsel %vm515, %v3341, 0
        %v3402 = vsel %vm515, %v3342, 0
        %v3405 = vsel %vm515, %v3343, 0
        %v3408 = vsel %vm515, %v3344, 0
        %3410 = vmatpush.bf16.msra.mxu0 0
        %3411 = vmatpush.bf16.msra.mxu0 0
        %3412 = vmatpush.bf16.msra.mxu0 0
        %3413 = vmatpush.bf16.msra.mxu0 0
        %3414 = vmatpush.bf16.msra.mxu0 0
        %3415 = vmatpush.bf16.msra.mxu0 0
        %3416 = vmatpush.bf16.msra.mxu0 %v3359
        %3417 = vmatpush.bf16.msra.mxu0 %v3358
        %3418 = vmatmul.bf16.gmra.mxu0 %v3363
        %v3419 = vpop.f32.mrf.mxu0
        %v3420 = vadd.f32 0.0, %v3419
        %v3421 = vpop.f32.mrf.mxu0
        %v3422 = vadd.f32 0.0, %v3421
        %3423 = vmatmul.bf16.gmra.mxu0 %v3366
        %v3424 = vpop.f32.mrf.mxu0
        %v3425 = vadd.f32 0.0, %v3424
        %v3426 = vpop.f32.mrf.mxu0
        %v3427 = vadd.f32 0.0, %v3426
        %3428 = vmatmul.bf16.gmra.mxu0 %v3369
        %v3429 = vpop.f32.mrf.mxu0
        %v3430 = vadd.f32 0.0, %v3429
        %v3431 = vpop.f32.mrf.mxu0
        %v3432 = vadd.f32 0.0, %v3431
        %3433 = vmatmul.bf16.gmra.mxu0 %v3372
        %v3434 = vpop.f32.mrf.mxu0
        %v3435 = vadd.f32 0.0, %v3434
        %v3436 = vpop.f32.mrf.mxu0
        %v3437 = vadd.f32 0.0, %v3436
        %3438 = vmatmul.bf16.gmra.mxu0 %v3375
        %v3439 = vpop.f32.mrf.mxu0
        %v3440 = vadd.f32 0.0, %v3439
        %v3441 = vpop.f32.mrf.mxu0
        %v3442 = vadd.f32 0.0, %v3441
        %3443 = vmatmul.bf16.gmra.mxu0 %v3378
        %v3444 = vpop.f32.mrf.mxu0
        %v3445 = vadd.f32 0.0, %v3444
        %v3446 = vpop.f32.mrf.mxu0
        %v3447 = vadd.f32 0.0, %v3446
        %3448 = vmatmul.bf16.gmra.mxu0 %v3381
        %v3449 = vpop.f32.mrf.mxu0
        %v3450 = vadd.f32 0.0, %v3449
        %v3451 = vpop.f32.mrf.mxu0
        %v3452 = vadd.f32 0.0, %v3451
        %3453 = vmatmul.bf16.gmra.mxu0 %v3384
        %v3454 = vpop.f32.mrf.mxu0
        %v3455 = vadd.f32 0.0, %v3454
        %v3456 = vpop.f32.mrf.mxu0
        %v3457 = vadd.f32 0.0, %v3456
        %3458 = vmatmul.bf16.gmra.mxu0 %v3387
        %v3459 = vpop.f32.mrf.mxu0
        %v3460 = vadd.f32 0.0, %v3459
        %v3461 = vpop.f32.mrf.mxu0
        %v3462 = vadd.f32 0.0, %v3461
        %3463 = vmatmul.bf16.gmra.mxu0 %v3390
        %v3464 = vpop.f32.mrf.mxu0
        %v3465 = vadd.f32 0.0, %v3464
        %v3466 = vpop.f32.mrf.mxu0
        %v3467 = vadd.f32 0.0, %v3466
        %3468 = vmatmul.bf16.gmra.mxu0 %v3393
        %v3469 = vpop.f32.mrf.mxu0
        %v3470 = vadd.f32 0.0, %v3469
        %v3471 = vpop.f32.mrf.mxu0
        %v3472 = vadd.f32 0.0, %v3471
        %3473 = vmatmul.bf16.gmra.mxu0 %v3396
        %v3474 = vpop.f32.mrf.mxu0
        %v3475 = vadd.f32 0.0, %v3474
        %v3476 = vpop.f32.mrf.mxu0
        %v3477 = vadd.f32 0.0, %v3476
        %3478 = vmatmul.bf16.gmra.mxu0 %v3399
        %v3479 = vpop.f32.mrf.mxu0
        %v3480 = vadd.f32 0.0, %v3479
        %v3481 = vpop.f32.mrf.mxu0
        %v3482 = vadd.f32 0.0, %v3481
        %3483 = vmatmul.bf16.gmra.mxu0 %v3402
        %v3484 = vpop.f32.mrf.mxu0
        %v3485 = vadd.f32 0.0, %v3484
        %v3486 = vpop.f32.mrf.mxu0
        %v3487 = vadd.f32 0.0, %v3486
        %3488 = vmatmul.bf16.gmra.mxu0 %v3405
        %v3489 = vpop.f32.mrf.mxu0
        %v3490 = vadd.f32 0.0, %v3489
        %v3491 = vpop.f32.mrf.mxu0
        %v3492 = vadd.f32 0.0, %v3491
        %3493 = vmatmul.bf16.gmra.mxu0 %v3408
        %v3494 = vpop.f32.mrf.mxu0
        %v3495 = vadd.f32 0.0, %v3494
        %v3496 = vpop.f32.mrf.mxu0
        %v3497 = vadd.f32 0.0, %v3496
        %3498 = vdwg.mxu0
        %v3499 = vadd.f32 %v3264, %v3420
        %v3500 = vadd.f32 %v3265, %v3422
        %v3501 = vadd.f32 %v3266, %v3425
        %v3502 = vadd.f32 %v3267, %v3427
        %v3503 = vadd.f32 %v3268, %v3430
        %v3504 = vadd.f32 %v3269, %v3432
        %v3505 = vadd.f32 %v3270, %v3435
        %v3506 = vadd.f32 %v3271, %v3437
        %v3507 = vadd.f32 %v3272, %v3440
        %v3508 = vadd.f32 %v3273, %v3442
        %v3509 = vadd.f32 %v3274, %v3445
        %v3510 = vadd.f32 %v3275, %v3447
        %v3511 = vadd.f32 %v3276, %v3450
        %v3512 = vadd.f32 %v3277, %v3452
        %v3513 = vadd.f32 %v3278, %v3455
        %v3514 = vadd.f32 %v3279, %v3457
        %v3515 = vadd.f32 %v3280, %v3460
        %v3516 = vadd.f32 %v3281, %v3462
        %v3517 = vadd.f32 %v3282, %v3465
        %v3518 = vadd.f32 %v3283, %v3467
        %v3519 = vadd.f32 %v3284, %v3470
        %v3520 = vadd.f32 %v3285, %v3472
        %v3521 = vadd.f32 %v3286, %v3475
        %v3522 = vadd.f32 %v3287, %v3477
        %v3523 = vadd.f32 %v3288, %v3480
        %v3524 = vadd.f32 %v3289, %v3482
        %v3525 = vadd.f32 %v3290, %v3485
        %v3526 = vadd.f32 %v3291, %v3487
        %v3527 = vadd.f32 %v3292, %v3490
        %v3528 = vadd.f32 %v3293, %v3492
        %v3529 = vadd.f32 %v3294, %v3495
        %v3530 = vadd.f32 %v3295, %v3497
        %v3531 = vld [vmem:[%s3296 + $0x8] sm:$0xff]
        %v3532 = vld [vmem:[%s3296 + $0x10] sm:$0xff]
        %v3533 = vld [vmem:[%s3296 + $0x28] sm:$0xff]
        %v3534 = vld [vmem:[%s3296 + $0x30] sm:$0xff]
        %v3535 = vld [vmem:[%s3296 + $0x48] sm:$0xff]
        %v3536 = vld [vmem:[%s3296 + $0x50] sm:$0xff]
        %v3537 = vld [vmem:[%s3296 + $0x68] sm:$0xff]
        %v3538 = vld [vmem:[%s3296 + $0x70] sm:$0xff]
        %v3539 = vld [vmem:[%s3296 + $0x88] sm:$0xff]
        %v3540 = vld [vmem:[%s3296 + $0x90] sm:$0xff]
        %v3541 = vld [vmem:[%s3296 + $0xa8] sm:$0xff]
        %v3542 = vld [vmem:[%s3296 + $0xb0] sm:$0xff]
        %v3543 = vld [vmem:[%s3296 + $0xc8] sm:$0xff]
        %v3544 = vld [vmem:[%s3296 + $0xd0] sm:$0xff]
        %v3545 = vld [vmem:[%s3296 + $0xe8] sm:$0xff]
        %v3546 = vld [vmem:[%s3296 + $0xf0] sm:$0xff]
        %v3547 = vld [vmem:[%s3296 + $0x108] sm:$0xff]
        %v3548 = vld [vmem:[%s3296 + $0x110] sm:$0xff]
        %v3549 = vld [vmem:[%s3296 + $0x128] sm:$0xff]
        %v3550 = vld [vmem:[%s3296 + $0x130] sm:$0xff]
        %v3551 = vld [vmem:[%s3296 + $0x148] sm:$0xff]
        %v3552 = vld [vmem:[%s3296 + $0x150] sm:$0xff]
        %v3553 = vld [vmem:[%s3296 + $0x168] sm:$0xff]
        %v3554 = vld [vmem:[%s3296 + $0x170] sm:$0xff]
        %v3555 = vld [vmem:[%s3296 + $0x188] sm:$0xff]
        %v3556 = vld [vmem:[%s3296 + $0x190] sm:$0xff]
        %v3557 = vld [vmem:[%s3296 + $0x1a8] sm:$0xff]
        %v3558 = vld [vmem:[%s3296 + $0x1b0] sm:$0xff]
        %v3559 = vld [vmem:[%s3296 + $0x1c8] sm:$0xff]
        %v3560 = vld [vmem:[%s3296 + $0x1d0] sm:$0xff]
        %v3561 = vld [vmem:[%s3296 + $0x1e8] sm:$0xff]
        %v3562 = vld [vmem:[%s3296 + $0x1f0] sm:$0xff]
        %v3563 = vpack.c.bf16 %v3532, %v3531
        %v3564 = vpack.c.bf16 %v3534, %v3533
        %v3565 = vpack.c.bf16 %v3536, %v3535
        %v3566 = vpack.c.bf16 %v3538, %v3537
        %v3567 = vpack.c.bf16 %v3540, %v3539
        %v3568 = vpack.c.bf16 %v3542, %v3541
        %v3569 = vpack.c.bf16 %v3544, %v3543
        %v3570 = vpack.c.bf16 %v3546, %v3545
        %v3571 = vpack.c.bf16 %v3548, %v3547
        %v3572 = vpack.c.bf16 %v3550, %v3549
        %v3573 = vpack.c.bf16 %v3552, %v3551
        %v3574 = vpack.c.bf16 %v3554, %v3553
        %v3575 = vpack.c.bf16 %v3556, %v3555
        %v3576 = vpack.c.bf16 %v3558, %v3557
        %v3577 = vpack.c.bf16 %v3560, %v3559
        %v3578 = vpack.c.bf16 %v3562, %v3561
        %s3579 = scalar_lea.vmem %s3, 112
        %v3580 = vld [vmem:[%s3579] sm:$0xf]
        %v3581 = vld [vmem:[%s3579 + $0x4] sm:$0xf]
        %v3582 = vld [vmem:[%s3579 + $0x8] sm:$0xf]
        %v3583 = vld [vmem:[%s3579 + $0xc] sm:$0xf]
        %v3588 = vunpack.c.l.b16 %v3580
        %v3589 = vunpack.c.l.b16 %v3581
        %v3590 = vunpack.c.l.b16 %v3582
        %v3591 = vunpack.c.l.b16 %v3583
        %v3592 = vpack.c.b16 %v3589, %v3588
        %v3593 = vpack.c.b16 %v3591, %v3590
        %v3597 = vsel %vm515, %v3563, 0
        %v3600 = vsel %vm515, %v3564, 0
        %v3603 = vsel %vm515, %v3565, 0
        %v3606 = vsel %vm515, %v3566, 0
        %v3609 = vsel %vm515, %v3567, 0
        %v3612 = vsel %vm515, %v3568, 0
        %v3615 = vsel %vm515, %v3569, 0
        %v3618 = vsel %vm515, %v3570, 0
        %v3621 = vsel %vm515, %v3571, 0
        %v3624 = vsel %vm515, %v3572, 0
        %v3627 = vsel %vm515, %v3573, 0
        %v3630 = vsel %vm515, %v3574, 0
        %v3633 = vsel %vm515, %v3575, 0
        %v3636 = vsel %vm515, %v3576, 0
        %v3639 = vsel %vm515, %v3577, 0
        %v3642 = vsel %vm515, %v3578, 0
        %3644 = vmatpush.bf16.msra.mxu0 0
        %3645 = vmatpush.bf16.msra.mxu0 0
        %3646 = vmatpush.bf16.msra.mxu0 0
        %3647 = vmatpush.bf16.msra.mxu0 0
        %3648 = vmatpush.bf16.msra.mxu0 0
        %3649 = vmatpush.bf16.msra.mxu0 0
        %3650 = vmatpush.bf16.msra.mxu0 %v3593
        %3651 = vmatpush.bf16.msra.mxu0 %v3592
        %3652 = vmatmul.bf16.gmra.mxu0 %v3597
        %v3653 = vpop.f32.mrf.mxu0
        %v3654 = vadd.f32 0.0, %v3653
        %v3655 = vpop.f32.mrf.mxu0
        %v3656 = vadd.f32 0.0, %v3655
        %3657 = vmatmul.bf16.gmra.mxu0 %v3600
        %v3658 = vpop.f32.mrf.mxu0
        %v3659 = vadd.f32 0.0, %v3658
        %v3660 = vpop.f32.mrf.mxu0
        %v3661 = vadd.f32 0.0, %v3660
        %3662 = vmatmul.bf16.gmra.mxu0 %v3603
        %v3663 = vpop.f32.mrf.mxu0
        %v3664 = vadd.f32 0.0, %v3663
        %v3665 = vpop.f32.mrf.mxu0
        %v3666 = vadd.f32 0.0, %v3665
        %3667 = vmatmul.bf16.gmra.mxu0 %v3606
        %v3668 = vpop.f32.mrf.mxu0
        %v3669 = vadd.f32 0.0, %v3668
        %v3670 = vpop.f32.mrf.mxu0
        %v3671 = vadd.f32 0.0, %v3670
        %3672 = vmatmul.bf16.gmra.mxu0 %v3609
        %v3673 = vpop.f32.mrf.mxu0
        %v3674 = vadd.f32 0.0, %v3673
        %v3675 = vpop.f32.mrf.mxu0
        %v3676 = vadd.f32 0.0, %v3675
        %3677 = vmatmul.bf16.gmra.mxu0 %v3612
        %v3678 = vpop.f32.mrf.mxu0
        %v3679 = vadd.f32 0.0, %v3678
        %v3680 = vpop.f32.mrf.mxu0
        %v3681 = vadd.f32 0.0, %v3680
        %3682 = vmatmul.bf16.gmra.mxu0 %v3615
        %v3683 = vpop.f32.mrf.mxu0
        %v3684 = vadd.f32 0.0, %v3683
        %v3685 = vpop.f32.mrf.mxu0
        %v3686 = vadd.f32 0.0, %v3685
        %3687 = vmatmul.bf16.gmra.mxu0 %v3618
        %v3688 = vpop.f32.mrf.mxu0
        %v3689 = vadd.f32 0.0, %v3688
        %v3690 = vpop.f32.mrf.mxu0
        %v3691 = vadd.f32 0.0, %v3690
        %3692 = vmatmul.bf16.gmra.mxu0 %v3621
        %v3693 = vpop.f32.mrf.mxu0
        %v3694 = vadd.f32 0.0, %v3693
        %v3695 = vpop.f32.mrf.mxu0
        %v3696 = vadd.f32 0.0, %v3695
        %3697 = vmatmul.bf16.gmra.mxu0 %v3624
        %v3698 = vpop.f32.mrf.mxu0
        %v3699 = vadd.f32 0.0, %v3698
        %v3700 = vpop.f32.mrf.mxu0
        %v3701 = vadd.f32 0.0, %v3700
        %3702 = vmatmul.bf16.gmra.mxu0 %v3627
        %v3703 = vpop.f32.mrf.mxu0
        %v3704 = vadd.f32 0.0, %v3703
        %v3705 = vpop.f32.mrf.mxu0
        %v3706 = vadd.f32 0.0, %v3705
        %3707 = vmatmul.bf16.gmra.mxu0 %v3630
        %v3708 = vpop.f32.mrf.mxu0
        %v3709 = vadd.f32 0.0, %v3708
        %v3710 = vpop.f32.mrf.mxu0
        %v3711 = vadd.f32 0.0, %v3710
        %3712 = vmatmul.bf16.gmra.mxu0 %v3633
        %v3713 = vpop.f32.mrf.mxu0
        %v3714 = vadd.f32 0.0, %v3713
        %v3715 = vpop.f32.mrf.mxu0
        %v3716 = vadd.f32 0.0, %v3715
        %3717 = vmatmul.bf16.gmra.mxu0 %v3636
        %v3718 = vpop.f32.mrf.mxu0
        %v3719 = vadd.f32 0.0, %v3718
        %v3720 = vpop.f32.mrf.mxu0
        %v3721 = vadd.f32 0.0, %v3720
        %3722 = vmatmul.bf16.gmra.mxu0 %v3639
        %v3723 = vpop.f32.mrf.mxu0
        %v3724 = vadd.f32 0.0, %v3723
        %v3725 = vpop.f32.mrf.mxu0
        %v3726 = vadd.f32 0.0, %v3725
        %3727 = vmatmul.bf16.gmra.mxu0 %v3642
        %v3728 = vpop.f32.mrf.mxu0
        %v3729 = vadd.f32 0.0, %v3728
        %v3730 = vpop.f32.mrf.mxu0
        %v3731 = vadd.f32 0.0, %v3730
        %3732 = vdwg.mxu0
        %v3733 = vadd.f32 %v3499, %v3654
        %v3734 = vadd.f32 %v3500, %v3656
        %v3735 = vadd.f32 %v3501, %v3659
        %v3736 = vadd.f32 %v3502, %v3661
        %v3737 = vadd.f32 %v3503, %v3664
        %v3738 = vadd.f32 %v3504, %v3666
        %v3739 = vadd.f32 %v3505, %v3669
        %v3740 = vadd.f32 %v3506, %v3671
        %v3741 = vadd.f32 %v3507, %v3674
        %v3742 = vadd.f32 %v3508, %v3676
        %v3743 = vadd.f32 %v3509, %v3679
        %v3744 = vadd.f32 %v3510, %v3681
        %v3745 = vadd.f32 %v3511, %v3684
        %v3746 = vadd.f32 %v3512, %v3686
        %v3747 = vadd.f32 %v3513, %v3689
        %v3748 = vadd.f32 %v3514, %v3691
        %v3749 = vadd.f32 %v3515, %v3694
        %v3750 = vadd.f32 %v3516, %v3696
        %v3751 = vadd.f32 %v3517, %v3699
        %v3752 = vadd.f32 %v3518, %v3701
        %v3753 = vadd.f32 %v3519, %v3704
        %v3754 = vadd.f32 %v3520, %v3706
        %v3755 = vadd.f32 %v3521, %v3709
        %v3756 = vadd.f32 %v3522, %v3711
        %v3757 = vadd.f32 %v3523, %v3714
        %v3758 = vadd.f32 %v3524, %v3716
        %v3759 = vadd.f32 %v3525, %v3719
        %v3760 = vadd.f32 %v3526, %v3721
        %v3761 = vadd.f32 %v3527, %v3724
        %v3762 = vadd.f32 %v3528, %v3726
        %v3763 = vadd.f32 %v3529, %v3729
        %v3764 = vadd.f32 %v3530, %v3731
        %v3765 = vld [vmem:[%s3296 + $0x9] sm:$0xff]
        %v3766 = vld [vmem:[%s3296 + $0x11] sm:$0xff]
        %v3767 = vld [vmem:[%s3296 + $0x29] sm:$0xff]
        %v3768 = vld [vmem:[%s3296 + $0x31] sm:$0xff]
        %v3769 = vld [vmem:[%s3296 + $0x49] sm:$0xff]
        %v3770 = vld [vmem:[%s3296 + $0x51] sm:$0xff]
        %v3771 = vld [vmem:[%s3296 + $0x69] sm:$0xff]
        %v3772 = vld [vmem:[%s3296 + $0x71] sm:$0xff]
        %v3773 = vld [vmem:[%s3296 + $0x89] sm:$0xff]
        %v3774 = vld [vmem:[%s3296 + $0x91] sm:$0xff]
        %v3775 = vld [vmem:[%s3296 + $0xa9] sm:$0xff]
        %v3776 = vld [vmem:[%s3296 + $0xb1] sm:$0xff]
        %v3777 = vld [vmem:[%s3296 + $0xc9] sm:$0xff]
        %v3778 = vld [vmem:[%s3296 + $0xd1] sm:$0xff]
        %v3779 = vld [vmem:[%s3296 + $0xe9] sm:$0xff]
        %v3780 = vld [vmem:[%s3296 + $0xf1] sm:$0xff]
        %v3781 = vld [vmem:[%s3296 + $0x109] sm:$0xff]
        %v3782 = vld [vmem:[%s3296 + $0x111] sm:$0xff]
        %v3783 = vld [vmem:[%s3296 + $0x129] sm:$0xff]
        %v3784 = vld [vmem:[%s3296 + $0x131] sm:$0xff]
        %v3785 = vld [vmem:[%s3296 + $0x149] sm:$0xff]
        %v3786 = vld [vmem:[%s3296 + $0x151] sm:$0xff]
        %v3787 = vld [vmem:[%s3296 + $0x169] sm:$0xff]
        %v3788 = vld [vmem:[%s3296 + $0x171] sm:$0xff]
        %v3789 = vld [vmem:[%s3296 + $0x189] sm:$0xff]
        %v3790 = vld [vmem:[%s3296 + $0x191] sm:$0xff]
        %v3791 = vld [vmem:[%s3296 + $0x1a9] sm:$0xff]
        %v3792 = vld [vmem:[%s3296 + $0x1b1] sm:$0xff]
        %v3793 = vld [vmem:[%s3296 + $0x1c9] sm:$0xff]
        %v3794 = vld [vmem:[%s3296 + $0x1d1] sm:$0xff]
        %v3795 = vld [vmem:[%s3296 + $0x1e9] sm:$0xff]
        %v3796 = vld [vmem:[%s3296 + $0x1f1] sm:$0xff]
        %v3797 = vpack.c.bf16 %v3766, %v3765
        %v3798 = vpack.c.bf16 %v3768, %v3767
        %v3799 = vpack.c.bf16 %v3770, %v3769
        %v3800 = vpack.c.bf16 %v3772, %v3771
        %v3801 = vpack.c.bf16 %v3774, %v3773
        %v3802 = vpack.c.bf16 %v3776, %v3775
        %v3803 = vpack.c.bf16 %v3778, %v3777
        %v3804 = vpack.c.bf16 %v3780, %v3779
        %v3805 = vpack.c.bf16 %v3782, %v3781
        %v3806 = vpack.c.bf16 %v3784, %v3783
        %v3807 = vpack.c.bf16 %v3786, %v3785
        %v3808 = vpack.c.bf16 %v3788, %v3787
        %v3809 = vpack.c.bf16 %v3790, %v3789
        %v3810 = vpack.c.bf16 %v3792, %v3791
        %v3811 = vpack.c.bf16 %v3794, %v3793
        %v3812 = vpack.c.bf16 %v3796, %v3795
        %s3813 = scalar_lea.vmem %s3, 128
        %v3814 = vld [vmem:[%s3813] sm:$0xf]
        %v3815 = vld [vmem:[%s3813 + $0x4] sm:$0xf]
        %v3816 = vld [vmem:[%s3813 + $0x8] sm:$0xf]
        %v3817 = vld [vmem:[%s3813 + $0xc] sm:$0xf]
        %v3822 = vunpack.c.l.b16 %v3814
        %v3823 = vunpack.c.l.b16 %v3815
        %v3824 = vunpack.c.l.b16 %v3816
        %v3825 = vunpack.c.l.b16 %v3817
        %v3826 = vpack.c.b16 %v3823, %v3822
        %v3827 = vpack.c.b16 %v3825, %v3824
        %v3831 = vsel %vm515, %v3797, 0
        %v3834 = vsel %vm515, %v3798, 0
        %v3837 = vsel %vm515, %v3799, 0
        %v3840 = vsel %vm515, %v3800, 0
        %v3843 = vsel %vm515, %v3801, 0
        %v3846 = vsel %vm515, %v3802, 0
        %v3849 = vsel %vm515, %v3803, 0
        %v3852 = vsel %vm515, %v3804, 0
        %v3855 = vsel %vm515, %v3805, 0
        %v3858 = vsel %vm515, %v3806, 0
        %v3861 = vsel %vm515, %v3807, 0
        %v3864 = vsel %vm515, %v3808, 0
        %v3867 = vsel %vm515, %v3809, 0
        %v3870 = vsel %vm515, %v3810, 0
        %v3873 = vsel %vm515, %v3811, 0
        %v3876 = vsel %vm515, %v3812, 0
        %3878 = vmatpush.bf16.msra.mxu0 0
        %3879 = vmatpush.bf16.msra.mxu0 0
        %3880 = vmatpush.bf16.msra.mxu0 0
        %3881 = vmatpush.bf16.msra.mxu0 0
        %3882 = vmatpush.bf16.msra.mxu0 0
        %3883 = vmatpush.bf16.msra.mxu0 0
        %3884 = vmatpush.bf16.msra.mxu0 %v3827
        %3885 = vmatpush.bf16.msra.mxu0 %v3826
        %3886 = vmatmul.bf16.gmra.mxu0 %v3831
        %v3887 = vpop.f32.mrf.mxu0
        %v3888 = vadd.f32 0.0, %v3887
        %v3889 = vpop.f32.mrf.mxu0
        %v3890 = vadd.f32 0.0, %v3889
        %3891 = vmatmul.bf16.gmra.mxu0 %v3834
        %v3892 = vpop.f32.mrf.mxu0
        %v3893 = vadd.f32 0.0, %v3892
        %v3894 = vpop.f32.mrf.mxu0
        %v3895 = vadd.f32 0.0, %v3894
        %3896 = vmatmul.bf16.gmra.mxu0 %v3837
        %v3897 = vpop.f32.mrf.mxu0
        %v3898 = vadd.f32 0.0, %v3897
        %v3899 = vpop.f32.mrf.mxu0
        %v3900 = vadd.f32 0.0, %v3899
        %3901 = vmatmul.bf16.gmra.mxu0 %v3840
        %v3902 = vpop.f32.mrf.mxu0
        %v3903 = vadd.f32 0.0, %v3902
        %v3904 = vpop.f32.mrf.mxu0
        %v3905 = vadd.f32 0.0, %v3904
        %3906 = vmatmul.bf16.gmra.mxu0 %v3843
        %v3907 = vpop.f32.mrf.mxu0
        %v3908 = vadd.f32 0.0, %v3907
        %v3909 = vpop.f32.mrf.mxu0
        %v3910 = vadd.f32 0.0, %v3909
        %3911 = vmatmul.bf16.gmra.mxu0 %v3846
        %v3912 = vpop.f32.mrf.mxu0
        %v3913 = vadd.f32 0.0, %v3912
        %v3914 = vpop.f32.mrf.mxu0
        %v3915 = vadd.f32 0.0, %v3914
        %3916 = vmatmul.bf16.gmra.mxu0 %v3849
        %v3917 = vpop.f32.mrf.mxu0
        %v3918 = vadd.f32 0.0, %v3917
        %v3919 = vpop.f32.mrf.mxu0
        %v3920 = vadd.f32 0.0, %v3919
        %3921 = vmatmul.bf16.gmra.mxu0 %v3852
        %v3922 = vpop.f32.mrf.mxu0
        %v3923 = vadd.f32 0.0, %v3922
        %v3924 = vpop.f32.mrf.mxu0
        %v3925 = vadd.f32 0.0, %v3924
        %3926 = vmatmul.bf16.gmra.mxu0 %v3855
        %v3927 = vpop.f32.mrf.mxu0
        %v3928 = vadd.f32 0.0, %v3927
        %v3929 = vpop.f32.mrf.mxu0
        %v3930 = vadd.f32 0.0, %v3929
        %3931 = vmatmul.bf16.gmra.mxu0 %v3858
        %v3932 = vpop.f32.mrf.mxu0
        %v3933 = vadd.f32 0.0, %v3932
        %v3934 = vpop.f32.mrf.mxu0
        %v3935 = vadd.f32 0.0, %v3934
        %3936 = vmatmul.bf16.gmra.mxu0 %v3861
        %v3937 = vpop.f32.mrf.mxu0
        %v3938 = vadd.f32 0.0, %v3937
        %v3939 = vpop.f32.mrf.mxu0
        %v3940 = vadd.f32 0.0, %v3939
        %3941 = vmatmul.bf16.gmra.mxu0 %v3864
        %v3942 = vpop.f32.mrf.mxu0
        %v3943 = vadd.f32 0.0, %v3942
        %v3944 = vpop.f32.mrf.mxu0
        %v3945 = vadd.f32 0.0, %v3944
        %3946 = vmatmul.bf16.gmra.mxu0 %v3867
        %v3947 = vpop.f32.mrf.mxu0
        %v3948 = vadd.f32 0.0, %v3947
        %v3949 = vpop.f32.mrf.mxu0
        %v3950 = vadd.f32 0.0, %v3949
        %3951 = vmatmul.bf16.gmra.mxu0 %v3870
        %v3952 = vpop.f32.mrf.mxu0
        %v3953 = vadd.f32 0.0, %v3952
        %v3954 = vpop.f32.mrf.mxu0
        %v3955 = vadd.f32 0.0, %v3954
        %3956 = vmatmul.bf16.gmra.mxu0 %v3873
        %v3957 = vpop.f32.mrf.mxu0
        %v3958 = vadd.f32 0.0, %v3957
        %v3959 = vpop.f32.mrf.mxu0
        %v3960 = vadd.f32 0.0, %v3959
        %3961 = vmatmul.bf16.gmra.mxu0 %v3876
        %v3962 = vpop.f32.mrf.mxu0
        %v3963 = vadd.f32 0.0, %v3962
        %v3964 = vpop.f32.mrf.mxu0
        %v3965 = vadd.f32 0.0, %v3964
        %3966 = vdwg.mxu0
        %v3967 = vadd.f32 %v3733, %v3888
        %v3968 = vadd.f32 %v3734, %v3890
        %v3969 = vadd.f32 %v3735, %v3893
        %v3970 = vadd.f32 %v3736, %v3895
        %v3971 = vadd.f32 %v3737, %v3898
        %v3972 = vadd.f32 %v3738, %v3900
        %v3973 = vadd.f32 %v3739, %v3903
        %v3974 = vadd.f32 %v3740, %v3905
        %v3975 = vadd.f32 %v3741, %v3908
        %v3976 = vadd.f32 %v3742, %v3910
        %v3977 = vadd.f32 %v3743, %v3913
        %v3978 = vadd.f32 %v3744, %v3915
        %v3979 = vadd.f32 %v3745, %v3918
        %v3980 = vadd.f32 %v3746, %v3920
        %v3981 = vadd.f32 %v3747, %v3923
        %v3982 = vadd.f32 %v3748, %v3925
        %v3983 = vadd.f32 %v3749, %v3928
        %v3984 = vadd.f32 %v3750, %v3930
        %v3985 = vadd.f32 %v3751, %v3933
        %v3986 = vadd.f32 %v3752, %v3935
        %v3987 = vadd.f32 %v3753, %v3938
        %v3988 = vadd.f32 %v3754, %v3940
        %v3989 = vadd.f32 %v3755, %v3943
        %v3990 = vadd.f32 %v3756, %v3945
        %v3991 = vadd.f32 %v3757, %v3948
        %v3992 = vadd.f32 %v3758, %v3950
        %v3993 = vadd.f32 %v3759, %v3953
        %v3994 = vadd.f32 %v3760, %v3955
        %v3995 = vadd.f32 %v3761, %v3958
        %v3996 = vadd.f32 %v3762, %v3960
        %v3997 = vadd.f32 %v3763, %v3963
        %v3998 = vadd.f32 %v3764, %v3965
        %v3999 = vld [vmem:[%s4] sm:$0x1]
        %v4001 = vperm.slane %v3999, 0
        %v4003 = vadd.f32 %v3967, %v4001
        %v4004 = vadd.f32 %v3968, %v4001
        %v4005 = vadd.f32 %v3969, %v4001
        %v4006 = vadd.f32 %v3970, %v4001
        %v4007 = vadd.f32 %v3971, %v4001
        %v4008 = vadd.f32 %v3972, %v4001
        %v4009 = vadd.f32 %v3973, %v4001
        %v4010 = vadd.f32 %v3974, %v4001
        %v4011 = vadd.f32 %v3975, %v4001
        %v4012 = vadd.f32 %v3976, %v4001
        %v4013 = vadd.f32 %v3977, %v4001
        %v4014 = vadd.f32 %v3978, %v4001
        %v4015 = vadd.f32 %v3979, %v4001
        %v4016 = vadd.f32 %v3980, %v4001
        %v4017 = vadd.f32 %v3981, %v4001
        %v4018 = vadd.f32 %v3982, %v4001
        %v4019 = vadd.f32 %v3983, %v4001
        %v4020 = vadd.f32 %v3984, %v4001
        %v4021 = vadd.f32 %v3985, %v4001
        %v4022 = vadd.f32 %v3986, %v4001
        %v4023 = vadd.f32 %v3987, %v4001
        %v4024 = vadd.f32 %v3988, %v4001
        %v4025 = vadd.f32 %v3989, %v4001
        %v4026 = vadd.f32 %v3990, %v4001
        %v4027 = vadd.f32 %v3991, %v4001
        %v4028 = vadd.f32 %v3992, %v4001
        %v4029 = vadd.f32 %v3993, %v4001
        %v4030 = vadd.f32 %v3994, %v4001
        %v4031 = vadd.f32 %v3995, %v4001
        %v4032 = vadd.f32 %v3996, %v4001
        %v4033 = vadd.f32 %v3997, %v4001
        %v4034 = vadd.f32 %v3998, %v4001
        %v4035 = vmax.f32 %v4003, 0.0
        %v4036 = vmax.f32 %v4004, 0.0
        %v4037 = vmax.f32 %v4005, 0.0
        %v4038 = vmax.f32 %v4006, 0.0
        %v4039 = vmax.f32 %v4007, 0.0
        %v4040 = vmax.f32 %v4008, 0.0
        %v4041 = vmax.f32 %v4009, 0.0
        %v4042 = vmax.f32 %v4010, 0.0
        %v4043 = vmax.f32 %v4011, 0.0
        %v4044 = vmax.f32 %v4012, 0.0
        %v4045 = vmax.f32 %v4013, 0.0
        %v4046 = vmax.f32 %v4014, 0.0
        %v4047 = vmax.f32 %v4015, 0.0
        %v4048 = vmax.f32 %v4016, 0.0
        %v4049 = vmax.f32 %v4017, 0.0
        %v4050 = vmax.f32 %v4018, 0.0
        %v4051 = vmax.f32 %v4019, 0.0
        %v4052 = vmax.f32 %v4020, 0.0
        %v4053 = vmax.f32 %v4021, 0.0
        %v4054 = vmax.f32 %v4022, 0.0
        %v4055 = vmax.f32 %v4023, 0.0
        %v4056 = vmax.f32 %v4024, 0.0
        %v4057 = vmax.f32 %v4025, 0.0
        %v4058 = vmax.f32 %v4026, 0.0
        %v4059 = vmax.f32 %v4027, 0.0
        %v4060 = vmax.f32 %v4028, 0.0
        %v4061 = vmax.f32 %v4029, 0.0
        %v4062 = vmax.f32 %v4030, 0.0
        %v4063 = vmax.f32 %v4031, 0.0
        %v4064 = vmax.f32 %v4032, 0.0
        %v4065 = vmax.f32 %v4033, 0.0
        %v4066 = vmax.f32 %v4034, 0.0
        %v4067 = vld [vmem:[%s315] sm:$0xff]
        %v4068 = vld [vmem:[%s315 + $0x8] sm:$0xff]
        %v4069 = vld [vmem:[%s315 + $0x10] sm:$0xff]
        %v4070 = vld [vmem:[%s315 + $0x18] sm:$0xff]
        %v4071 = vld [vmem:[%s315 + $0x20] sm:$0xff]
        %v4072 = vld [vmem:[%s315 + $0x28] sm:$0xff]
        %v4073 = vld [vmem:[%s315 + $0x30] sm:$0xff]
        %v4074 = vld [vmem:[%s315 + $0x38] sm:$0xff]
        %v4075 = vld [vmem:[%s315 + $0x40] sm:$0xff]
        %v4076 = vld [vmem:[%s315 + $0x48] sm:$0xff]
        %v4077 = vld [vmem:[%s315 + $0x50] sm:$0xff]
        %v4078 = vld [vmem:[%s315 + $0x58] sm:$0xff]
        %v4079 = vld [vmem:[%s315 + $0x60] sm:$0xff]
        %v4080 = vld [vmem:[%s315 + $0x68] sm:$0xff]
        %v4081 = vld [vmem:[%s315 + $0x70] sm:$0xff]
        %v4082 = vld [vmem:[%s315 + $0x78] sm:$0xff]
        %v4083 = vld [vmem:[%s315 + $0x80] sm:$0xff]
        %v4084 = vld [vmem:[%s315 + $0x88] sm:$0xff]
        %v4085 = vld [vmem:[%s315 + $0x90] sm:$0xff]
        %v4086 = vld [vmem:[%s315 + $0x98] sm:$0xff]
        %v4087 = vld [vmem:[%s315 + $0xa0] sm:$0xff]
        %v4088 = vld [vmem:[%s315 + $0xa8] sm:$0xff]
        %v4089 = vld [vmem:[%s315 + $0xb0] sm:$0xff]
        %v4090 = vld [vmem:[%s315 + $0xb8] sm:$0xff]
        %v4091 = vld [vmem:[%s315 + $0xc0] sm:$0xff]
        %v4092 = vld [vmem:[%s315 + $0xc8] sm:$0xff]
        %v4093 = vld [vmem:[%s315 + $0xd0] sm:$0xff]
        %v4094 = vld [vmem:[%s315 + $0xd8] sm:$0xff]
        %v4095 = vld [vmem:[%s315 + $0xe0] sm:$0xff]
        %v4096 = vld [vmem:[%s315 + $0xe8] sm:$0xff]
        %v4097 = vld [vmem:[%s315 + $0xf0] sm:$0xff]
        %v4098 = vld [vmem:[%s315 + $0xf8] sm:$0xff]
        %v4099 = vld [vmem:[%s315 + $0x100] sm:$0xff]
        %v4100 = vld [vmem:[%s315 + $0x108] sm:$0xff]
        %v4101 = vld [vmem:[%s315 + $0x110] sm:$0xff]
        %v4102 = vld [vmem:[%s315 + $0x118] sm:$0xff]
        %v4103 = vld [vmem:[%s315 + $0x120] sm:$0xff]
        %v4104 = vld [vmem:[%s315 + $0x128] sm:$0xff]
        %v4105 = vld [vmem:[%s315 + $0x130] sm:$0xff]
        %v4106 = vld [vmem:[%s315 + $0x138] sm:$0xff]
        %v4107 = vld [vmem:[%s315 + $0x140] sm:$0xff]
        %v4108 = vld [vmem:[%s315 + $0x148] sm:$0xff]
        %v4109 = vld [vmem:[%s315 + $0x150] sm:$0xff]
        %v4110 = vld [vmem:[%s315 + $0x158] sm:$0xff]
        %v4111 = vld [vmem:[%s315 + $0x160] sm:$0xff]
        %v4112 = vld [vmem:[%s315 + $0x168] sm:$0xff]
        %v4113 = vld [vmem:[%s315 + $0x170] sm:$0xff]
        %v4114 = vld [vmem:[%s315 + $0x178] sm:$0xff]
        %v4115 = vld [vmem:[%s315 + $0x180] sm:$0xff]
        %v4116 = vld [vmem:[%s315 + $0x188] sm:$0xff]
        %v4117 = vld [vmem:[%s315 + $0x190] sm:$0xff]
        %v4118 = vld [vmem:[%s315 + $0x198] sm:$0xff]
        %v4119 = vld [vmem:[%s315 + $0x1a0] sm:$0xff]
        %v4120 = vld [vmem:[%s315 + $0x1a8] sm:$0xff]
        %v4121 = vld [vmem:[%s315 + $0x1b0] sm:$0xff]
        %v4122 = vld [vmem:[%s315 + $0x1b8] sm:$0xff]
        %v4123 = vld [vmem:[%s315 + $0x1c0] sm:$0xff]
        %v4124 = vld [vmem:[%s315 + $0x1c8] sm:$0xff]
        %v4125 = vld [vmem:[%s315 + $0x1d0] sm:$0xff]
        %v4126 = vld [vmem:[%s315 + $0x1d8] sm:$0xff]
        %v4127 = vld [vmem:[%s315 + $0x1e0] sm:$0xff]
        %v4128 = vld [vmem:[%s315 + $0x1e8] sm:$0xff]
        %v4129 = vld [vmem:[%s315 + $0x1f0] sm:$0xff]
        %v4130 = vld [vmem:[%s315 + $0x1f8] sm:$0xff]
        %v4131 = vpack.c.bf16 %v4036, %v4035
        %v4132 = vpack.c.bf16 %v4038, %v4037
        %v4133 = vpack.c.bf16 %v4040, %v4039
        %v4134 = vpack.c.bf16 %v4042, %v4041
        %v4135 = vpack.c.bf16 %v4044, %v4043
        %v4136 = vpack.c.bf16 %v4046, %v4045
        %v4137 = vpack.c.bf16 %v4048, %v4047
        %v4138 = vpack.c.bf16 %v4050, %v4049
        %v4139 = vpack.c.bf16 %v4052, %v4051
        %v4140 = vpack.c.bf16 %v4054, %v4053
        %v4141 = vpack.c.bf16 %v4056, %v4055
        %v4142 = vpack.c.bf16 %v4058, %v4057
        %v4143 = vpack.c.bf16 %v4060, %v4059
        %v4144 = vpack.c.bf16 %v4062, %v4061
        %v4145 = vpack.c.bf16 %v4064, %v4063
        %v4146 = vpack.c.bf16 %v4066, %v4065
        %s4147 = scalar_lea.vmem [#allocation6], 32
        %v4148 = vld [vmem:[%s4147] sm:$0xff]
        %v4149 = vld [vmem:[%s4147 + $0x8] sm:$0xff]
        %v4150 = vld [vmem:[%s4147 + $0x10] sm:$0xff]
        %v4151 = vld [vmem:[%s4147 + $0x18] sm:$0xff]
        %v4156 = vunpack.c.l.b16 %v4148
        %v4157 = vunpack.c.h.b16 %v4148
        %v4158 = vunpack.c.l.b16 %v4149
        %v4159 = vunpack.c.h.b16 %v4149
        %v4160 = vunpack.c.l.b16 %v4150
        %v4161 = vunpack.c.h.b16 %v4150
        %v4162 = vunpack.c.l.b16 %v4151
        %v4163 = vunpack.c.h.b16 %v4151
        %v4164 = vpack.c.b16 %v4158, %v4156
        %v4165 = vpack.c.b16 %v4159, %v4157
        %v4166 = vpack.c.b16 %v4162, %v4160
        %v4167 = vpack.c.b16 %v4163, %v4161
        %v4173 = vsel %vm515, %v4131, 0
        %v4176 = vsel %vm515, %v4132, 0
        %v4179 = vsel %vm515, %v4133, 0
        %v4182 = vsel %vm515, %v4134, 0
        %v4185 = vsel %vm515, %v4135, 0
        %v4188 = vsel %vm515, %v4136, 0
        %v4191 = vsel %vm515, %v4137, 0
        %v4194 = vsel %vm515, %v4138, 0
        %v4197 = vsel %vm515, %v4139, 0
        %v4200 = vsel %vm515, %v4140, 0
        %v4203 = vsel %vm515, %v4141, 0
        %v4206 = vsel %vm515, %v4142, 0
        %v4209 = vsel %vm515, %v4143, 0
        %v4212 = vsel %vm515, %v4144, 0
        %v4215 = vsel %vm515, %v4145, 0
        %v4218 = vsel %vm515, %v4146, 0
        %4220 = vmatpush.bf16.msra.mxu0 0
        %4221 = vmatpush.bf16.msra.mxu0 0
        %4222 = vmatpush.bf16.msra.mxu0 0
        %4223 = vmatpush.bf16.msra.mxu0 0
        %4224 = vmatpush.bf16.msra.mxu0 0
        %4225 = vmatpush.bf16.msra.mxu0 0
        %4226 = vmatpush.bf16.msra.mxu0 %v4166
        %4227 = vmatpush.bf16.msra.mxu0 %v4164
        %4228 = vmatmul.bf16.gmra.mxu0 %v4173
        %v4229 = vpop.f32.mrf.mxu0
        %v4230 = vadd.f32 0.0, %v4229
        %v4231 = vpop.f32.mrf.mxu0
        %v4232 = vadd.f32 0.0, %v4231
        %4233 = vmatmul.bf16.gmra.mxu0 %v4176
        %v4234 = vpop.f32.mrf.mxu0
        %v4235 = vadd.f32 0.0, %v4234
        %v4236 = vpop.f32.mrf.mxu0
        %v4237 = vadd.f32 0.0, %v4236
        %4238 = vmatmul.bf16.gmra.mxu0 %v4179
        %v4239 = vpop.f32.mrf.mxu0
        %v4240 = vadd.f32 0.0, %v4239
        %v4241 = vpop.f32.mrf.mxu0
        %v4242 = vadd.f32 0.0, %v4241
        %4243 = vmatmul.bf16.gmra.mxu0 %v4182
        %v4244 = vpop.f32.mrf.mxu0
        %v4245 = vadd.f32 0.0, %v4244
        %v4246 = vpop.f32.mrf.mxu0
        %v4247 = vadd.f32 0.0, %v4246
        %4248 = vmatmul.bf16.gmra.mxu0 %v4185
        %v4249 = vpop.f32.mrf.mxu0
        %v4250 = vadd.f32 0.0, %v4249
        %v4251 = vpop.f32.mrf.mxu0
        %v4252 = vadd.f32 0.0, %v4251
        %4253 = vmatmul.bf16.gmra.mxu0 %v4188
        %v4254 = vpop.f32.mrf.mxu0
        %v4255 = vadd.f32 0.0, %v4254
        %v4256 = vpop.f32.mrf.mxu0
        %v4257 = vadd.f32 0.0, %v4256
        %4258 = vmatmul.bf16.gmra.mxu0 %v4191
        %v4259 = vpop.f32.mrf.mxu0
        %v4260 = vadd.f32 0.0, %v4259
        %v4261 = vpop.f32.mrf.mxu0
        %v4262 = vadd.f32 0.0, %v4261
        %4263 = vmatmul.bf16.gmra.mxu0 %v4194
        %v4264 = vpop.f32.mrf.mxu0
        %v4265 = vadd.f32 0.0, %v4264
        %v4266 = vpop.f32.mrf.mxu0
        %v4267 = vadd.f32 0.0, %v4266
        %4268 = vmatmul.bf16.gmra.mxu0 %v4197
        %v4269 = vpop.f32.mrf.mxu0
        %v4270 = vadd.f32 0.0, %v4269
        %v4271 = vpop.f32.mrf.mxu0
        %v4272 = vadd.f32 0.0, %v4271
        %4273 = vmatmul.bf16.gmra.mxu0 %v4200
        %v4274 = vpop.f32.mrf.mxu0
        %v4275 = vadd.f32 0.0, %v4274
        %v4276 = vpop.f32.mrf.mxu0
        %v4277 = vadd.f32 0.0, %v4276
        %4278 = vmatmul.bf16.gmra.mxu0 %v4203
        %v4279 = vpop.f32.mrf.mxu0
        %v4280 = vadd.f32 0.0, %v4279
        %v4281 = vpop.f32.mrf.mxu0
        %v4282 = vadd.f32 0.0, %v4281
        %4283 = vmatmul.bf16.gmra.mxu0 %v4206
        %v4284 = vpop.f32.mrf.mxu0
        %v4285 = vadd.f32 0.0, %v4284
        %v4286 = vpop.f32.mrf.mxu0
        %v4287 = vadd.f32 0.0, %v4286
        %4288 = vmatmul.bf16.gmra.mxu0 %v4209
        %v4289 = vpop.f32.mrf.mxu0
        %v4290 = vadd.f32 0.0, %v4289
        %v4291 = vpop.f32.mrf.mxu0
        %v4292 = vadd.f32 0.0, %v4291
        %4293 = vmatmul.bf16.gmra.mxu0 %v4212
        %v4294 = vpop.f32.mrf.mxu0
        %v4295 = vadd.f32 0.0, %v4294
        %v4296 = vpop.f32.mrf.mxu0
        %v4297 = vadd.f32 0.0, %v4296
        %4298 = vmatmul.bf16.gmra.mxu0 %v4215
        %v4299 = vpop.f32.mrf.mxu0
        %v4300 = vadd.f32 0.0, %v4299
        %v4301 = vpop.f32.mrf.mxu0
        %v4302 = vadd.f32 0.0, %v4301
        %4303 = vmatmul.bf16.gmra.mxu0 %v4218
        %v4304 = vpop.f32.mrf.mxu0
        %v4305 = vadd.f32 0.0, %v4304
        %v4306 = vpop.f32.mrf.mxu0
        %v4307 = vadd.f32 0.0, %v4306
        %4308 = vdwg.mxu0
        %4309 = vmatpush.bf16.msra.mxu0 0
        %4310 = vmatpush.bf16.msra.mxu0 0
        %4311 = vmatpush.bf16.msra.mxu0 0
        %4312 = vmatpush.bf16.msra.mxu0 0
        %4313 = vmatpush.bf16.msra.mxu0 0
        %4314 = vmatpush.bf16.msra.mxu0 0
        %4315 = vmatpush.bf16.msra.mxu0 %v4167
        %4316 = vmatpush.bf16.msra.mxu0 %v4165
        %4317 = vmatmul.bf16.gmra.mxu0 %v4173
        %v4318 = vpop.f32.mrf.mxu0
        %v4319 = vadd.f32 0.0, %v4318
        %v4320 = vpop.f32.mrf.mxu0
        %v4321 = vadd.f32 0.0, %v4320
        %4322 = vmatmul.bf16.gmra.mxu0 %v4176
        %v4323 = vpop.f32.mrf.mxu0
        %v4324 = vadd.f32 0.0, %v4323
        %v4325 = vpop.f32.mrf.mxu0
        %v4326 = vadd.f32 0.0, %v4325
        %4327 = vmatmul.bf16.gmra.mxu0 %v4179
        %v4328 = vpop.f32.mrf.mxu0
        %v4329 = vadd.f32 0.0, %v4328
        %v4330 = vpop.f32.mrf.mxu0
        %v4331 = vadd.f32 0.0, %v4330
        %4332 = vmatmul.bf16.gmra.mxu0 %v4182
        %v4333 = vpop.f32.mrf.mxu0
        %v4334 = vadd.f32 0.0, %v4333
        %v4335 = vpop.f32.mrf.mxu0
        %v4336 = vadd.f32 0.0, %v4335
        %4337 = vmatmul.bf16.gmra.mxu0 %v4185
        %v4338 = vpop.f32.mrf.mxu0
        %v4339 = vadd.f32 0.0, %v4338
        %v4340 = vpop.f32.mrf.mxu0
        %v4341 = vadd.f32 0.0, %v4340
        %4342 = vmatmul.bf16.gmra.mxu0 %v4188
        %v4343 = vpop.f32.mrf.mxu0
        %v4344 = vadd.f32 0.0, %v4343
        %v4345 = vpop.f32.mrf.mxu0
        %v4346 = vadd.f32 0.0, %v4345
        %4347 = vmatmul.bf16.gmra.mxu0 %v4191
        %v4348 = vpop.f32.mrf.mxu0
        %v4349 = vadd.f32 0.0, %v4348
        %v4350 = vpop.f32.mrf.mxu0
        %v4351 = vadd.f32 0.0, %v4350
        %4352 = vmatmul.bf16.gmra.mxu0 %v4194
        %v4353 = vpop.f32.mrf.mxu0
        %v4354 = vadd.f32 0.0, %v4353
        %v4355 = vpop.f32.mrf.mxu0
        %v4356 = vadd.f32 0.0, %v4355
        %4357 = vmatmul.bf16.gmra.mxu0 %v4197
        %v4358 = vpop.f32.mrf.mxu0
        %v4359 = vadd.f32 0.0, %v4358
        %v4360 = vpop.f32.mrf.mxu0
        %v4361 = vadd.f32 0.0, %v4360
        %4362 = vmatmul.bf16.gmra.mxu0 %v4200
        %v4363 = vpop.f32.mrf.mxu0
        %v4364 = vadd.f32 0.0, %v4363
        %v4365 = vpop.f32.mrf.mxu0
        %v4366 = vadd.f32 0.0, %v4365
        %4367 = vmatmul.bf16.gmra.mxu0 %v4203
        %v4368 = vpop.f32.mrf.mxu0
        %v4369 = vadd.f32 0.0, %v4368
        %v4370 = vpop.f32.mrf.mxu0
        %v4371 = vadd.f32 0.0, %v4370
        %4372 = vmatmul.bf16.gmra.mxu0 %v4206
        %v4373 = vpop.f32.mrf.mxu0
        %v4374 = vadd.f32 0.0, %v4373
        %v4375 = vpop.f32.mrf.mxu0
        %v4376 = vadd.f32 0.0, %v4375
        %4377 = vmatmul.bf16.gmra.mxu0 %v4209
        %v4378 = vpop.f32.mrf.mxu0
        %v4379 = vadd.f32 0.0, %v4378
        %v4380 = vpop.f32.mrf.mxu0
        %v4381 = vadd.f32 0.0, %v4380
        %4382 = vmatmul.bf16.gmra.mxu0 %v4212
        %v4383 = vpop.f32.mrf.mxu0
        %v4384 = vadd.f32 0.0, %v4383
        %v4385 = vpop.f32.mrf.mxu0
        %v4386 = vadd.f32 0.0, %v4385
        %4387 = vmatmul.bf16.gmra.mxu0 %v4215
        %v4388 = vpop.f32.mrf.mxu0
        %v4389 = vadd.f32 0.0, %v4388
        %v4390 = vpop.f32.mrf.mxu0
        %v4391 = vadd.f32 0.0, %v4390
        %4392 = vmatmul.bf16.gmra.mxu0 %v4218
        %v4393 = vpop.f32.mrf.mxu0
        %v4394 = vadd.f32 0.0, %v4393
        %v4395 = vpop.f32.mrf.mxu0
        %v4396 = vadd.f32 0.0, %v4395
        %4397 = vdwg.mxu0
        %v4398 = vadd.f32 %v4067, %v4230
        %v4399 = vadd.f32 %v4068, %v4319
        %v4400 = vadd.f32 %v4069, %v4232
        %v4401 = vadd.f32 %v4070, %v4321
        %v4402 = vadd.f32 %v4071, %v4235
        %v4403 = vadd.f32 %v4072, %v4324
        %v4404 = vadd.f32 %v4073, %v4237
        %v4405 = vadd.f32 %v4074, %v4326
        %v4406 = vadd.f32 %v4075, %v4240
        %v4407 = vadd.f32 %v4076, %v4329
        %v4408 = vadd.f32 %v4077, %v4242
        %v4409 = vadd.f32 %v4078, %v4331
        %v4410 = vadd.f32 %v4079, %v4245
        %v4411 = vadd.f32 %v4080, %v4334
        %v4412 = vadd.f32 %v4081, %v4247
        %v4413 = vadd.f32 %v4082, %v4336
        %v4414 = vadd.f32 %v4083, %v4250
        %v4415 = vadd.f32 %v4084, %v4339
        %v4416 = vadd.f32 %v4085, %v4252
        %v4417 = vadd.f32 %v4086, %v4341
        %v4418 = vadd.f32 %v4087, %v4255
        %v4419 = vadd.f32 %v4088, %v4344
        %v4420 = vadd.f32 %v4089, %v4257
        %v4421 = vadd.f32 %v4090, %v4346
        %v4422 = vadd.f32 %v4091, %v4260
        %v4423 = vadd.f32 %v4092, %v4349
        %v4424 = vadd.f32 %v4093, %v4262
        %v4425 = vadd.f32 %v4094, %v4351
        %v4426 = vadd.f32 %v4095, %v4265
        %v4427 = vadd.f32 %v4096, %v4354
        %v4428 = vadd.f32 %v4097, %v4267
        %v4429 = vadd.f32 %v4098, %v4356
        %v4430 = vadd.f32 %v4099, %v4270
        %v4431 = vadd.f32 %v4100, %v4359
        %v4432 = vadd.f32 %v4101, %v4272
        %v4433 = vadd.f32 %v4102, %v4361
        %v4434 = vadd.f32 %v4103, %v4275
        %v4435 = vadd.f32 %v4104, %v4364
        %v4436 = vadd.f32 %v4105, %v4277
        %v4437 = vadd.f32 %v4106, %v4366
        %v4438 = vadd.f32 %v4107, %v4280
        %v4439 = vadd.f32 %v4108, %v4369
        %v4440 = vadd.f32 %v4109, %v4282
        %v4441 = vadd.f32 %v4110, %v4371
        %v4442 = vadd.f32 %v4111, %v4285
        %v4443 = vadd.f32 %v4112, %v4374
        %v4444 = vadd.f32 %v4113, %v4287
        %v4445 = vadd.f32 %v4114, %v4376
        %v4446 = vadd.f32 %v4115, %v4290
        %v4447 = vadd.f32 %v4116, %v4379
        %v4448 = vadd.f32 %v4117, %v4292
        %v4449 = vadd.f32 %v4118, %v4381
        %v4450 = vadd.f32 %v4119, %v4295
        %v4451 = vadd.f32 %v4120, %v4384
        %v4452 = vadd.f32 %v4121, %v4297
        %v4453 = vadd.f32 %v4122, %v4386
        %v4454 = vadd.f32 %v4123, %v4300
        %v4455 = vadd.f32 %v4124, %v4389
        %v4456 = vadd.f32 %v4125, %v4302
        %v4457 = vadd.f32 %v4126, %v4391
        %v4458 = vadd.f32 %v4127, %v4305
        %v4459 = vadd.f32 %v4128, %v4394
        %v4460 = vadd.f32 %v4129, %v4307
        %v4461 = vadd.f32 %v4130, %v4396
        %4462 = vst [vmem:[%s315] sm:$0xff] %v4398
        %4463 = vst [vmem:[%s315 + $0x8] sm:$0xff] %v4399
        %4464 = vst [vmem:[%s315 + $0x10] sm:$0xff] %v4400
        %4465 = vst [vmem:[%s315 + $0x18] sm:$0xff] %v4401
        %4466 = vst [vmem:[%s315 + $0x20] sm:$0xff] %v4402
        %4467 = vst [vmem:[%s315 + $0x28] sm:$0xff] %v4403
        %4468 = vst [vmem:[%s315 + $0x30] sm:$0xff] %v4404
        %4469 = vst [vmem:[%s315 + $0x38] sm:$0xff] %v4405
        %4470 = vst [vmem:[%s315 + $0x40] sm:$0xff] %v4406
        %4471 = vst [vmem:[%s315 + $0x48] sm:$0xff] %v4407
        %4472 = vst [vmem:[%s315 + $0x50] sm:$0xff] %v4408
        %4473 = vst [vmem:[%s315 + $0x58] sm:$0xff] %v4409
        %4474 = vst [vmem:[%s315 + $0x60] sm:$0xff] %v4410
        %4475 = vst [vmem:[%s315 + $0x68] sm:$0xff] %v4411
        %4476 = vst [vmem:[%s315 + $0x70] sm:$0xff] %v4412
        %4477 = vst [vmem:[%s315 + $0x78] sm:$0xff] %v4413
        %4478 = vst [vmem:[%s315 + $0x80] sm:$0xff] %v4414
        %4479 = vst [vmem:[%s315 + $0x88] sm:$0xff] %v4415
        %4480 = vst [vmem:[%s315 + $0x90] sm:$0xff] %v4416
        %4481 = vst [vmem:[%s315 + $0x98] sm:$0xff] %v4417
        %4482 = vst [vmem:[%s315 + $0xa0] sm:$0xff] %v4418
        %4483 = vst [vmem:[%s315 + $0xa8] sm:$0xff] %v4419
        %4484 = vst [vmem:[%s315 + $0xb0] sm:$0xff] %v4420
        %4485 = vst [vmem:[%s315 + $0xb8] sm:$0xff] %v4421
        %4486 = vst [vmem:[%s315 + $0xc0] sm:$0xff] %v4422
        %4487 = vst [vmem:[%s315 + $0xc8] sm:$0xff] %v4423
        %4488 = vst [vmem:[%s315 + $0xd0] sm:$0xff] %v4424
        %4489 = vst [vmem:[%s315 + $0xd8] sm:$0xff] %v4425
        %4490 = vst [vmem:[%s315 + $0xe0] sm:$0xff] %v4426
        %4491 = vst [vmem:[%s315 + $0xe8] sm:$0xff] %v4427
        %4492 = vst [vmem:[%s315 + $0xf0] sm:$0xff] %v4428
        %4493 = vst [vmem:[%s315 + $0xf8] sm:$0xff] %v4429
        %4494 = vst [vmem:[%s315 + $0x100] sm:$0xff] %v4430
        %4495 = vst [vmem:[%s315 + $0x108] sm:$0xff] %v4431
        %4496 = vst [vmem:[%s315 + $0x110] sm:$0xff] %v4432
        %4497 = vst [vmem:[%s315 + $0x118] sm:$0xff] %v4433
        %4498 = vst [vmem:[%s315 + $0x120] sm:$0xff] %v4434
        %4499 = vst [vmem:[%s315 + $0x128] sm:$0xff] %v4435
        %4500 = vst [vmem:[%s315 + $0x130] sm:$0xff] %v4436
        %4501 = vst [vmem:[%s315 + $0x138] sm:$0xff] %v4437
        %4502 = vst [vmem:[%s315 + $0x140] sm:$0xff] %v4438
        %4503 = vst [vmem:[%s315 + $0x148] sm:$0xff] %v4439
        %4504 = vst [vmem:[%s315 + $0x150] sm:$0xff] %v4440
        %4505 = vst [vmem:[%s315 + $0x158] sm:$0xff] %v4441
        %4506 = vst [vmem:[%s315 + $0x160] sm:$0xff] %v4442
        %4507 = vst [vmem:[%s315 + $0x168] sm:$0xff] %v4443
        %4508 = vst [vmem:[%s315 + $0x170] sm:$0xff] %v4444
        %4509 = vst [vmem:[%s315 + $0x178] sm:$0xff] %v4445
        %4510 = vst [vmem:[%s315 + $0x180] sm:$0xff] %v4446
        %4511 = vst [vmem:[%s315 + $0x188] sm:$0xff] %v4447
        %4512 = vst [vmem:[%s315 + $0x190] sm:$0xff] %v4448
        %4513 = vst [vmem:[%s315 + $0x198] sm:$0xff] %v4449
        %4514 = vst [vmem:[%s315 + $0x1a0] sm:$0xff] %v4450
        %4515 = vst [vmem:[%s315 + $0x1a8] sm:$0xff] %v4451
        %4516 = vst [vmem:[%s315 + $0x1b0] sm:$0xff] %v4452
        %4517 = vst [vmem:[%s315 + $0x1b8] sm:$0xff] %v4453
        %4518 = vst [vmem:[%s315 + $0x1c0] sm:$0xff] %v4454
        %4519 = vst [vmem:[%s315 + $0x1c8] sm:$0xff] %v4455
        %4520 = vst [vmem:[%s315 + $0x1d0] sm:$0xff] %v4456
        %4521 = vst [vmem:[%s315 + $0x1d8] sm:$0xff] %v4457
        %4522 = vst [vmem:[%s315 + $0x1e0] sm:$0xff] %v4458
        %4523 = vst [vmem:[%s315 + $0x1e8] sm:$0xff] %v4459
        %4524 = vst [vmem:[%s315 + $0x1f0] sm:$0xff] %v4460
        %4525 = vst [vmem:[%s315 + $0x1f8] sm:$0xff] %v4461
        %v4526 = vld [vmem:[%s279] sm:$0xff]
        %v4527 = vld [vmem:[%s279 + $0x8] sm:$0xff]
        %v4528 = vld [vmem:[%s279 + $0x10] sm:$0xff]
        %v4529 = vld [vmem:[%s279 + $0x18] sm:$0xff]
        %v4530 = vld [vmem:[%s279 + $0x20] sm:$0xff]
        %v4531 = vld [vmem:[%s279 + $0x28] sm:$0xff]
        %v4532 = vld [vmem:[%s279 + $0x30] sm:$0xff]
        %v4533 = vld [vmem:[%s279 + $0x38] sm:$0xff]
        %v4534 = vld [vmem:[%s279 + $0x40] sm:$0xff]
        %v4535 = vld [vmem:[%s279 + $0x48] sm:$0xff]
        %v4536 = vld [vmem:[%s279 + $0x50] sm:$0xff]
        %v4537 = vld [vmem:[%s279 + $0x58] sm:$0xff]
        %v4538 = vld [vmem:[%s279 + $0x60] sm:$0xff]
        %v4539 = vld [vmem:[%s279 + $0x68] sm:$0xff]
        %v4540 = vld [vmem:[%s279 + $0x70] sm:$0xff]
        %v4541 = vld [vmem:[%s279 + $0x78] sm:$0xff]
        %v4542 = vld [vmem:[%s279 + $0x80] sm:$0xff]
        %v4543 = vld [vmem:[%s279 + $0x88] sm:$0xff]
        %v4544 = vld [vmem:[%s279 + $0x90] sm:$0xff]
        %v4545 = vld [vmem:[%s279 + $0x98] sm:$0xff]
        %v4546 = vld [vmem:[%s279 + $0xa0] sm:$0xff]
        %v4547 = vld [vmem:[%s279 + $0xa8] sm:$0xff]
        %v4548 = vld [vmem:[%s279 + $0xb0] sm:$0xff]
        %v4549 = vld [vmem:[%s279 + $0xb8] sm:$0xff]
        %v4550 = vld [vmem:[%s279 + $0xc0] sm:$0xff]
        %v4551 = vld [vmem:[%s279 + $0xc8] sm:$0xff]
        %v4552 = vld [vmem:[%s279 + $0xd0] sm:$0xff]
        %v4553 = vld [vmem:[%s279 + $0xd8] sm:$0xff]
        %v4554 = vld [vmem:[%s279 + $0xe0] sm:$0xff]
        %v4555 = vld [vmem:[%s279 + $0xe8] sm:$0xff]
        %v4556 = vld [vmem:[%s279 + $0xf0] sm:$0xff]
        %v4557 = vld [vmem:[%s279 + $0xf8] sm:$0xff]
        %v4558 = vld [vmem:[%s279 + $0x100] sm:$0xff]
        %v4559 = vld [vmem:[%s279 + $0x108] sm:$0xff]
        %v4560 = vld [vmem:[%s279 + $0x110] sm:$0xff]
        %v4561 = vld [vmem:[%s279 + $0x118] sm:$0xff]
        %v4562 = vld [vmem:[%s279 + $0x120] sm:$0xff]
        %v4563 = vld [vmem:[%s279 + $0x128] sm:$0xff]
        %v4564 = vld [vmem:[%s279 + $0x130] sm:$0xff]
        %v4565 = vld [vmem:[%s279 + $0x138] sm:$0xff]
        %v4566 = vld [vmem:[%s279 + $0x140] sm:$0xff]
        %v4567 = vld [vmem:[%s279 + $0x148] sm:$0xff]
        %v4568 = vld [vmem:[%s279 + $0x150] sm:$0xff]
        %v4569 = vld [vmem:[%s279 + $0x158] sm:$0xff]
        %v4570 = vld [vmem:[%s279 + $0x160] sm:$0xff]
        %v4571 = vld [vmem:[%s279 + $0x168] sm:$0xff]
        %v4572 = vld [vmem:[%s279 + $0x170] sm:$0xff]
        %v4573 = vld [vmem:[%s279 + $0x178] sm:$0xff]
        %v4574 = vld [vmem:[%s279 + $0x180] sm:$0xff]
        %v4575 = vld [vmem:[%s279 + $0x188] sm:$0xff]
        %v4576 = vld [vmem:[%s279 + $0x190] sm:$0xff]
        %v4577 = vld [vmem:[%s279 + $0x198] sm:$0xff]
        %v4578 = vld [vmem:[%s279 + $0x1a0] sm:$0xff]
        %v4579 = vld [vmem:[%s279 + $0x1a8] sm:$0xff]
        %v4580 = vld [vmem:[%s279 + $0x1b0] sm:$0xff]
        %v4581 = vld [vmem:[%s279 + $0x1b8] sm:$0xff]
        %v4582 = vld [vmem:[%s279 + $0x1c0] sm:$0xff]
        %v4583 = vld [vmem:[%s279 + $0x1c8] sm:$0xff]
        %v4584 = vld [vmem:[%s279 + $0x1d0] sm:$0xff]
        %v4585 = vld [vmem:[%s279 + $0x1d8] sm:$0xff]
        %v4586 = vld [vmem:[%s279 + $0x1e0] sm:$0xff]
        %v4587 = vld [vmem:[%s279 + $0x1e8] sm:$0xff]
        %v4588 = vld [vmem:[%s279 + $0x1f0] sm:$0xff]
        %v4589 = vld [vmem:[%s279 + $0x1f8] sm:$0xff]
        %v4590 = vpack.c.bf16 %v4528, %v4526
        %v4591 = vpack.c.bf16 %v4529, %v4527
        %v4592 = vpack.c.bf16 %v4532, %v4530
        %v4593 = vpack.c.bf16 %v4533, %v4531
        %v4594 = vpack.c.bf16 %v4536, %v4534
        %v4595 = vpack.c.bf16 %v4537, %v4535
        %v4596 = vpack.c.bf16 %v4540, %v4538
        %v4597 = vpack.c.bf16 %v4541, %v4539
        %v4598 = vpack.c.bf16 %v4544, %v4542
        %v4599 = vpack.c.bf16 %v4545, %v4543
        %v4600 = vpack.c.bf16 %v4548, %v4546
        %v4601 = vpack.c.bf16 %v4549, %v4547
        %v4602 = vpack.c.bf16 %v4552, %v4550
        %v4603 = vpack.c.bf16 %v4553, %v4551
        %v4604 = vpack.c.bf16 %v4556, %v4554
        %v4605 = vpack.c.bf16 %v4557, %v4555
        %v4606 = vpack.c.bf16 %v4560, %v4558
        %v4607 = vpack.c.bf16 %v4561, %v4559
        %v4608 = vpack.c.bf16 %v4564, %v4562
        %v4609 = vpack.c.bf16 %v4565, %v4563
        %v4610 = vpack.c.bf16 %v4568, %v4566
        %v4611 = vpack.c.bf16 %v4569, %v4567
        %v4612 = vpack.c.bf16 %v4572, %v4570
        %v4613 = vpack.c.bf16 %v4573, %v4571
        %v4614 = vpack.c.bf16 %v4576, %v4574
        %v4615 = vpack.c.bf16 %v4577, %v4575
        %v4616 = vpack.c.bf16 %v4580, %v4578
        %v4617 = vpack.c.bf16 %v4581, %v4579
        %v4618 = vpack.c.bf16 %v4584, %v4582
        %v4619 = vpack.c.bf16 %v4585, %v4583
        %v4620 = vpack.c.bf16 %v4588, %v4586
        %v4621 = vpack.c.bf16 %v4589, %v4587
        %s4622 = scalar_lea.vmem %s1, 256
        %v4623 = vld [vmem:[%s4622] sm:$0xf]
        %v4624 = vld [vmem:[%s4622 + $0x4] sm:$0xf]
        %v4625 = vld [vmem:[%s4622 + $0x8] sm:$0xf]
        %v4626 = vld [vmem:[%s4622 + $0xc] sm:$0xf]
        %v4627 = vld [vmem:[%s4622 + $0x10] sm:$0xf]
        %v4628 = vld [vmem:[%s4622 + $0x14] sm:$0xf]
        %v4629 = vld [vmem:[%s4622 + $0x18] sm:$0xf]
        %v4630 = vld [vmem:[%s4622 + $0x1c] sm:$0xf]
        %v4631 = vld [vmem:[%s4622 + $0x20] sm:$0xf]
        %v4632 = vld [vmem:[%s4622 + $0x24] sm:$0xf]
        %v4633 = vld [vmem:[%s4622 + $0x28] sm:$0xf]
        %v4634 = vld [vmem:[%s4622 + $0x2c] sm:$0xf]
        %v4635 = vld [vmem:[%s4622 + $0x30] sm:$0xf]
        %v4636 = vld [vmem:[%s4622 + $0x34] sm:$0xf]
        %v4637 = vld [vmem:[%s4622 + $0x38] sm:$0xf]
        %v4638 = vld [vmem:[%s4622 + $0x3c] sm:$0xf]
        %v4639 = vld [vmem:[%s4622 + $0x40] sm:$0xf]
        %v4640 = vld [vmem:[%s4622 + $0x44] sm:$0xf]
        %v4641 = vld [vmem:[%s4622 + $0x48] sm:$0xf]
        %v4642 = vld [vmem:[%s4622 + $0x4c] sm:$0xf]
        %v4643 = vld [vmem:[%s4622 + $0x50] sm:$0xf]
        %v4644 = vld [vmem:[%s4622 + $0x54] sm:$0xf]
        %v4645 = vld [vmem:[%s4622 + $0x58] sm:$0xf]
        %v4646 = vld [vmem:[%s4622 + $0x5c] sm:$0xf]
        %v4647 = vld [vmem:[%s4622 + $0x60] sm:$0xf]
        %v4648 = vld [vmem:[%s4622 + $0x64] sm:$0xf]
        %v4649 = vld [vmem:[%s4622 + $0x68] sm:$0xf]
        %v4650 = vld [vmem:[%s4622 + $0x6c] sm:$0xf]
        %v4651 = vld [vmem:[%s4622 + $0x70] sm:$0xf]
        %v4652 = vld [vmem:[%s4622 + $0x74] sm:$0xf]
        %v4653 = vld [vmem:[%s4622 + $0x78] sm:$0xf]
        %v4654 = vld [vmem:[%s4622 + $0x7c] sm:$0xf]
        %s4655 = scalar_lea.vmem %s2, 2
        %v4656 = vld [vmem:[%s4655] sm:$0x1]
        %v4658 = vperm.slane %v4656, 0
        %v4692 = vunpack.c.l.b16 %v4623
        %v4693 = vunpack.c.l.b16 %v4624
        %v4694 = vunpack.c.l.b16 %v4625
        %v4695 = vunpack.c.l.b16 %v4626
        %v4696 = vunpack.c.l.b16 %v4627
        %v4697 = vunpack.c.l.b16 %v4628
        %v4698 = vunpack.c.l.b16 %v4629
        %v4699 = vunpack.c.l.b16 %v4630
        %v4700 = vunpack.c.l.b16 %v4631
        %v4701 = vunpack.c.l.b16 %v4632
        %v4702 = vunpack.c.l.b16 %v4633
        %v4703 = vunpack.c.l.b16 %v4634
        %v4704 = vunpack.c.l.b16 %v4635
        %v4705 = vunpack.c.l.b16 %v4636
        %v4706 = vunpack.c.l.b16 %v4637
        %v4707 = vunpack.c.l.b16 %v4638
        %v4708 = vunpack.c.l.b16 %v4639
        %v4709 = vunpack.c.l.b16 %v4640
        %v4710 = vunpack.c.l.b16 %v4641
        %v4711 = vunpack.c.l.b16 %v4642
        %v4712 = vunpack.c.l.b16 %v4643
        %v4713 = vunpack.c.l.b16 %v4644
        %v4714 = vunpack.c.l.b16 %v4645
        %v4715 = vunpack.c.l.b16 %v4646
        %v4716 = vunpack.c.l.b16 %v4647
        %v4717 = vunpack.c.l.b16 %v4648
        %v4718 = vunpack.c.l.b16 %v4649
        %v4719 = vunpack.c.l.b16 %v4650
        %v4720 = vunpack.c.l.b16 %v4651
        %v4721 = vunpack.c.l.b16 %v4652
        %v4722 = vunpack.c.l.b16 %v4653
        %v4723 = vunpack.c.l.b16 %v4654
        %v4724 = vpack.c.b16 %v4693, %v4692
        %v4725 = vpack.c.b16 %v4695, %v4694
        %v4726 = vpack.c.b16 %v4697, %v4696
        %v4727 = vpack.c.b16 %v4699, %v4698
        %v4728 = vpack.c.b16 %v4701, %v4700
        %v4729 = vpack.c.b16 %v4703, %v4702
        %v4730 = vpack.c.b16 %v4705, %v4704
        %v4731 = vpack.c.b16 %v4707, %v4706
        %v4732 = vpack.c.b16 %v4709, %v4708
        %v4733 = vpack.c.b16 %v4711, %v4710
        %v4734 = vpack.c.b16 %v4713, %v4712
        %v4735 = vpack.c.b16 %v4715, %v4714
        %v4736 = vpack.c.b16 %v4717, %v4716
        %v4737 = vpack.c.b16 %v4719, %v4718
        %v4738 = vpack.c.b16 %v4721, %v4720
        %v4739 = vpack.c.b16 %v4723, %v4722
        %4756 = vmatpush.bf16.msra.mxu0 %v4731
        %4757 = vmatpush.bf16.msra.mxu0 %v4730
        %4758 = vmatpush.bf16.msra.mxu0 %v4729
        %4759 = vmatpush.bf16.msra.mxu0 %v4728
        %4760 = vmatpush.bf16.msra.mxu0 %v4727
        %4761 = vmatpush.bf16.msra.mxu0 %v4726
        %4762 = vmatpush.bf16.msra.mxu0 %v4725
        %4763 = vmatpush.bf16.msra.mxu0 %v4724
        %4764 = vmatmul.bf16.gmra.mxu0 %v4590
        %v4765 = vpop.f32.mrf.mxu0
        %v4766 = vadd.f32 %v4658, %v4765
        %v4767 = vpop.f32.mrf.mxu0
        %v4768 = vadd.f32 %v4658, %v4767
        %4769 = vmatmul.bf16.gmra.mxu0 %v4592
        %v4770 = vpop.f32.mrf.mxu0
        %v4771 = vadd.f32 %v4658, %v4770
        %v4772 = vpop.f32.mrf.mxu0
        %v4773 = vadd.f32 %v4658, %v4772
        %4774 = vmatmul.bf16.gmra.mxu0 %v4594
        %v4775 = vpop.f32.mrf.mxu0
        %v4776 = vadd.f32 %v4658, %v4775
        %v4777 = vpop.f32.mrf.mxu0
        %v4778 = vadd.f32 %v4658, %v4777
        %4779 = vmatmul.bf16.gmra.mxu0 %v4596
        %v4780 = vpop.f32.mrf.mxu0
        %v4781 = vadd.f32 %v4658, %v4780
        %v4782 = vpop.f32.mrf.mxu0
        %v4783 = vadd.f32 %v4658, %v4782
        %4784 = vmatmul.bf16.gmra.mxu0 %v4598
        %v4785 = vpop.f32.mrf.mxu0
        %v4786 = vadd.f32 %v4658, %v4785
        %v4787 = vpop.f32.mrf.mxu0
        %v4788 = vadd.f32 %v4658, %v4787
        %4789 = vmatmul.bf16.gmra.mxu0 %v4600
        %v4790 = vpop.f32.mrf.mxu0
        %v4791 = vadd.f32 %v4658, %v4790
        %v4792 = vpop.f32.mrf.mxu0
        %v4793 = vadd.f32 %v4658, %v4792
        %4794 = vmatmul.bf16.gmra.mxu0 %v4602
        %v4795 = vpop.f32.mrf.mxu0
        %v4796 = vadd.f32 %v4658, %v4795
        %v4797 = vpop.f32.mrf.mxu0
        %v4798 = vadd.f32 %v4658, %v4797
        %4799 = vmatmul.bf16.gmra.mxu0 %v4604
        %v4800 = vpop.f32.mrf.mxu0
        %v4801 = vadd.f32 %v4658, %v4800
        %v4802 = vpop.f32.mrf.mxu0
        %v4803 = vadd.f32 %v4658, %v4802
        %4804 = vmatmul.bf16.gmra.mxu0 %v4606
        %v4805 = vpop.f32.mrf.mxu0
        %v4806 = vadd.f32 %v4658, %v4805
        %v4807 = vpop.f32.mrf.mxu0
        %v4808 = vadd.f32 %v4658, %v4807
        %4809 = vmatmul.bf16.gmra.mxu0 %v4608
        %v4810 = vpop.f32.mrf.mxu0
        %v4811 = vadd.f32 %v4658, %v4810
        %v4812 = vpop.f32.mrf.mxu0
        %v4813 = vadd.f32 %v4658, %v4812
        %4814 = vmatmul.bf16.gmra.mxu0 %v4610
        %v4815 = vpop.f32.mrf.mxu0
        %v4816 = vadd.f32 %v4658, %v4815
        %v4817 = vpop.f32.mrf.mxu0
        %v4818 = vadd.f32 %v4658, %v4817
        %4819 = vmatmul.bf16.gmra.mxu0 %v4612
        %v4820 = vpop.f32.mrf.mxu0
        %v4821 = vadd.f32 %v4658, %v4820
        %v4822 = vpop.f32.mrf.mxu0
        %v4823 = vadd.f32 %v4658, %v4822
        %4824 = vmatmul.bf16.gmra.mxu0 %v4614
        %v4825 = vpop.f32.mrf.mxu0
        %v4826 = vadd.f32 %v4658, %v4825
        %v4827 = vpop.f32.mrf.mxu0
        %v4828 = vadd.f32 %v4658, %v4827
        %4829 = vmatmul.bf16.gmra.mxu0 %v4616
        %v4830 = vpop.f32.mrf.mxu0
        %v4831 = vadd.f32 %v4658, %v4830
        %v4832 = vpop.f32.mrf.mxu0
        %v4833 = vadd.f32 %v4658, %v4832
        %4834 = vmatmul.bf16.gmra.mxu0 %v4618
        %v4835 = vpop.f32.mrf.mxu0
        %v4836 = vadd.f32 %v4658, %v4835
        %v4837 = vpop.f32.mrf.mxu0
        %v4838 = vadd.f32 %v4658, %v4837
        %4839 = vmatmul.bf16.gmra.mxu0 %v4620
        %v4840 = vpop.f32.mrf.mxu0
        %v4841 = vadd.f32 %v4658, %v4840
        %v4842 = vpop.f32.mrf.mxu0
        %v4843 = vadd.f32 %v4658, %v4842
        %4844 = vdwg.mxu0
        %4845 = vmatpush.bf16.msra.mxu0 %v4739
        %4846 = vmatpush.bf16.msra.mxu0 %v4738
        %4847 = vmatpush.bf16.msra.mxu0 %v4737
        %4848 = vmatpush.bf16.msra.mxu0 %v4736
        %4849 = vmatpush.bf16.msra.mxu0 %v4735
        %4850 = vmatpush.bf16.msra.mxu0 %v4734
        %4851 = vmatpush.bf16.msra.mxu0 %v4733
        %4852 = vmatpush.bf16.msra.mxu0 %v4732
        %4853 = vmatmul.bf16.gmra.mxu0 %v4591
        %v4854 = vpop.f32.mrf.mxu0
        %v4855 = vadd.f32 %v4766, %v4854
        %v4856 = vpop.f32.mrf.mxu0
        %v4857 = vadd.f32 %v4768, %v4856
        %4858 = vmatmul.bf16.gmra.mxu0 %v4593
        %v4859 = vpop.f32.mrf.mxu0
        %v4860 = vadd.f32 %v4771, %v4859
        %v4861 = vpop.f32.mrf.mxu0
        %v4862 = vadd.f32 %v4773, %v4861
        %4863 = vmatmul.bf16.gmra.mxu0 %v4595
        %v4864 = vpop.f32.mrf.mxu0
        %v4865 = vadd.f32 %v4776, %v4864
        %v4866 = vpop.f32.mrf.mxu0
        %v4867 = vadd.f32 %v4778, %v4866
        %4868 = vmatmul.bf16.gmra.mxu0 %v4597
        %v4869 = vpop.f32.mrf.mxu0
        %v4870 = vadd.f32 %v4781, %v4869
        %v4871 = vpop.f32.mrf.mxu0
        %v4872 = vadd.f32 %v4783, %v4871
        %4873 = vmatmul.bf16.gmra.mxu0 %v4599
        %v4874 = vpop.f32.mrf.mxu0
        %v4875 = vadd.f32 %v4786, %v4874
        %v4876 = vpop.f32.mrf.mxu0
        %v4877 = vadd.f32 %v4788, %v4876
        %4878 = vmatmul.bf16.gmra.mxu0 %v4601
        %v4879 = vpop.f32.mrf.mxu0
        %v4880 = vadd.f32 %v4791, %v4879
        %v4881 = vpop.f32.mrf.mxu0
        %v4882 = vadd.f32 %v4793, %v4881
        %4883 = vmatmul.bf16.gmra.mxu0 %v4603
        %v4884 = vpop.f32.mrf.mxu0
        %v4885 = vadd.f32 %v4796, %v4884
        %v4886 = vpop.f32.mrf.mxu0
        %v4887 = vadd.f32 %v4798, %v4886
        %4888 = vmatmul.bf16.gmra.mxu0 %v4605
        %v4889 = vpop.f32.mrf.mxu0
        %v4890 = vadd.f32 %v4801, %v4889
        %v4891 = vpop.f32.mrf.mxu0
        %v4892 = vadd.f32 %v4803, %v4891
        %4893 = vmatmul.bf16.gmra.mxu0 %v4607
        %v4894 = vpop.f32.mrf.mxu0
        %v4895 = vadd.f32 %v4806, %v4894
        %v4896 = vpop.f32.mrf.mxu0
        %v4897 = vadd.f32 %v4808, %v4896
        %4898 = vmatmul.bf16.gmra.mxu0 %v4609
        %v4899 = vpop.f32.mrf.mxu0
        %v4900 = vadd.f32 %v4811, %v4899
        %v4901 = vpop.f32.mrf.mxu0
        %v4902 = vadd.f32 %v4813, %v4901
        %4903 = vmatmul.bf16.gmra.mxu0 %v4611
        %v4904 = vpop.f32.mrf.mxu0
        %v4905 = vadd.f32 %v4816, %v4904
        %v4906 = vpop.f32.mrf.mxu0
        %v4907 = vadd.f32 %v4818, %v4906
        %4908 = vmatmul.bf16.gmra.mxu0 %v4613
        %v4909 = vpop.f32.mrf.mxu0
        %v4910 = vadd.f32 %v4821, %v4909
        %v4911 = vpop.f32.mrf.mxu0
        %v4912 = vadd.f32 %v4823, %v4911
        %4913 = vmatmul.bf16.gmra.mxu0 %v4615
        %v4914 = vpop.f32.mrf.mxu0
        %v4915 = vadd.f32 %v4826, %v4914
        %v4916 = vpop.f32.mrf.mxu0
        %v4917 = vadd.f32 %v4828, %v4916
        %4918 = vmatmul.bf16.gmra.mxu0 %v4617
        %v4919 = vpop.f32.mrf.mxu0
        %v4920 = vadd.f32 %v4831, %v4919
        %v4921 = vpop.f32.mrf.mxu0
        %v4922 = vadd.f32 %v4833, %v4921
        %4923 = vmatmul.bf16.gmra.mxu0 %v4619
        %v4924 = vpop.f32.mrf.mxu0
        %v4925 = vadd.f32 %v4836, %v4924
        %v4926 = vpop.f32.mrf.mxu0
        %v4927 = vadd.f32 %v4838, %v4926
        %4928 = vmatmul.bf16.gmra.mxu0 %v4621
        %v4929 = vpop.f32.mrf.mxu0
        %v4930 = vadd.f32 %v4841, %v4929
        %v4931 = vpop.f32.mrf.mxu0
        %v4932 = vadd.f32 %v4843, %v4931
        %4933 = vdwg.mxu0
        %v4934 = vmax.f32 %v4855, 0.0
        %v4935 = vmax.f32 %v4857, 0.0
        %v4936 = vmax.f32 %v4860, 0.0
        %v4937 = vmax.f32 %v4862, 0.0
        %v4938 = vmax.f32 %v4865, 0.0
        %v4939 = vmax.f32 %v4867, 0.0
        %v4940 = vmax.f32 %v4870, 0.0
        %v4941 = vmax.f32 %v4872, 0.0
        %v4942 = vmax.f32 %v4875, 0.0
        %v4943 = vmax.f32 %v4877, 0.0
        %v4944 = vmax.f32 %v4880, 0.0
        %v4945 = vmax.f32 %v4882, 0.0
        %v4946 = vmax.f32 %v4885, 0.0
        %v4947 = vmax.f32 %v4887, 0.0
        %v4948 = vmax.f32 %v4890, 0.0
        %v4949 = vmax.f32 %v4892, 0.0
        %v4950 = vmax.f32 %v4895, 0.0
        %v4951 = vmax.f32 %v4897, 0.0
        %v4952 = vmax.f32 %v4900, 0.0
        %v4953 = vmax.f32 %v4902, 0.0
        %v4954 = vmax.f32 %v4905, 0.0
        %v4955 = vmax.f32 %v4907, 0.0
        %v4956 = vmax.f32 %v4910, 0.0
        %v4957 = vmax.f32 %v4912, 0.0
        %v4958 = vmax.f32 %v4915, 0.0
        %v4959 = vmax.f32 %v4917, 0.0
        %v4960 = vmax.f32 %v4920, 0.0
        %v4961 = vmax.f32 %v4922, 0.0
        %v4962 = vmax.f32 %v4925, 0.0
        %v4963 = vmax.f32 %v4927, 0.0
        %v4964 = vmax.f32 %v4930, 0.0
        %v4965 = vmax.f32 %v4932, 0.0
        %4966 = vst.msk [vmem:[%s1924 + $0x8] sm:$0xff] %vm515, %v4934
        %4967 = vst.msk [vmem:[%s1924 + $0x10] sm:$0xff] %vm515, %v4935
        %4968 = vst.msk [vmem:[%s1924 + $0x28] sm:$0xff] %vm515, %v4936
        %4969 = vst.msk [vmem:[%s1924 + $0x30] sm:$0xff] %vm515, %v4937
        %4970 = vst.msk [vmem:[%s1924 + $0x48] sm:$0xff] %vm515, %v4938
        %4971 = vst.msk [vmem:[%s1924 + $0x50] sm:$0xff] %vm515, %v4939
        %4972 = vst.msk [vmem:[%s1924 + $0x68] sm:$0xff] %vm515, %v4940
        %4973 = vst.msk [vmem:[%s1924 + $0x70] sm:$0xff] %vm515, %v4941
        %4974 = vst.msk [vmem:[%s1924 + $0x88] sm:$0xff] %vm515, %v4942
        %4975 = vst.msk [vmem:[%s1924 + $0x90] sm:$0xff] %vm515, %v4943
        %4976 = vst.msk [vmem:[%s1924 + $0xa8] sm:$0xff] %vm515, %v4944
        %4977 = vst.msk [vmem:[%s1924 + $0xb0] sm:$0xff] %vm515, %v4945
        %4978 = vst.msk [vmem:[%s1924 + $0xc8] sm:$0xff] %vm515, %v4946
        %4979 = vst.msk [vmem:[%s1924 + $0xd0] sm:$0xff] %vm515, %v4947
        %4980 = vst.msk [vmem:[%s1924 + $0xe8] sm:$0xff] %vm515, %v4948
        %4981 = vst.msk [vmem:[%s1924 + $0xf0] sm:$0xff] %vm515, %v4949
        %4982 = vst.msk [vmem:[%s1924 + $0x108] sm:$0xff] %vm515, %v4950
        %4983 = vst.msk [vmem:[%s1924 + $0x110] sm:$0xff] %vm515, %v4951
        %4984 = vst.msk [vmem:[%s1924 + $0x128] sm:$0xff] %vm515, %v4952
        %4985 = vst.msk [vmem:[%s1924 + $0x130] sm:$0xff] %vm515, %v4953
        %4986 = vst.msk [vmem:[%s1924 + $0x148] sm:$0xff] %vm515, %v4954
        %4987 = vst.msk [vmem:[%s1924 + $0x150] sm:$0xff] %vm515, %v4955
        %4988 = vst.msk [vmem:[%s1924 + $0x168] sm:$0xff] %vm515, %v4956
        %4989 = vst.msk [vmem:[%s1924 + $0x170] sm:$0xff] %vm515, %v4957
        %4990 = vst.msk [vmem:[%s1924 + $0x188] sm:$0xff] %vm515, %v4958
        %4991 = vst.msk [vmem:[%s1924 + $0x190] sm:$0xff] %vm515, %v4959
        %4992 = vst.msk [vmem:[%s1924 + $0x1a8] sm:$0xff] %vm515, %v4960
        %4993 = vst.msk [vmem:[%s1924 + $0x1b0] sm:$0xff] %vm515, %v4961
        %4994 = vst.msk [vmem:[%s1924 + $0x1c8] sm:$0xff] %vm515, %v4962
        %4995 = vst.msk [vmem:[%s1924 + $0x1d0] sm:$0xff] %vm515, %v4963
        %4996 = vst.msk [vmem:[%s1924 + $0x1e8] sm:$0xff] %vm515, %v4964
        %4997 = vst.msk [vmem:[%s1924 + $0x1f0] sm:$0xff] %vm515, %v4965
        %v4998 = vld [vmem:[#allocation2 + $0x7] sm:$0xff]
        %v4999 = vld [vmem:[#allocation2 + $0xf] sm:$0xff]
        %v5000 = vld [vmem:[#allocation2 + $0x27] sm:$0xff]
        %v5001 = vld [vmem:[#allocation2 + $0x2f] sm:$0xff]
        %v5002 = vld [vmem:[#allocation2 + $0x47] sm:$0xff]
        %v5003 = vld [vmem:[#allocation2 + $0x4f] sm:$0xff]
        %v5004 = vld [vmem:[#allocation2 + $0x67] sm:$0xff]
        %v5005 = vld [vmem:[#allocation2 + $0x6f] sm:$0xff]
        %v5006 = vld [vmem:[#allocation2 + $0x87] sm:$0xff]
        %v5007 = vld [vmem:[#allocation2 + $0x8f] sm:$0xff]
        %v5008 = vld [vmem:[#allocation2 + $0xa7] sm:$0xff]
        %v5009 = vld [vmem:[#allocation2 + $0xaf] sm:$0xff]
        %v5010 = vld [vmem:[#allocation2 + $0xc7] sm:$0xff]
        %v5011 = vld [vmem:[#allocation2 + $0xcf] sm:$0xff]
        %v5012 = vld [vmem:[#allocation2 + $0xe7] sm:$0xff]
        %v5013 = vld [vmem:[#allocation2 + $0xef] sm:$0xff]
        %v5014 = vld [vmem:[#allocation2 + $0x107] sm:$0xff]
        %v5015 = vld [vmem:[#allocation2 + $0x10f] sm:$0xff]
        %v5016 = vld [vmem:[#allocation2 + $0x127] sm:$0xff]
        %v5017 = vld [vmem:[#allocation2 + $0x12f] sm:$0xff]
        %v5018 = vld [vmem:[#allocation2 + $0x147] sm:$0xff]
        %v5019 = vld [vmem:[#allocation2 + $0x14f] sm:$0xff]
        %v5020 = vld [vmem:[#allocation2 + $0x167] sm:$0xff]
        %v5021 = vld [vmem:[#allocation2 + $0x16f] sm:$0xff]
        %v5022 = vld [vmem:[#allocation2 + $0x187] sm:$0xff]
        %v5023 = vld [vmem:[#allocation2 + $0x18f] sm:$0xff]
        %v5024 = vld [vmem:[#allocation2 + $0x1a7] sm:$0xff]
        %v5025 = vld [vmem:[#allocation2 + $0x1af] sm:$0xff]
        %v5026 = vld [vmem:[#allocation2 + $0x1c7] sm:$0xff]
        %v5027 = vld [vmem:[#allocation2 + $0x1cf] sm:$0xff]
        %v5028 = vld [vmem:[#allocation2 + $0x1e7] sm:$0xff]
        %v5029 = vld [vmem:[#allocation2 + $0x1ef] sm:$0xff]
        %v5030 = vpack.c.bf16 %v4999, %v4998
        %v5031 = vpack.c.bf16 %v5001, %v5000
        %v5032 = vpack.c.bf16 %v5003, %v5002
        %v5033 = vpack.c.bf16 %v5005, %v5004
        %v5034 = vpack.c.bf16 %v5007, %v5006
        %v5035 = vpack.c.bf16 %v5009, %v5008
        %v5036 = vpack.c.bf16 %v5011, %v5010
        %v5037 = vpack.c.bf16 %v5013, %v5012
        %v5038 = vpack.c.bf16 %v5015, %v5014
        %v5039 = vpack.c.bf16 %v5017, %v5016
        %v5040 = vpack.c.bf16 %v5019, %v5018
        %v5041 = vpack.c.bf16 %v5021, %v5020
        %v5042 = vpack.c.bf16 %v5023, %v5022
        %v5043 = vpack.c.bf16 %v5025, %v5024
        %v5044 = vpack.c.bf16 %v5027, %v5026
        %v5045 = vpack.c.bf16 %v5029, %v5028
        %s5046 = scalar_lea.vmem %s3, 144
        %v5047 = vld [vmem:[%s5046] sm:$0xf]
        %v5048 = vld [vmem:[%s5046 + $0x4] sm:$0xf]
        %v5049 = vld [vmem:[%s5046 + $0x8] sm:$0xf]
        %v5050 = vld [vmem:[%s5046 + $0xc] sm:$0xf]
        %v5051 = vld [vmem:[#allocation2 + $0x8] sm:$0xff]
        %v5052 = vld [vmem:[#allocation2 + $0x10] sm:$0xff]
        %v5053 = vld [vmem:[#allocation2 + $0x28] sm:$0xff]
        %v5054 = vld [vmem:[#allocation2 + $0x30] sm:$0xff]
        %v5055 = vld [vmem:[#allocation2 + $0x48] sm:$0xff]
        %v5056 = vld [vmem:[#allocation2 + $0x50] sm:$0xff]
        %v5057 = vld [vmem:[#allocation2 + $0x68] sm:$0xff]
        %v5058 = vld [vmem:[#allocation2 + $0x70] sm:$0xff]
        %v5059 = vld [vmem:[#allocation2 + $0x88] sm:$0xff]
        %v5060 = vld [vmem:[#allocation2 + $0x90] sm:$0xff]
        %v5061 = vld [vmem:[#allocation2 + $0xa8] sm:$0xff]
        %v5062 = vld [vmem:[#allocation2 + $0xb0] sm:$0xff]
        %v5063 = vld [vmem:[#allocation2 + $0xc8] sm:$0xff]
        %v5064 = vld [vmem:[#allocation2 + $0xd0] sm:$0xff]
        %v5065 = vld [vmem:[#allocation2 + $0xe8] sm:$0xff]
        %v5066 = vld [vmem:[#allocation2 + $0xf0] sm:$0xff]
        %v5067 = vld [vmem:[#allocation2 + $0x108] sm:$0xff]
        %v5068 = vld [vmem:[#allocation2 + $0x110] sm:$0xff]
        %v5069 = vld [vmem:[#allocation2 + $0x128] sm:$0xff]
        %v5070 = vld [vmem:[#allocation2 + $0x130] sm:$0xff]
        %v5071 = vld [vmem:[#allocation2 + $0x148] sm:$0xff]
        %v5072 = vld [vmem:[#allocation2 + $0x150] sm:$0xff]
        %v5073 = vld [vmem:[#allocation2 + $0x168] sm:$0xff]
        %v5074 = vld [vmem:[#allocation2 + $0x170] sm:$0xff]
        %v5075 = vld [vmem:[#allocation2 + $0x188] sm:$0xff]
        %v5076 = vld [vmem:[#allocation2 + $0x190] sm:$0xff]
        %v5077 = vld [vmem:[#allocation2 + $0x1a8] sm:$0xff]
        %v5078 = vld [vmem:[#allocation2 + $0x1b0] sm:$0xff]
        %v5079 = vld [vmem:[#allocation2 + $0x1c8] sm:$0xff]
        %v5080 = vld [vmem:[#allocation2 + $0x1d0] sm:$0xff]
        %v5081 = vld [vmem:[#allocation2 + $0x1e8] sm:$0xff]
        %v5082 = vld [vmem:[#allocation2 + $0x1f0] sm:$0xff]
        %v5083 = vpack.c.bf16 %v5052, %v5051
        %v5084 = vpack.c.bf16 %v5054, %v5053
        %v5085 = vpack.c.bf16 %v5056, %v5055
        %v5086 = vpack.c.bf16 %v5058, %v5057
        %v5087 = vpack.c.bf16 %v5060, %v5059
        %v5088 = vpack.c.bf16 %v5062, %v5061
        %v5089 = vpack.c.bf16 %v5064, %v5063
        %v5090 = vpack.c.bf16 %v5066, %v5065
        %v5091 = vpack.c.bf16 %v5068, %v5067
        %v5092 = vpack.c.bf16 %v5070, %v5069
        %v5093 = vpack.c.bf16 %v5072, %v5071
        %v5094 = vpack.c.bf16 %v5074, %v5073
        %v5095 = vpack.c.bf16 %v5076, %v5075
        %v5096 = vpack.c.bf16 %v5078, %v5077
        %v5097 = vpack.c.bf16 %v5080, %v5079
        %v5098 = vpack.c.bf16 %v5082, %v5081
        %s5099 = scalar_lea.vmem %s3, 160
        %v5100 = vld [vmem:[%s5099] sm:$0xf]
        %v5101 = vld [vmem:[%s5099 + $0x4] sm:$0xf]
        %v5102 = vld [vmem:[%s5099 + $0x8] sm:$0xf]
        %v5103 = vld [vmem:[%s5099 + $0xc] sm:$0xf]
        %v5108 = vunpack.c.l.b16 %v5100
        %v5109 = vunpack.c.l.b16 %v5101
        %v5110 = vunpack.c.l.b16 %v5102
        %v5111 = vunpack.c.l.b16 %v5103
        %v5112 = vpack.c.b16 %v5109, %v5108
        %v5113 = vpack.c.b16 %v5111, %v5110
        %v5117 = vsel %vm515, %v5083, 0
        %v5120 = vsel %vm515, %v5084, 0
        %v5123 = vsel %vm515, %v5085, 0
        %v5126 = vsel %vm515, %v5086, 0
        %v5129 = vsel %vm515, %v5087, 0
        %v5132 = vsel %vm515, %v5088, 0
        %v5135 = vsel %vm515, %v5089, 0
        %v5138 = vsel %vm515, %v5090, 0
        %v5141 = vsel %vm515, %v5091, 0
        %v5144 = vsel %vm515, %v5092, 0
        %v5147 = vsel %vm515, %v5093, 0
        %v5150 = vsel %vm515, %v5094, 0
        %v5153 = vsel %vm515, %v5095, 0
        %v5156 = vsel %vm515, %v5096, 0
        %v5159 = vsel %vm515, %v5097, 0
        %v5162 = vsel %vm515, %v5098, 0
        %5164 = vmatpush.bf16.msra.mxu0 0
        %5165 = vmatpush.bf16.msra.mxu0 0
        %5166 = vmatpush.bf16.msra.mxu0 0
        %5167 = vmatpush.bf16.msra.mxu0 0
        %5168 = vmatpush.bf16.msra.mxu0 0
        %5169 = vmatpush.bf16.msra.mxu0 0
        %5170 = vmatpush.bf16.msra.mxu0 %v5113
        %5171 = vmatpush.bf16.msra.mxu0 %v5112
        %5172 = vmatmul.bf16.gmra.mxu0 %v5117
        %v5173 = vpop.f32.mrf.mxu0
        %v5174 = vadd.f32 0.0, %v5173
        %v5175 = vpop.f32.mrf.mxu0
        %v5176 = vadd.f32 0.0, %v5175
        %5177 = vmatmul.bf16.gmra.mxu0 %v5120
        %v5178 = vpop.f32.mrf.mxu0
        %v5179 = vadd.f32 0.0, %v5178
        %v5180 = vpop.f32.mrf.mxu0
        %v5181 = vadd.f32 0.0, %v5180
        %5182 = vmatmul.bf16.gmra.mxu0 %v5123
        %v5183 = vpop.f32.mrf.mxu0
        %v5184 = vadd.f32 0.0, %v5183
        %v5185 = vpop.f32.mrf.mxu0
        %v5186 = vadd.f32 0.0, %v5185
        %5187 = vmatmul.bf16.gmra.mxu0 %v5126
        %v5188 = vpop.f32.mrf.mxu0
        %v5189 = vadd.f32 0.0, %v5188
        %v5190 = vpop.f32.mrf.mxu0
        %v5191 = vadd.f32 0.0, %v5190
        %5192 = vmatmul.bf16.gmra.mxu0 %v5129
        %v5193 = vpop.f32.mrf.mxu0
        %v5194 = vadd.f32 0.0, %v5193
        %v5195 = vpop.f32.mrf.mxu0
        %v5196 = vadd.f32 0.0, %v5195
        %5197 = vmatmul.bf16.gmra.mxu0 %v5132
        %v5198 = vpop.f32.mrf.mxu0
        %v5199 = vadd.f32 0.0, %v5198
        %v5200 = vpop.f32.mrf.mxu0
        %v5201 = vadd.f32 0.0, %v5200
        %5202 = vmatmul.bf16.gmra.mxu0 %v5135
        %v5203 = vpop.f32.mrf.mxu0
        %v5204 = vadd.f32 0.0, %v5203
        %v5205 = vpop.f32.mrf.mxu0
        %v5206 = vadd.f32 0.0, %v5205
        %5207 = vmatmul.bf16.gmra.mxu0 %v5138
        %v5208 = vpop.f32.mrf.mxu0
        %v5209 = vadd.f32 0.0, %v5208
        %v5210 = vpop.f32.mrf.mxu0
        %v5211 = vadd.f32 0.0, %v5210
        %5212 = vmatmul.bf16.gmra.mxu0 %v5141
        %v5213 = vpop.f32.mrf.mxu0
        %v5214 = vadd.f32 0.0, %v5213
        %v5215 = vpop.f32.mrf.mxu0
        %v5216 = vadd.f32 0.0, %v5215
        %5217 = vmatmul.bf16.gmra.mxu0 %v5144
        %v5218 = vpop.f32.mrf.mxu0
        %v5219 = vadd.f32 0.0, %v5218
        %v5220 = vpop.f32.mrf.mxu0
        %v5221 = vadd.f32 0.0, %v5220
        %5222 = vmatmul.bf16.gmra.mxu0 %v5147
        %v5223 = vpop.f32.mrf.mxu0
        %v5224 = vadd.f32 0.0, %v5223
        %v5225 = vpop.f32.mrf.mxu0
        %v5226 = vadd.f32 0.0, %v5225
        %5227 = vmatmul.bf16.gmra.mxu0 %v5150
        %v5228 = vpop.f32.mrf.mxu0
        %v5229 = vadd.f32 0.0, %v5228
        %v5230 = vpop.f32.mrf.mxu0
        %v5231 = vadd.f32 0.0, %v5230
        %5232 = vmatmul.bf16.gmra.mxu0 %v5153
        %v5233 = vpop.f32.mrf.mxu0
        %v5234 = vadd.f32 0.0, %v5233
        %v5235 = vpop.f32.mrf.mxu0
        %v5236 = vadd.f32 0.0, %v5235
        %5237 = vmatmul.bf16.gmra.mxu0 %v5156
        %v5238 = vpop.f32.mrf.mxu0
        %v5239 = vadd.f32 0.0, %v5238
        %v5240 = vpop.f32.mrf.mxu0
        %v5241 = vadd.f32 0.0, %v5240
        %5242 = vmatmul.bf16.gmra.mxu0 %v5159
        %v5243 = vpop.f32.mrf.mxu0
        %v5244 = vadd.f32 0.0, %v5243
        %v5245 = vpop.f32.mrf.mxu0
        %v5246 = vadd.f32 0.0, %v5245
        %5247 = vmatmul.bf16.gmra.mxu0 %v5162
        %v5248 = vpop.f32.mrf.mxu0
        %v5249 = vadd.f32 0.0, %v5248
        %v5250 = vpop.f32.mrf.mxu0
        %v5251 = vadd.f32 0.0, %v5250
        %5252 = vdwg.mxu0
        %v5257 = vunpack.c.l.b16 %v5047
        %v5258 = vunpack.c.l.b16 %v5048
        %v5259 = vunpack.c.l.b16 %v5049
        %v5260 = vunpack.c.l.b16 %v5050
        %v5261 = vpack.c.b16 %v5258, %v5257
        %v5262 = vpack.c.b16 %v5260, %v5259
        %v5266 = vsel %vm515, %v5030, 0
        %v5269 = vsel %vm515, %v5031, 0
        %v5272 = vsel %vm515, %v5032, 0
        %v5275 = vsel %vm515, %v5033, 0
        %v5278 = vsel %vm515, %v5034, 0
        %v5281 = vsel %vm515, %v5035, 0
        %v5284 = vsel %vm515, %v5036, 0
        %v5287 = vsel %vm515, %v5037, 0
        %v5290 = vsel %vm515, %v5038, 0
        %v5293 = vsel %vm515, %v5039, 0
        %v5296 = vsel %vm515, %v5040, 0
        %v5299 = vsel %vm515, %v5041, 0
        %v5302 = vsel %vm515, %v5042, 0
        %v5305 = vsel %vm515, %v5043, 0
        %v5308 = vsel %vm515, %v5044, 0
        %v5311 = vsel %vm515, %v5045, 0
        %5313 = vmatpush.bf16.msra.mxu0 0
        %5314 = vmatpush.bf16.msra.mxu0 0
        %5315 = vmatpush.bf16.msra.mxu0 0
        %5316 = vmatpush.bf16.msra.mxu0 0
        %5317 = vmatpush.bf16.msra.mxu0 0
        %5318 = vmatpush.bf16.msra.mxu0 0
        %5319 = vmatpush.bf16.msra.mxu0 %v5262
        %5320 = vmatpush.bf16.msra.mxu0 %v5261
        %5321 = vmatmul.bf16.gmra.mxu0 %v5266
        %v5322 = vpop.f32.mrf.mxu0
        %v5323 = vadd.f32 %v5174, %v5322
        %v5324 = vpop.f32.mrf.mxu0
        %v5325 = vadd.f32 %v5176, %v5324
        %5326 = vmatmul.bf16.gmra.mxu0 %v5269
        %v5327 = vpop.f32.mrf.mxu0
        %v5328 = vadd.f32 %v5179, %v5327
        %v5329 = vpop.f32.mrf.mxu0
        %v5330 = vadd.f32 %v5181, %v5329
        %5331 = vmatmul.bf16.gmra.mxu0 %v5272
        %v5332 = vpop.f32.mrf.mxu0
        %v5333 = vadd.f32 %v5184, %v5332
        %v5334 = vpop.f32.mrf.mxu0
        %v5335 = vadd.f32 %v5186, %v5334
        %5336 = vmatmul.bf16.gmra.mxu0 %v5275
        %v5337 = vpop.f32.mrf.mxu0
        %v5338 = vadd.f32 %v5189, %v5337
        %v5339 = vpop.f32.mrf.mxu0
        %v5340 = vadd.f32 %v5191, %v5339
        %5341 = vmatmul.bf16.gmra.mxu0 %v5278
        %v5342 = vpop.f32.mrf.mxu0
        %v5343 = vadd.f32 %v5194, %v5342
        %v5344 = vpop.f32.mrf.mxu0
        %v5345 = vadd.f32 %v5196, %v5344
        %5346 = vmatmul.bf16.gmra.mxu0 %v5281
        %v5347 = vpop.f32.mrf.mxu0
        %v5348 = vadd.f32 %v5199, %v5347
        %v5349 = vpop.f32.mrf.mxu0
        %v5350 = vadd.f32 %v5201, %v5349
        %5351 = vmatmul.bf16.gmra.mxu0 %v5284
        %v5352 = vpop.f32.mrf.mxu0
        %v5353 = vadd.f32 %v5204, %v5352
        %v5354 = vpop.f32.mrf.mxu0
        %v5355 = vadd.f32 %v5206, %v5354
        %5356 = vmatmul.bf16.gmra.mxu0 %v5287
        %v5357 = vpop.f32.mrf.mxu0
        %v5358 = vadd.f32 %v5209, %v5357
        %v5359 = vpop.f32.mrf.mxu0
        %v5360 = vadd.f32 %v5211, %v5359
        %5361 = vmatmul.bf16.gmra.mxu0 %v5290
        %v5362 = vpop.f32.mrf.mxu0
        %v5363 = vadd.f32 %v5214, %v5362
        %v5364 = vpop.f32.mrf.mxu0
        %v5365 = vadd.f32 %v5216, %v5364
        %5366 = vmatmul.bf16.gmra.mxu0 %v5293
        %v5367 = vpop.f32.mrf.mxu0
        %v5368 = vadd.f32 %v5219, %v5367
        %v5369 = vpop.f32.mrf.mxu0
        %v5370 = vadd.f32 %v5221, %v5369
        %5371 = vmatmul.bf16.gmra.mxu0 %v5296
        %v5372 = vpop.f32.mrf.mxu0
        %v5373 = vadd.f32 %v5224, %v5372
        %v5374 = vpop.f32.mrf.mxu0
        %v5375 = vadd.f32 %v5226, %v5374
        %5376 = vmatmul.bf16.gmra.mxu0 %v5299
        %v5377 = vpop.f32.mrf.mxu0
        %v5378 = vadd.f32 %v5229, %v5377
        %v5379 = vpop.f32.mrf.mxu0
        %v5380 = vadd.f32 %v5231, %v5379
        %5381 = vmatmul.bf16.gmra.mxu0 %v5302
        %v5382 = vpop.f32.mrf.mxu0
        %v5383 = vadd.f32 %v5234, %v5382
        %v5384 = vpop.f32.mrf.mxu0
        %v5385 = vadd.f32 %v5236, %v5384
        %5386 = vmatmul.bf16.gmra.mxu0 %v5305
        %v5387 = vpop.f32.mrf.mxu0
        %v5388 = vadd.f32 %v5239, %v5387
        %v5389 = vpop.f32.mrf.mxu0
        %v5390 = vadd.f32 %v5241, %v5389
        %5391 = vmatmul.bf16.gmra.mxu0 %v5308
        %v5392 = vpop.f32.mrf.mxu0
        %v5393 = vadd.f32 %v5244, %v5392
        %v5394 = vpop.f32.mrf.mxu0
        %v5395 = vadd.f32 %v5246, %v5394
        %5396 = vmatmul.bf16.gmra.mxu0 %v5311
        %v5397 = vpop.f32.mrf.mxu0
        %v5398 = vadd.f32 %v5249, %v5397
        %v5399 = vpop.f32.mrf.mxu0
        %v5400 = vadd.f32 %v5251, %v5399
        %5401 = vdwg.mxu0
        %v5402 = vld [vmem:[#allocation2 + $0x9] sm:$0xff]
        %v5403 = vld [vmem:[#allocation2 + $0x11] sm:$0xff]
        %v5404 = vld [vmem:[#allocation2 + $0x29] sm:$0xff]
        %v5405 = vld [vmem:[#allocation2 + $0x31] sm:$0xff]
        %v5406 = vld [vmem:[#allocation2 + $0x49] sm:$0xff]
        %v5407 = vld [vmem:[#allocation2 + $0x51] sm:$0xff]
        %v5408 = vld [vmem:[#allocation2 + $0x69] sm:$0xff]
        %v5409 = vld [vmem:[#allocation2 + $0x71] sm:$0xff]
        %v5410 = vld [vmem:[#allocation2 + $0x89] sm:$0xff]
        %v5411 = vld [vmem:[#allocation2 + $0x91] sm:$0xff]
        %v5412 = vld [vmem:[#allocation2 + $0xa9] sm:$0xff]
        %v5413 = vld [vmem:[#allocation2 + $0xb1] sm:$0xff]
        %v5414 = vld [vmem:[#allocation2 + $0xc9] sm:$0xff]
        %v5415 = vld [vmem:[#allocation2 + $0xd1] sm:$0xff]
        %v5416 = vld [vmem:[#allocation2 + $0xe9] sm:$0xff]
        %v5417 = vld [vmem:[#allocation2 + $0xf1] sm:$0xff]
        %v5418 = vld [vmem:[#allocation2 + $0x109] sm:$0xff]
        %v5419 = vld [vmem:[#allocation2 + $0x111] sm:$0xff]
        %v5420 = vld [vmem:[#allocation2 + $0x129] sm:$0xff]
        %v5421 = vld [vmem:[#allocation2 + $0x131] sm:$0xff]
        %v5422 = vld [vmem:[#allocation2 + $0x149] sm:$0xff]
        %v5423 = vld [vmem:[#allocation2 + $0x151] sm:$0xff]
        %v5424 = vld [vmem:[#allocation2 + $0x169] sm:$0xff]
        %v5425 = vld [vmem:[#allocation2 + $0x171] sm:$0xff]
        %v5426 = vld [vmem:[#allocation2 + $0x189] sm:$0xff]
        %v5427 = vld [vmem:[#allocation2 + $0x191] sm:$0xff]
        %v5428 = vld [vmem:[#allocation2 + $0x1a9] sm:$0xff]
        %v5429 = vld [vmem:[#allocation2 + $0x1b1] sm:$0xff]
        %v5430 = vld [vmem:[#allocation2 + $0x1c9] sm:$0xff]
        %v5431 = vld [vmem:[#allocation2 + $0x1d1] sm:$0xff]
        %v5432 = vld [vmem:[#allocation2 + $0x1e9] sm:$0xff]
        %v5433 = vld [vmem:[#allocation2 + $0x1f1] sm:$0xff]
        %v5434 = vpack.c.bf16 %v5403, %v5402
        %v5435 = vpack.c.bf16 %v5405, %v5404
        %v5436 = vpack.c.bf16 %v5407, %v5406
        %v5437 = vpack.c.bf16 %v5409, %v5408
        %v5438 = vpack.c.bf16 %v5411, %v5410
        %v5439 = vpack.c.bf16 %v5413, %v5412
        %v5440 = vpack.c.bf16 %v5415, %v5414
        %v5441 = vpack.c.bf16 %v5417, %v5416
        %v5442 = vpack.c.bf16 %v5419, %v5418
        %v5443 = vpack.c.bf16 %v5421, %v5420
        %v5444 = vpack.c.bf16 %v5423, %v5422
        %v5445 = vpack.c.bf16 %v5425, %v5424
        %v5446 = vpack.c.bf16 %v5427, %v5426
        %v5447 = vpack.c.bf16 %v5429, %v5428
        %v5448 = vpack.c.bf16 %v5431, %v5430
        %v5449 = vpack.c.bf16 %v5433, %v5432
        %s5450 = scalar_lea.vmem %s3, 176
        %v5451 = vld [vmem:[%s5450] sm:$0xf]
        %v5452 = vld [vmem:[%s5450 + $0x4] sm:$0xf]
        %v5453 = vld [vmem:[%s5450 + $0x8] sm:$0xf]
        %v5454 = vld [vmem:[%s5450 + $0xc] sm:$0xf]
        %v5459 = vunpack.c.l.b16 %v5451
        %v5460 = vunpack.c.l.b16 %v5452
        %v5461 = vunpack.c.l.b16 %v5453
        %v5462 = vunpack.c.l.b16 %v5454
        %v5463 = vpack.c.b16 %v5460, %v5459
        %v5464 = vpack.c.b16 %v5462, %v5461
        %v5468 = vsel %vm515, %v5434, 0
        %v5471 = vsel %vm515, %v5435, 0
        %v5474 = vsel %vm515, %v5436, 0
        %v5477 = vsel %vm515, %v5437, 0
        %v5480 = vsel %vm515, %v5438, 0
        %v5483 = vsel %vm515, %v5439, 0
        %v5486 = vsel %vm515, %v5440, 0
        %v5489 = vsel %vm515, %v5441, 0
        %v5492 = vsel %vm515, %v5442, 0
        %v5495 = vsel %vm515, %v5443, 0
        %v5498 = vsel %vm515, %v5444, 0
        %v5501 = vsel %vm515, %v5445, 0
        %v5504 = vsel %vm515, %v5446, 0
        %v5507 = vsel %vm515, %v5447, 0
        %v5510 = vsel %vm515, %v5448, 0
        %v5513 = vsel %vm515, %v5449, 0
        %5515 = vmatpush.bf16.msra.mxu0 0
        %5516 = vmatpush.bf16.msra.mxu0 0
        %5517 = vmatpush.bf16.msra.mxu0 0
        %5518 = vmatpush.bf16.msra.mxu0 0
        %5519 = vmatpush.bf16.msra.mxu0 0
        %5520 = vmatpush.bf16.msra.mxu0 0
        %5521 = vmatpush.bf16.msra.mxu0 %v5464
        %5522 = vmatpush.bf16.msra.mxu0 %v5463
        %5523 = vmatmul.bf16.gmra.mxu0 %v5468
        %v5524 = vpop.f32.mrf.mxu0
        %v5525 = vadd.f32 0.0, %v5524
        %v5526 = vpop.f32.mrf.mxu0
        %v5527 = vadd.f32 0.0, %v5526
        %5528 = vmatmul.bf16.gmra.mxu0 %v5471
        %v5529 = vpop.f32.mrf.mxu0
        %v5530 = vadd.f32 0.0, %v5529
        %v5531 = vpop.f32.mrf.mxu0
        %v5532 = vadd.f32 0.0, %v5531
        %5533 = vmatmul.bf16.gmra.mxu0 %v5474
        %v5534 = vpop.f32.mrf.mxu0
        %v5535 = vadd.f32 0.0, %v5534
        %v5536 = vpop.f32.mrf.mxu0
        %v5537 = vadd.f32 0.0, %v5536
        %5538 = vmatmul.bf16.gmra.mxu0 %v5477
        %v5539 = vpop.f32.mrf.mxu0
        %v5540 = vadd.f32 0.0, %v5539
        %v5541 = vpop.f32.mrf.mxu0
        %v5542 = vadd.f32 0.0, %v5541
        %5543 = vmatmul.bf16.gmra.mxu0 %v5480
        %v5544 = vpop.f32.mrf.mxu0
        %v5545 = vadd.f32 0.0, %v5544
        %v5546 = vpop.f32.mrf.mxu0
        %v5547 = vadd.f32 0.0, %v5546
        %5548 = vmatmul.bf16.gmra.mxu0 %v5483
        %v5549 = vpop.f32.mrf.mxu0
        %v5550 = vadd.f32 0.0, %v5549
        %v5551 = vpop.f32.mrf.mxu0
        %v5552 = vadd.f32 0.0, %v5551
        %5553 = vmatmul.bf16.gmra.mxu0 %v5486
        %v5554 = vpop.f32.mrf.mxu0
        %v5555 = vadd.f32 0.0, %v5554
        %v5556 = vpop.f32.mrf.mxu0
        %v5557 = vadd.f32 0.0, %v5556
        %5558 = vmatmul.bf16.gmra.mxu0 %v5489
        %v5559 = vpop.f32.mrf.mxu0
        %v5560 = vadd.f32 0.0, %v5559
        %v5561 = vpop.f32.mrf.mxu0
        %v5562 = vadd.f32 0.0, %v5561
        %5563 = vmatmul.bf16.gmra.mxu0 %v5492
        %v5564 = vpop.f32.mrf.mxu0
        %v5565 = vadd.f32 0.0, %v5564
        %v5566 = vpop.f32.mrf.mxu0
        %v5567 = vadd.f32 0.0, %v5566
        %5568 = vmatmul.bf16.gmra.mxu0 %v5495
        %v5569 = vpop.f32.mrf.mxu0
        %v5570 = vadd.f32 0.0, %v5569
        %v5571 = vpop.f32.mrf.mxu0
        %v5572 = vadd.f32 0.0, %v5571
        %5573 = vmatmul.bf16.gmra.mxu0 %v5498
        %v5574 = vpop.f32.mrf.mxu0
        %v5575 = vadd.f32 0.0, %v5574
        %v5576 = vpop.f32.mrf.mxu0
        %v5577 = vadd.f32 0.0, %v5576
        %5578 = vmatmul.bf16.gmra.mxu0 %v5501
        %v5579 = vpop.f32.mrf.mxu0
        %v5580 = vadd.f32 0.0, %v5579
        %v5581 = vpop.f32.mrf.mxu0
        %v5582 = vadd.f32 0.0, %v5581
        %5583 = vmatmul.bf16.gmra.mxu0 %v5504
        %v5584 = vpop.f32.mrf.mxu0
        %v5585 = vadd.f32 0.0, %v5584
        %v5586 = vpop.f32.mrf.mxu0
        %v5587 = vadd.f32 0.0, %v5586
        %5588 = vmatmul.bf16.gmra.mxu0 %v5507
        %v5589 = vpop.f32.mrf.mxu0
        %v5590 = vadd.f32 0.0, %v5589
        %v5591 = vpop.f32.mrf.mxu0
        %v5592 = vadd.f32 0.0, %v5591
        %5593 = vmatmul.bf16.gmra.mxu0 %v5510
        %v5594 = vpop.f32.mrf.mxu0
        %v5595 = vadd.f32 0.0, %v5594
        %v5596 = vpop.f32.mrf.mxu0
        %v5597 = vadd.f32 0.0, %v5596
        %5598 = vmatmul.bf16.gmra.mxu0 %v5513
        %v5599 = vpop.f32.mrf.mxu0
        %v5600 = vadd.f32 0.0, %v5599
        %v5601 = vpop.f32.mrf.mxu0
        %v5602 = vadd.f32 0.0, %v5601
        %5603 = vdwg.mxu0
        %v5604 = vadd.f32 %v5323, %v5525
        %v5605 = vadd.f32 %v5325, %v5527
        %v5606 = vadd.f32 %v5328, %v5530
        %v5607 = vadd.f32 %v5330, %v5532
        %v5608 = vadd.f32 %v5333, %v5535
        %v5609 = vadd.f32 %v5335, %v5537
        %v5610 = vadd.f32 %v5338, %v5540
        %v5611 = vadd.f32 %v5340, %v5542
        %v5612 = vadd.f32 %v5343, %v5545
        %v5613 = vadd.f32 %v5345, %v5547
        %v5614 = vadd.f32 %v5348, %v5550
        %v5615 = vadd.f32 %v5350, %v5552
        %v5616 = vadd.f32 %v5353, %v5555
        %v5617 = vadd.f32 %v5355, %v5557
        %v5618 = vadd.f32 %v5358, %v5560
        %v5619 = vadd.f32 %v5360, %v5562
        %v5620 = vadd.f32 %v5363, %v5565
        %v5621 = vadd.f32 %v5365, %v5567
        %v5622 = vadd.f32 %v5368, %v5570
        %v5623 = vadd.f32 %v5370, %v5572
        %v5624 = vadd.f32 %v5373, %v5575
        %v5625 = vadd.f32 %v5375, %v5577
        %v5626 = vadd.f32 %v5378, %v5580
        %v5627 = vadd.f32 %v5380, %v5582
        %v5628 = vadd.f32 %v5383, %v5585
        %v5629 = vadd.f32 %v5385, %v5587
        %v5630 = vadd.f32 %v5388, %v5590
        %v5631 = vadd.f32 %v5390, %v5592
        %v5632 = vadd.f32 %v5393, %v5595
        %v5633 = vadd.f32 %v5395, %v5597
        %v5634 = vadd.f32 %v5398, %v5600
        %v5635 = vadd.f32 %v5400, %v5602
        %v5636 = vld [vmem:[%s1924 + $0x7] sm:$0xff]
        %v5637 = vld [vmem:[%s1924 + $0xf] sm:$0xff]
        %v5638 = vld [vmem:[%s1924 + $0x27] sm:$0xff]
        %v5639 = vld [vmem:[%s1924 + $0x2f] sm:$0xff]
        %v5640 = vld [vmem:[%s1924 + $0x47] sm:$0xff]
        %v5641 = vld [vmem:[%s1924 + $0x4f] sm:$0xff]
        %v5642 = vld [vmem:[%s1924 + $0x67] sm:$0xff]
        %v5643 = vld [vmem:[%s1924 + $0x6f] sm:$0xff]
        %v5644 = vld [vmem:[%s1924 + $0x87] sm:$0xff]
        %v5645 = vld [vmem:[%s1924 + $0x8f] sm:$0xff]
        %v5646 = vld [vmem:[%s1924 + $0xa7] sm:$0xff]
        %v5647 = vld [vmem:[%s1924 + $0xaf] sm:$0xff]
        %v5648 = vld [vmem:[%s1924 + $0xc7] sm:$0xff]
        %v5649 = vld [vmem:[%s1924 + $0xcf] sm:$0xff]
        %v5650 = vld [vmem:[%s1924 + $0xe7] sm:$0xff]
        %v5651 = vld [vmem:[%s1924 + $0xef] sm:$0xff]
        %v5652 = vld [vmem:[%s1924 + $0x107] sm:$0xff]
        %v5653 = vld [vmem:[%s1924 + $0x10f] sm:$0xff]
        %v5654 = vld [vmem:[%s1924 + $0x127] sm:$0xff]
        %v5655 = vld [vmem:[%s1924 + $0x12f] sm:$0xff]
        %v5656 = vld [vmem:[%s1924 + $0x147] sm:$0xff]
        %v5657 = vld [vmem:[%s1924 + $0x14f] sm:$0xff]
        %v5658 = vld [vmem:[%s1924 + $0x167] sm:$0xff]
        %v5659 = vld [vmem:[%s1924 + $0x16f] sm:$0xff]
        %v5660 = vld [vmem:[%s1924 + $0x187] sm:$0xff]
        %v5661 = vld [vmem:[%s1924 + $0x18f] sm:$0xff]
        %v5662 = vld [vmem:[%s1924 + $0x1a7] sm:$0xff]
        %v5663 = vld [vmem:[%s1924 + $0x1af] sm:$0xff]
        %v5664 = vld [vmem:[%s1924 + $0x1c7] sm:$0xff]
        %v5665 = vld [vmem:[%s1924 + $0x1cf] sm:$0xff]
        %v5666 = vld [vmem:[%s1924 + $0x1e7] sm:$0xff]
        %v5667 = vld [vmem:[%s1924 + $0x1ef] sm:$0xff]
        %v5668 = vpack.c.bf16 %v5637, %v5636
        %v5669 = vpack.c.bf16 %v5639, %v5638
        %v5670 = vpack.c.bf16 %v5641, %v5640
        %v5671 = vpack.c.bf16 %v5643, %v5642
        %v5672 = vpack.c.bf16 %v5645, %v5644
        %v5673 = vpack.c.bf16 %v5647, %v5646
        %v5674 = vpack.c.bf16 %v5649, %v5648
        %v5675 = vpack.c.bf16 %v5651, %v5650
        %v5676 = vpack.c.bf16 %v5653, %v5652
        %v5677 = vpack.c.bf16 %v5655, %v5654
        %v5678 = vpack.c.bf16 %v5657, %v5656
        %v5679 = vpack.c.bf16 %v5659, %v5658
        %v5680 = vpack.c.bf16 %v5661, %v5660
        %v5681 = vpack.c.bf16 %v5663, %v5662
        %v5682 = vpack.c.bf16 %v5665, %v5664
        %v5683 = vpack.c.bf16 %v5667, %v5666
        %s5684 = scalar_lea.vmem %s3, 192
        %v5685 = vld [vmem:[%s5684] sm:$0xf]
        %v5686 = vld [vmem:[%s5684 + $0x4] sm:$0xf]
        %v5687 = vld [vmem:[%s5684 + $0x8] sm:$0xf]
        %v5688 = vld [vmem:[%s5684 + $0xc] sm:$0xf]
        %v5693 = vunpack.c.l.b16 %v5685
        %v5694 = vunpack.c.l.b16 %v5686
        %v5695 = vunpack.c.l.b16 %v5687
        %v5696 = vunpack.c.l.b16 %v5688
        %v5697 = vpack.c.b16 %v5694, %v5693
        %v5698 = vpack.c.b16 %v5696, %v5695
        %v5702 = vsel %vm515, %v5668, 0
        %v5705 = vsel %vm515, %v5669, 0
        %v5708 = vsel %vm515, %v5670, 0
        %v5711 = vsel %vm515, %v5671, 0
        %v5714 = vsel %vm515, %v5672, 0
        %v5717 = vsel %vm515, %v5673, 0
        %v5720 = vsel %vm515, %v5674, 0
        %v5723 = vsel %vm515, %v5675, 0
        %v5726 = vsel %vm515, %v5676, 0
        %v5729 = vsel %vm515, %v5677, 0
        %v5732 = vsel %vm515, %v5678, 0
        %v5735 = vsel %vm515, %v5679, 0
        %v5738 = vsel %vm515, %v5680, 0
        %v5741 = vsel %vm515, %v5681, 0
        %v5744 = vsel %vm515, %v5682, 0
        %v5747 = vsel %vm515, %v5683, 0
        %5749 = vmatpush.bf16.msra.mxu0 0
        %5750 = vmatpush.bf16.msra.mxu0 0
        %5751 = vmatpush.bf16.msra.mxu0 0
        %5752 = vmatpush.bf16.msra.mxu0 0
        %5753 = vmatpush.bf16.msra.mxu0 0
        %5754 = vmatpush.bf16.msra.mxu0 0
        %5755 = vmatpush.bf16.msra.mxu0 %v5698
        %5756 = vmatpush.bf16.msra.mxu0 %v5697
        %5757 = vmatmul.bf16.gmra.mxu0 %v5702
        %v5758 = vpop.f32.mrf.mxu0
        %v5759 = vadd.f32 0.0, %v5758
        %v5760 = vpop.f32.mrf.mxu0
        %v5761 = vadd.f32 0.0, %v5760
        %5762 = vmatmul.bf16.gmra.mxu0 %v5705
        %v5763 = vpop.f32.mrf.mxu0
        %v5764 = vadd.f32 0.0, %v5763
        %v5765 = vpop.f32.mrf.mxu0
        %v5766 = vadd.f32 0.0, %v5765
        %5767 = vmatmul.bf16.gmra.mxu0 %v5708
        %v5768 = vpop.f32.mrf.mxu0
        %v5769 = vadd.f32 0.0, %v5768
        %v5770 = vpop.f32.mrf.mxu0
        %v5771 = vadd.f32 0.0, %v5770
        %5772 = vmatmul.bf16.gmra.mxu0 %v5711
        %v5773 = vpop.f32.mrf.mxu0
        %v5774 = vadd.f32 0.0, %v5773
        %v5775 = vpop.f32.mrf.mxu0
        %v5776 = vadd.f32 0.0, %v5775
        %5777 = vmatmul.bf16.gmra.mxu0 %v5714
        %v5778 = vpop.f32.mrf.mxu0
        %v5779 = vadd.f32 0.0, %v5778
        %v5780 = vpop.f32.mrf.mxu0
        %v5781 = vadd.f32 0.0, %v5780
        %5782 = vmatmul.bf16.gmra.mxu0 %v5717
        %v5783 = vpop.f32.mrf.mxu0
        %v5784 = vadd.f32 0.0, %v5783
        %v5785 = vpop.f32.mrf.mxu0
        %v5786 = vadd.f32 0.0, %v5785
        %5787 = vmatmul.bf16.gmra.mxu0 %v5720
        %v5788 = vpop.f32.mrf.mxu0
        %v5789 = vadd.f32 0.0, %v5788
        %v5790 = vpop.f32.mrf.mxu0
        %v5791 = vadd.f32 0.0, %v5790
        %5792 = vmatmul.bf16.gmra.mxu0 %v5723
        %v5793 = vpop.f32.mrf.mxu0
        %v5794 = vadd.f32 0.0, %v5793
        %v5795 = vpop.f32.mrf.mxu0
        %v5796 = vadd.f32 0.0, %v5795
        %5797 = vmatmul.bf16.gmra.mxu0 %v5726
        %v5798 = vpop.f32.mrf.mxu0
        %v5799 = vadd.f32 0.0, %v5798
        %v5800 = vpop.f32.mrf.mxu0
        %v5801 = vadd.f32 0.0, %v5800
        %5802 = vmatmul.bf16.gmra.mxu0 %v5729
        %v5803 = vpop.f32.mrf.mxu0
        %v5804 = vadd.f32 0.0, %v5803
        %v5805 = vpop.f32.mrf.mxu0
        %v5806 = vadd.f32 0.0, %v5805
        %5807 = vmatmul.bf16.gmra.mxu0 %v5732
        %v5808 = vpop.f32.mrf.mxu0
        %v5809 = vadd.f32 0.0, %v5808
        %v5810 = vpop.f32.mrf.mxu0
        %v5811 = vadd.f32 0.0, %v5810
        %5812 = vmatmul.bf16.gmra.mxu0 %v5735
        %v5813 = vpop.f32.mrf.mxu0
        %v5814 = vadd.f32 0.0, %v5813
        %v5815 = vpop.f32.mrf.mxu0
        %v5816 = vadd.f32 0.0, %v5815
        %5817 = vmatmul.bf16.gmra.mxu0 %v5738
        %v5818 = vpop.f32.mrf.mxu0
        %v5819 = vadd.f32 0.0, %v5818
        %v5820 = vpop.f32.mrf.mxu0
        %v5821 = vadd.f32 0.0, %v5820
        %5822 = vmatmul.bf16.gmra.mxu0 %v5741
        %v5823 = vpop.f32.mrf.mxu0
        %v5824 = vadd.f32 0.0, %v5823
        %v5825 = vpop.f32.mrf.mxu0
        %v5826 = vadd.f32 0.0, %v5825
        %5827 = vmatmul.bf16.gmra.mxu0 %v5744
        %v5828 = vpop.f32.mrf.mxu0
        %v5829 = vadd.f32 0.0, %v5828
        %v5830 = vpop.f32.mrf.mxu0
        %v5831 = vadd.f32 0.0, %v5830
        %5832 = vmatmul.bf16.gmra.mxu0 %v5747
        %v5833 = vpop.f32.mrf.mxu0
        %v5834 = vadd.f32 0.0, %v5833
        %v5835 = vpop.f32.mrf.mxu0
        %v5836 = vadd.f32 0.0, %v5835
        %5837 = vdwg.mxu0
        %v5838 = vadd.f32 %v5604, %v5759
        %v5839 = vadd.f32 %v5605, %v5761
        %v5840 = vadd.f32 %v5606, %v5764
        %v5841 = vadd.f32 %v5607, %v5766
        %v5842 = vadd.f32 %v5608, %v5769
        %v5843 = vadd.f32 %v5609, %v5771
        %v5844 = vadd.f32 %v5610, %v5774
        %v5845 = vadd.f32 %v5611, %v5776
        %v5846 = vadd.f32 %v5612, %v5779
        %v5847 = vadd.f32 %v5613, %v5781
        %v5848 = vadd.f32 %v5614, %v5784
        %v5849 = vadd.f32 %v5615, %v5786
        %v5850 = vadd.f32 %v5616, %v5789
        %v5851 = vadd.f32 %v5617, %v5791
        %v5852 = vadd.f32 %v5618, %v5794
        %v5853 = vadd.f32 %v5619, %v5796
        %v5854 = vadd.f32 %v5620, %v5799
        %v5855 = vadd.f32 %v5621, %v5801
        %v5856 = vadd.f32 %v5622, %v5804
        %v5857 = vadd.f32 %v5623, %v5806
        %v5858 = vadd.f32 %v5624, %v5809
        %v5859 = vadd.f32 %v5625, %v5811
        %v5860 = vadd.f32 %v5626, %v5814
        %v5861 = vadd.f32 %v5627, %v5816
        %v5862 = vadd.f32 %v5628, %v5819
        %v5863 = vadd.f32 %v5629, %v5821
        %v5864 = vadd.f32 %v5630, %v5824
        %v5865 = vadd.f32 %v5631, %v5826
        %v5866 = vadd.f32 %v5632, %v5829
        %v5867 = vadd.f32 %v5633, %v5831
        %v5868 = vadd.f32 %v5634, %v5834
        %v5869 = vadd.f32 %v5635, %v5836
        %v5870 = vld [vmem:[%s1924 + $0x8] sm:$0xff]
        %v5871 = vld [vmem:[%s1924 + $0x10] sm:$0xff]
        %v5872 = vld [vmem:[%s1924 + $0x28] sm:$0xff]
        %v5873 = vld [vmem:[%s1924 + $0x30] sm:$0xff]
        %v5874 = vld [vmem:[%s1924 + $0x48] sm:$0xff]
        %v5875 = vld [vmem:[%s1924 + $0x50] sm:$0xff]
        %v5876 = vld [vmem:[%s1924 + $0x68] sm:$0xff]
        %v5877 = vld [vmem:[%s1924 + $0x70] sm:$0xff]
        %v5878 = vld [vmem:[%s1924 + $0x88] sm:$0xff]
        %v5879 = vld [vmem:[%s1924 + $0x90] sm:$0xff]
        %v5880 = vld [vmem:[%s1924 + $0xa8] sm:$0xff]
        %v5881 = vld [vmem:[%s1924 + $0xb0] sm:$0xff]
        %v5882 = vld [vmem:[%s1924 + $0xc8] sm:$0xff]
        %v5883 = vld [vmem:[%s1924 + $0xd0] sm:$0xff]
        %v5884 = vld [vmem:[%s1924 + $0xe8] sm:$0xff]
        %v5885 = vld [vmem:[%s1924 + $0xf0] sm:$0xff]
        %v5886 = vld [vmem:[%s1924 + $0x108] sm:$0xff]
        %v5887 = vld [vmem:[%s1924 + $0x110] sm:$0xff]
        %v5888 = vld [vmem:[%s1924 + $0x128] sm:$0xff]
        %v5889 = vld [vmem:[%s1924 + $0x130] sm:$0xff]
        %v5890 = vld [vmem:[%s1924 + $0x148] sm:$0xff]
        %v5891 = vld [vmem:[%s1924 + $0x150] sm:$0xff]
        %v5892 = vld [vmem:[%s1924 + $0x168] sm:$0xff]
        %v5893 = vld [vmem:[%s1924 + $0x170] sm:$0xff]
        %v5894 = vld [vmem:[%s1924 + $0x188] sm:$0xff]
        %v5895 = vld [vmem:[%s1924 + $0x190] sm:$0xff]
        %v5896 = vld [vmem:[%s1924 + $0x1a8] sm:$0xff]
        %v5897 = vld [vmem:[%s1924 + $0x1b0] sm:$0xff]
        %v5898 = vld [vmem:[%s1924 + $0x1c8] sm:$0xff]
        %v5899 = vld [vmem:[%s1924 + $0x1d0] sm:$0xff]
        %v5900 = vld [vmem:[%s1924 + $0x1e8] sm:$0xff]
        %v5901 = vld [vmem:[%s1924 + $0x1f0] sm:$0xff]
        %v5902 = vpack.c.bf16 %v5871, %v5870
        %v5903 = vpack.c.bf16 %v5873, %v5872
        %v5904 = vpack.c.bf16 %v5875, %v5874
        %v5905 = vpack.c.bf16 %v5877, %v5876
        %v5906 = vpack.c.bf16 %v5879, %v5878
        %v5907 = vpack.c.bf16 %v5881, %v5880
        %v5908 = vpack.c.bf16 %v5883, %v5882
        %v5909 = vpack.c.bf16 %v5885, %v5884
        %v5910 = vpack.c.bf16 %v5887, %v5886
        %v5911 = vpack.c.bf16 %v5889, %v5888
        %v5912 = vpack.c.bf16 %v5891, %v5890
        %v5913 = vpack.c.bf16 %v5893, %v5892
        %v5914 = vpack.c.bf16 %v5895, %v5894
        %v5915 = vpack.c.bf16 %v5897, %v5896
        %v5916 = vpack.c.bf16 %v5899, %v5898
        %v5917 = vpack.c.bf16 %v5901, %v5900
        %s5918 = scalar_lea.vmem %s3, 208
        %v5919 = vld [vmem:[%s5918] sm:$0xf]
        %v5920 = vld [vmem:[%s5918 + $0x4] sm:$0xf]
        %v5921 = vld [vmem:[%s5918 + $0x8] sm:$0xf]
        %v5922 = vld [vmem:[%s5918 + $0xc] sm:$0xf]
        %v5927 = vunpack.c.l.b16 %v5919
        %v5928 = vunpack.c.l.b16 %v5920
        %v5929 = vunpack.c.l.b16 %v5921
        %v5930 = vunpack.c.l.b16 %v5922
        %v5931 = vpack.c.b16 %v5928, %v5927
        %v5932 = vpack.c.b16 %v5930, %v5929
        %v5936 = vsel %vm515, %v5902, 0
        %v5939 = vsel %vm515, %v5903, 0
        %v5942 = vsel %vm515, %v5904, 0
        %v5945 = vsel %vm515, %v5905, 0
        %v5948 = vsel %vm515, %v5906, 0
        %v5951 = vsel %vm515, %v5907, 0
        %v5954 = vsel %vm515, %v5908, 0
        %v5957 = vsel %vm515, %v5909, 0
        %v5960 = vsel %vm515, %v5910, 0
        %v5963 = vsel %vm515, %v5911, 0
        %v5966 = vsel %vm515, %v5912, 0
        %v5969 = vsel %vm515, %v5913, 0
        %v5972 = vsel %vm515, %v5914, 0
        %v5975 = vsel %vm515, %v5915, 0
        %v5978 = vsel %vm515, %v5916, 0
        %v5981 = vsel %vm515, %v5917, 0
        %5983 = vmatpush.bf16.msra.mxu0 0
        %5984 = vmatpush.bf16.msra.mxu0 0
        %5985 = vmatpush.bf16.msra.mxu0 0
        %5986 = vmatpush.bf16.msra.mxu0 0
        %5987 = vmatpush.bf16.msra.mxu0 0
        %5988 = vmatpush.bf16.msra.mxu0 0
        %5989 = vmatpush.bf16.msra.mxu0 %v5932
        %5990 = vmatpush.bf16.msra.mxu0 %v5931
        %5991 = vmatmul.bf16.gmra.mxu0 %v5936
        %v5992 = vpop.f32.mrf.mxu0
        %v5993 = vadd.f32 0.0, %v5992
        %v5994 = vpop.f32.mrf.mxu0
        %v5995 = vadd.f32 0.0, %v5994
        %5996 = vmatmul.bf16.gmra.mxu0 %v5939
        %v5997 = vpop.f32.mrf.mxu0
        %v5998 = vadd.f32 0.0, %v5997
        %v5999 = vpop.f32.mrf.mxu0
        %v6000 = vadd.f32 0.0, %v5999
        %6001 = vmatmul.bf16.gmra.mxu0 %v5942
        %v6002 = vpop.f32.mrf.mxu0
        %v6003 = vadd.f32 0.0, %v6002
        %v6004 = vpop.f32.mrf.mxu0
        %v6005 = vadd.f32 0.0, %v6004
        %6006 = vmatmul.bf16.gmra.mxu0 %v5945
        %v6007 = vpop.f32.mrf.mxu0
        %v6008 = vadd.f32 0.0, %v6007
        %v6009 = vpop.f32.mrf.mxu0
        %v6010 = vadd.f32 0.0, %v6009
        %6011 = vmatmul.bf16.gmra.mxu0 %v5948
        %v6012 = vpop.f32.mrf.mxu0
        %v6013 = vadd.f32 0.0, %v6012
        %v6014 = vpop.f32.mrf.mxu0
        %v6015 = vadd.f32 0.0, %v6014
        %6016 = vmatmul.bf16.gmra.mxu0 %v5951
        %v6017 = vpop.f32.mrf.mxu0
        %v6018 = vadd.f32 0.0, %v6017
        %v6019 = vpop.f32.mrf.mxu0
        %v6020 = vadd.f32 0.0, %v6019
        %6021 = vmatmul.bf16.gmra.mxu0 %v5954
        %v6022 = vpop.f32.mrf.mxu0
        %v6023 = vadd.f32 0.0, %v6022
        %v6024 = vpop.f32.mrf.mxu0
        %v6025 = vadd.f32 0.0, %v6024
        %6026 = vmatmul.bf16.gmra.mxu0 %v5957
        %v6027 = vpop.f32.mrf.mxu0
        %v6028 = vadd.f32 0.0, %v6027
        %v6029 = vpop.f32.mrf.mxu0
        %v6030 = vadd.f32 0.0, %v6029
        %6031 = vmatmul.bf16.gmra.mxu0 %v5960
        %v6032 = vpop.f32.mrf.mxu0
        %v6033 = vadd.f32 0.0, %v6032
        %v6034 = vpop.f32.mrf.mxu0
        %v6035 = vadd.f32 0.0, %v6034
        %6036 = vmatmul.bf16.gmra.mxu0 %v5963
        %v6037 = vpop.f32.mrf.mxu0
        %v6038 = vadd.f32 0.0, %v6037
        %v6039 = vpop.f32.mrf.mxu0
        %v6040 = vadd.f32 0.0, %v6039
        %6041 = vmatmul.bf16.gmra.mxu0 %v5966
        %v6042 = vpop.f32.mrf.mxu0
        %v6043 = vadd.f32 0.0, %v6042
        %v6044 = vpop.f32.mrf.mxu0
        %v6045 = vadd.f32 0.0, %v6044
        %6046 = vmatmul.bf16.gmra.mxu0 %v5969
        %v6047 = vpop.f32.mrf.mxu0
        %v6048 = vadd.f32 0.0, %v6047
        %v6049 = vpop.f32.mrf.mxu0
        %v6050 = vadd.f32 0.0, %v6049
        %6051 = vmatmul.bf16.gmra.mxu0 %v5972
        %v6052 = vpop.f32.mrf.mxu0
        %v6053 = vadd.f32 0.0, %v6052
        %v6054 = vpop.f32.mrf.mxu0
        %v6055 = vadd.f32 0.0, %v6054
        %6056 = vmatmul.bf16.gmra.mxu0 %v5975
        %v6057 = vpop.f32.mrf.mxu0
        %v6058 = vadd.f32 0.0, %v6057
        %v6059 = vpop.f32.mrf.mxu0
        %v6060 = vadd.f32 0.0, %v6059
        %6061 = vmatmul.bf16.gmra.mxu0 %v5978
        %v6062 = vpop.f32.mrf.mxu0
        %v6063 = vadd.f32 0.0, %v6062
        %v6064 = vpop.f32.mrf.mxu0
        %v6065 = vadd.f32 0.0, %v6064
        %6066 = vmatmul.bf16.gmra.mxu0 %v5981
        %v6067 = vpop.f32.mrf.mxu0
        %v6068 = vadd.f32 0.0, %v6067
        %v6069 = vpop.f32.mrf.mxu0
        %v6070 = vadd.f32 0.0, %v6069
        %6071 = vdwg.mxu0
        %v6072 = vadd.f32 %v5838, %v5993
        %v6073 = vadd.f32 %v5839, %v5995
        %v6074 = vadd.f32 %v5840, %v5998
        %v6075 = vadd.f32 %v5841, %v6000
        %v6076 = vadd.f32 %v5842, %v6003
        %v6077 = vadd.f32 %v5843, %v6005
        %v6078 = vadd.f32 %v5844, %v6008
        %v6079 = vadd.f32 %v5845, %v6010
        %v6080 = vadd.f32 %v5846, %v6013
        %v6081 = vadd.f32 %v5847, %v6015
        %v6082 = vadd.f32 %v5848, %v6018
        %v6083 = vadd.f32 %v5849, %v6020
        %v6084 = vadd.f32 %v5850, %v6023
        %v6085 = vadd.f32 %v5851, %v6025
        %v6086 = vadd.f32 %v5852, %v6028
        %v6087 = vadd.f32 %v5853, %v6030
        %v6088 = vadd.f32 %v5854, %v6033
        %v6089 = vadd.f32 %v5855, %v6035
        %v6090 = vadd.f32 %v5856, %v6038
        %v6091 = vadd.f32 %v5857, %v6040
        %v6092 = vadd.f32 %v5858, %v6043
        %v6093 = vadd.f32 %v5859, %v6045
        %v6094 = vadd.f32 %v5860, %v6048
        %v6095 = vadd.f32 %v5861, %v6050
        %v6096 = vadd.f32 %v5862, %v6053
        %v6097 = vadd.f32 %v5863, %v6055
        %v6098 = vadd.f32 %v5864, %v6058
        %v6099 = vadd.f32 %v5865, %v6060
        %v6100 = vadd.f32 %v5866, %v6063
        %v6101 = vadd.f32 %v5867, %v6065
        %v6102 = vadd.f32 %v5868, %v6068
        %v6103 = vadd.f32 %v5869, %v6070
        %v6104 = vld [vmem:[%s1924 + $0x9] sm:$0xff]
        %v6105 = vld [vmem:[%s1924 + $0x11] sm:$0xff]
        %v6106 = vld [vmem:[%s1924 + $0x29] sm:$0xff]
        %v6107 = vld [vmem:[%s1924 + $0x31] sm:$0xff]
        %v6108 = vld [vmem:[%s1924 + $0x49] sm:$0xff]
        %v6109 = vld [vmem:[%s1924 + $0x51] sm:$0xff]
        %v6110 = vld [vmem:[%s1924 + $0x69] sm:$0xff]
        %v6111 = vld [vmem:[%s1924 + $0x71] sm:$0xff]
        %v6112 = vld [vmem:[%s1924 + $0x89] sm:$0xff]
        %v6113 = vld [vmem:[%s1924 + $0x91] sm:$0xff]
        %v6114 = vld [vmem:[%s1924 + $0xa9] sm:$0xff]
        %v6115 = vld [vmem:[%s1924 + $0xb1] sm:$0xff]
        %v6116 = vld [vmem:[%s1924 + $0xc9] sm:$0xff]
        %v6117 = vld [vmem:[%s1924 + $0xd1] sm:$0xff]
        %v6118 = vld [vmem:[%s1924 + $0xe9] sm:$0xff]
        %v6119 = vld [vmem:[%s1924 + $0xf1] sm:$0xff]
        %v6120 = vld [vmem:[%s1924 + $0x109] sm:$0xff]
        %v6121 = vld [vmem:[%s1924 + $0x111] sm:$0xff]
        %v6122 = vld [vmem:[%s1924 + $0x129] sm:$0xff]
        %v6123 = vld [vmem:[%s1924 + $0x131] sm:$0xff]
        %v6124 = vld [vmem:[%s1924 + $0x149] sm:$0xff]
        %v6125 = vld [vmem:[%s1924 + $0x151] sm:$0xff]
        %v6126 = vld [vmem:[%s1924 + $0x169] sm:$0xff]
        %v6127 = vld [vmem:[%s1924 + $0x171] sm:$0xff]
        %v6128 = vld [vmem:[%s1924 + $0x189] sm:$0xff]
        %v6129 = vld [vmem:[%s1924 + $0x191] sm:$0xff]
        %v6130 = vld [vmem:[%s1924 + $0x1a9] sm:$0xff]
        %v6131 = vld [vmem:[%s1924 + $0x1b1] sm:$0xff]
        %v6132 = vld [vmem:[%s1924 + $0x1c9] sm:$0xff]
        %v6133 = vld [vmem:[%s1924 + $0x1d1] sm:$0xff]
        %v6134 = vld [vmem:[%s1924 + $0x1e9] sm:$0xff]
        %v6135 = vld [vmem:[%s1924 + $0x1f1] sm:$0xff]
        %v6136 = vpack.c.bf16 %v6105, %v6104
        %v6137 = vpack.c.bf16 %v6107, %v6106
        %v6138 = vpack.c.bf16 %v6109, %v6108
        %v6139 = vpack.c.bf16 %v6111, %v6110
        %v6140 = vpack.c.bf16 %v6113, %v6112
        %v6141 = vpack.c.bf16 %v6115, %v6114
        %v6142 = vpack.c.bf16 %v6117, %v6116
        %v6143 = vpack.c.bf16 %v6119, %v6118
        %v6144 = vpack.c.bf16 %v6121, %v6120
        %v6145 = vpack.c.bf16 %v6123, %v6122
        %v6146 = vpack.c.bf16 %v6125, %v6124
        %v6147 = vpack.c.bf16 %v6127, %v6126
        %v6148 = vpack.c.bf16 %v6129, %v6128
        %v6149 = vpack.c.bf16 %v6131, %v6130
        %v6150 = vpack.c.bf16 %v6133, %v6132
        %v6151 = vpack.c.bf16 %v6135, %v6134
        %s6152 = scalar_lea.vmem %s3, 224
        %v6153 = vld [vmem:[%s6152] sm:$0xf]
        %v6154 = vld [vmem:[%s6152 + $0x4] sm:$0xf]
        %v6155 = vld [vmem:[%s6152 + $0x8] sm:$0xf]
        %v6156 = vld [vmem:[%s6152 + $0xc] sm:$0xf]
        %v6161 = vunpack.c.l.b16 %v6153
        %v6162 = vunpack.c.l.b16 %v6154
        %v6163 = vunpack.c.l.b16 %v6155
        %v6164 = vunpack.c.l.b16 %v6156
        %v6165 = vpack.c.b16 %v6162, %v6161
        %v6166 = vpack.c.b16 %v6164, %v6163
        %v6170 = vsel %vm515, %v6136, 0
        %v6173 = vsel %vm515, %v6137, 0
        %v6176 = vsel %vm515, %v6138, 0
        %v6179 = vsel %vm515, %v6139, 0
        %v6182 = vsel %vm515, %v6140, 0
        %v6185 = vsel %vm515, %v6141, 0
        %v6188 = vsel %vm515, %v6142, 0
        %v6191 = vsel %vm515, %v6143, 0
        %v6194 = vsel %vm515, %v6144, 0
        %v6197 = vsel %vm515, %v6145, 0
        %v6200 = vsel %vm515, %v6146, 0
        %v6203 = vsel %vm515, %v6147, 0
        %v6206 = vsel %vm515, %v6148, 0
        %v6209 = vsel %vm515, %v6149, 0
        %v6212 = vsel %vm515, %v6150, 0
        %v6215 = vsel %vm515, %v6151, 0
        %6217 = vmatpush.bf16.msra.mxu0 0
        %6218 = vmatpush.bf16.msra.mxu0 0
        %6219 = vmatpush.bf16.msra.mxu0 0
        %6220 = vmatpush.bf16.msra.mxu0 0
        %6221 = vmatpush.bf16.msra.mxu0 0
        %6222 = vmatpush.bf16.msra.mxu0 0
        %6223 = vmatpush.bf16.msra.mxu0 %v6166
        %6224 = vmatpush.bf16.msra.mxu0 %v6165
        %6225 = vmatmul.bf16.gmra.mxu0 %v6170
        %v6226 = vpop.f32.mrf.mxu0
        %v6227 = vadd.f32 0.0, %v6226
        %v6228 = vpop.f32.mrf.mxu0
        %v6229 = vadd.f32 0.0, %v6228
        %6230 = vmatmul.bf16.gmra.mxu0 %v6173
        %v6231 = vpop.f32.mrf.mxu0
        %v6232 = vadd.f32 0.0, %v6231
        %v6233 = vpop.f32.mrf.mxu0
        %v6234 = vadd.f32 0.0, %v6233
        %6235 = vmatmul.bf16.gmra.mxu0 %v6176
        %v6236 = vpop.f32.mrf.mxu0
        %v6237 = vadd.f32 0.0, %v6236
        %v6238 = vpop.f32.mrf.mxu0
        %v6239 = vadd.f32 0.0, %v6238
        %6240 = vmatmul.bf16.gmra.mxu0 %v6179
        %v6241 = vpop.f32.mrf.mxu0
        %v6242 = vadd.f32 0.0, %v6241
        %v6243 = vpop.f32.mrf.mxu0
        %v6244 = vadd.f32 0.0, %v6243
        %6245 = vmatmul.bf16.gmra.mxu0 %v6182
        %v6246 = vpop.f32.mrf.mxu0
        %v6247 = vadd.f32 0.0, %v6246
        %v6248 = vpop.f32.mrf.mxu0
        %v6249 = vadd.f32 0.0, %v6248
        %6250 = vmatmul.bf16.gmra.mxu0 %v6185
        %v6251 = vpop.f32.mrf.mxu0
        %v6252 = vadd.f32 0.0, %v6251
        %v6253 = vpop.f32.mrf.mxu0
        %v6254 = vadd.f32 0.0, %v6253
        %6255 = vmatmul.bf16.gmra.mxu0 %v6188
        %v6256 = vpop.f32.mrf.mxu0
        %v6257 = vadd.f32 0.0, %v6256
        %v6258 = vpop.f32.mrf.mxu0
        %v6259 = vadd.f32 0.0, %v6258
        %6260 = vmatmul.bf16.gmra.mxu0 %v6191
        %v6261 = vpop.f32.mrf.mxu0
        %v6262 = vadd.f32 0.0, %v6261
        %v6263 = vpop.f32.mrf.mxu0
        %v6264 = vadd.f32 0.0, %v6263
        %6265 = vmatmul.bf16.gmra.mxu0 %v6194
        %v6266 = vpop.f32.mrf.mxu0
        %v6267 = vadd.f32 0.0, %v6266
        %v6268 = vpop.f32.mrf.mxu0
        %v6269 = vadd.f32 0.0, %v6268
        %6270 = vmatmul.bf16.gmra.mxu0 %v6197
        %v6271 = vpop.f32.mrf.mxu0
        %v6272 = vadd.f32 0.0, %v6271
        %v6273 = vpop.f32.mrf.mxu0
        %v6274 = vadd.f32 0.0, %v6273
        %6275 = vmatmul.bf16.gmra.mxu0 %v6200
        %v6276 = vpop.f32.mrf.mxu0
        %v6277 = vadd.f32 0.0, %v6276
        %v6278 = vpop.f32.mrf.mxu0
        %v6279 = vadd.f32 0.0, %v6278
        %6280 = vmatmul.bf16.gmra.mxu0 %v6203
        %v6281 = vpop.f32.mrf.mxu0
        %v6282 = vadd.f32 0.0, %v6281
        %v6283 = vpop.f32.mrf.mxu0
        %v6284 = vadd.f32 0.0, %v6283
        %6285 = vmatmul.bf16.gmra.mxu0 %v6206
        %v6286 = vpop.f32.mrf.mxu0
        %v6287 = vadd.f32 0.0, %v6286
        %v6288 = vpop.f32.mrf.mxu0
        %v6289 = vadd.f32 0.0, %v6288
        %6290 = vmatmul.bf16.gmra.mxu0 %v6209
        %v6291 = vpop.f32.mrf.mxu0
        %v6292 = vadd.f32 0.0, %v6291
        %v6293 = vpop.f32.mrf.mxu0
        %v6294 = vadd.f32 0.0, %v6293
        %6295 = vmatmul.bf16.gmra.mxu0 %v6212
        %v6296 = vpop.f32.mrf.mxu0
        %v6297 = vadd.f32 0.0, %v6296
        %v6298 = vpop.f32.mrf.mxu0
        %v6299 = vadd.f32 0.0, %v6298
        %6300 = vmatmul.bf16.gmra.mxu0 %v6215
        %v6301 = vpop.f32.mrf.mxu0
        %v6302 = vadd.f32 0.0, %v6301
        %v6303 = vpop.f32.mrf.mxu0
        %v6304 = vadd.f32 0.0, %v6303
        %6305 = vdwg.mxu0
        %v6306 = vadd.f32 %v6072, %v6227
        %v6307 = vadd.f32 %v6073, %v6229
        %v6308 = vadd.f32 %v6074, %v6232
        %v6309 = vadd.f32 %v6075, %v6234
        %v6310 = vadd.f32 %v6076, %v6237
        %v6311 = vadd.f32 %v6077, %v6239
        %v6312 = vadd.f32 %v6078, %v6242
        %v6313 = vadd.f32 %v6079, %v6244
        %v6314 = vadd.f32 %v6080, %v6247
        %v6315 = vadd.f32 %v6081, %v6249
        %v6316 = vadd.f32 %v6082, %v6252
        %v6317 = vadd.f32 %v6083, %v6254
        %v6318 = vadd.f32 %v6084, %v6257
        %v6319 = vadd.f32 %v6085, %v6259
        %v6320 = vadd.f32 %v6086, %v6262
        %v6321 = vadd.f32 %v6087, %v6264
        %v6322 = vadd.f32 %v6088, %v6267
        %v6323 = vadd.f32 %v6089, %v6269
        %v6324 = vadd.f32 %v6090, %v6272
        %v6325 = vadd.f32 %v6091, %v6274
        %v6326 = vadd.f32 %v6092, %v6277
        %v6327 = vadd.f32 %v6093, %v6279
        %v6328 = vadd.f32 %v6094, %v6282
        %v6329 = vadd.f32 %v6095, %v6284
        %v6330 = vadd.f32 %v6096, %v6287
        %v6331 = vadd.f32 %v6097, %v6289
        %v6332 = vadd.f32 %v6098, %v6292
        %v6333 = vadd.f32 %v6099, %v6294
        %v6334 = vadd.f32 %v6100, %v6297
        %v6335 = vadd.f32 %v6101, %v6299
        %v6336 = vadd.f32 %v6102, %v6302
        %v6337 = vadd.f32 %v6103, %v6304
        %v6338 = vld [vmem:[%s3296 + $0x7] sm:$0xff]
        %v6339 = vld [vmem:[%s3296 + $0xf] sm:$0xff]
        %v6340 = vld [vmem:[%s3296 + $0x27] sm:$0xff]
        %v6341 = vld [vmem:[%s3296 + $0x2f] sm:$0xff]
        %v6342 = vld [vmem:[%s3296 + $0x47] sm:$0xff]
        %v6343 = vld [vmem:[%s3296 + $0x4f] sm:$0xff]
        %v6344 = vld [vmem:[%s3296 + $0x67] sm:$0xff]
        %v6345 = vld [vmem:[%s3296 + $0x6f] sm:$0xff]
        %v6346 = vld [vmem:[%s3296 + $0x87] sm:$0xff]
        %v6347 = vld [vmem:[%s3296 + $0x8f] sm:$0xff]
        %v6348 = vld [vmem:[%s3296 + $0xa7] sm:$0xff]
        %v6349 = vld [vmem:[%s3296 + $0xaf] sm:$0xff]
        %v6350 = vld [vmem:[%s3296 + $0xc7] sm:$0xff]
        %v6351 = vld [vmem:[%s3296 + $0xcf] sm:$0xff]
        %v6352 = vld [vmem:[%s3296 + $0xe7] sm:$0xff]
        %v6353 = vld [vmem:[%s3296 + $0xef] sm:$0xff]
        %v6354 = vld [vmem:[%s3296 + $0x107] sm:$0xff]
        %v6355 = vld [vmem:[%s3296 + $0x10f] sm:$0xff]
        %v6356 = vld [vmem:[%s3296 + $0x127] sm:$0xff]
        %v6357 = vld [vmem:[%s3296 + $0x12f] sm:$0xff]
        %v6358 = vld [vmem:[%s3296 + $0x147] sm:$0xff]
        %v6359 = vld [vmem:[%s3296 + $0x14f] sm:$0xff]
        %v6360 = vld [vmem:[%s3296 + $0x167] sm:$0xff]
        %v6361 = vld [vmem:[%s3296 + $0x16f] sm:$0xff]
        %v6362 = vld [vmem:[%s3296 + $0x187] sm:$0xff]
        %v6363 = vld [vmem:[%s3296 + $0x18f] sm:$0xff]
        %v6364 = vld [vmem:[%s3296 + $0x1a7] sm:$0xff]
        %v6365 = vld [vmem:[%s3296 + $0x1af] sm:$0xff]
        %v6366 = vld [vmem:[%s3296 + $0x1c7] sm:$0xff]
        %v6367 = vld [vmem:[%s3296 + $0x1cf] sm:$0xff]
        %v6368 = vld [vmem:[%s3296 + $0x1e7] sm:$0xff]
        %v6369 = vld [vmem:[%s3296 + $0x1ef] sm:$0xff]
        %v6370 = vpack.c.bf16 %v6339, %v6338
        %v6371 = vpack.c.bf16 %v6341, %v6340
        %v6372 = vpack.c.bf16 %v6343, %v6342
        %v6373 = vpack.c.bf16 %v6345, %v6344
        %v6374 = vpack.c.bf16 %v6347, %v6346
        %v6375 = vpack.c.bf16 %v6349, %v6348
        %v6376 = vpack.c.bf16 %v6351, %v6350
        %v6377 = vpack.c.bf16 %v6353, %v6352
        %v6378 = vpack.c.bf16 %v6355, %v6354
        %v6379 = vpack.c.bf16 %v6357, %v6356
        %v6380 = vpack.c.bf16 %v6359, %v6358
        %v6381 = vpack.c.bf16 %v6361, %v6360
        %v6382 = vpack.c.bf16 %v6363, %v6362
        %v6383 = vpack.c.bf16 %v6365, %v6364
        %v6384 = vpack.c.bf16 %v6367, %v6366
        %v6385 = vpack.c.bf16 %v6369, %v6368
        %s6386 = scalar_lea.vmem %s3, 240
        %v6387 = vld [vmem:[%s6386] sm:$0xf]
        %v6388 = vld [vmem:[%s6386 + $0x4] sm:$0xf]
        %v6389 = vld [vmem:[%s6386 + $0x8] sm:$0xf]
        %v6390 = vld [vmem:[%s6386 + $0xc] sm:$0xf]
        %v6395 = vunpack.c.l.b16 %v6387
        %v6396 = vunpack.c.l.b16 %v6388
        %v6397 = vunpack.c.l.b16 %v6389
        %v6398 = vunpack.c.l.b16 %v6390
        %v6399 = vpack.c.b16 %v6396, %v6395
        %v6400 = vpack.c.b16 %v6398, %v6397
        %v6404 = vsel %vm515, %v6370, 0
        %v6407 = vsel %vm515, %v6371, 0
        %v6410 = vsel %vm515, %v6372, 0
        %v6413 = vsel %vm515, %v6373, 0
        %v6416 = vsel %vm515, %v6374, 0
        %v6419 = vsel %vm515, %v6375, 0
        %v6422 = vsel %vm515, %v6376, 0
        %v6425 = vsel %vm515, %v6377, 0
        %v6428 = vsel %vm515, %v6378, 0
        %v6431 = vsel %vm515, %v6379, 0
        %v6434 = vsel %vm515, %v6380, 0
        %v6437 = vsel %vm515, %v6381, 0
        %v6440 = vsel %vm515, %v6382, 0
        %v6443 = vsel %vm515, %v6383, 0
        %v6446 = vsel %vm515, %v6384, 0
        %v6449 = vsel %vm515, %v6385, 0
        %6451 = vmatpush.bf16.msra.mxu0 0
        %6452 = vmatpush.bf16.msra.mxu0 0
        %6453 = vmatpush.bf16.msra.mxu0 0
        %6454 = vmatpush.bf16.msra.mxu0 0
        %6455 = vmatpush.bf16.msra.mxu0 0
        %6456 = vmatpush.bf16.msra.mxu0 0
        %6457 = vmatpush.bf16.msra.mxu0 %v6400
        %6458 = vmatpush.bf16.msra.mxu0 %v6399
        %6459 = vmatmul.bf16.gmra.mxu0 %v6404
        %v6460 = vpop.f32.mrf.mxu0
        %v6461 = vadd.f32 0.0, %v6460
        %v6462 = vpop.f32.mrf.mxu0
        %v6463 = vadd.f32 0.0, %v6462
        %6464 = vmatmul.bf16.gmra.mxu0 %v6407
        %v6465 = vpop.f32.mrf.mxu0
        %v6466 = vadd.f32 0.0, %v6465
        %v6467 = vpop.f32.mrf.mxu0
        %v6468 = vadd.f32 0.0, %v6467
        %6469 = vmatmul.bf16.gmra.mxu0 %v6410
        %v6470 = vpop.f32.mrf.mxu0
        %v6471 = vadd.f32 0.0, %v6470
        %v6472 = vpop.f32.mrf.mxu0
        %v6473 = vadd.f32 0.0, %v6472
        %6474 = vmatmul.bf16.gmra.mxu0 %v6413
        %v6475 = vpop.f32.mrf.mxu0
        %v6476 = vadd.f32 0.0, %v6475
        %v6477 = vpop.f32.mrf.mxu0
        %v6478 = vadd.f32 0.0, %v6477
        %6479 = vmatmul.bf16.gmra.mxu0 %v6416
        %v6480 = vpop.f32.mrf.mxu0
        %v6481 = vadd.f32 0.0, %v6480
        %v6482 = vpop.f32.mrf.mxu0
        %v6483 = vadd.f32 0.0, %v6482
        %6484 = vmatmul.bf16.gmra.mxu0 %v6419
        %v6485 = vpop.f32.mrf.mxu0
        %v6486 = vadd.f32 0.0, %v6485
        %v6487 = vpop.f32.mrf.mxu0
        %v6488 = vadd.f32 0.0, %v6487
        %6489 = vmatmul.bf16.gmra.mxu0 %v6422
        %v6490 = vpop.f32.mrf.mxu0
        %v6491 = vadd.f32 0.0, %v6490
        %v6492 = vpop.f32.mrf.mxu0
        %v6493 = vadd.f32 0.0, %v6492
        %6494 = vmatmul.bf16.gmra.mxu0 %v6425
        %v6495 = vpop.f32.mrf.mxu0
        %v6496 = vadd.f32 0.0, %v6495
        %v6497 = vpop.f32.mrf.mxu0
        %v6498 = vadd.f32 0.0, %v6497
        %6499 = vmatmul.bf16.gmra.mxu0 %v6428
        %v6500 = vpop.f32.mrf.mxu0
        %v6501 = vadd.f32 0.0, %v6500
        %v6502 = vpop.f32.mrf.mxu0
        %v6503 = vadd.f32 0.0, %v6502
        %6504 = vmatmul.bf16.gmra.mxu0 %v6431
        %v6505 = vpop.f32.mrf.mxu0
        %v6506 = vadd.f32 0.0, %v6505
        %v6507 = vpop.f32.mrf.mxu0
        %v6508 = vadd.f32 0.0, %v6507
        %6509 = vmatmul.bf16.gmra.mxu0 %v6434
        %v6510 = vpop.f32.mrf.mxu0
        %v6511 = vadd.f32 0.0, %v6510
        %v6512 = vpop.f32.mrf.mxu0
        %v6513 = vadd.f32 0.0, %v6512
        %6514 = vmatmul.bf16.gmra.mxu0 %v6437
        %v6515 = vpop.f32.mrf.mxu0
        %v6516 = vadd.f32 0.0, %v6515
        %v6517 = vpop.f32.mrf.mxu0
        %v6518 = vadd.f32 0.0, %v6517
        %6519 = vmatmul.bf16.gmra.mxu0 %v6440
        %v6520 = vpop.f32.mrf.mxu0
        %v6521 = vadd.f32 0.0, %v6520
        %v6522 = vpop.f32.mrf.mxu0
        %v6523 = vadd.f32 0.0, %v6522
        %6524 = vmatmul.bf16.gmra.mxu0 %v6443
        %v6525 = vpop.f32.mrf.mxu0
        %v6526 = vadd.f32 0.0, %v6525
        %v6527 = vpop.f32.mrf.mxu0
        %v6528 = vadd.f32 0.0, %v6527
        %6529 = vmatmul.bf16.gmra.mxu0 %v6446
        %v6530 = vpop.f32.mrf.mxu0
        %v6531 = vadd.f32 0.0, %v6530
        %v6532 = vpop.f32.mrf.mxu0
        %v6533 = vadd.f32 0.0, %v6532
        %6534 = vmatmul.bf16.gmra.mxu0 %v6449
        %v6535 = vpop.f32.mrf.mxu0
        %v6536 = vadd.f32 0.0, %v6535
        %v6537 = vpop.f32.mrf.mxu0
        %v6538 = vadd.f32 0.0, %v6537
        %6539 = vdwg.mxu0
        %v6540 = vadd.f32 %v6306, %v6461
        %v6541 = vadd.f32 %v6307, %v6463
        %v6542 = vadd.f32 %v6308, %v6466
        %v6543 = vadd.f32 %v6309, %v6468
        %v6544 = vadd.f32 %v6310, %v6471
        %v6545 = vadd.f32 %v6311, %v6473
        %v6546 = vadd.f32 %v6312, %v6476
        %v6547 = vadd.f32 %v6313, %v6478
        %v6548 = vadd.f32 %v6314, %v6481
        %v6549 = vadd.f32 %v6315, %v6483
        %v6550 = vadd.f32 %v6316, %v6486
        %v6551 = vadd.f32 %v6317, %v6488
        %v6552 = vadd.f32 %v6318, %v6491
        %v6553 = vadd.f32 %v6319, %v6493
        %v6554 = vadd.f32 %v6320, %v6496
        %v6555 = vadd.f32 %v6321, %v6498
        %v6556 = vadd.f32 %v6322, %v6501
        %v6557 = vadd.f32 %v6323, %v6503
        %v6558 = vadd.f32 %v6324, %v6506
        %v6559 = vadd.f32 %v6325, %v6508
        %v6560 = vadd.f32 %v6326, %v6511
        %v6561 = vadd.f32 %v6327, %v6513
        %v6562 = vadd.f32 %v6328, %v6516
        %v6563 = vadd.f32 %v6329, %v6518
        %v6564 = vadd.f32 %v6330, %v6521
        %v6565 = vadd.f32 %v6331, %v6523
        %v6566 = vadd.f32 %v6332, %v6526
        %v6567 = vadd.f32 %v6333, %v6528
        %v6568 = vadd.f32 %v6334, %v6531
        %v6569 = vadd.f32 %v6335, %v6533
        %v6570 = vadd.f32 %v6336, %v6536
        %v6571 = vadd.f32 %v6337, %v6538
        %v6572 = vld [vmem:[%s3296 + $0x8] sm:$0xff]
        %v6573 = vld [vmem:[%s3296 + $0x10] sm:$0xff]
        %v6574 = vld [vmem:[%s3296 + $0x28] sm:$0xff]
        %v6575 = vld [vmem:[%s3296 + $0x30] sm:$0xff]
        %v6576 = vld [vmem:[%s3296 + $0x48] sm:$0xff]
        %v6577 = vld [vmem:[%s3296 + $0x50] sm:$0xff]
        %v6578 = vld [vmem:[%s3296 + $0x68] sm:$0xff]
        %v6579 = vld [vmem:[%s3296 + $0x70] sm:$0xff]
        %v6580 = vld [vmem:[%s3296 + $0x88] sm:$0xff]
        %v6581 = vld [vmem:[%s3296 + $0x90] sm:$0xff]
        %v6582 = vld [vmem:[%s3296 + $0xa8] sm:$0xff]
        %v6583 = vld [vmem:[%s3296 + $0xb0] sm:$0xff]
        %v6584 = vld [vmem:[%s3296 + $0xc8] sm:$0xff]
        %v6585 = vld [vmem:[%s3296 + $0xd0] sm:$0xff]
        %v6586 = vld [vmem:[%s3296 + $0xe8] sm:$0xff]
        %v6587 = vld [vmem:[%s3296 + $0xf0] sm:$0xff]
        %v6588 = vld [vmem:[%s3296 + $0x108] sm:$0xff]
        %v6589 = vld [vmem:[%s3296 + $0x110] sm:$0xff]
        %v6590 = vld [vmem:[%s3296 + $0x128] sm:$0xff]
        %v6591 = vld [vmem:[%s3296 + $0x130] sm:$0xff]
        %v6592 = vld [vmem:[%s3296 + $0x148] sm:$0xff]
        %v6593 = vld [vmem:[%s3296 + $0x150] sm:$0xff]
        %v6594 = vld [vmem:[%s3296 + $0x168] sm:$0xff]
        %v6595 = vld [vmem:[%s3296 + $0x170] sm:$0xff]
        %v6596 = vld [vmem:[%s3296 + $0x188] sm:$0xff]
        %v6597 = vld [vmem:[%s3296 + $0x190] sm:$0xff]
        %v6598 = vld [vmem:[%s3296 + $0x1a8] sm:$0xff]
        %v6599 = vld [vmem:[%s3296 + $0x1b0] sm:$0xff]
        %v6600 = vld [vmem:[%s3296 + $0x1c8] sm:$0xff]
        %v6601 = vld [vmem:[%s3296 + $0x1d0] sm:$0xff]
        %v6602 = vld [vmem:[%s3296 + $0x1e8] sm:$0xff]
        %v6603 = vld [vmem:[%s3296 + $0x1f0] sm:$0xff]
        %v6604 = vpack.c.bf16 %v6573, %v6572
        %v6605 = vpack.c.bf16 %v6575, %v6574
        %v6606 = vpack.c.bf16 %v6577, %v6576
        %v6607 = vpack.c.bf16 %v6579, %v6578
        %v6608 = vpack.c.bf16 %v6581, %v6580
        %v6609 = vpack.c.bf16 %v6583, %v6582
        %v6610 = vpack.c.bf16 %v6585, %v6584
        %v6611 = vpack.c.bf16 %v6587, %v6586
        %v6612 = vpack.c.bf16 %v6589, %v6588
        %v6613 = vpack.c.bf16 %v6591, %v6590
        %v6614 = vpack.c.bf16 %v6593, %v6592
        %v6615 = vpack.c.bf16 %v6595, %v6594
        %v6616 = vpack.c.bf16 %v6597, %v6596
        %v6617 = vpack.c.bf16 %v6599, %v6598
        %v6618 = vpack.c.bf16 %v6601, %v6600
        %v6619 = vpack.c.bf16 %v6603, %v6602
        %s6620 = scalar_lea.vmem %s3, 256
        %v6621 = vld [vmem:[%s6620] sm:$0xf]
        %v6622 = vld [vmem:[%s6620 + $0x4] sm:$0xf]
        %v6623 = vld [vmem:[%s6620 + $0x8] sm:$0xf]
        %v6624 = vld [vmem:[%s6620 + $0xc] sm:$0xf]
        %v6629 = vunpack.c.l.b16 %v6621
        %v6630 = vunpack.c.l.b16 %v6622
        %v6631 = vunpack.c.l.b16 %v6623
        %v6632 = vunpack.c.l.b16 %v6624
        %v6633 = vpack.c.b16 %v6630, %v6629
        %v6634 = vpack.c.b16 %v6632, %v6631
        %v6638 = vsel %vm515, %v6604, 0
        %v6641 = vsel %vm515, %v6605, 0
        %v6644 = vsel %vm515, %v6606, 0
        %v6647 = vsel %vm515, %v6607, 0
        %v6650 = vsel %vm515, %v6608, 0
        %v6653 = vsel %vm515, %v6609, 0
        %v6656 = vsel %vm515, %v6610, 0
        %v6659 = vsel %vm515, %v6611, 0
        %v6662 = vsel %vm515, %v6612, 0
        %v6665 = vsel %vm515, %v6613, 0
        %v6668 = vsel %vm515, %v6614, 0
        %v6671 = vsel %vm515, %v6615, 0
        %v6674 = vsel %vm515, %v6616, 0
        %v6677 = vsel %vm515, %v6617, 0
        %v6680 = vsel %vm515, %v6618, 0
        %v6683 = vsel %vm515, %v6619, 0
        %6685 = vmatpush.bf16.msra.mxu0 0
        %6686 = vmatpush.bf16.msra.mxu0 0
        %6687 = vmatpush.bf16.msra.mxu0 0
        %6688 = vmatpush.bf16.msra.mxu0 0
        %6689 = vmatpush.bf16.msra.mxu0 0
        %6690 = vmatpush.bf16.msra.mxu0 0
        %6691 = vmatpush.bf16.msra.mxu0 %v6634
        %6692 = vmatpush.bf16.msra.mxu0 %v6633
        %6693 = vmatmul.bf16.gmra.mxu0 %v6638
        %v6694 = vpop.f32.mrf.mxu0
        %v6695 = vadd.f32 0.0, %v6694
        %v6696 = vpop.f32.mrf.mxu0
        %v6697 = vadd.f32 0.0, %v6696
        %6698 = vmatmul.bf16.gmra.mxu0 %v6641
        %v6699 = vpop.f32.mrf.mxu0
        %v6700 = vadd.f32 0.0, %v6699
        %v6701 = vpop.f32.mrf.mxu0
        %v6702 = vadd.f32 0.0, %v6701
        %6703 = vmatmul.bf16.gmra.mxu0 %v6644
        %v6704 = vpop.f32.mrf.mxu0
        %v6705 = vadd.f32 0.0, %v6704
        %v6706 = vpop.f32.mrf.mxu0
        %v6707 = vadd.f32 0.0, %v6706
        %6708 = vmatmul.bf16.gmra.mxu0 %v6647
        %v6709 = vpop.f32.mrf.mxu0
        %v6710 = vadd.f32 0.0, %v6709
        %v6711 = vpop.f32.mrf.mxu0
        %v6712 = vadd.f32 0.0, %v6711
        %6713 = vmatmul.bf16.gmra.mxu0 %v6650
        %v6714 = vpop.f32.mrf.mxu0
        %v6715 = vadd.f32 0.0, %v6714
        %v6716 = vpop.f32.mrf.mxu0
        %v6717 = vadd.f32 0.0, %v6716
        %6718 = vmatmul.bf16.gmra.mxu0 %v6653
        %v6719 = vpop.f32.mrf.mxu0
        %v6720 = vadd.f32 0.0, %v6719
        %v6721 = vpop.f32.mrf.mxu0
        %v6722 = vadd.f32 0.0, %v6721
        %6723 = vmatmul.bf16.gmra.mxu0 %v6656
        %v6724 = vpop.f32.mrf.mxu0
        %v6725 = vadd.f32 0.0, %v6724
        %v6726 = vpop.f32.mrf.mxu0
        %v6727 = vadd.f32 0.0, %v6726
        %6728 = vmatmul.bf16.gmra.mxu0 %v6659
        %v6729 = vpop.f32.mrf.mxu0
        %v6730 = vadd.f32 0.0, %v6729
        %v6731 = vpop.f32.mrf.mxu0
        %v6732 = vadd.f32 0.0, %v6731
        %6733 = vmatmul.bf16.gmra.mxu0 %v6662
        %v6734 = vpop.f32.mrf.mxu0
        %v6735 = vadd.f32 0.0, %v6734
        %v6736 = vpop.f32.mrf.mxu0
        %v6737 = vadd.f32 0.0, %v6736
        %6738 = vmatmul.bf16.gmra.mxu0 %v6665
        %v6739 = vpop.f32.mrf.mxu0
        %v6740 = vadd.f32 0.0, %v6739
        %v6741 = vpop.f32.mrf.mxu0
        %v6742 = vadd.f32 0.0, %v6741
        %6743 = vmatmul.bf16.gmra.mxu0 %v6668
        %v6744 = vpop.f32.mrf.mxu0
        %v6745 = vadd.f32 0.0, %v6744
        %v6746 = vpop.f32.mrf.mxu0
        %v6747 = vadd.f32 0.0, %v6746
        %6748 = vmatmul.bf16.gmra.mxu0 %v6671
        %v6749 = vpop.f32.mrf.mxu0
        %v6750 = vadd.f32 0.0, %v6749
        %v6751 = vpop.f32.mrf.mxu0
        %v6752 = vadd.f32 0.0, %v6751
        %6753 = vmatmul.bf16.gmra.mxu0 %v6674
        %v6754 = vpop.f32.mrf.mxu0
        %v6755 = vadd.f32 0.0, %v6754
        %v6756 = vpop.f32.mrf.mxu0
        %v6757 = vadd.f32 0.0, %v6756
        %6758 = vmatmul.bf16.gmra.mxu0 %v6677
        %v6759 = vpop.f32.mrf.mxu0
        %v6760 = vadd.f32 0.0, %v6759
        %v6761 = vpop.f32.mrf.mxu0
        %v6762 = vadd.f32 0.0, %v6761
        %6763 = vmatmul.bf16.gmra.mxu0 %v6680
        %v6764 = vpop.f32.mrf.mxu0
        %v6765 = vadd.f32 0.0, %v6764
        %v6766 = vpop.f32.mrf.mxu0
        %v6767 = vadd.f32 0.0, %v6766
        %6768 = vmatmul.bf16.gmra.mxu0 %v6683
        %v6769 = vpop.f32.mrf.mxu0
        %v6770 = vadd.f32 0.0, %v6769
        %v6771 = vpop.f32.mrf.mxu0
        %v6772 = vadd.f32 0.0, %v6771
        %6773 = vdwg.mxu0
        %v6774 = vadd.f32 %v6540, %v6695
        %v6775 = vadd.f32 %v6541, %v6697
        %v6776 = vadd.f32 %v6542, %v6700
        %v6777 = vadd.f32 %v6543, %v6702
        %v6778 = vadd.f32 %v6544, %v6705
        %v6779 = vadd.f32 %v6545, %v6707
        %v6780 = vadd.f32 %v6546, %v6710
        %v6781 = vadd.f32 %v6547, %v6712
        %v6782 = vadd.f32 %v6548, %v6715
        %v6783 = vadd.f32 %v6549, %v6717
        %v6784 = vadd.f32 %v6550, %v6720
        %v6785 = vadd.f32 %v6551, %v6722
        %v6786 = vadd.f32 %v6552, %v6725
        %v6787 = vadd.f32 %v6553, %v6727
        %v6788 = vadd.f32 %v6554, %v6730
        %v6789 = vadd.f32 %v6555, %v6732
        %v6790 = vadd.f32 %v6556, %v6735
        %v6791 = vadd.f32 %v6557, %v6737
        %v6792 = vadd.f32 %v6558, %v6740
        %v6793 = vadd.f32 %v6559, %v6742
        %v6794 = vadd.f32 %v6560, %v6745
        %v6795 = vadd.f32 %v6561, %v6747
        %v6796 = vadd.f32 %v6562, %v6750
        %v6797 = vadd.f32 %v6563, %v6752
        %v6798 = vadd.f32 %v6564, %v6755
        %v6799 = vadd.f32 %v6565, %v6757
        %v6800 = vadd.f32 %v6566, %v6760
        %v6801 = vadd.f32 %v6567, %v6762
        %v6802 = vadd.f32 %v6568, %v6765
        %v6803 = vadd.f32 %v6569, %v6767
        %v6804 = vadd.f32 %v6570, %v6770
        %v6805 = vadd.f32 %v6571, %v6772
        %v6806 = vld [vmem:[%s3296 + $0x9] sm:$0xff]
        %v6807 = vld [vmem:[%s3296 + $0x11] sm:$0xff]
        %v6808 = vld [vmem:[%s3296 + $0x29] sm:$0xff]
        %v6809 = vld [vmem:[%s3296 + $0x31] sm:$0xff]
        %v6810 = vld [vmem:[%s3296 + $0x49] sm:$0xff]
        %v6811 = vld [vmem:[%s3296 + $0x51] sm:$0xff]
        %v6812 = vld [vmem:[%s3296 + $0x69] sm:$0xff]
        %v6813 = vld [vmem:[%s3296 + $0x71] sm:$0xff]
        %v6814 = vld [vmem:[%s3296 + $0x89] sm:$0xff]
        %v6815 = vld [vmem:[%s3296 + $0x91] sm:$0xff]
        %v6816 = vld [vmem:[%s3296 + $0xa9] sm:$0xff]
        %v6817 = vld [vmem:[%s3296 + $0xb1] sm:$0xff]
        %v6818 = vld [vmem:[%s3296 + $0xc9] sm:$0xff]
        %v6819 = vld [vmem:[%s3296 + $0xd1] sm:$0xff]
        %v6820 = vld [vmem:[%s3296 + $0xe9] sm:$0xff]
        %v6821 = vld [vmem:[%s3296 + $0xf1] sm:$0xff]
        %v6822 = vld [vmem:[%s3296 + $0x109] sm:$0xff]
        %v6823 = vld [vmem:[%s3296 + $0x111] sm:$0xff]
        %v6824 = vld [vmem:[%s3296 + $0x129] sm:$0xff]
        %v6825 = vld [vmem:[%s3296 + $0x131] sm:$0xff]
        %v6826 = vld [vmem:[%s3296 + $0x149] sm:$0xff]
        %v6827 = vld [vmem:[%s3296 + $0x151] sm:$0xff]
        %v6828 = vld [vmem:[%s3296 + $0x169] sm:$0xff]
        %v6829 = vld [vmem:[%s3296 + $0x171] sm:$0xff]
        %v6830 = vld [vmem:[%s3296 + $0x189] sm:$0xff]
        %v6831 = vld [vmem:[%s3296 + $0x191] sm:$0xff]
        %v6832 = vld [vmem:[%s3296 + $0x1a9] sm:$0xff]
        %v6833 = vld [vmem:[%s3296 + $0x1b1] sm:$0xff]
        %v6834 = vld [vmem:[%s3296 + $0x1c9] sm:$0xff]
        %v6835 = vld [vmem:[%s3296 + $0x1d1] sm:$0xff]
        %v6836 = vld [vmem:[%s3296 + $0x1e9] sm:$0xff]
        %v6837 = vld [vmem:[%s3296 + $0x1f1] sm:$0xff]
        %v6838 = vpack.c.bf16 %v6807, %v6806
        %v6839 = vpack.c.bf16 %v6809, %v6808
        %v6840 = vpack.c.bf16 %v6811, %v6810
        %v6841 = vpack.c.bf16 %v6813, %v6812
        %v6842 = vpack.c.bf16 %v6815, %v6814
        %v6843 = vpack.c.bf16 %v6817, %v6816
        %v6844 = vpack.c.bf16 %v6819, %v6818
        %v6845 = vpack.c.bf16 %v6821, %v6820
        %v6846 = vpack.c.bf16 %v6823, %v6822
        %v6847 = vpack.c.bf16 %v6825, %v6824
        %v6848 = vpack.c.bf16 %v6827, %v6826
        %v6849 = vpack.c.bf16 %v6829, %v6828
        %v6850 = vpack.c.bf16 %v6831, %v6830
        %v6851 = vpack.c.bf16 %v6833, %v6832
        %v6852 = vpack.c.bf16 %v6835, %v6834
        %v6853 = vpack.c.bf16 %v6837, %v6836
        %s6854 = scalar_lea.vmem %s3, 272
        %v6855 = vld [vmem:[%s6854] sm:$0xf]
        %v6856 = vld [vmem:[%s6854 + $0x4] sm:$0xf]
        %v6857 = vld [vmem:[%s6854 + $0x8] sm:$0xf]
        %v6858 = vld [vmem:[%s6854 + $0xc] sm:$0xf]
        %v6863 = vunpack.c.l.b16 %v6855
        %v6864 = vunpack.c.l.b16 %v6856
        %v6865 = vunpack.c.l.b16 %v6857
        %v6866 = vunpack.c.l.b16 %v6858
        %v6867 = vpack.c.b16 %v6864, %v6863
        %v6868 = vpack.c.b16 %v6866, %v6865
        %v6872 = vsel %vm515, %v6838, 0
        %v6875 = vsel %vm515, %v6839, 0
        %v6878 = vsel %vm515, %v6840, 0
        %v6881 = vsel %vm515, %v6841, 0
        %v6884 = vsel %vm515, %v6842, 0
        %v6887 = vsel %vm515, %v6843, 0
        %v6890 = vsel %vm515, %v6844, 0
        %v6893 = vsel %vm515, %v6845, 0
        %v6896 = vsel %vm515, %v6846, 0
        %v6899 = vsel %vm515, %v6847, 0
        %v6902 = vsel %vm515, %v6848, 0
        %v6905 = vsel %vm515, %v6849, 0
        %v6908 = vsel %vm515, %v6850, 0
        %v6911 = vsel %vm515, %v6851, 0
        %v6914 = vsel %vm515, %v6852, 0
        %v6917 = vsel %vm515, %v6853, 0
        %6919 = vmatpush.bf16.msra.mxu0 0
        %6920 = vmatpush.bf16.msra.mxu0 0
        %6921 = vmatpush.bf16.msra.mxu0 0
        %6922 = vmatpush.bf16.msra.mxu0 0
        %6923 = vmatpush.bf16.msra.mxu0 0
        %6924 = vmatpush.bf16.msra.mxu0 0
        %6925 = vmatpush.bf16.msra.mxu0 %v6868
        %6926 = vmatpush.bf16.msra.mxu0 %v6867
        %6927 = vmatmul.bf16.gmra.mxu0 %v6872
        %v6928 = vpop.f32.mrf.mxu0
        %v6929 = vadd.f32 0.0, %v6928
        %v6930 = vpop.f32.mrf.mxu0
        %v6931 = vadd.f32 0.0, %v6930
        %6932 = vmatmul.bf16.gmra.mxu0 %v6875
        %v6933 = vpop.f32.mrf.mxu0
        %v6934 = vadd.f32 0.0, %v6933
        %v6935 = vpop.f32.mrf.mxu0
        %v6936 = vadd.f32 0.0, %v6935
        %6937 = vmatmul.bf16.gmra.mxu0 %v6878
        %v6938 = vpop.f32.mrf.mxu0
        %v6939 = vadd.f32 0.0, %v6938
        %v6940 = vpop.f32.mrf.mxu0
        %v6941 = vadd.f32 0.0, %v6940
        %6942 = vmatmul.bf16.gmra.mxu0 %v6881
        %v6943 = vpop.f32.mrf.mxu0
        %v6944 = vadd.f32 0.0, %v6943
        %v6945 = vpop.f32.mrf.mxu0
        %v6946 = vadd.f32 0.0, %v6945
        %6947 = vmatmul.bf16.gmra.mxu0 %v6884
        %v6948 = vpop.f32.mrf.mxu0
        %v6949 = vadd.f32 0.0, %v6948
        %v6950 = vpop.f32.mrf.mxu0
        %v6951 = vadd.f32 0.0, %v6950
        %6952 = vmatmul.bf16.gmra.mxu0 %v6887
        %v6953 = vpop.f32.mrf.mxu0
        %v6954 = vadd.f32 0.0, %v6953
        %v6955 = vpop.f32.mrf.mxu0
        %v6956 = vadd.f32 0.0, %v6955
        %6957 = vmatmul.bf16.gmra.mxu0 %v6890
        %v6958 = vpop.f32.mrf.mxu0
        %v6959 = vadd.f32 0.0, %v6958
        %v6960 = vpop.f32.mrf.mxu0
        %v6961 = vadd.f32 0.0, %v6960
        %6962 = vmatmul.bf16.gmra.mxu0 %v6893
        %v6963 = vpop.f32.mrf.mxu0
        %v6964 = vadd.f32 0.0, %v6963
        %v6965 = vpop.f32.mrf.mxu0
        %v6966 = vadd.f32 0.0, %v6965
        %6967 = vmatmul.bf16.gmra.mxu0 %v6896
        %v6968 = vpop.f32.mrf.mxu0
        %v6969 = vadd.f32 0.0, %v6968
        %v6970 = vpop.f32.mrf.mxu0
        %v6971 = vadd.f32 0.0, %v6970
        %6972 = vmatmul.bf16.gmra.mxu0 %v6899
        %v6973 = vpop.f32.mrf.mxu0
        %v6974 = vadd.f32 0.0, %v6973
        %v6975 = vpop.f32.mrf.mxu0
        %v6976 = vadd.f32 0.0, %v6975
        %6977 = vmatmul.bf16.gmra.mxu0 %v6902
        %v6978 = vpop.f32.mrf.mxu0
        %v6979 = vadd.f32 0.0, %v6978
        %v6980 = vpop.f32.mrf.mxu0
        %v6981 = vadd.f32 0.0, %v6980
        %6982 = vmatmul.bf16.gmra.mxu0 %v6905
        %v6983 = vpop.f32.mrf.mxu0
        %v6984 = vadd.f32 0.0, %v6983
        %v6985 = vpop.f32.mrf.mxu0
        %v6986 = vadd.f32 0.0, %v6985
        %6987 = vmatmul.bf16.gmra.mxu0 %v6908
        %v6988 = vpop.f32.mrf.mxu0
        %v6989 = vadd.f32 0.0, %v6988
        %v6990 = vpop.f32.mrf.mxu0
        %v6991 = vadd.f32 0.0, %v6990
        %6992 = vmatmul.bf16.gmra.mxu0 %v6911
        %v6993 = vpop.f32.mrf.mxu0
        %v6994 = vadd.f32 0.0, %v6993
        %v6995 = vpop.f32.mrf.mxu0
        %v6996 = vadd.f32 0.0, %v6995
        %6997 = vmatmul.bf16.gmra.mxu0 %v6914
        %v6998 = vpop.f32.mrf.mxu0
        %v6999 = vadd.f32 0.0, %v6998
        %v7000 = vpop.f32.mrf.mxu0
        %v7001 = vadd.f32 0.0, %v7000
        %7002 = vmatmul.bf16.gmra.mxu0 %v6917
        %v7003 = vpop.f32.mrf.mxu0
        %v7004 = vadd.f32 0.0, %v7003
        %v7005 = vpop.f32.mrf.mxu0
        %v7006 = vadd.f32 0.0, %v7005
        %7007 = vdwg.mxu0
        %v7008 = vadd.f32 %v6774, %v6929
        %v7009 = vadd.f32 %v6775, %v6931
        %v7010 = vadd.f32 %v6776, %v6934
        %v7011 = vadd.f32 %v6777, %v6936
        %v7012 = vadd.f32 %v6778, %v6939
        %v7013 = vadd.f32 %v6779, %v6941
        %v7014 = vadd.f32 %v6780, %v6944
        %v7015 = vadd.f32 %v6781, %v6946
        %v7016 = vadd.f32 %v6782, %v6949
        %v7017 = vadd.f32 %v6783, %v6951
        %v7018 = vadd.f32 %v6784, %v6954
        %v7019 = vadd.f32 %v6785, %v6956
        %v7020 = vadd.f32 %v6786, %v6959
        %v7021 = vadd.f32 %v6787, %v6961
        %v7022 = vadd.f32 %v6788, %v6964
        %v7023 = vadd.f32 %v6789, %v6966
        %v7024 = vadd.f32 %v6790, %v6969
        %v7025 = vadd.f32 %v6791, %v6971
        %v7026 = vadd.f32 %v6792, %v6974
        %v7027 = vadd.f32 %v6793, %v6976
        %v7028 = vadd.f32 %v6794, %v6979
        %v7029 = vadd.f32 %v6795, %v6981
        %v7030 = vadd.f32 %v6796, %v6984
        %v7031 = vadd.f32 %v6797, %v6986
        %v7032 = vadd.f32 %v6798, %v6989
        %v7033 = vadd.f32 %v6799, %v6991
        %v7034 = vadd.f32 %v6800, %v6994
        %v7035 = vadd.f32 %v6801, %v6996
        %v7036 = vadd.f32 %v6802, %v6999
        %v7037 = vadd.f32 %v6803, %v7001
        %v7038 = vadd.f32 %v6804, %v7004
        %v7039 = vadd.f32 %v6805, %v7006
        %s7040 = scalar_lea.vmem %s4, 1
        %v7041 = vld [vmem:[%s7040] sm:$0x1]
        %v7043 = vperm.slane %v7041, 0
        %v7045 = vadd.f32 %v7008, %v7043
        %v7046 = vadd.f32 %v7009, %v7043
        %v7047 = vadd.f32 %v7010, %v7043
        %v7048 = vadd.f32 %v7011, %v7043
        %v7049 = vadd.f32 %v7012, %v7043
        %v7050 = vadd.f32 %v7013, %v7043
        %v7051 = vadd.f32 %v7014, %v7043
        %v7052 = vadd.f32 %v7015, %v7043
        %v7053 = vadd.f32 %v7016, %v7043
        %v7054 = vadd.f32 %v7017, %v7043
        %v7055 = vadd.f32 %v7018, %v7043
        %v7056 = vadd.f32 %v7019, %v7043
        %v7057 = vadd.f32 %v7020, %v7043
        %v7058 = vadd.f32 %v7021, %v7043
        %v7059 = vadd.f32 %v7022, %v7043
        %v7060 = vadd.f32 %v7023, %v7043
        %v7061 = vadd.f32 %v7024, %v7043
        %v7062 = vadd.f32 %v7025, %v7043
        %v7063 = vadd.f32 %v7026, %v7043
        %v7064 = vadd.f32 %v7027, %v7043
        %v7065 = vadd.f32 %v7028, %v7043
        %v7066 = vadd.f32 %v7029, %v7043
        %v7067 = vadd.f32 %v7030, %v7043
        %v7068 = vadd.f32 %v7031, %v7043
        %v7069 = vadd.f32 %v7032, %v7043
        %v7070 = vadd.f32 %v7033, %v7043
        %v7071 = vadd.f32 %v7034, %v7043
        %v7072 = vadd.f32 %v7035, %v7043
        %v7073 = vadd.f32 %v7036, %v7043
        %v7074 = vadd.f32 %v7037, %v7043
        %v7075 = vadd.f32 %v7038, %v7043
        %v7076 = vadd.f32 %v7039, %v7043
        %v7077 = vmax.f32 %v7045, 0.0
        %v7078 = vmax.f32 %v7046, 0.0
        %v7079 = vmax.f32 %v7047, 0.0
        %v7080 = vmax.f32 %v7048, 0.0
        %v7081 = vmax.f32 %v7049, 0.0
        %v7082 = vmax.f32 %v7050, 0.0
        %v7083 = vmax.f32 %v7051, 0.0
        %v7084 = vmax.f32 %v7052, 0.0
        %v7085 = vmax.f32 %v7053, 0.0
        %v7086 = vmax.f32 %v7054, 0.0
        %v7087 = vmax.f32 %v7055, 0.0
        %v7088 = vmax.f32 %v7056, 0.0
        %v7089 = vmax.f32 %v7057, 0.0
        %v7090 = vmax.f32 %v7058, 0.0
        %v7091 = vmax.f32 %v7059, 0.0
        %v7092 = vmax.f32 %v7060, 0.0
        %v7093 = vmax.f32 %v7061, 0.0
        %v7094 = vmax.f32 %v7062, 0.0
        %v7095 = vmax.f32 %v7063, 0.0
        %v7096 = vmax.f32 %v7064, 0.0
        %v7097 = vmax.f32 %v7065, 0.0
        %v7098 = vmax.f32 %v7066, 0.0
        %v7099 = vmax.f32 %v7067, 0.0
        %v7100 = vmax.f32 %v7068, 0.0
        %v7101 = vmax.f32 %v7069, 0.0
        %v7102 = vmax.f32 %v7070, 0.0
        %v7103 = vmax.f32 %v7071, 0.0
        %v7104 = vmax.f32 %v7072, 0.0
        %v7105 = vmax.f32 %v7073, 0.0
        %v7106 = vmax.f32 %v7074, 0.0
        %v7107 = vmax.f32 %v7075, 0.0
        %v7108 = vmax.f32 %v7076, 0.0
        %7109 = vst.msk [vmem:[%s1924 + $0x8] sm:$0xff] %vm515, %v7077
        %7110 = vst.msk [vmem:[%s1924 + $0x10] sm:$0xff] %vm515, %v7078
        %7111 = vst.msk [vmem:[%s1924 + $0x28] sm:$0xff] %vm515, %v7079
        %7112 = vst.msk [vmem:[%s1924 + $0x30] sm:$0xff] %vm515, %v7080
        %7113 = vst.msk [vmem:[%s1924 + $0x48] sm:$0xff] %vm515, %v7081
        %7114 = vst.msk [vmem:[%s1924 + $0x50] sm:$0xff] %vm515, %v7082
        %7115 = vst.msk [vmem:[%s1924 + $0x68] sm:$0xff] %vm515, %v7083
        %7116 = vst.msk [vmem:[%s1924 + $0x70] sm:$0xff] %vm515, %v7084
        %7117 = vst.msk [vmem:[%s1924 + $0x88] sm:$0xff] %vm515, %v7085
        %7118 = vst.msk [vmem:[%s1924 + $0x90] sm:$0xff] %vm515, %v7086
        %7119 = vst.msk [vmem:[%s1924 + $0xa8] sm:$0xff] %vm515, %v7087
        %7120 = vst.msk [vmem:[%s1924 + $0xb0] sm:$0xff] %vm515, %v7088
        %7121 = vst.msk [vmem:[%s1924 + $0xc8] sm:$0xff] %vm515, %v7089
        %7122 = vst.msk [vmem:[%s1924 + $0xd0] sm:$0xff] %vm515, %v7090
        %7123 = vst.msk [vmem:[%s1924 + $0xe8] sm:$0xff] %vm515, %v7091
        %7124 = vst.msk [vmem:[%s1924 + $0xf0] sm:$0xff] %vm515, %v7092
        %7125 = vst.msk [vmem:[%s1924 + $0x108] sm:$0xff] %vm515, %v7093
        %7126 = vst.msk [vmem:[%s1924 + $0x110] sm:$0xff] %vm515, %v7094
        %7127 = vst.msk [vmem:[%s1924 + $0x128] sm:$0xff] %vm515, %v7095
        %7128 = vst.msk [vmem:[%s1924 + $0x130] sm:$0xff] %vm515, %v7096
        %7129 = vst.msk [vmem:[%s1924 + $0x148] sm:$0xff] %vm515, %v7097
        %7130 = vst.msk [vmem:[%s1924 + $0x150] sm:$0xff] %vm515, %v7098
        %7131 = vst.msk [vmem:[%s1924 + $0x168] sm:$0xff] %vm515, %v7099
        %7132 = vst.msk [vmem:[%s1924 + $0x170] sm:$0xff] %vm515, %v7100
        %7133 = vst.msk [vmem:[%s1924 + $0x188] sm:$0xff] %vm515, %v7101
        %7134 = vst.msk [vmem:[%s1924 + $0x190] sm:$0xff] %vm515, %v7102
        %7135 = vst.msk [vmem:[%s1924 + $0x1a8] sm:$0xff] %vm515, %v7103
        %7136 = vst.msk [vmem:[%s1924 + $0x1b0] sm:$0xff] %vm515, %v7104
        %7137 = vst.msk [vmem:[%s1924 + $0x1c8] sm:$0xff] %vm515, %v7105
        %7138 = vst.msk [vmem:[%s1924 + $0x1d0] sm:$0xff] %vm515, %v7106
        %7139 = vst.msk [vmem:[%s1924 + $0x1e8] sm:$0xff] %vm515, %v7107
        %7140 = vst.msk [vmem:[%s1924 + $0x1f0] sm:$0xff] %vm515, %v7108
        %v7141 = vld [vmem:[#allocation2 + $0x7] sm:$0xff]
        %v7142 = vld [vmem:[#allocation2 + $0xf] sm:$0xff]
        %v7143 = vld [vmem:[#allocation2 + $0x27] sm:$0xff]
        %v7144 = vld [vmem:[#allocation2 + $0x2f] sm:$0xff]
        %v7145 = vld [vmem:[#allocation2 + $0x47] sm:$0xff]
        %v7146 = vld [vmem:[#allocation2 + $0x4f] sm:$0xff]
        %v7147 = vld [vmem:[#allocation2 + $0x67] sm:$0xff]
        %v7148 = vld [vmem:[#allocation2 + $0x6f] sm:$0xff]
        %v7149 = vld [vmem:[#allocation2 + $0x87] sm:$0xff]
        %v7150 = vld [vmem:[#allocation2 + $0x8f] sm:$0xff]
        %v7151 = vld [vmem:[#allocation2 + $0xa7] sm:$0xff]
        %v7152 = vld [vmem:[#allocation2 + $0xaf] sm:$0xff]
        %v7153 = vld [vmem:[#allocation2 + $0xc7] sm:$0xff]
        %v7154 = vld [vmem:[#allocation2 + $0xcf] sm:$0xff]
        %v7155 = vld [vmem:[#allocation2 + $0xe7] sm:$0xff]
        %v7156 = vld [vmem:[#allocation2 + $0xef] sm:$0xff]
        %v7157 = vld [vmem:[#allocation2 + $0x107] sm:$0xff]
        %v7158 = vld [vmem:[#allocation2 + $0x10f] sm:$0xff]
        %v7159 = vld [vmem:[#allocation2 + $0x127] sm:$0xff]
        %v7160 = vld [vmem:[#allocation2 + $0x12f] sm:$0xff]
        %v7161 = vld [vmem:[#allocation2 + $0x147] sm:$0xff]
        %v7162 = vld [vmem:[#allocation2 + $0x14f] sm:$0xff]
        %v7163 = vld [vmem:[#allocation2 + $0x167] sm:$0xff]
        %v7164 = vld [vmem:[#allocation2 + $0x16f] sm:$0xff]
        %v7165 = vld [vmem:[#allocation2 + $0x187] sm:$0xff]
        %v7166 = vld [vmem:[#allocation2 + $0x18f] sm:$0xff]
        %v7167 = vld [vmem:[#allocation2 + $0x1a7] sm:$0xff]
        %v7168 = vld [vmem:[#allocation2 + $0x1af] sm:$0xff]
        %v7169 = vld [vmem:[#allocation2 + $0x1c7] sm:$0xff]
        %v7170 = vld [vmem:[#allocation2 + $0x1cf] sm:$0xff]
        %v7171 = vld [vmem:[#allocation2 + $0x1e7] sm:$0xff]
        %v7172 = vld [vmem:[#allocation2 + $0x1ef] sm:$0xff]
        %v7173 = vpack.c.bf16 %v7142, %v7141
        %v7174 = vpack.c.bf16 %v7144, %v7143
        %v7175 = vpack.c.bf16 %v7146, %v7145
        %v7176 = vpack.c.bf16 %v7148, %v7147
        %v7177 = vpack.c.bf16 %v7150, %v7149
        %v7178 = vpack.c.bf16 %v7152, %v7151
        %v7179 = vpack.c.bf16 %v7154, %v7153
        %v7180 = vpack.c.bf16 %v7156, %v7155
        %v7181 = vpack.c.bf16 %v7158, %v7157
        %v7182 = vpack.c.bf16 %v7160, %v7159
        %v7183 = vpack.c.bf16 %v7162, %v7161
        %v7184 = vpack.c.bf16 %v7164, %v7163
        %v7185 = vpack.c.bf16 %v7166, %v7165
        %v7186 = vpack.c.bf16 %v7168, %v7167
        %v7187 = vpack.c.bf16 %v7170, %v7169
        %v7188 = vpack.c.bf16 %v7172, %v7171
        %s7189 = scalar_lea.vmem %s3, 288
        %v7190 = vld [vmem:[%s7189] sm:$0xf]
        %v7191 = vld [vmem:[%s7189 + $0x4] sm:$0xf]
        %v7192 = vld [vmem:[%s7189 + $0x8] sm:$0xf]
        %v7193 = vld [vmem:[%s7189 + $0xc] sm:$0xf]
        %v7194 = vld [vmem:[#allocation2 + $0x8] sm:$0xff]
        %v7195 = vld [vmem:[#allocation2 + $0x10] sm:$0xff]
        %v7196 = vld [vmem:[#allocation2 + $0x28] sm:$0xff]
        %v7197 = vld [vmem:[#allocation2 + $0x30] sm:$0xff]
        %v7198 = vld [vmem:[#allocation2 + $0x48] sm:$0xff]
        %v7199 = vld [vmem:[#allocation2 + $0x50] sm:$0xff]
        %v7200 = vld [vmem:[#allocation2 + $0x68] sm:$0xff]
        %v7201 = vld [vmem:[#allocation2 + $0x70] sm:$0xff]
        %v7202 = vld [vmem:[#allocation2 + $0x88] sm:$0xff]
        %v7203 = vld [vmem:[#allocation2 + $0x90] sm:$0xff]
        %v7204 = vld [vmem:[#allocation2 + $0xa8] sm:$0xff]
        %v7205 = vld [vmem:[#allocation2 + $0xb0] sm:$0xff]
        %v7206 = vld [vmem:[#allocation2 + $0xc8] sm:$0xff]
        %v7207 = vld [vmem:[#allocation2 + $0xd0] sm:$0xff]
        %v7208 = vld [vmem:[#allocation2 + $0xe8] sm:$0xff]
        %v7209 = vld [vmem:[#allocation2 + $0xf0] sm:$0xff]
        %v7210 = vld [vmem:[#allocation2 + $0x108] sm:$0xff]
        %v7211 = vld [vmem:[#allocation2 + $0x110] sm:$0xff]
        %v7212 = vld [vmem:[#allocation2 + $0x128] sm:$0xff]
        %v7213 = vld [vmem:[#allocation2 + $0x130] sm:$0xff]
        %v7214 = vld [vmem:[#allocation2 + $0x148] sm:$0xff]
        %v7215 = vld [vmem:[#allocation2 + $0x150] sm:$0xff]
        %v7216 = vld [vmem:[#allocation2 + $0x168] sm:$0xff]
        %v7217 = vld [vmem:[#allocation2 + $0x170] sm:$0xff]
        %v7218 = vld [vmem:[#allocation2 + $0x188] sm:$0xff]
        %v7219 = vld [vmem:[#allocation2 + $0x190] sm:$0xff]
        %v7220 = vld [vmem:[#allocation2 + $0x1a8] sm:$0xff]
        %v7221 = vld [vmem:[#allocation2 + $0x1b0] sm:$0xff]
        %v7222 = vld [vmem:[#allocation2 + $0x1c8] sm:$0xff]
        %v7223 = vld [vmem:[#allocation2 + $0x1d0] sm:$0xff]
        %v7224 = vld [vmem:[#allocation2 + $0x1e8] sm:$0xff]
        %v7225 = vld [vmem:[#allocation2 + $0x1f0] sm:$0xff]
        %v7226 = vpack.c.bf16 %v7195, %v7194
        %v7227 = vpack.c.bf16 %v7197, %v7196
        %v7228 = vpack.c.bf16 %v7199, %v7198
        %v7229 = vpack.c.bf16 %v7201, %v7200
        %v7230 = vpack.c.bf16 %v7203, %v7202
        %v7231 = vpack.c.bf16 %v7205, %v7204
        %v7232 = vpack.c.bf16 %v7207, %v7206
        %v7233 = vpack.c.bf16 %v7209, %v7208
        %v7234 = vpack.c.bf16 %v7211, %v7210
        %v7235 = vpack.c.bf16 %v7213, %v7212
        %v7236 = vpack.c.bf16 %v7215, %v7214
        %v7237 = vpack.c.bf16 %v7217, %v7216
        %v7238 = vpack.c.bf16 %v7219, %v7218
        %v7239 = vpack.c.bf16 %v7221, %v7220
        %v7240 = vpack.c.bf16 %v7223, %v7222
        %v7241 = vpack.c.bf16 %v7225, %v7224
        %s7242 = scalar_lea.vmem %s3, 304
        %v7243 = vld [vmem:[%s7242] sm:$0xf]
        %v7244 = vld [vmem:[%s7242 + $0x4] sm:$0xf]
        %v7245 = vld [vmem:[%s7242 + $0x8] sm:$0xf]
        %v7246 = vld [vmem:[%s7242 + $0xc] sm:$0xf]
        %v7251 = vunpack.c.l.b16 %v7243
        %v7252 = vunpack.c.l.b16 %v7244
        %v7253 = vunpack.c.l.b16 %v7245
        %v7254 = vunpack.c.l.b16 %v7246
        %v7255 = vpack.c.b16 %v7252, %v7251
        %v7256 = vpack.c.b16 %v7254, %v7253
        %v7260 = vsel %vm515, %v7226, 0
        %v7263 = vsel %vm515, %v7227, 0
        %v7266 = vsel %vm515, %v7228, 0
        %v7269 = vsel %vm515, %v7229, 0
        %v7272 = vsel %vm515, %v7230, 0
        %v7275 = vsel %vm515, %v7231, 0
        %v7278 = vsel %vm515, %v7232, 0
        %v7281 = vsel %vm515, %v7233, 0
        %v7284 = vsel %vm515, %v7234, 0
        %v7287 = vsel %vm515, %v7235, 0
        %v7290 = vsel %vm515, %v7236, 0
        %v7293 = vsel %vm515, %v7237, 0
        %v7296 = vsel %vm515, %v7238, 0
        %v7299 = vsel %vm515, %v7239, 0
        %v7302 = vsel %vm515, %v7240, 0
        %v7305 = vsel %vm515, %v7241, 0
        %7307 = vmatpush.bf16.msra.mxu0 0
        %7308 = vmatpush.bf16.msra.mxu0 0
        %7309 = vmatpush.bf16.msra.mxu0 0
        %7310 = vmatpush.bf16.msra.mxu0 0
        %7311 = vmatpush.bf16.msra.mxu0 0
        %7312 = vmatpush.bf16.msra.mxu0 0
        %7313 = vmatpush.bf16.msra.mxu0 %v7256
        %7314 = vmatpush.bf16.msra.mxu0 %v7255
        %7315 = vmatmul.bf16.gmra.mxu0 %v7260
        %v7316 = vpop.f32.mrf.mxu0
        %v7317 = vadd.f32 0.0, %v7316
        %v7318 = vpop.f32.mrf.mxu0
        %v7319 = vadd.f32 0.0, %v7318
        %7320 = vmatmul.bf16.gmra.mxu0 %v7263
        %v7321 = vpop.f32.mrf.mxu0
        %v7322 = vadd.f32 0.0, %v7321
        %v7323 = vpop.f32.mrf.mxu0
        %v7324 = vadd.f32 0.0, %v7323
        %7325 = vmatmul.bf16.gmra.mxu0 %v7266
        %v7326 = vpop.f32.mrf.mxu0
        %v7327 = vadd.f32 0.0, %v7326
        %v7328 = vpop.f32.mrf.mxu0
        %v7329 = vadd.f32 0.0, %v7328
        %7330 = vmatmul.bf16.gmra.mxu0 %v7269
        %v7331 = vpop.f32.mrf.mxu0
        %v7332 = vadd.f32 0.0, %v7331
        %v7333 = vpop.f32.mrf.mxu0
        %v7334 = vadd.f32 0.0, %v7333
        %7335 = vmatmul.bf16.gmra.mxu0 %v7272
        %v7336 = vpop.f32.mrf.mxu0
        %v7337 = vadd.f32 0.0, %v7336
        %v7338 = vpop.f32.mrf.mxu0
        %v7339 = vadd.f32 0.0, %v7338
        %7340 = vmatmul.bf16.gmra.mxu0 %v7275
        %v7341 = vpop.f32.mrf.mxu0
        %v7342 = vadd.f32 0.0, %v7341
        %v7343 = vpop.f32.mrf.mxu0
        %v7344 = vadd.f32 0.0, %v7343
        %7345 = vmatmul.bf16.gmra.mxu0 %v7278
        %v7346 = vpop.f32.mrf.mxu0
        %v7347 = vadd.f32 0.0, %v7346
        %v7348 = vpop.f32.mrf.mxu0
        %v7349 = vadd.f32 0.0, %v7348
        %7350 = vmatmul.bf16.gmra.mxu0 %v7281
        %v7351 = vpop.f32.mrf.mxu0
        %v7352 = vadd.f32 0.0, %v7351
        %v7353 = vpop.f32.mrf.mxu0
        %v7354 = vadd.f32 0.0, %v7353
        %7355 = vmatmul.bf16.gmra.mxu0 %v7284
        %v7356 = vpop.f32.mrf.mxu0
        %v7357 = vadd.f32 0.0, %v7356
        %v7358 = vpop.f32.mrf.mxu0
        %v7359 = vadd.f32 0.0, %v7358
        %7360 = vmatmul.bf16.gmra.mxu0 %v7287
        %v7361 = vpop.f32.mrf.mxu0
        %v7362 = vadd.f32 0.0, %v7361
        %v7363 = vpop.f32.mrf.mxu0
        %v7364 = vadd.f32 0.0, %v7363
        %7365 = vmatmul.bf16.gmra.mxu0 %v7290
        %v7366 = vpop.f32.mrf.mxu0
        %v7367 = vadd.f32 0.0, %v7366
        %v7368 = vpop.f32.mrf.mxu0
        %v7369 = vadd.f32 0.0, %v7368
        %7370 = vmatmul.bf16.gmra.mxu0 %v7293
        %v7371 = vpop.f32.mrf.mxu0
        %v7372 = vadd.f32 0.0, %v7371
        %v7373 = vpop.f32.mrf.mxu0
        %v7374 = vadd.f32 0.0, %v7373
        %7375 = vmatmul.bf16.gmra.mxu0 %v7296
        %v7376 = vpop.f32.mrf.mxu0
        %v7377 = vadd.f32 0.0, %v7376
        %v7378 = vpop.f32.mrf.mxu0
        %v7379 = vadd.f32 0.0, %v7378
        %7380 = vmatmul.bf16.gmra.mxu0 %v7299
        %v7381 = vpop.f32.mrf.mxu0
        %v7382 = vadd.f32 0.0, %v7381
        %v7383 = vpop.f32.mrf.mxu0
        %v7384 = vadd.f32 0.0, %v7383
        %7385 = vmatmul.bf16.gmra.mxu0 %v7302
        %v7386 = vpop.f32.mrf.mxu0
        %v7387 = vadd.f32 0.0, %v7386
        %v7388 = vpop.f32.mrf.mxu0
        %v7389 = vadd.f32 0.0, %v7388
        %7390 = vmatmul.bf16.gmra.mxu0 %v7305
        %v7391 = vpop.f32.mrf.mxu0
        %v7392 = vadd.f32 0.0, %v7391
        %v7393 = vpop.f32.mrf.mxu0
        %v7394 = vadd.f32 0.0, %v7393
        %7395 = vdwg.mxu0
        %v7400 = vunpack.c.l.b16 %v7190
        %v7401 = vunpack.c.l.b16 %v7191
        %v7402 = vunpack.c.l.b16 %v7192
        %v7403 = vunpack.c.l.b16 %v7193
        %v7404 = vpack.c.b16 %v7401, %v7400
        %v7405 = vpack.c.b16 %v7403, %v7402
        %v7409 = vsel %vm515, %v7173, 0
        %v7412 = vsel %vm515, %v7174, 0
        %v7415 = vsel %vm515, %v7175, 0
        %v7418 = vsel %vm515, %v7176, 0
        %v7421 = vsel %vm515, %v7177, 0
        %v7424 = vsel %vm515, %v7178, 0
        %v7427 = vsel %vm515, %v7179, 0
        %v7430 = vsel %vm515, %v7180, 0
        %v7433 = vsel %vm515, %v7181, 0
        %v7436 = vsel %vm515, %v7182, 0
        %v7439 = vsel %vm515, %v7183, 0
        %v7442 = vsel %vm515, %v7184, 0
        %v7445 = vsel %vm515, %v7185, 0
        %v7448 = vsel %vm515, %v7186, 0
        %v7451 = vsel %vm515, %v7187, 0
        %v7454 = vsel %vm515, %v7188, 0
        %7456 = vmatpush.bf16.msra.mxu0 0
        %7457 = vmatpush.bf16.msra.mxu0 0
        %7458 = vmatpush.bf16.msra.mxu0 0
        %7459 = vmatpush.bf16.msra.mxu0 0
        %7460 = vmatpush.bf16.msra.mxu0 0
        %7461 = vmatpush.bf16.msra.mxu0 0
        %7462 = vmatpush.bf16.msra.mxu0 %v7405
        %7463 = vmatpush.bf16.msra.mxu0 %v7404
        %7464 = vmatmul.bf16.gmra.mxu0 %v7409
        %v7465 = vpop.f32.mrf.mxu0
        %v7466 = vadd.f32 %v7317, %v7465
        %v7467 = vpop.f32.mrf.mxu0
        %v7468 = vadd.f32 %v7319, %v7467
        %7469 = vmatmul.bf16.gmra.mxu0 %v7412
        %v7470 = vpop.f32.mrf.mxu0
        %v7471 = vadd.f32 %v7322, %v7470
        %v7472 = vpop.f32.mrf.mxu0
        %v7473 = vadd.f32 %v7324, %v7472
        %7474 = vmatmul.bf16.gmra.mxu0 %v7415
        %v7475 = vpop.f32.mrf.mxu0
        %v7476 = vadd.f32 %v7327, %v7475
        %v7477 = vpop.f32.mrf.mxu0
        %v7478 = vadd.f32 %v7329, %v7477
        %7479 = vmatmul.bf16.gmra.mxu0 %v7418
        %v7480 = vpop.f32.mrf.mxu0
        %v7481 = vadd.f32 %v7332, %v7480
        %v7482 = vpop.f32.mrf.mxu0
        %v7483 = vadd.f32 %v7334, %v7482
        %7484 = vmatmul.bf16.gmra.mxu0 %v7421
        %v7485 = vpop.f32.mrf.mxu0
        %v7486 = vadd.f32 %v7337, %v7485
        %v7487 = vpop.f32.mrf.mxu0
        %v7488 = vadd.f32 %v7339, %v7487
        %7489 = vmatmul.bf16.gmra.mxu0 %v7424
        %v7490 = vpop.f32.mrf.mxu0
        %v7491 = vadd.f32 %v7342, %v7490
        %v7492 = vpop.f32.mrf.mxu0
        %v7493 = vadd.f32 %v7344, %v7492
        %7494 = vmatmul.bf16.gmra.mxu0 %v7427
        %v7495 = vpop.f32.mrf.mxu0
        %v7496 = vadd.f32 %v7347, %v7495
        %v7497 = vpop.f32.mrf.mxu0
        %v7498 = vadd.f32 %v7349, %v7497
        %7499 = vmatmul.bf16.gmra.mxu0 %v7430
        %v7500 = vpop.f32.mrf.mxu0
        %v7501 = vadd.f32 %v7352, %v7500
        %v7502 = vpop.f32.mrf.mxu0
        %v7503 = vadd.f32 %v7354, %v7502
        %7504 = vmatmul.bf16.gmra.mxu0 %v7433
        %v7505 = vpop.f32.mrf.mxu0
        %v7506 = vadd.f32 %v7357, %v7505
        %v7507 = vpop.f32.mrf.mxu0
        %v7508 = vadd.f32 %v7359, %v7507
        %7509 = vmatmul.bf16.gmra.mxu0 %v7436
        %v7510 = vpop.f32.mrf.mxu0
        %v7511 = vadd.f32 %v7362, %v7510
        %v7512 = vpop.f32.mrf.mxu0
        %v7513 = vadd.f32 %v7364, %v7512
        %7514 = vmatmul.bf16.gmra.mxu0 %v7439
        %v7515 = vpop.f32.mrf.mxu0
        %v7516 = vadd.f32 %v7367, %v7515
        %v7517 = vpop.f32.mrf.mxu0
        %v7518 = vadd.f32 %v7369, %v7517
        %7519 = vmatmul.bf16.gmra.mxu0 %v7442
        %v7520 = vpop.f32.mrf.mxu0
        %v7521 = vadd.f32 %v7372, %v7520
        %v7522 = vpop.f32.mrf.mxu0
        %v7523 = vadd.f32 %v7374, %v7522
        %7524 = vmatmul.bf16.gmra.mxu0 %v7445
        %v7525 = vpop.f32.mrf.mxu0
        %v7526 = vadd.f32 %v7377, %v7525
        %v7527 = vpop.f32.mrf.mxu0
        %v7528 = vadd.f32 %v7379, %v7527
        %7529 = vmatmul.bf16.gmra.mxu0 %v7448
        %v7530 = vpop.f32.mrf.mxu0
        %v7531 = vadd.f32 %v7382, %v7530
        %v7532 = vpop.f32.mrf.mxu0
        %v7533 = vadd.f32 %v7384, %v7532
        %7534 = vmatmul.bf16.gmra.mxu0 %v7451
        %v7535 = vpop.f32.mrf.mxu0
        %v7536 = vadd.f32 %v7387, %v7535
        %v7537 = vpop.f32.mrf.mxu0
        %v7538 = vadd.f32 %v7389, %v7537
        %7539 = vmatmul.bf16.gmra.mxu0 %v7454
        %v7540 = vpop.f32.mrf.mxu0
        %v7541 = vadd.f32 %v7392, %v7540
        %v7542 = vpop.f32.mrf.mxu0
        %v7543 = vadd.f32 %v7394, %v7542
        %7544 = vdwg.mxu0
        %v7545 = vld [vmem:[#allocation2 + $0x9] sm:$0xff]
        %v7546 = vld [vmem:[#allocation2 + $0x11] sm:$0xff]
        %v7547 = vld [vmem:[#allocation2 + $0x29] sm:$0xff]
        %v7548 = vld [vmem:[#allocation2 + $0x31] sm:$0xff]
        %v7549 = vld [vmem:[#allocation2 + $0x49] sm:$0xff]
        %v7550 = vld [vmem:[#allocation2 + $0x51] sm:$0xff]
        %v7551 = vld [vmem:[#allocation2 + $0x69] sm:$0xff]
        %v7552 = vld [vmem:[#allocation2 + $0x71] sm:$0xff]
        %v7553 = vld [vmem:[#allocation2 + $0x89] sm:$0xff]
        %v7554 = vld [vmem:[#allocation2 + $0x91] sm:$0xff]
        %v7555 = vld [vmem:[#allocation2 + $0xa9] sm:$0xff]
        %v7556 = vld [vmem:[#allocation2 + $0xb1] sm:$0xff]
        %v7557 = vld [vmem:[#allocation2 + $0xc9] sm:$0xff]
        %v7558 = vld [vmem:[#allocation2 + $0xd1] sm:$0xff]
        %v7559 = vld [vmem:[#allocation2 + $0xe9] sm:$0xff]
        %v7560 = vld [vmem:[#allocation2 + $0xf1] sm:$0xff]
        %v7561 = vld [vmem:[#allocation2 + $0x109] sm:$0xff]
        %v7562 = vld [vmem:[#allocation2 + $0x111] sm:$0xff]
        %v7563 = vld [vmem:[#allocation2 + $0x129] sm:$0xff]
        %v7564 = vld [vmem:[#allocation2 + $0x131] sm:$0xff]
        %v7565 = vld [vmem:[#allocation2 + $0x149] sm:$0xff]
        %v7566 = vld [vmem:[#allocation2 + $0x151] sm:$0xff]
        %v7567 = vld [vmem:[#allocation2 + $0x169] sm:$0xff]
        %v7568 = vld [vmem:[#allocation2 + $0x171] sm:$0xff]
        %v7569 = vld [vmem:[#allocation2 + $0x189] sm:$0xff]
        %v7570 = vld [vmem:[#allocation2 + $0x191] sm:$0xff]
        %v7571 = vld [vmem:[#allocation2 + $0x1a9] sm:$0xff]
        %v7572 = vld [vmem:[#allocation2 + $0x1b1] sm:$0xff]
        %v7573 = vld [vmem:[#allocation2 + $0x1c9] sm:$0xff]
        %v7574 = vld [vmem:[#allocation2 + $0x1d1] sm:$0xff]
        %v7575 = vld [vmem:[#allocation2 + $0x1e9] sm:$0xff]
        %v7576 = vld [vmem:[#allocation2 + $0x1f1] sm:$0xff]
        %v7577 = vpack.c.bf16 %v7546, %v7545
        %v7578 = vpack.c.bf16 %v7548, %v7547
        %v7579 = vpack.c.bf16 %v7550, %v7549
        %v7580 = vpack.c.bf16 %v7552, %v7551
        %v7581 = vpack.c.bf16 %v7554, %v7553
        %v7582 = vpack.c.bf16 %v7556, %v7555
        %v7583 = vpack.c.bf16 %v7558, %v7557
        %v7584 = vpack.c.bf16 %v7560, %v7559
        %v7585 = vpack.c.bf16 %v7562, %v7561
        %v7586 = vpack.c.bf16 %v7564, %v7563
        %v7587 = vpack.c.bf16 %v7566, %v7565
        %v7588 = vpack.c.bf16 %v7568, %v7567
        %v7589 = vpack.c.bf16 %v7570, %v7569
        %v7590 = vpack.c.bf16 %v7572, %v7571
        %v7591 = vpack.c.bf16 %v7574, %v7573
        %v7592 = vpack.c.bf16 %v7576, %v7575
        %s7593 = scalar_lea.vmem %s3, 320
        %v7594 = vld [vmem:[%s7593] sm:$0xf]
        %v7595 = vld [vmem:[%s7593 + $0x4] sm:$0xf]
        %v7596 = vld [vmem:[%s7593 + $0x8] sm:$0xf]
        %v7597 = vld [vmem:[%s7593 + $0xc] sm:$0xf]
        %v7602 = vunpack.c.l.b16 %v7594
        %v7603 = vunpack.c.l.b16 %v7595
        %v7604 = vunpack.c.l.b16 %v7596
        %v7605 = vunpack.c.l.b16 %v7597
        %v7606 = vpack.c.b16 %v7603, %v7602
        %v7607 = vpack.c.b16 %v7605, %v7604
        %v7611 = vsel %vm515, %v7577, 0
        %v7614 = vsel %vm515, %v7578, 0
        %v7617 = vsel %vm515, %v7579, 0
        %v7620 = vsel %vm515, %v7580, 0
        %v7623 = vsel %vm515, %v7581, 0
        %v7626 = vsel %vm515, %v7582, 0
        %v7629 = vsel %vm515, %v7583, 0
        %v7632 = vsel %vm515, %v7584, 0
        %v7635 = vsel %vm515, %v7585, 0
        %v7638 = vsel %vm515, %v7586, 0
        %v7641 = vsel %vm515, %v7587, 0
        %v7644 = vsel %vm515, %v7588, 0
        %v7647 = vsel %vm515, %v7589, 0
        %v7650 = vsel %vm515, %v7590, 0
        %v7653 = vsel %vm515, %v7591, 0
        %v7656 = vsel %vm515, %v7592, 0
        %7658 = vmatpush.bf16.msra.mxu0 0
        %7659 = vmatpush.bf16.msra.mxu0 0
        %7660 = vmatpush.bf16.msra.mxu0 0
        %7661 = vmatpush.bf16.msra.mxu0 0
        %7662 = vmatpush.bf16.msra.mxu0 0
        %7663 = vmatpush.bf16.msra.mxu0 0
        %7664 = vmatpush.bf16.msra.mxu0 %v7607
        %7665 = vmatpush.bf16.msra.mxu0 %v7606
        %7666 = vmatmul.bf16.gmra.mxu0 %v7611
        %v7667 = vpop.f32.mrf.mxu0
        %v7668 = vadd.f32 0.0, %v7667
        %v7669 = vpop.f32.mrf.mxu0
        %v7670 = vadd.f32 0.0, %v7669
        %7671 = vmatmul.bf16.gmra.mxu0 %v7614
        %v7672 = vpop.f32.mrf.mxu0
        %v7673 = vadd.f32 0.0, %v7672
        %v7674 = vpop.f32.mrf.mxu0
        %v7675 = vadd.f32 0.0, %v7674
        %7676 = vmatmul.bf16.gmra.mxu0 %v7617
        %v7677 = vpop.f32.mrf.mxu0
        %v7678 = vadd.f32 0.0, %v7677
        %v7679 = vpop.f32.mrf.mxu0
        %v7680 = vadd.f32 0.0, %v7679
        %7681 = vmatmul.bf16.gmra.mxu0 %v7620
        %v7682 = vpop.f32.mrf.mxu0
        %v7683 = vadd.f32 0.0, %v7682
        %v7684 = vpop.f32.mrf.mxu0
        %v7685 = vadd.f32 0.0, %v7684
        %7686 = vmatmul.bf16.gmra.mxu0 %v7623
        %v7687 = vpop.f32.mrf.mxu0
        %v7688 = vadd.f32 0.0, %v7687
        %v7689 = vpop.f32.mrf.mxu0
        %v7690 = vadd.f32 0.0, %v7689
        %7691 = vmatmul.bf16.gmra.mxu0 %v7626
        %v7692 = vpop.f32.mrf.mxu0
        %v7693 = vadd.f32 0.0, %v7692
        %v7694 = vpop.f32.mrf.mxu0
        %v7695 = vadd.f32 0.0, %v7694
        %7696 = vmatmul.bf16.gmra.mxu0 %v7629
        %v7697 = vpop.f32.mrf.mxu0
        %v7698 = vadd.f32 0.0, %v7697
        %v7699 = vpop.f32.mrf.mxu0
        %v7700 = vadd.f32 0.0, %v7699
        %7701 = vmatmul.bf16.gmra.mxu0 %v7632
        %v7702 = vpop.f32.mrf.mxu0
        %v7703 = vadd.f32 0.0, %v7702
        %v7704 = vpop.f32.mrf.mxu0
        %v7705 = vadd.f32 0.0, %v7704
        %7706 = vmatmul.bf16.gmra.mxu0 %v7635
        %v7707 = vpop.f32.mrf.mxu0
        %v7708 = vadd.f32 0.0, %v7707
        %v7709 = vpop.f32.mrf.mxu0
        %v7710 = vadd.f32 0.0, %v7709
        %7711 = vmatmul.bf16.gmra.mxu0 %v7638
        %v7712 = vpop.f32.mrf.mxu0
        %v7713 = vadd.f32 0.0, %v7712
        %v7714 = vpop.f32.mrf.mxu0
        %v7715 = vadd.f32 0.0, %v7714
        %7716 = vmatmul.bf16.gmra.mxu0 %v7641
        %v7717 = vpop.f32.mrf.mxu0
        %v7718 = vadd.f32 0.0, %v7717
        %v7719 = vpop.f32.mrf.mxu0
        %v7720 = vadd.f32 0.0, %v7719
        %7721 = vmatmul.bf16.gmra.mxu0 %v7644
        %v7722 = vpop.f32.mrf.mxu0
        %v7723 = vadd.f32 0.0, %v7722
        %v7724 = vpop.f32.mrf.mxu0
        %v7725 = vadd.f32 0.0, %v7724
        %7726 = vmatmul.bf16.gmra.mxu0 %v7647
        %v7727 = vpop.f32.mrf.mxu0
        %v7728 = vadd.f32 0.0, %v7727
        %v7729 = vpop.f32.mrf.mxu0
        %v7730 = vadd.f32 0.0, %v7729
        %7731 = vmatmul.bf16.gmra.mxu0 %v7650
        %v7732 = vpop.f32.mrf.mxu0
        %v7733 = vadd.f32 0.0, %v7732
        %v7734 = vpop.f32.mrf.mxu0
        %v7735 = vadd.f32 0.0, %v7734
        %7736 = vmatmul.bf16.gmra.mxu0 %v7653
        %v7737 = vpop.f32.mrf.mxu0
        %v7738 = vadd.f32 0.0, %v7737
        %v7739 = vpop.f32.mrf.mxu0
        %v7740 = vadd.f32 0.0, %v7739
        %7741 = vmatmul.bf16.gmra.mxu0 %v7656
        %v7742 = vpop.f32.mrf.mxu0
        %v7743 = vadd.f32 0.0, %v7742
        %v7744 = vpop.f32.mrf.mxu0
        %v7745 = vadd.f32 0.0, %v7744
        %7746 = vdwg.mxu0
        %v7747 = vadd.f32 %v7466, %v7668
        %v7748 = vadd.f32 %v7468, %v7670
        %v7749 = vadd.f32 %v7471, %v7673
        %v7750 = vadd.f32 %v7473, %v7675
        %v7751 = vadd.f32 %v7476, %v7678
        %v7752 = vadd.f32 %v7478, %v7680
        %v7753 = vadd.f32 %v7481, %v7683
        %v7754 = vadd.f32 %v7483, %v7685
        %v7755 = vadd.f32 %v7486, %v7688
        %v7756 = vadd.f32 %v7488, %v7690
        %v7757 = vadd.f32 %v7491, %v7693
        %v7758 = vadd.f32 %v7493, %v7695
        %v7759 = vadd.f32 %v7496, %v7698
        %v7760 = vadd.f32 %v7498, %v7700
        %v7761 = vadd.f32 %v7501, %v7703
        %v7762 = vadd.f32 %v7503, %v7705
        %v7763 = vadd.f32 %v7506, %v7708
        %v7764 = vadd.f32 %v7508, %v7710
        %v7765 = vadd.f32 %v7511, %v7713
        %v7766 = vadd.f32 %v7513, %v7715
        %v7767 = vadd.f32 %v7516, %v7718
        %v7768 = vadd.f32 %v7518, %v7720
        %v7769 = vadd.f32 %v7521, %v7723
        %v7770 = vadd.f32 %v7523, %v7725
        %v7771 = vadd.f32 %v7526, %v7728
        %v7772 = vadd.f32 %v7528, %v7730
        %v7773 = vadd.f32 %v7531, %v7733
        %v7774 = vadd.f32 %v7533, %v7735
        %v7775 = vadd.f32 %v7536, %v7738
        %v7776 = vadd.f32 %v7538, %v7740
        %v7777 = vadd.f32 %v7541, %v7743
        %v7778 = vadd.f32 %v7543, %v7745
        %v7779 = vld [vmem:[%s1924 + $0x7] sm:$0xff]
        %v7780 = vld [vmem:[%s1924 + $0xf] sm:$0xff]
        %v7781 = vld [vmem:[%s1924 + $0x27] sm:$0xff]
        %v7782 = vld [vmem:[%s1924 + $0x2f] sm:$0xff]
        %v7783 = vld [vmem:[%s1924 + $0x47] sm:$0xff]
        %v7784 = vld [vmem:[%s1924 + $0x4f] sm:$0xff]
        %v7785 = vld [vmem:[%s1924 + $0x67] sm:$0xff]
        %v7786 = vld [vmem:[%s1924 + $0x6f] sm:$0xff]
        %v7787 = vld [vmem:[%s1924 + $0x87] sm:$0xff]
        %v7788 = vld [vmem:[%s1924 + $0x8f] sm:$0xff]
        %v7789 = vld [vmem:[%s1924 + $0xa7] sm:$0xff]
        %v7790 = vld [vmem:[%s1924 + $0xaf] sm:$0xff]
        %v7791 = vld [vmem:[%s1924 + $0xc7] sm:$0xff]
        %v7792 = vld [vmem:[%s1924 + $0xcf] sm:$0xff]
        %v7793 = vld [vmem:[%s1924 + $0xe7] sm:$0xff]
        %v7794 = vld [vmem:[%s1924 + $0xef] sm:$0xff]
        %v7795 = vld [vmem:[%s1924 + $0x107] sm:$0xff]
        %v7796 = vld [vmem:[%s1924 + $0x10f] sm:$0xff]
        %v7797 = vld [vmem:[%s1924 + $0x127] sm:$0xff]
        %v7798 = vld [vmem:[%s1924 + $0x12f] sm:$0xff]
        %v7799 = vld [vmem:[%s1924 + $0x147] sm:$0xff]
        %v7800 = vld [vmem:[%s1924 + $0x14f] sm:$0xff]
        %v7801 = vld [vmem:[%s1924 + $0x167] sm:$0xff]
        %v7802 = vld [vmem:[%s1924 + $0x16f] sm:$0xff]
        %v7803 = vld [vmem:[%s1924 + $0x187] sm:$0xff]
        %v7804 = vld [vmem:[%s1924 + $0x18f] sm:$0xff]
        %v7805 = vld [vmem:[%s1924 + $0x1a7] sm:$0xff]
        %v7806 = vld [vmem:[%s1924 + $0x1af] sm:$0xff]
        %v7807 = vld [vmem:[%s1924 + $0x1c7] sm:$0xff]
        %v7808 = vld [vmem:[%s1924 + $0x1cf] sm:$0xff]
        %v7809 = vld [vmem:[%s1924 + $0x1e7] sm:$0xff]
        %v7810 = vld [vmem:[%s1924 + $0x1ef] sm:$0xff]
        %v7811 = vpack.c.bf16 %v7780, %v7779
        %v7812 = vpack.c.bf16 %v7782, %v7781
        %v7813 = vpack.c.bf16 %v7784, %v7783
        %v7814 = vpack.c.bf16 %v7786, %v7785
        %v7815 = vpack.c.bf16 %v7788, %v7787
        %v7816 = vpack.c.bf16 %v7790, %v7789
        %v7817 = vpack.c.bf16 %v7792, %v7791
        %v7818 = vpack.c.bf16 %v7794, %v7793
        %v7819 = vpack.c.bf16 %v7796, %v7795
        %v7820 = vpack.c.bf16 %v7798, %v7797
        %v7821 = vpack.c.bf16 %v7800, %v7799
        %v7822 = vpack.c.bf16 %v7802, %v7801
        %v7823 = vpack.c.bf16 %v7804, %v7803
        %v7824 = vpack.c.bf16 %v7806, %v7805
        %v7825 = vpack.c.bf16 %v7808, %v7807
        %v7826 = vpack.c.bf16 %v7810, %v7809
        %s7827 = scalar_lea.vmem %s3, 336
        %v7828 = vld [vmem:[%s7827] sm:$0xf]
        %v7829 = vld [vmem:[%s7827 + $0x4] sm:$0xf]
        %v7830 = vld [vmem:[%s7827 + $0x8] sm:$0xf]
        %v7831 = vld [vmem:[%s7827 + $0xc] sm:$0xf]
        %v7836 = vunpack.c.l.b16 %v7828
        %v7837 = vunpack.c.l.b16 %v7829
        %v7838 = vunpack.c.l.b16 %v7830
        %v7839 = vunpack.c.l.b16 %v7831
        %v7840 = vpack.c.b16 %v7837, %v7836
        %v7841 = vpack.c.b16 %v7839, %v7838
        %v7845 = vsel %vm515, %v7811, 0
        %v7848 = vsel %vm515, %v7812, 0
        %v7851 = vsel %vm515, %v7813, 0
        %v7854 = vsel %vm515, %v7814, 0
        %v7857 = vsel %vm515, %v7815, 0
        %v7860 = vsel %vm515, %v7816, 0
        %v7863 = vsel %vm515, %v7817, 0
        %v7866 = vsel %vm515, %v7818, 0
        %v7869 = vsel %vm515, %v7819, 0
        %v7872 = vsel %vm515, %v7820, 0
        %v7875 = vsel %vm515, %v7821, 0
        %v7878 = vsel %vm515, %v7822, 0
        %v7881 = vsel %vm515, %v7823, 0
        %v7884 = vsel %vm515, %v7824, 0
        %v7887 = vsel %vm515, %v7825, 0
        %v7890 = vsel %vm515, %v7826, 0
        %7892 = vmatpush.bf16.msra.mxu0 0
        %7893 = vmatpush.bf16.msra.mxu0 0
        %7894 = vmatpush.bf16.msra.mxu0 0
        %7895 = vmatpush.bf16.msra.mxu0 0
        %7896 = vmatpush.bf16.msra.mxu0 0
        %7897 = vmatpush.bf16.msra.mxu0 0
        %7898 = vmatpush.bf16.msra.mxu0 %v7841
        %7899 = vmatpush.bf16.msra.mxu0 %v7840
        %7900 = vmatmul.bf16.gmra.mxu0 %v7845
        %v7901 = vpop.f32.mrf.mxu0
        %v7902 = vadd.f32 0.0, %v7901
        %v7903 = vpop.f32.mrf.mxu0
        %v7904 = vadd.f32 0.0, %v7903
        %7905 = vmatmul.bf16.gmra.mxu0 %v7848
        %v7906 = vpop.f32.mrf.mxu0
        %v7907 = vadd.f32 0.0, %v7906
        %v7908 = vpop.f32.mrf.mxu0
        %v7909 = vadd.f32 0.0, %v7908
        %7910 = vmatmul.bf16.gmra.mxu0 %v7851
        %v7911 = vpop.f32.mrf.mxu0
        %v7912 = vadd.f32 0.0, %v7911
        %v7913 = vpop.f32.mrf.mxu0
        %v7914 = vadd.f32 0.0, %v7913
        %7915 = vmatmul.bf16.gmra.mxu0 %v7854
        %v7916 = vpop.f32.mrf.mxu0
        %v7917 = vadd.f32 0.0, %v7916
        %v7918 = vpop.f32.mrf.mxu0
        %v7919 = vadd.f32 0.0, %v7918
        %7920 = vmatmul.bf16.gmra.mxu0 %v7857
        %v7921 = vpop.f32.mrf.mxu0
        %v7922 = vadd.f32 0.0, %v7921
        %v7923 = vpop.f32.mrf.mxu0
        %v7924 = vadd.f32 0.0, %v7923
        %7925 = vmatmul.bf16.gmra.mxu0 %v7860
        %v7926 = vpop.f32.mrf.mxu0
        %v7927 = vadd.f32 0.0, %v7926
        %v7928 = vpop.f32.mrf.mxu0
        %v7929 = vadd.f32 0.0, %v7928
        %7930 = vmatmul.bf16.gmra.mxu0 %v7863
        %v7931 = vpop.f32.mrf.mxu0
        %v7932 = vadd.f32 0.0, %v7931
        %v7933 = vpop.f32.mrf.mxu0
        %v7934 = vadd.f32 0.0, %v7933
        %7935 = vmatmul.bf16.gmra.mxu0 %v7866
        %v7936 = vpop.f32.mrf.mxu0
        %v7937 = vadd.f32 0.0, %v7936
        %v7938 = vpop.f32.mrf.mxu0
        %v7939 = vadd.f32 0.0, %v7938
        %7940 = vmatmul.bf16.gmra.mxu0 %v7869
        %v7941 = vpop.f32.mrf.mxu0
        %v7942 = vadd.f32 0.0, %v7941
        %v7943 = vpop.f32.mrf.mxu0
        %v7944 = vadd.f32 0.0, %v7943
        %7945 = vmatmul.bf16.gmra.mxu0 %v7872
        %v7946 = vpop.f32.mrf.mxu0
        %v7947 = vadd.f32 0.0, %v7946
        %v7948 = vpop.f32.mrf.mxu0
        %v7949 = vadd.f32 0.0, %v7948
        %7950 = vmatmul.bf16.gmra.mxu0 %v7875
        %v7951 = vpop.f32.mrf.mxu0
        %v7952 = vadd.f32 0.0, %v7951
        %v7953 = vpop.f32.mrf.mxu0
        %v7954 = vadd.f32 0.0, %v7953
        %7955 = vmatmul.bf16.gmra.mxu0 %v7878
        %v7956 = vpop.f32.mrf.mxu0
        %v7957 = vadd.f32 0.0, %v7956
        %v7958 = vpop.f32.mrf.mxu0
        %v7959 = vadd.f32 0.0, %v7958
        %7960 = vmatmul.bf16.gmra.mxu0 %v7881
        %v7961 = vpop.f32.mrf.mxu0
        %v7962 = vadd.f32 0.0, %v7961
        %v7963 = vpop.f32.mrf.mxu0
        %v7964 = vadd.f32 0.0, %v7963
        %7965 = vmatmul.bf16.gmra.mxu0 %v7884
        %v7966 = vpop.f32.mrf.mxu0
        %v7967 = vadd.f32 0.0, %v7966
        %v7968 = vpop.f32.mrf.mxu0
        %v7969 = vadd.f32 0.0, %v7968
        %7970 = vmatmul.bf16.gmra.mxu0 %v7887
        %v7971 = vpop.f32.mrf.mxu0
        %v7972 = vadd.f32 0.0, %v7971
        %v7973 = vpop.f32.mrf.mxu0
        %v7974 = vadd.f32 0.0, %v7973
        %7975 = vmatmul.bf16.gmra.mxu0 %v7890
        %v7976 = vpop.f32.mrf.mxu0
        %v7977 = vadd.f32 0.0, %v7976
        %v7978 = vpop.f32.mrf.mxu0
        %v7979 = vadd.f32 0.0, %v7978
        %7980 = vdwg.mxu0
        %v7981 = vadd.f32 %v7747, %v7902
        %v7982 = vadd.f32 %v7748, %v7904
        %v7983 = vadd.f32 %v7749, %v7907
        %v7984 = vadd.f32 %v7750, %v7909
        %v7985 = vadd.f32 %v7751, %v7912
        %v7986 = vadd.f32 %v7752, %v7914
        %v7987 = vadd.f32 %v7753, %v7917
        %v7988 = vadd.f32 %v7754, %v7919
        %v7989 = vadd.f32 %v7755, %v7922
        %v7990 = vadd.f32 %v7756, %v7924
        %v7991 = vadd.f32 %v7757, %v7927
        %v7992 = vadd.f32 %v7758, %v7929
        %v7993 = vadd.f32 %v7759, %v7932
        %v7994 = vadd.f32 %v7760, %v7934
        %v7995 = vadd.f32 %v7761, %v7937
        %v7996 = vadd.f32 %v7762, %v7939
        %v7997 = vadd.f32 %v7763, %v7942
        %v7998 = vadd.f32 %v7764, %v7944
        %v7999 = vadd.f32 %v7765, %v7947
        %v8000 = vadd.f32 %v7766, %v7949
        %v8001 = vadd.f32 %v7767, %v7952
        %v8002 = vadd.f32 %v7768, %v7954
        %v8003 = vadd.f32 %v7769, %v7957
        %v8004 = vadd.f32 %v7770, %v7959
        %v8005 = vadd.f32 %v7771, %v7962
        %v8006 = vadd.f32 %v7772, %v7964
        %v8007 = vadd.f32 %v7773, %v7967
        %v8008 = vadd.f32 %v7774, %v7969
        %v8009 = vadd.f32 %v7775, %v7972
        %v8010 = vadd.f32 %v7776, %v7974
        %v8011 = vadd.f32 %v7777, %v7977
        %v8012 = vadd.f32 %v7778, %v7979
        %v8013 = vld [vmem:[%s1924 + $0x8] sm:$0xff]
        %v8014 = vld [vmem:[%s1924 + $0x10] sm:$0xff]
        %v8015 = vld [vmem:[%s1924 + $0x28] sm:$0xff]
        %v8016 = vld [vmem:[%s1924 + $0x30] sm:$0xff]
        %v8017 = vld [vmem:[%s1924 + $0x48] sm:$0xff]
        %v8018 = vld [vmem:[%s1924 + $0x50] sm:$0xff]
        %v8019 = vld [vmem:[%s1924 + $0x68] sm:$0xff]
        %v8020 = vld [vmem:[%s1924 + $0x70] sm:$0xff]
        %v8021 = vld [vmem:[%s1924 + $0x88] sm:$0xff]
        %v8022 = vld [vmem:[%s1924 + $0x90] sm:$0xff]
        %v8023 = vld [vmem:[%s1924 + $0xa8] sm:$0xff]
        %v8024 = vld [vmem:[%s1924 + $0xb0] sm:$0xff]
        %v8025 = vld [vmem:[%s1924 + $0xc8] sm:$0xff]
        %v8026 = vld [vmem:[%s1924 + $0xd0] sm:$0xff]
        %v8027 = vld [vmem:[%s1924 + $0xe8] sm:$0xff]
        %v8028 = vld [vmem:[%s1924 + $0xf0] sm:$0xff]
        %v8029 = vld [vmem:[%s1924 + $0x108] sm:$0xff]
        %v8030 = vld [vmem:[%s1924 + $0x110] sm:$0xff]
        %v8031 = vld [vmem:[%s1924 + $0x128] sm:$0xff]
        %v8032 = vld [vmem:[%s1924 + $0x130] sm:$0xff]
        %v8033 = vld [vmem:[%s1924 + $0x148] sm:$0xff]
        %v8034 = vld [vmem:[%s1924 + $0x150] sm:$0xff]
        %v8035 = vld [vmem:[%s1924 + $0x168] sm:$0xff]
        %v8036 = vld [vmem:[%s1924 + $0x170] sm:$0xff]
        %v8037 = vld [vmem:[%s1924 + $0x188] sm:$0xff]
        %v8038 = vld [vmem:[%s1924 + $0x190] sm:$0xff]
        %v8039 = vld [vmem:[%s1924 + $0x1a8] sm:$0xff]
        %v8040 = vld [vmem:[%s1924 + $0x1b0] sm:$0xff]
        %v8041 = vld [vmem:[%s1924 + $0x1c8] sm:$0xff]
        %v8042 = vld [vmem:[%s1924 + $0x1d0] sm:$0xff]
        %v8043 = vld [vmem:[%s1924 + $0x1e8] sm:$0xff]
        %v8044 = vld [vmem:[%s1924 + $0x1f0] sm:$0xff]
        %v8045 = vpack.c.bf16 %v8014, %v8013
        %v8046 = vpack.c.bf16 %v8016, %v8015
        %v8047 = vpack.c.bf16 %v8018, %v8017
        %v8048 = vpack.c.bf16 %v8020, %v8019
        %v8049 = vpack.c.bf16 %v8022, %v8021
        %v8050 = vpack.c.bf16 %v8024, %v8023
        %v8051 = vpack.c.bf16 %v8026, %v8025
        %v8052 = vpack.c.bf16 %v8028, %v8027
        %v8053 = vpack.c.bf16 %v8030, %v8029
        %v8054 = vpack.c.bf16 %v8032, %v8031
        %v8055 = vpack.c.bf16 %v8034, %v8033
        %v8056 = vpack.c.bf16 %v8036, %v8035
        %v8057 = vpack.c.bf16 %v8038, %v8037
        %v8058 = vpack.c.bf16 %v8040, %v8039
        %v8059 = vpack.c.bf16 %v8042, %v8041
        %v8060 = vpack.c.bf16 %v8044, %v8043
        %s8061 = scalar_lea.vmem %s3, 352
        %v8062 = vld [vmem:[%s8061] sm:$0xf]
        %v8063 = vld [vmem:[%s8061 + $0x4] sm:$0xf]
        %v8064 = vld [vmem:[%s8061 + $0x8] sm:$0xf]
        %v8065 = vld [vmem:[%s8061 + $0xc] sm:$0xf]
        %v8070 = vunpack.c.l.b16 %v8062
        %v8071 = vunpack.c.l.b16 %v8063
        %v8072 = vunpack.c.l.b16 %v8064
        %v8073 = vunpack.c.l.b16 %v8065
        %v8074 = vpack.c.b16 %v8071, %v8070
        %v8075 = vpack.c.b16 %v8073, %v8072
        %v8079 = vsel %vm515, %v8045, 0
        %v8082 = vsel %vm515, %v8046, 0
        %v8085 = vsel %vm515, %v8047, 0
        %v8088 = vsel %vm515, %v8048, 0
        %v8091 = vsel %vm515, %v8049, 0
        %v8094 = vsel %vm515, %v8050, 0
        %v8097 = vsel %vm515, %v8051, 0
        %v8100 = vsel %vm515, %v8052, 0
        %v8103 = vsel %vm515, %v8053, 0
        %v8106 = vsel %vm515, %v8054, 0
        %v8109 = vsel %vm515, %v8055, 0
        %v8112 = vsel %vm515, %v8056, 0
        %v8115 = vsel %vm515, %v8057, 0
        %v8118 = vsel %vm515, %v8058, 0
        %v8121 = vsel %vm515, %v8059, 0
        %v8124 = vsel %vm515, %v8060, 0
        %8126 = vmatpush.bf16.msra.mxu0 0
        %8127 = vmatpush.bf16.msra.mxu0 0
        %8128 = vmatpush.bf16.msra.mxu0 0
        %8129 = vmatpush.bf16.msra.mxu0 0
        %8130 = vmatpush.bf16.msra.mxu0 0
        %8131 = vmatpush.bf16.msra.mxu0 0
        %8132 = vmatpush.bf16.msra.mxu0 %v8075
        %8133 = vmatpush.bf16.msra.mxu0 %v8074
        %8134 = vmatmul.bf16.gmra.mxu0 %v8079
        %v8135 = vpop.f32.mrf.mxu0
        %v8136 = vadd.f32 0.0, %v8135
        %v8137 = vpop.f32.mrf.mxu0
        %v8138 = vadd.f32 0.0, %v8137
        %8139 = vmatmul.bf16.gmra.mxu0 %v8082
        %v8140 = vpop.f32.mrf.mxu0
        %v8141 = vadd.f32 0.0, %v8140
        %v8142 = vpop.f32.mrf.mxu0
        %v8143 = vadd.f32 0.0, %v8142
        %8144 = vmatmul.bf16.gmra.mxu0 %v8085
        %v8145 = vpop.f32.mrf.mxu0
        %v8146 = vadd.f32 0.0, %v8145
        %v8147 = vpop.f32.mrf.mxu0
        %v8148 = vadd.f32 0.0, %v8147
        %8149 = vmatmul.bf16.gmra.mxu0 %v8088
        %v8150 = vpop.f32.mrf.mxu0
        %v8151 = vadd.f32 0.0, %v8150
        %v8152 = vpop.f32.mrf.mxu0
        %v8153 = vadd.f32 0.0, %v8152
        %8154 = vmatmul.bf16.gmra.mxu0 %v8091
        %v8155 = vpop.f32.mrf.mxu0
        %v8156 = vadd.f32 0.0, %v8155
        %v8157 = vpop.f32.mrf.mxu0
        %v8158 = vadd.f32 0.0, %v8157
        %8159 = vmatmul.bf16.gmra.mxu0 %v8094
        %v8160 = vpop.f32.mrf.mxu0
        %v8161 = vadd.f32 0.0, %v8160
        %v8162 = vpop.f32.mrf.mxu0
        %v8163 = vadd.f32 0.0, %v8162
        %8164 = vmatmul.bf16.gmra.mxu0 %v8097
        %v8165 = vpop.f32.mrf.mxu0
        %v8166 = vadd.f32 0.0, %v8165
        %v8167 = vpop.f32.mrf.mxu0
        %v8168 = vadd.f32 0.0, %v8167
        %8169 = vmatmul.bf16.gmra.mxu0 %v8100
        %v8170 = vpop.f32.mrf.mxu0
        %v8171 = vadd.f32 0.0, %v8170
        %v8172 = vpop.f32.mrf.mxu0
        %v8173 = vadd.f32 0.0, %v8172
        %8174 = vmatmul.bf16.gmra.mxu0 %v8103
        %v8175 = vpop.f32.mrf.mxu0
        %v8176 = vadd.f32 0.0, %v8175
        %v8177 = vpop.f32.mrf.mxu0
        %v8178 = vadd.f32 0.0, %v8177
        %8179 = vmatmul.bf16.gmra.mxu0 %v8106
        %v8180 = vpop.f32.mrf.mxu0
        %v8181 = vadd.f32 0.0, %v8180
        %v8182 = vpop.f32.mrf.mxu0
        %v8183 = vadd.f32 0.0, %v8182
        %8184 = vmatmul.bf16.gmra.mxu0 %v8109
        %v8185 = vpop.f32.mrf.mxu0
        %v8186 = vadd.f32 0.0, %v8185
        %v8187 = vpop.f32.mrf.mxu0
        %v8188 = vadd.f32 0.0, %v8187
        %8189 = vmatmul.bf16.gmra.mxu0 %v8112
        %v8190 = vpop.f32.mrf.mxu0
        %v8191 = vadd.f32 0.0, %v8190
        %v8192 = vpop.f32.mrf.mxu0
        %v8193 = vadd.f32 0.0, %v8192
        %8194 = vmatmul.bf16.gmra.mxu0 %v8115
        %v8195 = vpop.f32.mrf.mxu0
        %v8196 = vadd.f32 0.0, %v8195
        %v8197 = vpop.f32.mrf.mxu0
        %v8198 = vadd.f32 0.0, %v8197
        %8199 = vmatmul.bf16.gmra.mxu0 %v8118
        %v8200 = vpop.f32.mrf.mxu0
        %v8201 = vadd.f32 0.0, %v8200
        %v8202 = vpop.f32.mrf.mxu0
        %v8203 = vadd.f32 0.0, %v8202
        %8204 = vmatmul.bf16.gmra.mxu0 %v8121
        %v8205 = vpop.f32.mrf.mxu0
        %v8206 = vadd.f32 0.0, %v8205
        %v8207 = vpop.f32.mrf.mxu0
        %v8208 = vadd.f32 0.0, %v8207
        %8209 = vmatmul.bf16.gmra.mxu0 %v8124
        %v8210 = vpop.f32.mrf.mxu0
        %v8211 = vadd.f32 0.0, %v8210
        %v8212 = vpop.f32.mrf.mxu0
        %v8213 = vadd.f32 0.0, %v8212
        %8214 = vdwg.mxu0
        %v8215 = vadd.f32 %v7981, %v8136
        %v8216 = vadd.f32 %v7982, %v8138
        %v8217 = vadd.f32 %v7983, %v8141
        %v8218 = vadd.f32 %v7984, %v8143
        %v8219 = vadd.f32 %v7985, %v8146
        %v8220 = vadd.f32 %v7986, %v8148
        %v8221 = vadd.f32 %v7987, %v8151
        %v8222 = vadd.f32 %v7988, %v8153
        %v8223 = vadd.f32 %v7989, %v8156
        %v8224 = vadd.f32 %v7990, %v8158
        %v8225 = vadd.f32 %v7991, %v8161
        %v8226 = vadd.f32 %v7992, %v8163
        %v8227 = vadd.f32 %v7993, %v8166
        %v8228 = vadd.f32 %v7994, %v8168
        %v8229 = vadd.f32 %v7995, %v8171
        %v8230 = vadd.f32 %v7996, %v8173
        %v8231 = vadd.f32 %v7997, %v8176
        %v8232 = vadd.f32 %v7998, %v8178
        %v8233 = vadd.f32 %v7999, %v8181
        %v8234 = vadd.f32 %v8000, %v8183
        %v8235 = vadd.f32 %v8001, %v8186
        %v8236 = vadd.f32 %v8002, %v8188
        %v8237 = vadd.f32 %v8003, %v8191
        %v8238 = vadd.f32 %v8004, %v8193
        %v8239 = vadd.f32 %v8005, %v8196
        %v8240 = vadd.f32 %v8006, %v8198
        %v8241 = vadd.f32 %v8007, %v8201
        %v8242 = vadd.f32 %v8008, %v8203
        %v8243 = vadd.f32 %v8009, %v8206
        %v8244 = vadd.f32 %v8010, %v8208
        %v8245 = vadd.f32 %v8011, %v8211
        %v8246 = vadd.f32 %v8012, %v8213
        %v8247 = vld [vmem:[%s1924 + $0x9] sm:$0xff]
        %v8248 = vld [vmem:[%s1924 + $0x11] sm:$0xff]
        %v8249 = vld [vmem:[%s1924 + $0x29] sm:$0xff]
        %v8250 = vld [vmem:[%s1924 + $0x31] sm:$0xff]
        %v8251 = vld [vmem:[%s1924 + $0x49] sm:$0xff]
        %v8252 = vld [vmem:[%s1924 + $0x51] sm:$0xff]
        %v8253 = vld [vmem:[%s1924 + $0x69] sm:$0xff]
        %v8254 = vld [vmem:[%s1924 + $0x71] sm:$0xff]
        %v8255 = vld [vmem:[%s1924 + $0x89] sm:$0xff]
        %v8256 = vld [vmem:[%s1924 + $0x91] sm:$0xff]
        %v8257 = vld [vmem:[%s1924 + $0xa9] sm:$0xff]
        %v8258 = vld [vmem:[%s1924 + $0xb1] sm:$0xff]
        %v8259 = vld [vmem:[%s1924 + $0xc9] sm:$0xff]
        %v8260 = vld [vmem:[%s1924 + $0xd1] sm:$0xff]
        %v8261 = vld [vmem:[%s1924 + $0xe9] sm:$0xff]
        %v8262 = vld [vmem:[%s1924 + $0xf1] sm:$0xff]
        %v8263 = vld [vmem:[%s1924 + $0x109] sm:$0xff]
        %v8264 = vld [vmem:[%s1924 + $0x111] sm:$0xff]
        %v8265 = vld [vmem:[%s1924 + $0x129] sm:$0xff]
        %v8266 = vld [vmem:[%s1924 + $0x131] sm:$0xff]
        %v8267 = vld [vmem:[%s1924 + $0x149] sm:$0xff]
        %v8268 = vld [vmem:[%s1924 + $0x151] sm:$0xff]
        %v8269 = vld [vmem:[%s1924 + $0x169] sm:$0xff]
        %v8270 = vld [vmem:[%s1924 + $0x171] sm:$0xff]
        %v8271 = vld [vmem:[%s1924 + $0x189] sm:$0xff]
        %v8272 = vld [vmem:[%s1924 + $0x191] sm:$0xff]
        %v8273 = vld [vmem:[%s1924 + $0x1a9] sm:$0xff]
        %v8274 = vld [vmem:[%s1924 + $0x1b1] sm:$0xff]
        %v8275 = vld [vmem:[%s1924 + $0x1c9] sm:$0xff]
        %v8276 = vld [vmem:[%s1924 + $0x1d1] sm:$0xff]
        %v8277 = vld [vmem:[%s1924 + $0x1e9] sm:$0xff]
        %v8278 = vld [vmem:[%s1924 + $0x1f1] sm:$0xff]
        %v8279 = vpack.c.bf16 %v8248, %v8247
        %v8280 = vpack.c.bf16 %v8250, %v8249
        %v8281 = vpack.c.bf16 %v8252, %v8251
        %v8282 = vpack.c.bf16 %v8254, %v8253
        %v8283 = vpack.c.bf16 %v8256, %v8255
        %v8284 = vpack.c.bf16 %v8258, %v8257
        %v8285 = vpack.c.bf16 %v8260, %v8259
        %v8286 = vpack.c.bf16 %v8262, %v8261
        %v8287 = vpack.c.bf16 %v8264, %v8263
        %v8288 = vpack.c.bf16 %v8266, %v8265
        %v8289 = vpack.c.bf16 %v8268, %v8267
        %v8290 = vpack.c.bf16 %v8270, %v8269
        %v8291 = vpack.c.bf16 %v8272, %v8271
        %v8292 = vpack.c.bf16 %v8274, %v8273
        %v8293 = vpack.c.bf16 %v8276, %v8275
        %v8294 = vpack.c.bf16 %v8278, %v8277
        %s8295 = scalar_lea.vmem %s3, 368
        %v8296 = vld [vmem:[%s8295] sm:$0xf]
        %v8297 = vld [vmem:[%s8295 + $0x4] sm:$0xf]
        %v8298 = vld [vmem:[%s8295 + $0x8] sm:$0xf]
        %v8299 = vld [vmem:[%s8295 + $0xc] sm:$0xf]
        %v8304 = vunpack.c.l.b16 %v8296
        %v8305 = vunpack.c.l.b16 %v8297
        %v8306 = vunpack.c.l.b16 %v8298
        %v8307 = vunpack.c.l.b16 %v8299
        %v8308 = vpack.c.b16 %v8305, %v8304
        %v8309 = vpack.c.b16 %v8307, %v8306
        %v8313 = vsel %vm515, %v8279, 0
        %v8316 = vsel %vm515, %v8280, 0
        %v8319 = vsel %vm515, %v8281, 0
        %v8322 = vsel %vm515, %v8282, 0
        %v8325 = vsel %vm515, %v8283, 0
        %v8328 = vsel %vm515, %v8284, 0
        %v8331 = vsel %vm515, %v8285, 0
        %v8334 = vsel %vm515, %v8286, 0
        %v8337 = vsel %vm515, %v8287, 0
        %v8340 = vsel %vm515, %v8288, 0
        %v8343 = vsel %vm515, %v8289, 0
        %v8346 = vsel %vm515, %v8290, 0
        %v8349 = vsel %vm515, %v8291, 0
        %v8352 = vsel %vm515, %v8292, 0
        %v8355 = vsel %vm515, %v8293, 0
        %v8358 = vsel %vm515, %v8294, 0
        %8360 = vmatpush.bf16.msra.mxu0 0
        %8361 = vmatpush.bf16.msra.mxu0 0
        %8362 = vmatpush.bf16.msra.mxu0 0
        %8363 = vmatpush.bf16.msra.mxu0 0
        %8364 = vmatpush.bf16.msra.mxu0 0
        %8365 = vmatpush.bf16.msra.mxu0 0
        %8366 = vmatpush.bf16.msra.mxu0 %v8309
        %8367 = vmatpush.bf16.msra.mxu0 %v8308
        %8368 = vmatmul.bf16.gmra.mxu0 %v8313
        %v8369 = vpop.f32.mrf.mxu0
        %v8370 = vadd.f32 0.0, %v8369
        %v8371 = vpop.f32.mrf.mxu0
        %v8372 = vadd.f32 0.0, %v8371
        %8373 = vmatmul.bf16.gmra.mxu0 %v8316
        %v8374 = vpop.f32.mrf.mxu0
        %v8375 = vadd.f32 0.0, %v8374
        %v8376 = vpop.f32.mrf.mxu0
        %v8377 = vadd.f32 0.0, %v8376
        %8378 = vmatmul.bf16.gmra.mxu0 %v8319
        %v8379 = vpop.f32.mrf.mxu0
        %v8380 = vadd.f32 0.0, %v8379
        %v8381 = vpop.f32.mrf.mxu0
        %v8382 = vadd.f32 0.0, %v8381
        %8383 = vmatmul.bf16.gmra.mxu0 %v8322
        %v8384 = vpop.f32.mrf.mxu0
        %v8385 = vadd.f32 0.0, %v8384
        %v8386 = vpop.f32.mrf.mxu0
        %v8387 = vadd.f32 0.0, %v8386
        %8388 = vmatmul.bf16.gmra.mxu0 %v8325
        %v8389 = vpop.f32.mrf.mxu0
        %v8390 = vadd.f32 0.0, %v8389
        %v8391 = vpop.f32.mrf.mxu0
        %v8392 = vadd.f32 0.0, %v8391
        %8393 = vmatmul.bf16.gmra.mxu0 %v8328
        %v8394 = vpop.f32.mrf.mxu0
        %v8395 = vadd.f32 0.0, %v8394
        %v8396 = vpop.f32.mrf.mxu0
        %v8397 = vadd.f32 0.0, %v8396
        %8398 = vmatmul.bf16.gmra.mxu0 %v8331
        %v8399 = vpop.f32.mrf.mxu0
        %v8400 = vadd.f32 0.0, %v8399
        %v8401 = vpop.f32.mrf.mxu0
        %v8402 = vadd.f32 0.0, %v8401
        %8403 = vmatmul.bf16.gmra.mxu0 %v8334
        %v8404 = vpop.f32.mrf.mxu0
        %v8405 = vadd.f32 0.0, %v8404
        %v8406 = vpop.f32.mrf.mxu0
        %v8407 = vadd.f32 0.0, %v8406
        %8408 = vmatmul.bf16.gmra.mxu0 %v8337
        %v8409 = vpop.f32.mrf.mxu0
        %v8410 = vadd.f32 0.0, %v8409
        %v8411 = vpop.f32.mrf.mxu0
        %v8412 = vadd.f32 0.0, %v8411
        %8413 = vmatmul.bf16.gmra.mxu0 %v8340
        %v8414 = vpop.f32.mrf.mxu0
        %v8415 = vadd.f32 0.0, %v8414
        %v8416 = vpop.f32.mrf.mxu0
        %v8417 = vadd.f32 0.0, %v8416
        %8418 = vmatmul.bf16.gmra.mxu0 %v8343
        %v8419 = vpop.f32.mrf.mxu0
        %v8420 = vadd.f32 0.0, %v8419
        %v8421 = vpop.f32.mrf.mxu0
        %v8422 = vadd.f32 0.0, %v8421
        %8423 = vmatmul.bf16.gmra.mxu0 %v8346
        %v8424 = vpop.f32.mrf.mxu0
        %v8425 = vadd.f32 0.0, %v8424
        %v8426 = vpop.f32.mrf.mxu0
        %v8427 = vadd.f32 0.0, %v8426
        %8428 = vmatmul.bf16.gmra.mxu0 %v8349
        %v8429 = vpop.f32.mrf.mxu0
        %v8430 = vadd.f32 0.0, %v8429
        %v8431 = vpop.f32.mrf.mxu0
        %v8432 = vadd.f32 0.0, %v8431
        %8433 = vmatmul.bf16.gmra.mxu0 %v8352
        %v8434 = vpop.f32.mrf.mxu0
        %v8435 = vadd.f32 0.0, %v8434
        %v8436 = vpop.f32.mrf.mxu0
        %v8437 = vadd.f32 0.0, %v8436
        %8438 = vmatmul.bf16.gmra.mxu0 %v8355
        %v8439 = vpop.f32.mrf.mxu0
        %v8440 = vadd.f32 0.0, %v8439
        %v8441 = vpop.f32.mrf.mxu0
        %v8442 = vadd.f32 0.0, %v8441
        %8443 = vmatmul.bf16.gmra.mxu0 %v8358
        %v8444 = vpop.f32.mrf.mxu0
        %v8445 = vadd.f32 0.0, %v8444
        %v8446 = vpop.f32.mrf.mxu0
        %v8447 = vadd.f32 0.0, %v8446
        %8448 = vdwg.mxu0
        %v8449 = vadd.f32 %v8215, %v8370
        %v8450 = vadd.f32 %v8216, %v8372
        %v8451 = vadd.f32 %v8217, %v8375
        %v8452 = vadd.f32 %v8218, %v8377
        %v8453 = vadd.f32 %v8219, %v8380
        %v8454 = vadd.f32 %v8220, %v8382
        %v8455 = vadd.f32 %v8221, %v8385
        %v8456 = vadd.f32 %v8222, %v8387
        %v8457 = vadd.f32 %v8223, %v8390
        %v8458 = vadd.f32 %v8224, %v8392
        %v8459 = vadd.f32 %v8225, %v8395
        %v8460 = vadd.f32 %v8226, %v8397
        %v8461 = vadd.f32 %v8227, %v8400
        %v8462 = vadd.f32 %v8228, %v8402
        %v8463 = vadd.f32 %v8229, %v8405
        %v8464 = vadd.f32 %v8230, %v8407
        %v8465 = vadd.f32 %v8231, %v8410
        %v8466 = vadd.f32 %v8232, %v8412
        %v8467 = vadd.f32 %v8233, %v8415
        %v8468 = vadd.f32 %v8234, %v8417
        %v8469 = vadd.f32 %v8235, %v8420
        %v8470 = vadd.f32 %v8236, %v8422
        %v8471 = vadd.f32 %v8237, %v8425
        %v8472 = vadd.f32 %v8238, %v8427
        %v8473 = vadd.f32 %v8239, %v8430
        %v8474 = vadd.f32 %v8240, %v8432
        %v8475 = vadd.f32 %v8241, %v8435
        %v8476 = vadd.f32 %v8242, %v8437
        %v8477 = vadd.f32 %v8243, %v8440
        %v8478 = vadd.f32 %v8244, %v8442
        %v8479 = vadd.f32 %v8245, %v8445
        %v8480 = vadd.f32 %v8246, %v8447
        %v8481 = vld [vmem:[%s3296 + $0x7] sm:$0xff]
        %v8482 = vld [vmem:[%s3296 + $0xf] sm:$0xff]
        %v8483 = vld [vmem:[%s3296 + $0x27] sm:$0xff]
        %v8484 = vld [vmem:[%s3296 + $0x2f] sm:$0xff]
        %v8485 = vld [vmem:[%s3296 + $0x47] sm:$0xff]
        %v8486 = vld [vmem:[%s3296 + $0x4f] sm:$0xff]
        %v8487 = vld [vmem:[%s3296 + $0x67] sm:$0xff]
        %v8488 = vld [vmem:[%s3296 + $0x6f] sm:$0xff]
        %v8489 = vld [vmem:[%s3296 + $0x87] sm:$0xff]
        %v8490 = vld [vmem:[%s3296 + $0x8f] sm:$0xff]
        %v8491 = vld [vmem:[%s3296 + $0xa7] sm:$0xff]
        %v8492 = vld [vmem:[%s3296 + $0xaf] sm:$0xff]
        %v8493 = vld [vmem:[%s3296 + $0xc7] sm:$0xff]
        %v8494 = vld [vmem:[%s3296 + $0xcf] sm:$0xff]
        %v8495 = vld [vmem:[%s3296 + $0xe7] sm:$0xff]
        %v8496 = vld [vmem:[%s3296 + $0xef] sm:$0xff]
        %v8497 = vld [vmem:[%s3296 + $0x107] sm:$0xff]
        %v8498 = vld [vmem:[%s3296 + $0x10f] sm:$0xff]
        %v8499 = vld [vmem:[%s3296 + $0x127] sm:$0xff]
        %v8500 = vld [vmem:[%s3296 + $0x12f] sm:$0xff]
        %v8501 = vld [vmem:[%s3296 + $0x147] sm:$0xff]
        %v8502 = vld [vmem:[%s3296 + $0x14f] sm:$0xff]
        %v8503 = vld [vmem:[%s3296 + $0x167] sm:$0xff]
        %v8504 = vld [vmem:[%s3296 + $0x16f] sm:$0xff]
        %v8505 = vld [vmem:[%s3296 + $0x187] sm:$0xff]
        %v8506 = vld [vmem:[%s3296 + $0x18f] sm:$0xff]
        %v8507 = vld [vmem:[%s3296 + $0x1a7] sm:$0xff]
        %v8508 = vld [vmem:[%s3296 + $0x1af] sm:$0xff]
        %v8509 = vld [vmem:[%s3296 + $0x1c7] sm:$0xff]
        %v8510 = vld [vmem:[%s3296 + $0x1cf] sm:$0xff]
        %v8511 = vld [vmem:[%s3296 + $0x1e7] sm:$0xff]
        %v8512 = vld [vmem:[%s3296 + $0x1ef] sm:$0xff]
        %v8513 = vpack.c.bf16 %v8482, %v8481
        %v8514 = vpack.c.bf16 %v8484, %v8483
        %v8515 = vpack.c.bf16 %v8486, %v8485
        %v8516 = vpack.c.bf16 %v8488, %v8487
        %v8517 = vpack.c.bf16 %v8490, %v8489
        %v8518 = vpack.c.bf16 %v8492, %v8491
        %v8519 = vpack.c.bf16 %v8494, %v8493
        %v8520 = vpack.c.bf16 %v8496, %v8495
        %v8521 = vpack.c.bf16 %v8498, %v8497
        %v8522 = vpack.c.bf16 %v8500, %v8499
        %v8523 = vpack.c.bf16 %v8502, %v8501
        %v8524 = vpack.c.bf16 %v8504, %v8503
        %v8525 = vpack.c.bf16 %v8506, %v8505
        %v8526 = vpack.c.bf16 %v8508, %v8507
        %v8527 = vpack.c.bf16 %v8510, %v8509
        %v8528 = vpack.c.bf16 %v8512, %v8511
        %s8529 = scalar_lea.vmem %s3, 384
        %v8530 = vld [vmem:[%s8529] sm:$0xf]
        %v8531 = vld [vmem:[%s8529 + $0x4] sm:$0xf]
        %v8532 = vld [vmem:[%s8529 + $0x8] sm:$0xf]
        %v8533 = vld [vmem:[%s8529 + $0xc] sm:$0xf]
        %v8538 = vunpack.c.l.b16 %v8530
        %v8539 = vunpack.c.l.b16 %v8531
        %v8540 = vunpack.c.l.b16 %v8532
        %v8541 = vunpack.c.l.b16 %v8533
        %v8542 = vpack.c.b16 %v8539, %v8538
        %v8543 = vpack.c.b16 %v8541, %v8540
        %v8547 = vsel %vm515, %v8513, 0
        %v8550 = vsel %vm515, %v8514, 0
        %v8553 = vsel %vm515, %v8515, 0
        %v8556 = vsel %vm515, %v8516, 0
        %v8559 = vsel %vm515, %v8517, 0
        %v8562 = vsel %vm515, %v8518, 0
        %v8565 = vsel %vm515, %v8519, 0
        %v8568 = vsel %vm515, %v8520, 0
        %v8571 = vsel %vm515, %v8521, 0
        %v8574 = vsel %vm515, %v8522, 0
        %v8577 = vsel %vm515, %v8523, 0
        %v8580 = vsel %vm515, %v8524, 0
        %v8583 = vsel %vm515, %v8525, 0
        %v8586 = vsel %vm515, %v8526, 0
        %v8589 = vsel %vm515, %v8527, 0
        %v8592 = vsel %vm515, %v8528, 0
        %8594 = vmatpush.bf16.msra.mxu0 0
        %8595 = vmatpush.bf16.msra.mxu0 0
        %8596 = vmatpush.bf16.msra.mxu0 0
        %8597 = vmatpush.bf16.msra.mxu0 0
        %8598 = vmatpush.bf16.msra.mxu0 0
        %8599 = vmatpush.bf16.msra.mxu0 0
        %8600 = vmatpush.bf16.msra.mxu0 %v8543
        %8601 = vmatpush.bf16.msra.mxu0 %v8542
        %8602 = vmatmul.bf16.gmra.mxu0 %v8547
        %v8603 = vpop.f32.mrf.mxu0
        %v8604 = vadd.f32 0.0, %v8603
        %v8605 = vpop.f32.mrf.mxu0
        %v8606 = vadd.f32 0.0, %v8605
        %8607 = vmatmul.bf16.gmra.mxu0 %v8550
        %v8608 = vpop.f32.mrf.mxu0
        %v8609 = vadd.f32 0.0, %v8608
        %v8610 = vpop.f32.mrf.mxu0
        %v8611 = vadd.f32 0.0, %v8610
        %8612 = vmatmul.bf16.gmra.mxu0 %v8553
        %v8613 = vpop.f32.mrf.mxu0
        %v8614 = vadd.f32 0.0, %v8613
        %v8615 = vpop.f32.mrf.mxu0
        %v8616 = vadd.f32 0.0, %v8615
        %8617 = vmatmul.bf16.gmra.mxu0 %v8556
        %v8618 = vpop.f32.mrf.mxu0
        %v8619 = vadd.f32 0.0, %v8618
        %v8620 = vpop.f32.mrf.mxu0
        %v8621 = vadd.f32 0.0, %v8620
        %8622 = vmatmul.bf16.gmra.mxu0 %v8559
        %v8623 = vpop.f32.mrf.mxu0
        %v8624 = vadd.f32 0.0, %v8623
        %v8625 = vpop.f32.mrf.mxu0
        %v8626 = vadd.f32 0.0, %v8625
        %8627 = vmatmul.bf16.gmra.mxu0 %v8562
        %v8628 = vpop.f32.mrf.mxu0
        %v8629 = vadd.f32 0.0, %v8628
        %v8630 = vpop.f32.mrf.mxu0
        %v8631 = vadd.f32 0.0, %v8630
        %8632 = vmatmul.bf16.gmra.mxu0 %v8565
        %v8633 = vpop.f32.mrf.mxu0
        %v8634 = vadd.f32 0.0, %v8633
        %v8635 = vpop.f32.mrf.mxu0
        %v8636 = vadd.f32 0.0, %v8635
        %8637 = vmatmul.bf16.gmra.mxu0 %v8568
        %v8638 = vpop.f32.mrf.mxu0
        %v8639 = vadd.f32 0.0, %v8638
        %v8640 = vpop.f32.mrf.mxu0
        %v8641 = vadd.f32 0.0, %v8640
        %8642 = vmatmul.bf16.gmra.mxu0 %v8571
        %v8643 = vpop.f32.mrf.mxu0
        %v8644 = vadd.f32 0.0, %v8643
        %v8645 = vpop.f32.mrf.mxu0
        %v8646 = vadd.f32 0.0, %v8645
        %8647 = vmatmul.bf16.gmra.mxu0 %v8574
        %v8648 = vpop.f32.mrf.mxu0
        %v8649 = vadd.f32 0.0, %v8648
        %v8650 = vpop.f32.mrf.mxu0
        %v8651 = vadd.f32 0.0, %v8650
        %8652 = vmatmul.bf16.gmra.mxu0 %v8577
        %v8653 = vpop.f32.mrf.mxu0
        %v8654 = vadd.f32 0.0, %v8653
        %v8655 = vpop.f32.mrf.mxu0
        %v8656 = vadd.f32 0.0, %v8655
        %8657 = vmatmul.bf16.gmra.mxu0 %v8580
        %v8658 = vpop.f32.mrf.mxu0
        %v8659 = vadd.f32 0.0, %v8658
        %v8660 = vpop.f32.mrf.mxu0
        %v8661 = vadd.f32 0.0, %v8660
        %8662 = vmatmul.bf16.gmra.mxu0 %v8583
        %v8663 = vpop.f32.mrf.mxu0
        %v8664 = vadd.f32 0.0, %v8663
        %v8665 = vpop.f32.mrf.mxu0
        %v8666 = vadd.f32 0.0, %v8665
        %8667 = vmatmul.bf16.gmra.mxu0 %v8586
        %v8668 = vpop.f32.mrf.mxu0
        %v8669 = vadd.f32 0.0, %v8668
        %v8670 = vpop.f32.mrf.mxu0
        %v8671 = vadd.f32 0.0, %v8670
        %8672 = vmatmul.bf16.gmra.mxu0 %v8589
        %v8673 = vpop.f32.mrf.mxu0
        %v8674 = vadd.f32 0.0, %v8673
        %v8675 = vpop.f32.mrf.mxu0
        %v8676 = vadd.f32 0.0, %v8675
        %8677 = vmatmul.bf16.gmra.mxu0 %v8592
        %v8678 = vpop.f32.mrf.mxu0
        %v8679 = vadd.f32 0.0, %v8678
        %v8680 = vpop.f32.mrf.mxu0
        %v8681 = vadd.f32 0.0, %v8680
        %8682 = vdwg.mxu0
        %v8683 = vadd.f32 %v8449, %v8604
        %v8684 = vadd.f32 %v8450, %v8606
        %v8685 = vadd.f32 %v8451, %v8609
        %v8686 = vadd.f32 %v8452, %v8611
        %v8687 = vadd.f32 %v8453, %v8614
        %v8688 = vadd.f32 %v8454, %v8616
        %v8689 = vadd.f32 %v8455, %v8619
        %v8690 = vadd.f32 %v8456, %v8621
        %v8691 = vadd.f32 %v8457, %v8624
        %v8692 = vadd.f32 %v8458, %v8626
        %v8693 = vadd.f32 %v8459, %v8629
        %v8694 = vadd.f32 %v8460, %v8631
        %v8695 = vadd.f32 %v8461, %v8634
        %v8696 = vadd.f32 %v8462, %v8636
        %v8697 = vadd.f32 %v8463, %v8639
        %v8698 = vadd.f32 %v8464, %v8641
        %v8699 = vadd.f32 %v8465, %v8644
        %v8700 = vadd.f32 %v8466, %v8646
        %v8701 = vadd.f32 %v8467, %v8649
        %v8702 = vadd.f32 %v8468, %v8651
        %v8703 = vadd.f32 %v8469, %v8654
        %v8704 = vadd.f32 %v8470, %v8656
        %v8705 = vadd.f32 %v8471, %v8659
        %v8706 = vadd.f32 %v8472, %v8661
        %v8707 = vadd.f32 %v8473, %v8664
        %v8708 = vadd.f32 %v8474, %v8666
        %v8709 = vadd.f32 %v8475, %v8669
        %v8710 = vadd.f32 %v8476, %v8671
        %v8711 = vadd.f32 %v8477, %v8674
        %v8712 = vadd.f32 %v8478, %v8676
        %v8713 = vadd.f32 %v8479, %v8679
        %v8714 = vadd.f32 %v8480, %v8681
        %v8715 = vld [vmem:[%s3296 + $0x8] sm:$0xff]
        %v8716 = vld [vmem:[%s3296 + $0x10] sm:$0xff]
        %v8717 = vld [vmem:[%s3296 + $0x28] sm:$0xff]
        %v8718 = vld [vmem:[%s3296 + $0x30] sm:$0xff]
        %v8719 = vld [vmem:[%s3296 + $0x48] sm:$0xff]
        %v8720 = vld [vmem:[%s3296 + $0x50] sm:$0xff]
        %v8721 = vld [vmem:[%s3296 + $0x68] sm:$0xff]
        %v8722 = vld [vmem:[%s3296 + $0x70] sm:$0xff]
        %v8723 = vld [vmem:[%s3296 + $0x88] sm:$0xff]
        %v8724 = vld [vmem:[%s3296 + $0x90] sm:$0xff]
        %v8725 = vld [vmem:[%s3296 + $0xa8] sm:$0xff]
        %v8726 = vld [vmem:[%s3296 + $0xb0] sm:$0xff]
        %v8727 = vld [vmem:[%s3296 + $0xc8] sm:$0xff]
        %v8728 = vld [vmem:[%s3296 + $0xd0] sm:$0xff]
        %v8729 = vld [vmem:[%s3296 + $0xe8] sm:$0xff]
        %v8730 = vld [vmem:[%s3296 + $0xf0] sm:$0xff]
        %v8731 = vld [vmem:[%s3296 + $0x108] sm:$0xff]
        %v8732 = vld [vmem:[%s3296 + $0x110] sm:$0xff]
        %v8733 = vld [vmem:[%s3296 + $0x128] sm:$0xff]
        %v8734 = vld [vmem:[%s3296 + $0x130] sm:$0xff]
        %v8735 = vld [vmem:[%s3296 + $0x148] sm:$0xff]
        %v8736 = vld [vmem:[%s3296 + $0x150] sm:$0xff]
        %v8737 = vld [vmem:[%s3296 + $0x168] sm:$0xff]
        %v8738 = vld [vmem:[%s3296 + $0x170] sm:$0xff]
        %v8739 = vld [vmem:[%s3296 + $0x188] sm:$0xff]
        %v8740 = vld [vmem:[%s3296 + $0x190] sm:$0xff]
        %v8741 = vld [vmem:[%s3296 + $0x1a8] sm:$0xff]
        %v8742 = vld [vmem:[%s3296 + $0x1b0] sm:$0xff]
        %v8743 = vld [vmem:[%s3296 + $0x1c8] sm:$0xff]
        %v8744 = vld [vmem:[%s3296 + $0x1d0] sm:$0xff]
        %v8745 = vld [vmem:[%s3296 + $0x1e8] sm:$0xff]
        %v8746 = vld [vmem:[%s3296 + $0x1f0] sm:$0xff]
        %v8747 = vpack.c.bf16 %v8716, %v8715
        %v8748 = vpack.c.bf16 %v8718, %v8717
        %v8749 = vpack.c.bf16 %v8720, %v8719
        %v8750 = vpack.c.bf16 %v8722, %v8721
        %v8751 = vpack.c.bf16 %v8724, %v8723
        %v8752 = vpack.c.bf16 %v8726, %v8725
        %v8753 = vpack.c.bf16 %v8728, %v8727
        %v8754 = vpack.c.bf16 %v8730, %v8729
        %v8755 = vpack.c.bf16 %v8732, %v8731
        %v8756 = vpack.c.bf16 %v8734, %v8733
        %v8757 = vpack.c.bf16 %v8736, %v8735
        %v8758 = vpack.c.bf16 %v8738, %v8737
        %v8759 = vpack.c.bf16 %v8740, %v8739
        %v8760 = vpack.c.bf16 %v8742, %v8741
        %v8761 = vpack.c.bf16 %v8744, %v8743
        %v8762 = vpack.c.bf16 %v8746, %v8745
        %s8763 = scalar_lea.vmem %s3, 400
        %v8764 = vld [vmem:[%s8763] sm:$0xf]
        %v8765 = vld [vmem:[%s8763 + $0x4] sm:$0xf]
        %v8766 = vld [vmem:[%s8763 + $0x8] sm:$0xf]
        %v8767 = vld [vmem:[%s8763 + $0xc] sm:$0xf]
        %v8772 = vunpack.c.l.b16 %v8764
        %v8773 = vunpack.c.l.b16 %v8765
        %v8774 = vunpack.c.l.b16 %v8766
        %v8775 = vunpack.c.l.b16 %v8767
        %v8776 = vpack.c.b16 %v8773, %v8772
        %v8777 = vpack.c.b16 %v8775, %v8774
        %v8781 = vsel %vm515, %v8747, 0
        %v8784 = vsel %vm515, %v8748, 0
        %v8787 = vsel %vm515, %v8749, 0
        %v8790 = vsel %vm515, %v8750, 0
        %v8793 = vsel %vm515, %v8751, 0
        %v8796 = vsel %vm515, %v8752, 0
        %v8799 = vsel %vm515, %v8753, 0
        %v8802 = vsel %vm515, %v8754, 0
        %v8805 = vsel %vm515, %v8755, 0
        %v8808 = vsel %vm515, %v8756, 0
        %v8811 = vsel %vm515, %v8757, 0
        %v8814 = vsel %vm515, %v8758, 0
        %v8817 = vsel %vm515, %v8759, 0
        %v8820 = vsel %vm515, %v8760, 0
        %v8823 = vsel %vm515, %v8761, 0
        %v8826 = vsel %vm515, %v8762, 0
        %8828 = vmatpush.bf16.msra.mxu0 0
        %8829 = vmatpush.bf16.msra.mxu0 0
        %8830 = vmatpush.bf16.msra.mxu0 0
        %8831 = vmatpush.bf16.msra.mxu0 0
        %8832 = vmatpush.bf16.msra.mxu0 0
        %8833 = vmatpush.bf16.msra.mxu0 0
        %8834 = vmatpush.bf16.msra.mxu0 %v8777
        %8835 = vmatpush.bf16.msra.mxu0 %v8776
        %8836 = vmatmul.bf16.gmra.mxu0 %v8781
        %v8837 = vpop.f32.mrf.mxu0
        %v8838 = vadd.f32 0.0, %v8837
        %v8839 = vpop.f32.mrf.mxu0
        %v8840 = vadd.f32 0.0, %v8839
        %8841 = vmatmul.bf16.gmra.mxu0 %v8784
        %v8842 = vpop.f32.mrf.mxu0
        %v8843 = vadd.f32 0.0, %v8842
        %v8844 = vpop.f32.mrf.mxu0
        %v8845 = vadd.f32 0.0, %v8844
        %8846 = vmatmul.bf16.gmra.mxu0 %v8787
        %v8847 = vpop.f32.mrf.mxu0
        %v8848 = vadd.f32 0.0, %v8847
        %v8849 = vpop.f32.mrf.mxu0
        %v8850 = vadd.f32 0.0, %v8849
        %8851 = vmatmul.bf16.gmra.mxu0 %v8790
        %v8852 = vpop.f32.mrf.mxu0
        %v8853 = vadd.f32 0.0, %v8852
        %v8854 = vpop.f32.mrf.mxu0
        %v8855 = vadd.f32 0.0, %v8854
        %8856 = vmatmul.bf16.gmra.mxu0 %v8793
        %v8857 = vpop.f32.mrf.mxu0
        %v8858 = vadd.f32 0.0, %v8857
        %v8859 = vpop.f32.mrf.mxu0
        %v8860 = vadd.f32 0.0, %v8859
        %8861 = vmatmul.bf16.gmra.mxu0 %v8796
        %v8862 = vpop.f32.mrf.mxu0
        %v8863 = vadd.f32 0.0, %v8862
        %v8864 = vpop.f32.mrf.mxu0
        %v8865 = vadd.f32 0.0, %v8864
        %8866 = vmatmul.bf16.gmra.mxu0 %v8799
        %v8867 = vpop.f32.mrf.mxu0
        %v8868 = vadd.f32 0.0, %v8867
        %v8869 = vpop.f32.mrf.mxu0
        %v8870 = vadd.f32 0.0, %v8869
        %8871 = vmatmul.bf16.gmra.mxu0 %v8802
        %v8872 = vpop.f32.mrf.mxu0
        %v8873 = vadd.f32 0.0, %v8872
        %v8874 = vpop.f32.mrf.mxu0
        %v8875 = vadd.f32 0.0, %v8874
        %8876 = vmatmul.bf16.gmra.mxu0 %v8805
        %v8877 = vpop.f32.mrf.mxu0
        %v8878 = vadd.f32 0.0, %v8877
        %v8879 = vpop.f32.mrf.mxu0
        %v8880 = vadd.f32 0.0, %v8879
        %8881 = vmatmul.bf16.gmra.mxu0 %v8808
        %v8882 = vpop.f32.mrf.mxu0
        %v8883 = vadd.f32 0.0, %v8882
        %v8884 = vpop.f32.mrf.mxu0
        %v8885 = vadd.f32 0.0, %v8884
        %8886 = vmatmul.bf16.gmra.mxu0 %v8811
        %v8887 = vpop.f32.mrf.mxu0
        %v8888 = vadd.f32 0.0, %v8887
        %v8889 = vpop.f32.mrf.mxu0
        %v8890 = vadd.f32 0.0, %v8889
        %8891 = vmatmul.bf16.gmra.mxu0 %v8814
        %v8892 = vpop.f32.mrf.mxu0
        %v8893 = vadd.f32 0.0, %v8892
        %v8894 = vpop.f32.mrf.mxu0
        %v8895 = vadd.f32 0.0, %v8894
        %8896 = vmatmul.bf16.gmra.mxu0 %v8817
        %v8897 = vpop.f32.mrf.mxu0
        %v8898 = vadd.f32 0.0, %v8897
        %v8899 = vpop.f32.mrf.mxu0
        %v8900 = vadd.f32 0.0, %v8899
        %8901 = vmatmul.bf16.gmra.mxu0 %v8820
        %v8902 = vpop.f32.mrf.mxu0
        %v8903 = vadd.f32 0.0, %v8902
        %v8904 = vpop.f32.mrf.mxu0
        %v8905 = vadd.f32 0.0, %v8904
        %8906 = vmatmul.bf16.gmra.mxu0 %v8823
        %v8907 = vpop.f32.mrf.mxu0
        %v8908 = vadd.f32 0.0, %v8907
        %v8909 = vpop.f32.mrf.mxu0
        %v8910 = vadd.f32 0.0, %v8909
        %8911 = vmatmul.bf16.gmra.mxu0 %v8826
        %v8912 = vpop.f32.mrf.mxu0
        %v8913 = vadd.f32 0.0, %v8912
        %v8914 = vpop.f32.mrf.mxu0
        %v8915 = vadd.f32 0.0, %v8914
        %8916 = vdwg.mxu0
        %v8917 = vadd.f32 %v8683, %v8838
        %v8918 = vadd.f32 %v8684, %v8840
        %v8919 = vadd.f32 %v8685, %v8843
        %v8920 = vadd.f32 %v8686, %v8845
        %v8921 = vadd.f32 %v8687, %v8848
        %v8922 = vadd.f32 %v8688, %v8850
        %v8923 = vadd.f32 %v8689, %v8853
        %v8924 = vadd.f32 %v8690, %v8855
        %v8925 = vadd.f32 %v8691, %v8858
        %v8926 = vadd.f32 %v8692, %v8860
        %v8927 = vadd.f32 %v8693, %v8863
        %v8928 = vadd.f32 %v8694, %v8865
        %v8929 = vadd.f32 %v8695, %v8868
        %v8930 = vadd.f32 %v8696, %v8870
        %v8931 = vadd.f32 %v8697, %v8873
        %v8932 = vadd.f32 %v8698, %v8875
        %v8933 = vadd.f32 %v8699, %v8878
        %v8934 = vadd.f32 %v8700, %v8880
        %v8935 = vadd.f32 %v8701, %v8883
        %v8936 = vadd.f32 %v8702, %v8885
        %v8937 = vadd.f32 %v8703, %v8888
        %v8938 = vadd.f32 %v8704, %v8890
        %v8939 = vadd.f32 %v8705, %v8893
        %v8940 = vadd.f32 %v8706, %v8895
        %v8941 = vadd.f32 %v8707, %v8898
        %v8942 = vadd.f32 %v8708, %v8900
        %v8943 = vadd.f32 %v8709, %v8903
        %v8944 = vadd.f32 %v8710, %v8905
        %v8945 = vadd.f32 %v8711, %v8908
        %v8946 = vadd.f32 %v8712, %v8910
        %v8947 = vadd.f32 %v8713, %v8913
        %v8948 = vadd.f32 %v8714, %v8915
        %v8949 = vld [vmem:[%s3296 + $0x9] sm:$0xff]
        %v8950 = vld [vmem:[%s3296 + $0x11] sm:$0xff]
        %v8951 = vld [vmem:[%s3296 + $0x29] sm:$0xff]
        %v8952 = vld [vmem:[%s3296 + $0x31] sm:$0xff]
        %v8953 = vld [vmem:[%s3296 + $0x49] sm:$0xff]
        %v8954 = vld [vmem:[%s3296 + $0x51] sm:$0xff]
        %v8955 = vld [vmem:[%s3296 + $0x69] sm:$0xff]
        %v8956 = vld [vmem:[%s3296 + $0x71] sm:$0xff]
        %v8957 = vld [vmem:[%s3296 + $0x89] sm:$0xff]
        %v8958 = vld [vmem:[%s3296 + $0x91] sm:$0xff]
        %v8959 = vld [vmem:[%s3296 + $0xa9] sm:$0xff]
        %v8960 = vld [vmem:[%s3296 + $0xb1] sm:$0xff]
        %v8961 = vld [vmem:[%s3296 + $0xc9] sm:$0xff]
        %v8962 = vld [vmem:[%s3296 + $0xd1] sm:$0xff]
        %v8963 = vld [vmem:[%s3296 + $0xe9] sm:$0xff]
        %v8964 = vld [vmem:[%s3296 + $0xf1] sm:$0xff]
        %v8965 = vld [vmem:[%s3296 + $0x109] sm:$0xff]
        %v8966 = vld [vmem:[%s3296 + $0x111] sm:$0xff]
        %v8967 = vld [vmem:[%s3296 + $0x129] sm:$0xff]
        %v8968 = vld [vmem:[%s3296 + $0x131] sm:$0xff]
        %v8969 = vld [vmem:[%s3296 + $0x149] sm:$0xff]
        %v8970 = vld [vmem:[%s3296 + $0x151] sm:$0xff]
        %v8971 = vld [vmem:[%s3296 + $0x169] sm:$0xff]
        %v8972 = vld [vmem:[%s3296 + $0x171] sm:$0xff]
        %v8973 = vld [vmem:[%s3296 + $0x189] sm:$0xff]
        %v8974 = vld [vmem:[%s3296 + $0x191] sm:$0xff]
        %v8975 = vld [vmem:[%s3296 + $0x1a9] sm:$0xff]
        %v8976 = vld [vmem:[%s3296 + $0x1b1] sm:$0xff]
        %v8977 = vld [vmem:[%s3296 + $0x1c9] sm:$0xff]
        %v8978 = vld [vmem:[%s3296 + $0x1d1] sm:$0xff]
        %v8979 = vld [vmem:[%s3296 + $0x1e9] sm:$0xff]
        %v8980 = vld [vmem:[%s3296 + $0x1f1] sm:$0xff]
        %v8981 = vpack.c.bf16 %v8950, %v8949
        %v8982 = vpack.c.bf16 %v8952, %v8951
        %v8983 = vpack.c.bf16 %v8954, %v8953
        %v8984 = vpack.c.bf16 %v8956, %v8955
        %v8985 = vpack.c.bf16 %v8958, %v8957
        %v8986 = vpack.c.bf16 %v8960, %v8959
        %v8987 = vpack.c.bf16 %v8962, %v8961
        %v8988 = vpack.c.bf16 %v8964, %v8963
        %v8989 = vpack.c.bf16 %v8966, %v8965
        %v8990 = vpack.c.bf16 %v8968, %v8967
        %v8991 = vpack.c.bf16 %v8970, %v8969
        %v8992 = vpack.c.bf16 %v8972, %v8971
        %v8993 = vpack.c.bf16 %v8974, %v8973
        %v8994 = vpack.c.bf16 %v8976, %v8975
        %v8995 = vpack.c.bf16 %v8978, %v8977
        %v8996 = vpack.c.bf16 %v8980, %v8979
        %s8997 = scalar_lea.vmem %s3, 416
        %v8998 = vld [vmem:[%s8997] sm:$0xf]
        %v8999 = vld [vmem:[%s8997 + $0x4] sm:$0xf]
        %v9000 = vld [vmem:[%s8997 + $0x8] sm:$0xf]
        %v9001 = vld [vmem:[%s8997 + $0xc] sm:$0xf]
        %v9006 = vunpack.c.l.b16 %v8998
        %v9007 = vunpack.c.l.b16 %v8999
        %v9008 = vunpack.c.l.b16 %v9000
        %v9009 = vunpack.c.l.b16 %v9001
        %v9010 = vpack.c.b16 %v9007, %v9006
        %v9011 = vpack.c.b16 %v9009, %v9008
        %v9015 = vsel %vm515, %v8981, 0
        %v9018 = vsel %vm515, %v8982, 0
        %v9021 = vsel %vm515, %v8983, 0
        %v9024 = vsel %vm515, %v8984, 0
        %v9027 = vsel %vm515, %v8985, 0
        %v9030 = vsel %vm515, %v8986, 0
        %v9033 = vsel %vm515, %v8987, 0
        %v9036 = vsel %vm515, %v8988, 0
        %v9039 = vsel %vm515, %v8989, 0
        %v9042 = vsel %vm515, %v8990, 0
        %v9045 = vsel %vm515, %v8991, 0
        %v9048 = vsel %vm515, %v8992, 0
        %v9051 = vsel %vm515, %v8993, 0
        %v9054 = vsel %vm515, %v8994, 0
        %v9057 = vsel %vm515, %v8995, 0
        %v9060 = vsel %vm515, %v8996, 0
        %9062 = vmatpush.bf16.msra.mxu0 0
        %9063 = vmatpush.bf16.msra.mxu0 0
        %9064 = vmatpush.bf16.msra.mxu0 0
        %9065 = vmatpush.bf16.msra.mxu0 0
        %9066 = vmatpush.bf16.msra.mxu0 0
        %9067 = vmatpush.bf16.msra.mxu0 0
        %9068 = vmatpush.bf16.msra.mxu0 %v9011
        %9069 = vmatpush.bf16.msra.mxu0 %v9010
        %9070 = vmatmul.bf16.gmra.mxu0 %v9015
        %v9071 = vpop.f32.mrf.mxu0
        %v9072 = vadd.f32 0.0, %v9071
        %v9073 = vpop.f32.mrf.mxu0
        %v9074 = vadd.f32 0.0, %v9073
        %9075 = vmatmul.bf16.gmra.mxu0 %v9018
        %v9076 = vpop.f32.mrf.mxu0
        %v9077 = vadd.f32 0.0, %v9076
        %v9078 = vpop.f32.mrf.mxu0
        %v9079 = vadd.f32 0.0, %v9078
        %9080 = vmatmul.bf16.gmra.mxu0 %v9021
        %v9081 = vpop.f32.mrf.mxu0
        %v9082 = vadd.f32 0.0, %v9081
        %v9083 = vpop.f32.mrf.mxu0
        %v9084 = vadd.f32 0.0, %v9083
        %9085 = vmatmul.bf16.gmra.mxu0 %v9024
        %v9086 = vpop.f32.mrf.mxu0
        %v9087 = vadd.f32 0.0, %v9086
        %v9088 = vpop.f32.mrf.mxu0
        %v9089 = vadd.f32 0.0, %v9088
        %9090 = vmatmul.bf16.gmra.mxu0 %v9027
        %v9091 = vpop.f32.mrf.mxu0
        %v9092 = vadd.f32 0.0, %v9091
        %v9093 = vpop.f32.mrf.mxu0
        %v9094 = vadd.f32 0.0, %v9093
        %9095 = vmatmul.bf16.gmra.mxu0 %v9030
        %v9096 = vpop.f32.mrf.mxu0
        %v9097 = vadd.f32 0.0, %v9096
        %v9098 = vpop.f32.mrf.mxu0
        %v9099 = vadd.f32 0.0, %v9098
        %9100 = vmatmul.bf16.gmra.mxu0 %v9033
        %v9101 = vpop.f32.mrf.mxu0
        %v9102 = vadd.f32 0.0, %v9101
        %v9103 = vpop.f32.mrf.mxu0
        %v9104 = vadd.f32 0.0, %v9103
        %9105 = vmatmul.bf16.gmra.mxu0 %v9036
        %v9106 = vpop.f32.mrf.mxu0
        %v9107 = vadd.f32 0.0, %v9106
        %v9108 = vpop.f32.mrf.mxu0
        %v9109 = vadd.f32 0.0, %v9108
        %9110 = vmatmul.bf16.gmra.mxu0 %v9039
        %v9111 = vpop.f32.mrf.mxu0
        %v9112 = vadd.f32 0.0, %v9111
        %v9113 = vpop.f32.mrf.mxu0
        %v9114 = vadd.f32 0.0, %v9113
        %9115 = vmatmul.bf16.gmra.mxu0 %v9042
        %v9116 = vpop.f32.mrf.mxu0
        %v9117 = vadd.f32 0.0, %v9116
        %v9118 = vpop.f32.mrf.mxu0
        %v9119 = vadd.f32 0.0, %v9118
        %9120 = vmatmul.bf16.gmra.mxu0 %v9045
        %v9121 = vpop.f32.mrf.mxu0
        %v9122 = vadd.f32 0.0, %v9121
        %v9123 = vpop.f32.mrf.mxu0
        %v9124 = vadd.f32 0.0, %v9123
        %9125 = vmatmul.bf16.gmra.mxu0 %v9048
        %v9126 = vpop.f32.mrf.mxu0
        %v9127 = vadd.f32 0.0, %v9126
        %v9128 = vpop.f32.mrf.mxu0
        %v9129 = vadd.f32 0.0, %v9128
        %9130 = vmatmul.bf16.gmra.mxu0 %v9051
        %v9131 = vpop.f32.mrf.mxu0
        %v9132 = vadd.f32 0.0, %v9131
        %v9133 = vpop.f32.mrf.mxu0
        %v9134 = vadd.f32 0.0, %v9133
        %9135 = vmatmul.bf16.gmra.mxu0 %v9054
        %v9136 = vpop.f32.mrf.mxu0
        %v9137 = vadd.f32 0.0, %v9136
        %v9138 = vpop.f32.mrf.mxu0
        %v9139 = vadd.f32 0.0, %v9138
        %9140 = vmatmul.bf16.gmra.mxu0 %v9057
        %v9141 = vpop.f32.mrf.mxu0
        %v9142 = vadd.f32 0.0, %v9141
        %v9143 = vpop.f32.mrf.mxu0
        %v9144 = vadd.f32 0.0, %v9143
        %9145 = vmatmul.bf16.gmra.mxu0 %v9060
        %v9146 = vpop.f32.mrf.mxu0
        %v9147 = vadd.f32 0.0, %v9146
        %v9148 = vpop.f32.mrf.mxu0
        %v9149 = vadd.f32 0.0, %v9148
        %9150 = vdwg.mxu0
        %v9151 = vadd.f32 %v8917, %v9072
        %v9152 = vadd.f32 %v8918, %v9074
        %v9153 = vadd.f32 %v8919, %v9077
        %v9154 = vadd.f32 %v8920, %v9079
        %v9155 = vadd.f32 %v8921, %v9082
        %v9156 = vadd.f32 %v8922, %v9084
        %v9157 = vadd.f32 %v8923, %v9087
        %v9158 = vadd.f32 %v8924, %v9089
        %v9159 = vadd.f32 %v8925, %v9092
        %v9160 = vadd.f32 %v8926, %v9094
        %v9161 = vadd.f32 %v8927, %v9097
        %v9162 = vadd.f32 %v8928, %v9099
        %v9163 = vadd.f32 %v8929, %v9102
        %v9164 = vadd.f32 %v8930, %v9104
        %v9165 = vadd.f32 %v8931, %v9107
        %v9166 = vadd.f32 %v8932, %v9109
        %v9167 = vadd.f32 %v8933, %v9112
        %v9168 = vadd.f32 %v8934, %v9114
        %v9169 = vadd.f32 %v8935, %v9117
        %v9170 = vadd.f32 %v8936, %v9119
        %v9171 = vadd.f32 %v8937, %v9122
        %v9172 = vadd.f32 %v8938, %v9124
        %v9173 = vadd.f32 %v8939, %v9127
        %v9174 = vadd.f32 %v8940, %v9129
        %v9175 = vadd.f32 %v8941, %v9132
        %v9176 = vadd.f32 %v8942, %v9134
        %v9177 = vadd.f32 %v8943, %v9137
        %v9178 = vadd.f32 %v8944, %v9139
        %v9179 = vadd.f32 %v8945, %v9142
        %v9180 = vadd.f32 %v8946, %v9144
        %v9181 = vadd.f32 %v8947, %v9147
        %v9182 = vadd.f32 %v8948, %v9149
        %s9183 = scalar_lea.vmem %s4, 2
        %v9184 = vld [vmem:[%s9183] sm:$0x1]
        %v9186 = vperm.slane %v9184, 0
        %v9188 = vadd.f32 %v9151, %v9186
        %v9189 = vadd.f32 %v9152, %v9186
        %v9190 = vadd.f32 %v9153, %v9186
        %v9191 = vadd.f32 %v9154, %v9186
        %v9192 = vadd.f32 %v9155, %v9186
        %v9193 = vadd.f32 %v9156, %v9186
        %v9194 = vadd.f32 %v9157, %v9186
        %v9195 = vadd.f32 %v9158, %v9186
        %v9196 = vadd.f32 %v9159, %v9186
        %v9197 = vadd.f32 %v9160, %v9186
        %v9198 = vadd.f32 %v9161, %v9186
        %v9199 = vadd.f32 %v9162, %v9186
        %v9200 = vadd.f32 %v9163, %v9186
        %v9201 = vadd.f32 %v9164, %v9186
        %v9202 = vadd.f32 %v9165, %v9186
        %v9203 = vadd.f32 %v9166, %v9186
        %v9204 = vadd.f32 %v9167, %v9186
        %v9205 = vadd.f32 %v9168, %v9186
        %v9206 = vadd.f32 %v9169, %v9186
        %v9207 = vadd.f32 %v9170, %v9186
        %v9208 = vadd.f32 %v9171, %v9186
        %v9209 = vadd.f32 %v9172, %v9186
        %v9210 = vadd.f32 %v9173, %v9186
        %v9211 = vadd.f32 %v9174, %v9186
        %v9212 = vadd.f32 %v9175, %v9186
        %v9213 = vadd.f32 %v9176, %v9186
        %v9214 = vadd.f32 %v9177, %v9186
        %v9215 = vadd.f32 %v9178, %v9186
        %v9216 = vadd.f32 %v9179, %v9186
        %v9217 = vadd.f32 %v9180, %v9186
        %v9218 = vadd.f32 %v9181, %v9186
        %v9219 = vadd.f32 %v9182, %v9186
        %v9220 = vmax.f32 %v9188, 0.0
        %v9221 = vmax.f32 %v9189, 0.0
        %v9222 = vmax.f32 %v9190, 0.0
        %v9223 = vmax.f32 %v9191, 0.0
        %v9224 = vmax.f32 %v9192, 0.0
        %v9225 = vmax.f32 %v9193, 0.0
        %v9226 = vmax.f32 %v9194, 0.0
        %v9227 = vmax.f32 %v9195, 0.0
        %v9228 = vmax.f32 %v9196, 0.0
        %v9229 = vmax.f32 %v9197, 0.0
        %v9230 = vmax.f32 %v9198, 0.0
        %v9231 = vmax.f32 %v9199, 0.0
        %v9232 = vmax.f32 %v9200, 0.0
        %v9233 = vmax.f32 %v9201, 0.0
        %v9234 = vmax.f32 %v9202, 0.0
        %v9235 = vmax.f32 %v9203, 0.0
        %v9236 = vmax.f32 %v9204, 0.0
        %v9237 = vmax.f32 %v9205, 0.0
        %v9238 = vmax.f32 %v9206, 0.0
        %v9239 = vmax.f32 %v9207, 0.0
        %v9240 = vmax.f32 %v9208, 0.0
        %v9241 = vmax.f32 %v9209, 0.0
        %v9242 = vmax.f32 %v9210, 0.0
        %v9243 = vmax.f32 %v9211, 0.0
        %v9244 = vmax.f32 %v9212, 0.0
        %v9245 = vmax.f32 %v9213, 0.0
        %v9246 = vmax.f32 %v9214, 0.0
        %v9247 = vmax.f32 %v9215, 0.0
        %v9248 = vmax.f32 %v9216, 0.0
        %v9249 = vmax.f32 %v9217, 0.0
        %v9250 = vmax.f32 %v9218, 0.0
        %v9251 = vmax.f32 %v9219, 0.0
        %v9252 = vld [vmem:[%s315] sm:$0xff]
        %v9253 = vld [vmem:[%s315 + $0x8] sm:$0xff]
        %v9254 = vld [vmem:[%s315 + $0x10] sm:$0xff]
        %v9255 = vld [vmem:[%s315 + $0x18] sm:$0xff]
        %v9256 = vld [vmem:[%s315 + $0x20] sm:$0xff]
        %v9257 = vld [vmem:[%s315 + $0x28] sm:$0xff]
        %v9258 = vld [vmem:[%s315 + $0x30] sm:$0xff]
        %v9259 = vld [vmem:[%s315 + $0x38] sm:$0xff]
        %v9260 = vld [vmem:[%s315 + $0x40] sm:$0xff]
        %v9261 = vld [vmem:[%s315 + $0x48] sm:$0xff]
        %v9262 = vld [vmem:[%s315 + $0x50] sm:$0xff]
        %v9263 = vld [vmem:[%s315 + $0x58] sm:$0xff]
        %v9264 = vld [vmem:[%s315 + $0x60] sm:$0xff]
        %v9265 = vld [vmem:[%s315 + $0x68] sm:$0xff]
        %v9266 = vld [vmem:[%s315 + $0x70] sm:$0xff]
        %v9267 = vld [vmem:[%s315 + $0x78] sm:$0xff]
        %v9268 = vld [vmem:[%s315 + $0x80] sm:$0xff]
        %v9269 = vld [vmem:[%s315 + $0x88] sm:$0xff]
        %v9270 = vld [vmem:[%s315 + $0x90] sm:$0xff]
        %v9271 = vld [vmem:[%s315 + $0x98] sm:$0xff]
        %v9272 = vld [vmem:[%s315 + $0xa0] sm:$0xff]
        %v9273 = vld [vmem:[%s315 + $0xa8] sm:$0xff]
        %v9274 = vld [vmem:[%s315 + $0xb0] sm:$0xff]
        %v9275 = vld [vmem:[%s315 + $0xb8] sm:$0xff]
        %v9276 = vld [vmem:[%s315 + $0xc0] sm:$0xff]
        %v9277 = vld [vmem:[%s315 + $0xc8] sm:$0xff]
        %v9278 = vld [vmem:[%s315 + $0xd0] sm:$0xff]
        %v9279 = vld [vmem:[%s315 + $0xd8] sm:$0xff]
        %v9280 = vld [vmem:[%s315 + $0xe0] sm:$0xff]
        %v9281 = vld [vmem:[%s315 + $0xe8] sm:$0xff]
        %v9282 = vld [vmem:[%s315 + $0xf0] sm:$0xff]
        %v9283 = vld [vmem:[%s315 + $0xf8] sm:$0xff]
        %v9284 = vld [vmem:[%s315 + $0x100] sm:$0xff]
        %v9285 = vld [vmem:[%s315 + $0x108] sm:$0xff]
        %v9286 = vld [vmem:[%s315 + $0x110] sm:$0xff]
        %v9287 = vld [vmem:[%s315 + $0x118] sm:$0xff]
        %v9288 = vld [vmem:[%s315 + $0x120] sm:$0xff]
        %v9289 = vld [vmem:[%s315 + $0x128] sm:$0xff]
        %v9290 = vld [vmem:[%s315 + $0x130] sm:$0xff]
        %v9291 = vld [vmem:[%s315 + $0x138] sm:$0xff]
        %v9292 = vld [vmem:[%s315 + $0x140] sm:$0xff]
        %v9293 = vld [vmem:[%s315 + $0x148] sm:$0xff]
        %v9294 = vld [vmem:[%s315 + $0x150] sm:$0xff]
        %v9295 = vld [vmem:[%s315 + $0x158] sm:$0xff]
        %v9296 = vld [vmem:[%s315 + $0x160] sm:$0xff]
        %v9297 = vld [vmem:[%s315 + $0x168] sm:$0xff]
        %v9298 = vld [vmem:[%s315 + $0x170] sm:$0xff]
        %v9299 = vld [vmem:[%s315 + $0x178] sm:$0xff]
        %v9300 = vld [vmem:[%s315 + $0x180] sm:$0xff]
        %v9301 = vld [vmem:[%s315 + $0x188] sm:$0xff]
        %v9302 = vld [vmem:[%s315 + $0x190] sm:$0xff]
        %v9303 = vld [vmem:[%s315 + $0x198] sm:$0xff]
        %v9304 = vld [vmem:[%s315 + $0x1a0] sm:$0xff]
        %v9305 = vld [vmem:[%s315 + $0x1a8] sm:$0xff]
        %v9306 = vld [vmem:[%s315 + $0x1b0] sm:$0xff]
        %v9307 = vld [vmem:[%s315 + $0x1b8] sm:$0xff]
        %v9308 = vld [vmem:[%s315 + $0x1c0] sm:$0xff]
        %v9309 = vld [vmem:[%s315 + $0x1c8] sm:$0xff]
        %v9310 = vld [vmem:[%s315 + $0x1d0] sm:$0xff]
        %v9311 = vld [vmem:[%s315 + $0x1d8] sm:$0xff]
        %v9312 = vld [vmem:[%s315 + $0x1e0] sm:$0xff]
        %v9313 = vld [vmem:[%s315 + $0x1e8] sm:$0xff]
        %v9314 = vld [vmem:[%s315 + $0x1f0] sm:$0xff]
        %v9315 = vld [vmem:[%s315 + $0x1f8] sm:$0xff]
        %v9316 = vpack.c.bf16 %v9221, %v9220
        %v9317 = vpack.c.bf16 %v9223, %v9222
        %v9318 = vpack.c.bf16 %v9225, %v9224
        %v9319 = vpack.c.bf16 %v9227, %v9226
        %v9320 = vpack.c.bf16 %v9229, %v9228
        %v9321 = vpack.c.bf16 %v9231, %v9230
        %v9322 = vpack.c.bf16 %v9233, %v9232
        %v9323 = vpack.c.bf16 %v9235, %v9234
        %v9324 = vpack.c.bf16 %v9237, %v9236
        %v9325 = vpack.c.bf16 %v9239, %v9238
        %v9326 = vpack.c.bf16 %v9241, %v9240
        %v9327 = vpack.c.bf16 %v9243, %v9242
        %v9328 = vpack.c.bf16 %v9245, %v9244
        %v9329 = vpack.c.bf16 %v9247, %v9246
        %v9330 = vpack.c.bf16 %v9249, %v9248
        %v9331 = vpack.c.bf16 %v9251, %v9250
        %s9332 = scalar_lea.vmem [#allocation6], 64
        %v9333 = vld [vmem:[%s9332] sm:$0xff]
        %v9334 = vld [vmem:[%s9332 + $0x8] sm:$0xff]
        %v9335 = vld [vmem:[%s9332 + $0x10] sm:$0xff]
        %v9336 = vld [vmem:[%s9332 + $0x18] sm:$0xff]
        %v9341 = vunpack.c.l.b16 %v9333
        %v9342 = vunpack.c.h.b16 %v9333
        %v9343 = vunpack.c.l.b16 %v9334
        %v9344 = vunpack.c.h.b16 %v9334
        %v9345 = vunpack.c.l.b16 %v9335
        %v9346 = vunpack.c.h.b16 %v9335
        %v9347 = vunpack.c.l.b16 %v9336
        %v9348 = vunpack.c.h.b16 %v9336
        %v9349 = vpack.c.b16 %v9343, %v9341
        %v9350 = vpack.c.b16 %v9344, %v9342
        %v9351 = vpack.c.b16 %v9347, %v9345
        %v9352 = vpack.c.b16 %v9348, %v9346
        %v9358 = vsel %vm515, %v9316, 0
        %v9361 = vsel %vm515, %v9317, 0
        %v9364 = vsel %vm515, %v9318, 0
        %v9367 = vsel %vm515, %v9319, 0
        %v9370 = vsel %vm515, %v9320, 0
        %v9373 = vsel %vm515, %v9321, 0
        %v9376 = vsel %vm515, %v9322, 0
        %v9379 = vsel %vm515, %v9323, 0
        %v9382 = vsel %vm515, %v9324, 0
        %v9385 = vsel %vm515, %v9325, 0
        %v9388 = vsel %vm515, %v9326, 0
        %v9391 = vsel %vm515, %v9327, 0
        %v9394 = vsel %vm515, %v9328, 0
        %v9397 = vsel %vm515, %v9329, 0
        %v9400 = vsel %vm515, %v9330, 0
        %v9403 = vsel %vm515, %v9331, 0
        %9405 = vmatpush.bf16.msra.mxu0 0
        %9406 = vmatpush.bf16.msra.mxu0 0
        %9407 = vmatpush.bf16.msra.mxu0 0
        %9408 = vmatpush.bf16.msra.mxu0 0
        %9409 = vmatpush.bf16.msra.mxu0 0
        %9410 = vmatpush.bf16.msra.mxu0 0
        %9411 = vmatpush.bf16.msra.mxu0 %v9351
        %9412 = vmatpush.bf16.msra.mxu0 %v9349
        %9413 = vmatmul.bf16.gmra.mxu0 %v9358
        %v9414 = vpop.f32.mrf.mxu0
        %v9415 = vadd.f32 0.0, %v9414
        %v9416 = vpop.f32.mrf.mxu0
        %v9417 = vadd.f32 0.0, %v9416
        %9418 = vmatmul.bf16.gmra.mxu0 %v9361
        %v9419 = vpop.f32.mrf.mxu0
        %v9420 = vadd.f32 0.0, %v9419
        %v9421 = vpop.f32.mrf.mxu0
        %v9422 = vadd.f32 0.0, %v9421
        %9423 = vmatmul.bf16.gmra.mxu0 %v9364
        %v9424 = vpop.f32.mrf.mxu0
        %v9425 = vadd.f32 0.0, %v9424
        %v9426 = vpop.f32.mrf.mxu0
        %v9427 = vadd.f32 0.0, %v9426
        %9428 = vmatmul.bf16.gmra.mxu0 %v9367
        %v9429 = vpop.f32.mrf.mxu0
        %v9430 = vadd.f32 0.0, %v9429
        %v9431 = vpop.f32.mrf.mxu0
        %v9432 = vadd.f32 0.0, %v9431
        %9433 = vmatmul.bf16.gmra.mxu0 %v9370
        %v9434 = vpop.f32.mrf.mxu0
        %v9435 = vadd.f32 0.0, %v9434
        %v9436 = vpop.f32.mrf.mxu0
        %v9437 = vadd.f32 0.0, %v9436
        %9438 = vmatmul.bf16.gmra.mxu0 %v9373
        %v9439 = vpop.f32.mrf.mxu0
        %v9440 = vadd.f32 0.0, %v9439
        %v9441 = vpop.f32.mrf.mxu0
        %v9442 = vadd.f32 0.0, %v9441
        %9443 = vmatmul.bf16.gmra.mxu0 %v9376
        %v9444 = vpop.f32.mrf.mxu0
        %v9445 = vadd.f32 0.0, %v9444
        %v9446 = vpop.f32.mrf.mxu0
        %v9447 = vadd.f32 0.0, %v9446
        %9448 = vmatmul.bf16.gmra.mxu0 %v9379
        %v9449 = vpop.f32.mrf.mxu0
        %v9450 = vadd.f32 0.0, %v9449
        %v9451 = vpop.f32.mrf.mxu0
        %v9452 = vadd.f32 0.0, %v9451
        %9453 = vmatmul.bf16.gmra.mxu0 %v9382
        %v9454 = vpop.f32.mrf.mxu0
        %v9455 = vadd.f32 0.0, %v9454
        %v9456 = vpop.f32.mrf.mxu0
        %v9457 = vadd.f32 0.0, %v9456
        %9458 = vmatmul.bf16.gmra.mxu0 %v9385
        %v9459 = vpop.f32.mrf.mxu0
        %v9460 = vadd.f32 0.0, %v9459
        %v9461 = vpop.f32.mrf.mxu0
        %v9462 = vadd.f32 0.0, %v9461
        %9463 = vmatmul.bf16.gmra.mxu0 %v9388
        %v9464 = vpop.f32.mrf.mxu0
        %v9465 = vadd.f32 0.0, %v9464
        %v9466 = vpop.f32.mrf.mxu0
        %v9467 = vadd.f32 0.0, %v9466
        %9468 = vmatmul.bf16.gmra.mxu0 %v9391
        %v9469 = vpop.f32.mrf.mxu0
        %v9470 = vadd.f32 0.0, %v9469
        %v9471 = vpop.f32.mrf.mxu0
        %v9472 = vadd.f32 0.0, %v9471
        %9473 = vmatmul.bf16.gmra.mxu0 %v9394
        %v9474 = vpop.f32.mrf.mxu0
        %v9475 = vadd.f32 0.0, %v9474
        %v9476 = vpop.f32.mrf.mxu0
        %v9477 = vadd.f32 0.0, %v9476
        %9478 = vmatmul.bf16.gmra.mxu0 %v9397
        %v9479 = vpop.f32.mrf.mxu0
        %v9480 = vadd.f32 0.0, %v9479
        %v9481 = vpop.f32.mrf.mxu0
        %v9482 = vadd.f32 0.0, %v9481
        %9483 = vmatmul.bf16.gmra.mxu0 %v9400
        %v9484 = vpop.f32.mrf.mxu0
        %v9485 = vadd.f32 0.0, %v9484
        %v9486 = vpop.f32.mrf.mxu0
        %v9487 = vadd.f32 0.0, %v9486
        %9488 = vmatmul.bf16.gmra.mxu0 %v9403
        %v9489 = vpop.f32.mrf.mxu0
        %v9490 = vadd.f32 0.0, %v9489
        %v9491 = vpop.f32.mrf.mxu0
        %v9492 = vadd.f32 0.0, %v9491
        %9493 = vdwg.mxu0
        %9494 = vmatpush.bf16.msra.mxu0 0
        %9495 = vmatpush.bf16.msra.mxu0 0
        %9496 = vmatpush.bf16.msra.mxu0 0
        %9497 = vmatpush.bf16.msra.mxu0 0
        %9498 = vmatpush.bf16.msra.mxu0 0
        %9499 = vmatpush.bf16.msra.mxu0 0
        %9500 = vmatpush.bf16.msra.mxu0 %v9352
        %9501 = vmatpush.bf16.msra.mxu0 %v9350
        %9502 = vmatmul.bf16.gmra.mxu0 %v9358
        %v9503 = vpop.f32.mrf.mxu0
        %v9504 = vadd.f32 0.0, %v9503
        %v9505 = vpop.f32.mrf.mxu0
        %v9506 = vadd.f32 0.0, %v9505
        %9507 = vmatmul.bf16.gmra.mxu0 %v9361
        %v9508 = vpop.f32.mrf.mxu0
        %v9509 = vadd.f32 0.0, %v9508
        %v9510 = vpop.f32.mrf.mxu0
        %v9511 = vadd.f32 0.0, %v9510
        %9512 = vmatmul.bf16.gmra.mxu0 %v9364
        %v9513 = vpop.f32.mrf.mxu0
        %v9514 = vadd.f32 0.0, %v9513
        %v9515 = vpop.f32.mrf.mxu0
        %v9516 = vadd.f32 0.0, %v9515
        %9517 = vmatmul.bf16.gmra.mxu0 %v9367
        %v9518 = vpop.f32.mrf.mxu0
        %v9519 = vadd.f32 0.0, %v9518
        %v9520 = vpop.f32.mrf.mxu0
        %v9521 = vadd.f32 0.0, %v9520
        %9522 = vmatmul.bf16.gmra.mxu0 %v9370
        %v9523 = vpop.f32.mrf.mxu0
        %v9524 = vadd.f32 0.0, %v9523
        %v9525 = vpop.f32.mrf.mxu0
        %v9526 = vadd.f32 0.0, %v9525
        %9527 = vmatmul.bf16.gmra.mxu0 %v9373
        %v9528 = vpop.f32.mrf.mxu0
        %v9529 = vadd.f32 0.0, %v9528
        %v9530 = vpop.f32.mrf.mxu0
        %v9531 = vadd.f32 0.0, %v9530
        %9532 = vmatmul.bf16.gmra.mxu0 %v9376
        %v9533 = vpop.f32.mrf.mxu0
        %v9534 = vadd.f32 0.0, %v9533
        %v9535 = vpop.f32.mrf.mxu0
        %v9536 = vadd.f32 0.0, %v9535
        %9537 = vmatmul.bf16.gmra.mxu0 %v9379
        %v9538 = vpop.f32.mrf.mxu0
        %v9539 = vadd.f32 0.0, %v9538
        %v9540 = vpop.f32.mrf.mxu0
        %v9541 = vadd.f32 0.0, %v9540
        %9542 = vmatmul.bf16.gmra.mxu0 %v9382
        %v9543 = vpop.f32.mrf.mxu0
        %v9544 = vadd.f32 0.0, %v9543
        %v9545 = vpop.f32.mrf.mxu0
        %v9546 = vadd.f32 0.0, %v9545
        %9547 = vmatmul.bf16.gmra.mxu0 %v9385
        %v9548 = vpop.f32.mrf.mxu0
        %v9549 = vadd.f32 0.0, %v9548
        %v9550 = vpop.f32.mrf.mxu0
        %v9551 = vadd.f32 0.0, %v9550
        %9552 = vmatmul.bf16.gmra.mxu0 %v9388
        %v9553 = vpop.f32.mrf.mxu0
        %v9554 = vadd.f32 0.0, %v9553
        %v9555 = vpop.f32.mrf.mxu0
        %v9556 = vadd.f32 0.0, %v9555
        %9557 = vmatmul.bf16.gmra.mxu0 %v9391
        %v9558 = vpop.f32.mrf.mxu0
        %v9559 = vadd.f32 0.0, %v9558
        %v9560 = vpop.f32.mrf.mxu0
        %v9561 = vadd.f32 0.0, %v9560
        %9562 = vmatmul.bf16.gmra.mxu0 %v9394
        %v9563 = vpop.f32.mrf.mxu0
        %v9564 = vadd.f32 0.0, %v9563
        %v9565 = vpop.f32.mrf.mxu0
        %v9566 = vadd.f32 0.0, %v9565
        %9567 = vmatmul.bf16.gmra.mxu0 %v9397
        %v9568 = vpop.f32.mrf.mxu0
        %v9569 = vadd.f32 0.0, %v9568
        %v9570 = vpop.f32.mrf.mxu0
        %v9571 = vadd.f32 0.0, %v9570
        %9572 = vmatmul.bf16.gmra.mxu0 %v9400
        %v9573 = vpop.f32.mrf.mxu0
        %v9574 = vadd.f32 0.0, %v9573
        %v9575 = vpop.f32.mrf.mxu0
        %v9576 = vadd.f32 0.0, %v9575
        %9577 = vmatmul.bf16.gmra.mxu0 %v9403
        %v9578 = vpop.f32.mrf.mxu0
        %v9579 = vadd.f32 0.0, %v9578
        %v9580 = vpop.f32.mrf.mxu0
        %v9581 = vadd.f32 0.0, %v9580
        %9582 = vdwg.mxu0
        %v9583 = vadd.f32 %v9252, %v9415
        %v9584 = vadd.f32 %v9253, %v9504
        %v9585 = vadd.f32 %v9254, %v9417
        %v9586 = vadd.f32 %v9255, %v9506
        %v9587 = vadd.f32 %v9256, %v9420
        %v9588 = vadd.f32 %v9257, %v9509
        %v9589 = vadd.f32 %v9258, %v9422
        %v9590 = vadd.f32 %v9259, %v9511
        %v9591 = vadd.f32 %v9260, %v9425
        %v9592 = vadd.f32 %v9261, %v9514
        %v9593 = vadd.f32 %v9262, %v9427
        %v9594 = vadd.f32 %v9263, %v9516
        %v9595 = vadd.f32 %v9264, %v9430
        %v9596 = vadd.f32 %v9265, %v9519
        %v9597 = vadd.f32 %v9266, %v9432
        %v9598 = vadd.f32 %v9267, %v9521
        %v9599 = vadd.f32 %v9268, %v9435
        %v9600 = vadd.f32 %v9269, %v9524
        %v9601 = vadd.f32 %v9270, %v9437
        %v9602 = vadd.f32 %v9271, %v9526
        %v9603 = vadd.f32 %v9272, %v9440
        %v9604 = vadd.f32 %v9273, %v9529
        %v9605 = vadd.f32 %v9274, %v9442
        %v9606 = vadd.f32 %v9275, %v9531
        %v9607 = vadd.f32 %v9276, %v9445
        %v9608 = vadd.f32 %v9277, %v9534
        %v9609 = vadd.f32 %v9278, %v9447
        %v9610 = vadd.f32 %v9279, %v9536
        %v9611 = vadd.f32 %v9280, %v9450
        %v9612 = vadd.f32 %v9281, %v9539
        %v9613 = vadd.f32 %v9282, %v9452
        %v9614 = vadd.f32 %v9283, %v9541
        %v9615 = vadd.f32 %v9284, %v9455
        %v9616 = vadd.f32 %v9285, %v9544
        %v9617 = vadd.f32 %v9286, %v9457
        %v9618 = vadd.f32 %v9287, %v9546
        %v9619 = vadd.f32 %v9288, %v9460
        %v9620 = vadd.f32 %v9289, %v9549
        %v9621 = vadd.f32 %v9290, %v9462
        %v9622 = vadd.f32 %v9291, %v9551
        %v9623 = vadd.f32 %v9292, %v9465
        %v9624 = vadd.f32 %v9293, %v9554
        %v9625 = vadd.f32 %v9294, %v9467
        %v9626 = vadd.f32 %v9295, %v9556
        %v9627 = vadd.f32 %v9296, %v9470
        %v9628 = vadd.f32 %v9297, %v9559
        %v9629 = vadd.f32 %v9298, %v9472
        %v9630 = vadd.f32 %v9299, %v9561
        %v9631 = vadd.f32 %v9300, %v9475
        %v9632 = vadd.f32 %v9301, %v9564
        %v9633 = vadd.f32 %v9302, %v9477
        %v9634 = vadd.f32 %v9303, %v9566
        %v9635 = vadd.f32 %v9304, %v9480
        %v9636 = vadd.f32 %v9305, %v9569
        %v9637 = vadd.f32 %v9306, %v9482
        %v9638 = vadd.f32 %v9307, %v9571
        %v9639 = vadd.f32 %v9308, %v9485
        %v9640 = vadd.f32 %v9309, %v9574
        %v9641 = vadd.f32 %v9310, %v9487
        %v9642 = vadd.f32 %v9311, %v9576
        %v9643 = vadd.f32 %v9312, %v9490
        %v9644 = vadd.f32 %v9313, %v9579
        %v9645 = vadd.f32 %v9314, %v9492
        %v9646 = vadd.f32 %v9315, %v9581
        %9647 = vst [vmem:[%s315] sm:$0xff] %v9583
        %9648 = vst [vmem:[%s315 + $0x8] sm:$0xff] %v9584
        %9649 = vst [vmem:[%s315 + $0x10] sm:$0xff] %v9585
        %9650 = vst [vmem:[%s315 + $0x18] sm:$0xff] %v9586
        %9651 = vst [vmem:[%s315 + $0x20] sm:$0xff] %v9587
        %9652 = vst [vmem:[%s315 + $0x28] sm:$0xff] %v9588
        %9653 = vst [vmem:[%s315 + $0x30] sm:$0xff] %v9589
        %9654 = vst [vmem:[%s315 + $0x38] sm:$0xff] %v9590
        %9655 = vst [vmem:[%s315 + $0x40] sm:$0xff] %v9591
        %9656 = vst [vmem:[%s315 + $0x48] sm:$0xff] %v9592
        %9657 = vst [vmem:[%s315 + $0x50] sm:$0xff] %v9593
        %9658 = vst [vmem:[%s315 + $0x58] sm:$0xff] %v9594
        %9659 = vst [vmem:[%s315 + $0x60] sm:$0xff] %v9595
        %9660 = vst [vmem:[%s315 + $0x68] sm:$0xff] %v9596
        %9661 = vst [vmem:[%s315 + $0x70] sm:$0xff] %v9597
        %9662 = vst [vmem:[%s315 + $0x78] sm:$0xff] %v9598
        %9663 = vst [vmem:[%s315 + $0x80] sm:$0xff] %v9599
        %9664 = vst [vmem:[%s315 + $0x88] sm:$0xff] %v9600
        %9665 = vst [vmem:[%s315 + $0x90] sm:$0xff] %v9601
        %9666 = vst [vmem:[%s315 + $0x98] sm:$0xff] %v9602
        %9667 = vst [vmem:[%s315 + $0xa0] sm:$0xff] %v9603
        %9668 = vst [vmem:[%s315 + $0xa8] sm:$0xff] %v9604
        %9669 = vst [vmem:[%s315 + $0xb0] sm:$0xff] %v9605
        %9670 = vst [vmem:[%s315 + $0xb8] sm:$0xff] %v9606
        %9671 = vst [vmem:[%s315 + $0xc0] sm:$0xff] %v9607
        %9672 = vst [vmem:[%s315 + $0xc8] sm:$0xff] %v9608
        %9673 = vst [vmem:[%s315 + $0xd0] sm:$0xff] %v9609
        %9674 = vst [vmem:[%s315 + $0xd8] sm:$0xff] %v9610
        %9675 = vst [vmem:[%s315 + $0xe0] sm:$0xff] %v9611
        %9676 = vst [vmem:[%s315 + $0xe8] sm:$0xff] %v9612
        %9677 = vst [vmem:[%s315 + $0xf0] sm:$0xff] %v9613
        %9678 = vst [vmem:[%s315 + $0xf8] sm:$0xff] %v9614
        %9679 = vst [vmem:[%s315 + $0x100] sm:$0xff] %v9615
        %9680 = vst [vmem:[%s315 + $0x108] sm:$0xff] %v9616
        %9681 = vst [vmem:[%s315 + $0x110] sm:$0xff] %v9617
        %9682 = vst [vmem:[%s315 + $0x118] sm:$0xff] %v9618
        %9683 = vst [vmem:[%s315 + $0x120] sm:$0xff] %v9619
        %9684 = vst [vmem:[%s315 + $0x128] sm:$0xff] %v9620
        %9685 = vst [vmem:[%s315 + $0x130] sm:$0xff] %v9621
        %9686 = vst [vmem:[%s315 + $0x138] sm:$0xff] %v9622
        %9687 = vst [vmem:[%s315 + $0x140] sm:$0xff] %v9623
        %9688 = vst [vmem:[%s315 + $0x148] sm:$0xff] %v9624
        %9689 = vst [vmem:[%s315 + $0x150] sm:$0xff] %v9625
        %9690 = vst [vmem:[%s315 + $0x158] sm:$0xff] %v9626
        %9691 = vst [vmem:[%s315 + $0x160] sm:$0xff] %v9627
        %9692 = vst [vmem:[%s315 + $0x168] sm:$0xff] %v9628
        %9693 = vst [vmem:[%s315 + $0x170] sm:$0xff] %v9629
        %9694 = vst [vmem:[%s315 + $0x178] sm:$0xff] %v9630
        %9695 = vst [vmem:[%s315 + $0x180] sm:$0xff] %v9631
        %9696 = vst [vmem:[%s315 + $0x188] sm:$0xff] %v9632
        %9697 = vst [vmem:[%s315 + $0x190] sm:$0xff] %v9633
        %9698 = vst [vmem:[%s315 + $0x198] sm:$0xff] %v9634
        %9699 = vst [vmem:[%s315 + $0x1a0] sm:$0xff] %v9635
        %9700 = vst [vmem:[%s315 + $0x1a8] sm:$0xff] %v9636
        %9701 = vst [vmem:[%s315 + $0x1b0] sm:$0xff] %v9637
        %9702 = vst [vmem:[%s315 + $0x1b8] sm:$0xff] %v9638
        %9703 = vst [vmem:[%s315 + $0x1c0] sm:$0xff] %v9639
        %9704 = vst [vmem:[%s315 + $0x1c8] sm:$0xff] %v9640
        %9705 = vst [vmem:[%s315 + $0x1d0] sm:$0xff] %v9641
        %9706 = vst [vmem:[%s315 + $0x1d8] sm:$0xff] %v9642
        %9707 = vst [vmem:[%s315 + $0x1e0] sm:$0xff] %v9643
        %9708 = vst [vmem:[%s315 + $0x1e8] sm:$0xff] %v9644
        %9709 = vst [vmem:[%s315 + $0x1f0] sm:$0xff] %v9645
        %9710 = vst [vmem:[%s315 + $0x1f8] sm:$0xff] %v9646
        %v9711 = vld [vmem:[%s315] sm:$0xff]
        %v9712 = vld [vmem:[%s315 + $0x8] sm:$0xff]
        %v9713 = vld [vmem:[%s315 + $0x10] sm:$0xff]
        %v9714 = vld [vmem:[%s315 + $0x18] sm:$0xff]
        %v9715 = vld [vmem:[%s315 + $0x20] sm:$0xff]
        %v9716 = vld [vmem:[%s315 + $0x28] sm:$0xff]
        %v9717 = vld [vmem:[%s315 + $0x30] sm:$0xff]
        %v9718 = vld [vmem:[%s315 + $0x38] sm:$0xff]
        %v9719 = vld [vmem:[%s315 + $0x40] sm:$0xff]
        %v9720 = vld [vmem:[%s315 + $0x48] sm:$0xff]
        %v9721 = vld [vmem:[%s315 + $0x50] sm:$0xff]
        %v9722 = vld [vmem:[%s315 + $0x58] sm:$0xff]
        %v9723 = vld [vmem:[%s315 + $0x60] sm:$0xff]
        %v9724 = vld [vmem:[%s315 + $0x68] sm:$0xff]
        %v9725 = vld [vmem:[%s315 + $0x70] sm:$0xff]
        %v9726 = vld [vmem:[%s315 + $0x78] sm:$0xff]
        %v9727 = vld [vmem:[%s315 + $0x80] sm:$0xff]
        %v9728 = vld [vmem:[%s315 + $0x88] sm:$0xff]
        %v9729 = vld [vmem:[%s315 + $0x90] sm:$0xff]
        %v9730 = vld [vmem:[%s315 + $0x98] sm:$0xff]
        %v9731 = vld [vmem:[%s315 + $0xa0] sm:$0xff]
        %v9732 = vld [vmem:[%s315 + $0xa8] sm:$0xff]
        %v9733 = vld [vmem:[%s315 + $0xb0] sm:$0xff]
        %v9734 = vld [vmem:[%s315 + $0xb8] sm:$0xff]
        %v9735 = vld [vmem:[%s315 + $0xc0] sm:$0xff]
        %v9736 = vld [vmem:[%s315 + $0xc8] sm:$0xff]
        %v9737 = vld [vmem:[%s315 + $0xd0] sm:$0xff]
        %v9738 = vld [vmem:[%s315 + $0xd8] sm:$0xff]
        %v9739 = vld [vmem:[%s315 + $0xe0] sm:$0xff]
        %v9740 = vld [vmem:[%s315 + $0xe8] sm:$0xff]
        %v9741 = vld [vmem:[%s315 + $0xf0] sm:$0xff]
        %v9742 = vld [vmem:[%s315 + $0xf8] sm:$0xff]
        %v9743 = vld [vmem:[%s315 + $0x100] sm:$0xff]
        %v9744 = vld [vmem:[%s315 + $0x108] sm:$0xff]
        %v9745 = vld [vmem:[%s315 + $0x110] sm:$0xff]
        %v9746 = vld [vmem:[%s315 + $0x118] sm:$0xff]
        %v9747 = vld [vmem:[%s315 + $0x120] sm:$0xff]
        %v9748 = vld [vmem:[%s315 + $0x128] sm:$0xff]
        %v9749 = vld [vmem:[%s315 + $0x130] sm:$0xff]
        %v9750 = vld [vmem:[%s315 + $0x138] sm:$0xff]
        %v9751 = vld [vmem:[%s315 + $0x140] sm:$0xff]
        %v9752 = vld [vmem:[%s315 + $0x148] sm:$0xff]
        %v9753 = vld [vmem:[%s315 + $0x150] sm:$0xff]
        %v9754 = vld [vmem:[%s315 + $0x158] sm:$0xff]
        %v9755 = vld [vmem:[%s315 + $0x160] sm:$0xff]
        %v9756 = vld [vmem:[%s315 + $0x168] sm:$0xff]
        %v9757 = vld [vmem:[%s315 + $0x170] sm:$0xff]
        %v9758 = vld [vmem:[%s315 + $0x178] sm:$0xff]
        %v9759 = vld [vmem:[%s315 + $0x180] sm:$0xff]
        %v9760 = vld [vmem:[%s315 + $0x188] sm:$0xff]
        %v9761 = vld [vmem:[%s315 + $0x190] sm:$0xff]
        %v9762 = vld [vmem:[%s315 + $0x198] sm:$0xff]
        %v9763 = vld [vmem:[%s315 + $0x1a0] sm:$0xff]
        %v9764 = vld [vmem:[%s315 + $0x1a8] sm:$0xff]
        %v9765 = vld [vmem:[%s315 + $0x1b0] sm:$0xff]
        %v9766 = vld [vmem:[%s315 + $0x1b8] sm:$0xff]
        %v9767 = vld [vmem:[%s315 + $0x1c0] sm:$0xff]
        %v9768 = vld [vmem:[%s315 + $0x1c8] sm:$0xff]
        %v9769 = vld [vmem:[%s315 + $0x1d0] sm:$0xff]
        %v9770 = vld [vmem:[%s315 + $0x1d8] sm:$0xff]
        %v9771 = vld [vmem:[%s315 + $0x1e0] sm:$0xff]
        %v9772 = vld [vmem:[%s315 + $0x1e8] sm:$0xff]
        %v9773 = vld [vmem:[%s315 + $0x1f0] sm:$0xff]
        %v9774 = vld [vmem:[%s315 + $0x1f8] sm:$0xff]
        %v9775 = vmax.f32 %v9711, 0.0
        %v9776 = vmax.f32 %v9712, 0.0
        %v9777 = vmax.f32 %v9713, 0.0
        %v9778 = vmax.f32 %v9714, 0.0
        %v9779 = vmax.f32 %v9715, 0.0
        %v9780 = vmax.f32 %v9716, 0.0
        %v9781 = vmax.f32 %v9717, 0.0
        %v9782 = vmax.f32 %v9718, 0.0
        %v9783 = vmax.f32 %v9719, 0.0
        %v9784 = vmax.f32 %v9720, 0.0
        %v9785 = vmax.f32 %v9721, 0.0
        %v9786 = vmax.f32 %v9722, 0.0
        %v9787 = vmax.f32 %v9723, 0.0
        %v9788 = vmax.f32 %v9724, 0.0
        %v9789 = vmax.f32 %v9725, 0.0
        %v9790 = vmax.f32 %v9726, 0.0
        %v9791 = vmax.f32 %v9727, 0.0
        %v9792 = vmax.f32 %v9728, 0.0
        %v9793 = vmax.f32 %v9729, 0.0
        %v9794 = vmax.f32 %v9730, 0.0
        %v9795 = vmax.f32 %v9731, 0.0
        %v9796 = vmax.f32 %v9732, 0.0
        %v9797 = vmax.f32 %v9733, 0.0
        %v9798 = vmax.f32 %v9734, 0.0
        %v9799 = vmax.f32 %v9735, 0.0
        %v9800 = vmax.f32 %v9736, 0.0
        %v9801 = vmax.f32 %v9737, 0.0
        %v9802 = vmax.f32 %v9738, 0.0
        %v9803 = vmax.f32 %v9739, 0.0
        %v9804 = vmax.f32 %v9740, 0.0
        %v9805 = vmax.f32 %v9741, 0.0
        %v9806 = vmax.f32 %v9742, 0.0
        %v9807 = vmax.f32 %v9743, 0.0
        %v9808 = vmax.f32 %v9744, 0.0
        %v9809 = vmax.f32 %v9745, 0.0
        %v9810 = vmax.f32 %v9746, 0.0
        %v9811 = vmax.f32 %v9747, 0.0
        %v9812 = vmax.f32 %v9748, 0.0
        %v9813 = vmax.f32 %v9749, 0.0
        %v9814 = vmax.f32 %v9750, 0.0
        %v9815 = vmax.f32 %v9751, 0.0
        %v9816 = vmax.f32 %v9752, 0.0
        %v9817 = vmax.f32 %v9753, 0.0
        %v9818 = vmax.f32 %v9754, 0.0
        %v9819 = vmax.f32 %v9755, 0.0
        %v9820 = vmax.f32 %v9756, 0.0
        %v9821 = vmax.f32 %v9757, 0.0
        %v9822 = vmax.f32 %v9758, 0.0
        %v9823 = vmax.f32 %v9759, 0.0
        %v9824 = vmax.f32 %v9760, 0.0
        %v9825 = vmax.f32 %v9761, 0.0
        %v9826 = vmax.f32 %v9762, 0.0
        %v9827 = vmax.f32 %v9763, 0.0
        %v9828 = vmax.f32 %v9764, 0.0
        %v9829 = vmax.f32 %v9765, 0.0
        %v9830 = vmax.f32 %v9766, 0.0
        %v9831 = vmax.f32 %v9767, 0.0
        %v9832 = vmax.f32 %v9768, 0.0
        %v9833 = vmax.f32 %v9769, 0.0
        %v9834 = vmax.f32 %v9770, 0.0
        %v9835 = vmax.f32 %v9771, 0.0
        %v9836 = vmax.f32 %v9772, 0.0
        %v9837 = vmax.f32 %v9773, 0.0
        %v9838 = vmax.f32 %v9774, 0.0
        %9839 = vst [vmem:[%s315] sm:$0xff] %v9775
        %9840 = vst [vmem:[%s315 + $0x8] sm:$0xff] %v9776
        %9841 = vst [vmem:[%s315 + $0x10] sm:$0xff] %v9777
        %9842 = vst [vmem:[%s315 + $0x18] sm:$0xff] %v9778
        %9843 = vst [vmem:[%s315 + $0x20] sm:$0xff] %v9779
        %9844 = vst [vmem:[%s315 + $0x28] sm:$0xff] %v9780
        %9845 = vst [vmem:[%s315 + $0x30] sm:$0xff] %v9781
        %9846 = vst [vmem:[%s315 + $0x38] sm:$0xff] %v9782
        %9847 = vst [vmem:[%s315 + $0x40] sm:$0xff] %v9783
        %9848 = vst [vmem:[%s315 + $0x48] sm:$0xff] %v9784
        %9849 = vst [vmem:[%s315 + $0x50] sm:$0xff] %v9785
        %9850 = vst [vmem:[%s315 + $0x58] sm:$0xff] %v9786
        %9851 = vst [vmem:[%s315 + $0x60] sm:$0xff] %v9787
        %9852 = vst [vmem:[%s315 + $0x68] sm:$0xff] %v9788
        %9853 = vst [vmem:[%s315 + $0x70] sm:$0xff] %v9789
        %9854 = vst [vmem:[%s315 + $0x78] sm:$0xff] %v9790
        %9855 = vst [vmem:[%s315 + $0x80] sm:$0xff] %v9791
        %9856 = vst [vmem:[%s315 + $0x88] sm:$0xff] %v9792
        %9857 = vst [vmem:[%s315 + $0x90] sm:$0xff] %v9793
        %9858 = vst [vmem:[%s315 + $0x98] sm:$0xff] %v9794
        %9859 = vst [vmem:[%s315 + $0xa0] sm:$0xff] %v9795
        %9860 = vst [vmem:[%s315 + $0xa8] sm:$0xff] %v9796
        %9861 = vst [vmem:[%s315 + $0xb0] sm:$0xff] %v9797
        %9862 = vst [vmem:[%s315 + $0xb8] sm:$0xff] %v9798
        %9863 = vst [vmem:[%s315 + $0xc0] sm:$0xff] %v9799
        %9864 = vst [vmem:[%s315 + $0xc8] sm:$0xff] %v9800
        %9865 = vst [vmem:[%s315 + $0xd0] sm:$0xff] %v9801
        %9866 = vst [vmem:[%s315 + $0xd8] sm:$0xff] %v9802
        %9867 = vst [vmem:[%s315 + $0xe0] sm:$0xff] %v9803
        %9868 = vst [vmem:[%s315 + $0xe8] sm:$0xff] %v9804
        %9869 = vst [vmem:[%s315 + $0xf0] sm:$0xff] %v9805
        %9870 = vst [vmem:[%s315 + $0xf8] sm:$0xff] %v9806
        %9871 = vst [vmem:[%s315 + $0x100] sm:$0xff] %v9807
        %9872 = vst [vmem:[%s315 + $0x108] sm:$0xff] %v9808
        %9873 = vst [vmem:[%s315 + $0x110] sm:$0xff] %v9809
        %9874 = vst [vmem:[%s315 + $0x118] sm:$0xff] %v9810
        %9875 = vst [vmem:[%s315 + $0x120] sm:$0xff] %v9811
        %9876 = vst [vmem:[%s315 + $0x128] sm:$0xff] %v9812
        %9877 = vst [vmem:[%s315 + $0x130] sm:$0xff] %v9813
        %9878 = vst [vmem:[%s315 + $0x138] sm:$0xff] %v9814
        %9879 = vst [vmem:[%s315 + $0x140] sm:$0xff] %v9815
        %9880 = vst [vmem:[%s315 + $0x148] sm:$0xff] %v9816
        %9881 = vst [vmem:[%s315 + $0x150] sm:$0xff] %v9817
        %9882 = vst [vmem:[%s315 + $0x158] sm:$0xff] %v9818
        %9883 = vst [vmem:[%s315 + $0x160] sm:$0xff] %v9819
        %9884 = vst [vmem:[%s315 + $0x168] sm:$0xff] %v9820
        %9885 = vst [vmem:[%s315 + $0x170] sm:$0xff] %v9821
        %9886 = vst [vmem:[%s315 + $0x178] sm:$0xff] %v9822
        %9887 = vst [vmem:[%s315 + $0x180] sm:$0xff] %v9823
        %9888 = vst [vmem:[%s315 + $0x188] sm:$0xff] %v9824
        %9889 = vst [vmem:[%s315 + $0x190] sm:$0xff] %v9825
        %9890 = vst [vmem:[%s315 + $0x198] sm:$0xff] %v9826
        %9891 = vst [vmem:[%s315 + $0x1a0] sm:$0xff] %v9827
        %9892 = vst [vmem:[%s315 + $0x1a8] sm:$0xff] %v9828
        %9893 = vst [vmem:[%s315 + $0x1b0] sm:$0xff] %v9829
        %9894 = vst [vmem:[%s315 + $0x1b8] sm:$0xff] %v9830
        %9895 = vst [vmem:[%s315 + $0x1c0] sm:$0xff] %v9831
        %9896 = vst [vmem:[%s315 + $0x1c8] sm:$0xff] %v9832
        %9897 = vst [vmem:[%s315 + $0x1d0] sm:$0xff] %v9833
        %9898 = vst [vmem:[%s315 + $0x1d8] sm:$0xff] %v9834
        %9899 = vst [vmem:[%s315 + $0x1e0] sm:$0xff] %v9835
        %9900 = vst [vmem:[%s315 + $0x1e8] sm:$0xff] %v9836
        %9901 = vst [vmem:[%s315 + $0x1f0] sm:$0xff] %v9837
        %9902 = vst [vmem:[%s315 + $0x1f8] sm:$0xff] %v9838
        %s9903 = sand.u32 %s185, 1
        %s9904 = scalar_lea.sflag [#allocation5], %s9903
        %s9905 = sand.u32 %s185, 1
        %s9906 = smul.addr %s9905, 512
        %s9907 = scalar_lea.vmem [#allocation8], %s9906
        // Predicated region
        $region57: #{block35_forward.1} parent=47 // pred_check
          %p9908 = pneg %p195
        $region58: #{block35_forward.1} parent=47 // pred_check_branch
          %9910 = sbr.rel (%p9908) target = $region60
        $region59: #{block35_forward.1} parent=47 // pred_region
          %9912 = vsyncadd %s9904, 0
          %s9913 = smul.addr %s25, 64
          %s9914 = smul.addr %s9913, 8
          %s9915 = scalar_lea.hbm %s7, %s9914
          %s9916 = sshll.u32 %s9907, 4
          %s9917 = int_to_ptr.vmem [resolvable:$true] %s9916
          %s9918 = sshll.u32 %s9915, 4
          %s9919 = int_to_ptr.hbm [resolvable:$true] %s9918
          %9924 = dma.vmem_to_hbm [thread:$0]  %s9917, 8192, %s9919, %s9904, 256, 256, 16
        $region60: #{block35_forward.1} parent=47 // pred_fallthru
          _
      $region48: #{block35_forward.1} parent=5 // pred_fallthru
        _
      %p9925 = scmp.le.s32.totalorder 2, %s20
      // Predicated region
      $region61: #{block35_forward.1} parent=5 // pred_check
        %p9926 = pneg %p9925
      $region62: #{block35_forward.1} parent=5 // pred_check_branch
        %9928 = sbr.rel (%p9926) target = $region64
      $region63: #{block35_forward.1} parent=5 // pred_region
        %s9929 = ssub.s32 %s20, 2
        // Predicated region
        $region65: #{block35_forward.1} parent=63 // pred_check
          %p9930 = pneg %p201
        $region66: #{block35_forward.1} parent=63 // pred_check_branch
          %9932 = sbr.rel (%p9930) target = $region68
        $region67: #{block35_forward.1} parent=63 // pred_region
          %s9933 = sand.u32 %s186, 1
          %s9934 = scalar_lea.sflag [#allocation5], %s9933
          %s9935 = sand.u32 %s186, 1
          %s9936 = smul.addr %s9935, 512
          %s9937 = scalar_lea.vmem [#allocation8], %s9936
          %9939 = dma.done %s9934, 8192
        $region68: #{block35_forward.1} parent=63 // pred_fallthru
          _
      $region64: #{block35_forward.1} parent=5 // pred_fallthru
        _
    $region6: #{block35_forward.1} parent=1 // loop_footer
      %s24 = sadd.s32 1, %s20
    $region7: #{block35_forward.1} parent=1 // loop_footer_branch
      %19 = sbr.rel target = $region3
    $region8: #{block35_forward.1} parent=1 // loop_exit
      _
    %9940 = vsyncpa [#allocation4], 1
    %s9941 = scalar_lea.sflag [#allocation4], 1
    %9942 = vsyncpa %s9941, 1
    %9943 = vsyncpa [#allocation7], 1
    %9944 = vsyncpa [#allocation5], 1
    %s9945 = scalar_lea.sflag [#allocation5], 1
    %9946 = vsyncpa %s9945, 1

</llo_original>
